<compile_context>
chip_gen: v5e
topology: v5e:2x2
jax: 0.10.0
libtpu: 0.0.40
codegen_flags: <defaults>
</compile_context>

<pallas_src>
import functools

import jax
import jax.numpy as jnp
from jax import lax
from jax.experimental import pallas as pl
from jax.experimental.pallas import tpu as pltpu

EPS = 1e-5  # nn.InstanceNorm3d default eps (affine=False, no running stats)


def _round_up(x, m):
    return (x + m - 1) // m * m


def _same_conv_kernel(x_ref, w_ref, mask_ref, o_ref, y_ref, sum_ref, ssq_ref,
                      *, tap_offsets, s_tile, wlen, inv_count):
    # x_ref:    (C_in, L)           flat zero-padded input, resident per batch
    # w_ref:    (27, C_out_p, C_in) per-tap weights, resident
    # mask_ref: (1, S_TILE)         1.0 on valid (interior) positions
    # o_ref:    (C_out_p, S_TILE)   output tile (lane-dense)
    # y_ref:    (C_out_p, L_out)    VMEM scratch: conv output for this batch
    # sum_ref/ssq_ref: (C_out_p, 1) streaming masked sum / sum-of-squares
    p = pl.program_id(1)   # phase: 0 = conv + stats, 1 = normalize + relu
    s = pl.program_id(2)   # spatial tile index
    base = pl.multiple_of(s * s_tile, s_tile)

    @pl.when(jnp.logical_and(p == 0, s == 0))
    def _init_stats():
        sum_ref[...] = jnp.zeros_like(sum_ref)
        ssq_ref[...] = jnp.zeros_like(ssq_ref)

    @pl.when(p == 0)
    def _conv_and_stats():
        # Aligned dynamic window covering all 27 shifted views of this tile.
        window = x_ref[:, pl.ds(base, wlen)]              # (C_in, S_TILE + 2*R_pad)
        # Three independent accumulation chains (one per kd plane) -> shorter
        # serial vadd dependency, more ILP for the VLIW scheduler.
        accs = []
        for g in range(3):
            a = jnp.zeros((o_ref.shape[0], s_tile), jnp.float32)
            for t in range(9):
                tap = g * 9 + t
                c = tap_offsets[tap]                       # static offset
                xs = window[:, c:c + s_tile]               # (C_in, S_TILE)
                a = a + jnp.dot(w_ref[tap], xs,
                                preferred_element_type=jnp.float32)
            accs.append(a)
        acc = (accs[0] + accs[1]) + accs[2]

        m = mask_ref[...]                                  # (1, S_TILE)
        ym = acc * m
        sum_ref[...] += jnp.sum(ym, axis=1, keepdims=True)
        ssq_ref[...] += jnp.sum(ym * acc, axis=1, keepdims=True)
        y_ref[:, pl.ds(base, s_tile)] = acc

    @pl.when(p == 1)
    def _normalize_relu():
        y = y_ref[:, pl.ds(base, s_tile)]
        mean = sum_ref[...] * inv_count
        var = ssq_ref[...] * inv_count - mean * mean       # biased variance (torch)
        rstd = lax.rsqrt(var + EPS)
        yn = (y - mean) * rstd
        o_ref[...] = jnp.maximum(yn, 0.0).astype(o_ref.dtype)


def same_conv_forward(x, weight, *, s_tile=1024, compute_dtype=jnp.float32):
    """x: (N, C_in, D, H, W) float32; weight: (C_out, C_in, 3, 3, 3) float32."""
    N, C_in, D, H, W = x.shape
    C_out = weight.shape[0]
    assert weight.shape == (C_out, C_in, 3, 3, 3)

    Dp, Hp, Wp = D + 2, H + 2, W + 2
    Sp = Dp * Hp * Wp                       # padded-grid spatial size
    S_true = D * H * W                      # true element count for the norm

    s_tile = max(128, min(s_tile, _round_up(Sp, 128)))
    T = -(-Sp // s_tile)                    # number of spatial tiles
    L_out = T * s_tile

    R = Hp * Wp + Wp + 1                    # max |flat shift| of any tap
    R_pad = _round_up(R, 128)
    L = L_out + 2 * R_pad                   # flat input length incl. halo
    wlen = s_tile + 2 * R_pad               # per-tile window length

    C_out_pad = _round_up(C_out, 8)

    # ---- cheap glue (O(input)/O(output) HBM traffic, no 27x expansion) ----
    xp = jnp.pad(x, ((0, 0), (0, 0), (1, 1), (1, 1), (1, 1)))
    xf = jnp.pad(xp.reshape(N, C_in, Sp),
                 ((0, 0), (0, 0), (R_pad, L - R_pad - Sp)))
    xf = xf.astype(compute_dtype)

    # weight -> (27, C_out_pad, C_in), tap = kd*9 + kh*3 + kw
    w_t = jnp.transpose(weight, (2, 3, 4, 0, 1)).reshape(27, C_out, C_in)
    if C_out_pad != C_out:
        w_t = jnp.pad(w_t, ((0, 0), (0, C_out_pad - C_out), (0, 0)))
    w_t = w_t.astype(compute_dtype)

    # validity mask over the padded output grid (interior positions only)
    dq = jnp.arange(Dp)
    hq = jnp.arange(Hp)
    wq = jnp.arange(Wp)
    valid = (((dq >= 1) & (dq <= D))[:, None, None]
             & ((hq >= 1) & (hq <= H))[None, :, None]
             & ((wq >= 1) & (wq <= W))[None, None, :])
    mask = jnp.pad(valid.reshape(Sp).astype(jnp.float32), (0, L_out - Sp))
    mask = mask.reshape(1, L_out)

    # static within-window start offsets of the 27 taps
    tap_offsets = tuple(
        R_pad + (kd - 1) * Hp * Wp + (kh - 1) * Wp + (kw - 1)
        for kd in range(3) for kh in range(3) for kw in range(3))

    kernel = functools.partial(
        _same_conv_kernel, tap_offsets=tap_offsets, s_tile=s_tile, wlen=wlen,
        inv_count=1.0 / S_true)

    # rough VMEM budget: double-buffered blocks + resident Y scratch
    itemsize = jnp.dtype(compute_dtype).itemsize
    est = (2 * C_in * L * itemsize                 # input slab (double-buffered)
           + 2 * C_out_pad * s_tile * 4            # output tile
           + 2 * s_tile * 4                        # mask tile
           + 2 * 27 * C_out_pad * C_in * itemsize  # weights
           + C_out_pad * L_out * 4                 # Y scratch
           + 8 * C_out_pad * 4)                    # stats
    vmem_limit = int(min(112 * 1024 * 1024, max(32 * 1024 * 1024, 2 * est)))

    out = pl.pallas_call(
        kernel,
        out_shape=jax.ShapeDtypeStruct((N, C_out_pad, L_out), x.dtype),
        grid_spec=pltpu.PrefetchScalarGridSpec(
            num_scalar_prefetch=0,
            grid=(N, 2, T),   # batch x phase(conv / normalize) x spatial tile
            in_specs=[
                # whole per-batch flat input stays resident across (phase, tile)
                pl.BlockSpec((None, C_in, L), lambda n, p, s: (n, 0, 0)),
                # weights resident
                pl.BlockSpec((27, C_out_pad, C_in), lambda n, p, s: (0, 0, 0)),
                # per-tile validity mask
                pl.BlockSpec((1, s_tile), lambda n, p, s: (0, s)),
            ],
            # phase 0 parks on tile 0 (never written); phase 1 streams tiles out
            out_specs=pl.BlockSpec((None, C_out_pad, s_tile),
                                   lambda n, p, s: (n, 0, s * p)),
            scratch_shapes=[
                pltpu.VMEM((C_out_pad, L_out), jnp.float32),  # Y resident
                pltpu.VMEM((C_out_pad, 1), jnp.float32),      # sum
                pltpu.VMEM((C_out_pad, 1), jnp.float32),      # sum of squares
            ]),
        compiler_params=pltpu.CompilerParams(
            dimension_semantics=("parallel", "arbitrary", "arbitrary"),
            vmem_limit_bytes=vmem_limit),
    )(xf, w_t, mask)

    # drop channel padding + boundary garbage, back to NCDHW
    y = out[:, :C_out, :Sp].reshape(N, C_out, Dp, Hp, Wp)
    return y[:, :, 1:D + 1, 1:H + 1, 1:W + 1]
    # TODO(synk): for N==1 on v7x, add a second parallel grid axis (e.g. over
    # C_out groups) so both TensorCores are used.


def _reference(x, weight):
    """Pure-JAX reference: conv3d + instance norm + relu (NCDHW)."""
    y = lax.conv_general_dilated(
        x, weight, window_strides=(1, 1, 1), padding=[(1, 1)] * 3,
        dimension_numbers=("NCDHW", "OIDHW", "NCDHW"))
    mean = jnp.mean(y, axis=(2, 3, 4), keepdims=True)
    var = jnp.mean(jnp.square(y - mean), axis=(2, 3, 4), keepdims=True)
    return jnp.maximum((y - mean) * lax.rsqrt(var + EPS), 0.0)


if __name__ == "__main__":
    # small shapes consistent with the module
    N, C_in, C_out = 2, 4, 8
    D = H = W = 8

    key = jax.random.PRNGKey(0)
    kx, kw = jax.random.split(key)
    x = jax.random.normal(kx, (N, C_in, D, H, W), dtype=jnp.float32)
    fan_in = C_in * 27
    weight = jax.random.normal(kw, (C_out, C_in, 3, 3, 3),
                               dtype=jnp.float32) * (2.0 / fan_in) ** 0.5

    out = jax.jit(same_conv_forward)(x, weight)
    out = jax.block_until_ready(out)

    ref = _reference(x, weight)
    assert out.shape == (N, C_out, D, H, W)
    assert jnp.allclose(out, ref, atol=1e-3, rtol=1e-3), "mismatch vs reference"

    print("KERNEL_OK")
</pallas_src>

<mosaic_0001>
module attributes {stable_mosaic.version = 11 : i64} {
  func.func @_same_conv_kernel(%arg0: i32, %arg1: i32, %arg2: i32, %arg3: memref<1x4x1280xf32, #tpu.memory_space<vmem>>, %arg4: memref<27x8x4xf32, #tpu.memory_space<vmem>>, %arg5: memref<1x1024xf32, #tpu.memory_space<vmem>>, %arg6: memref<1x8x1024xf32, #tpu.memory_space<vmem>>, %arg7: memref<8x1024xf32, #tpu.memory_space<vmem>>, %arg8: memref<8x1xf32, #tpu.memory_space<vmem>>, %arg9: memref<8x1xf32, #tpu.memory_space<vmem>>) attributes {dimension_semantics = [#tpu.dimension_semantics<parallel>, #tpu.dimension_semantics<arbitrary>, #tpu.dimension_semantics<arbitrary>], iteration_bounds = array<i64: 2, 2, 1>, scalar_prefetch = 0 : i64, scratch_operands = 3 : i64, tpu.core_type = #tpu.core_type<tc>, window_params = [{transform_indices = @transform_0, window_bounds = array<i64: 1, 4, 1280>}, {pipeline_mode = #tpu.pipeline_mode<synchronous>, transform_indices = @transform_1, window_bounds = array<i64: 27, 8, 4>}, {transform_indices = @transform_2, window_bounds = array<i64: 1, 1024>}, {transform_indices = @transform_3, window_bounds = array<i64: 1, 8, 1024>}]} {
    %c1024_i32 = arith.constant 1024 : i32
    %0 = arith.muli %arg2, %c1024_i32 : i32
    %1 = tpu.assume_multiple %0, 1024 : i32
    %c0_i32 = arith.constant 0 : i32
    %2 = arith.cmpi eq, %arg1, %c0_i32 : i32
    %c0_i32_0 = arith.constant 0 : i32
    %3 = arith.cmpi eq, %arg2, %c0_i32_0 : i32
    %4 = arith.andi %2, %3 : i1
    %5 = arith.extui %4 : i1 to i32
    %c0_i32_1 = arith.constant 0 : i32
    %6 = arith.cmpi ne, %5, %c0_i32_1 : i32
    scf.if %6 {
      %cst = arith.constant 0.000000e+00 : f32
      %13 = vector.broadcast %cst : f32 to vector<8x1xf32>
      %c0 = arith.constant 0 : index
      %c0_5 = arith.constant 0 : index
      %14 = vector.load %arg8[%c0, %c0_5] : memref<8x1xf32, #tpu.memory_space<vmem>>, vector<8x1xf32>
      tpu.vector_store %arg8[%c0, %c0_5], %13 {strides = array<i32>} : memref<8x1xf32, #tpu.memory_space<vmem>>, vector<8x1xf32>,
      %cst_6 = arith.constant 0.000000e+00 : f32
      %15 = vector.broadcast %cst_6 : f32 to vector<8x1xf32>
      %c0_7 = arith.constant 0 : index
      %c0_8 = arith.constant 0 : index
      %16 = vector.load %arg9[%c0_7, %c0_8] : memref<8x1xf32, #tpu.memory_space<vmem>>, vector<8x1xf32>
      tpu.vector_store %arg9[%c0_7, %c0_8], %15 {strides = array<i32>} : memref<8x1xf32, #tpu.memory_space<vmem>>, vector<8x1xf32>,
    } else {
    }
    %c0_i32_2 = arith.constant 0 : i32
    %7 = arith.cmpi eq, %arg1, %c0_i32_2 : i32
    %8 = arith.extui %7 : i1 to i32
    %c0_i32_3 = arith.constant 0 : i32
    %9 = arith.cmpi ne, %8, %c0_i32_3 : i32
    scf.if %9 {
      %c0 = arith.constant 0 : index
      %c0_5 = arith.constant 0 : index
      %13 = arith.index_cast %1 : i32 to index
      %14 = vector.load %arg3[%c0, %c0_5, %13] : memref<1x4x1280xf32, #tpu.memory_space<vmem>>, vector<1x4x1280xf32>
      %15 = vector.shape_cast %14 : vector<1x4x1280xf32> to vector<4x1280xf32>
      %cst = arith.constant 0.000000e+00 : f32
      %16 = vector.broadcast %cst : f32 to vector<8x1024xf32>
      %17 = vector.extract_strided_slice %15 {offsets = [0, 17], sizes = [4, 1024], strides = [1, 1]} : vector<4x1280xf32> to vector<4x1024xf32>
      %c0_6 = arith.constant 0 : index
      %c0_7 = arith.constant 0 : index
      %c0_8 = arith.constant 0 : index
      %18 = vector.load %arg4[%c0_6, %c0_7, %c0_8] : memref<27x8x4xf32, #tpu.memory_space<vmem>>, vector<1x8x4xf32>
      %19 = vector.shape_cast %18 : vector<1x8x4xf32> to vector<8x4xf32>
      %cst_9 = arith.constant dense<0.000000e+00> : vector<8x1024xf32>
      %20 = tpu.matmul %19, %17, %cst_9 {dimension_numbers = #tpu.dot_dimension_numbers<[1], [0], [0], [1], [0, 0, 1, 1], [], []>} : vector<8x4xf32>, vector<4x1024xf32>, vector<8x1024xf32> -> vector<8x1024xf32>
      %21 = arith.addf %16, %20 : vector<8x1024xf32>
      %22 = vector.extract_strided_slice %15 {offsets = [0, 18], sizes = [4, 1024], strides = [1, 1]} : vector<4x1280xf32> to vector<4x1024xf32>
      %c1 = arith.constant 1 : index
      %c0_10 = arith.constant 0 : index
      %c0_11 = arith.constant 0 : index
      %23 = vector.load %arg4[%c1, %c0_10, %c0_11] : memref<27x8x4xf32, #tpu.memory_space<vmem>>, vector<1x8x4xf32>
      %24 = vector.shape_cast %23 : vector<1x8x4xf32> to vector<8x4xf32>
      %cst_12 = arith.constant dense<0.000000e+00> : vector<8x1024xf32>
      %25 = tpu.matmul %24, %22, %cst_12 {dimension_numbers = #tpu.dot_dimension_numbers<[1], [0], [0], [1], [0, 0, 1, 1], [], []>} : vector<8x4xf32>, vector<4x1024xf32>, vector<8x1024xf32> -> vector<8x1024xf32>
      %26 = arith.addf %21, %25 : vector<8x1024xf32>
      %27 = vector.extract_strided_slice %15 {offsets = [0, 19], sizes = [4, 1024], strides = [1, 1]} : vector<4x1280xf32> to vector<4x1024xf32>
      %c2 = arith.constant 2 : index
      %c0_13 = arith.constant 0 : index
      %c0_14 = arith.constant 0 : index
      %28 = vector.load %arg4[%c2, %c0_13, %c0_14] : memref<27x8x4xf32, #tpu.memory_space<vmem>>, vector<1x8x4xf32>
      %29 = vector.shape_cast %28 : vector<1x8x4xf32> to vector<8x4xf32>
      %cst_15 = arith.constant dense<0.000000e+00> : vector<8x1024xf32>
      %30 = tpu.matmul %29, %27, %cst_15 {dimension_numbers = #tpu.dot_dimension_numbers<[1], [0], [0], [1], [0, 0, 1, 1], [], []>} : vector<8x4xf32>, vector<4x1024xf32>, vector<8x1024xf32> -> vector<8x1024xf32>
      %31 = arith.addf %26, %30 : vector<8x1024xf32>
      %32 = vector.extract_strided_slice %15 {offsets = [0, 27], sizes = [4, 1024], strides = [1, 1]} : vector<4x1280xf32> to vector<4x1024xf32>
      %c3 = arith.constant 3 : index
      %c0_16 = arith.constant 0 : index
      %c0_17 = arith.constant 0 : index
      %33 = vector.load %arg4[%c3, %c0_16, %c0_17] : memref<27x8x4xf32, #tpu.memory_space<vmem>>, vector<1x8x4xf32>
      %34 = vector.shape_cast %33 : vector<1x8x4xf32> to vector<8x4xf32>
      %cst_18 = arith.constant dense<0.000000e+00> : vector<8x1024xf32>
      %35 = tpu.matmul %34, %32, %cst_18 {dimension_numbers = #tpu.dot_dimension_numbers<[1], [0], [0], [1], [0, 0, 1, 1], [], []>} : vector<8x4xf32>, vector<4x1024xf32>, vector<8x1024xf32> -> vector<8x1024xf32>
      %36 = arith.addf %31, %35 : vector<8x1024xf32>
      %37 = vector.extract_strided_slice %15 {offsets = [0, 28], sizes = [4, 1024], strides = [1, 1]} : vector<4x1280xf32> to vector<4x1024xf32>
      %c4 = arith.constant 4 : index
      %c0_19 = arith.constant 0 : index
      %c0_20 = arith.constant 0 : index
      %38 = vector.load %arg4[%c4, %c0_19, %c0_20] : memref<27x8x4xf32, #tpu.memory_space<vmem>>, vector<1x8x4xf32>
      %39 = vector.shape_cast %38 : vector<1x8x4xf32> to vector<8x4xf32>
      %cst_21 = arith.constant dense<0.000000e+00> : vector<8x1024xf32>
      %40 = tpu.matmul %39, %37, %cst_21 {dimension_numbers = #tpu.dot_dimension_numbers<[1], [0], [0], [1], [0, 0, 1, 1], [], []>} : vector<8x4xf32>, vector<4x1024xf32>, vector<8x1024xf32> -> vector<8x1024xf32>
      %41 = arith.addf %36, %40 : vector<8x1024xf32>
      %42 = vector.extract_strided_slice %15 {offsets = [0, 29], sizes = [4, 1024], strides = [1, 1]} : vector<4x1280xf32> to vector<4x1024xf32>
      %c5 = arith.constant 5 : index
      %c0_22 = arith.constant 0 : index
      %c0_23 = arith.constant 0 : index
      %43 = vector.load %arg4[%c5, %c0_22, %c0_23] : memref<27x8x4xf32, #tpu.memory_space<vmem>>, vector<1x8x4xf32>
      %44 = vector.shape_cast %43 : vector<1x8x4xf32> to vector<8x4xf32>
      %cst_24 = arith.constant dense<0.000000e+00> : vector<8x1024xf32>
      %45 = tpu.matmul %44, %42, %cst_24 {dimension_numbers = #tpu.dot_dimension_numbers<[1], [0], [0], [1], [0, 0, 1, 1], [], []>} : vector<8x4xf32>, vector<4x1024xf32>, vector<8x1024xf32> -> vector<8x1024xf32>
      %46 = arith.addf %41, %45 : vector<8x1024xf32>
      %47 = vector.extract_strided_slice %15 {offsets = [0, 37], sizes = [4, 1024], strides = [1, 1]} : vector<4x1280xf32> to vector<4x1024xf32>
      %c6 = arith.constant 6 : index
      %c0_25 = arith.constant 0 : index
      %c0_26 = arith.constant 0 : index
      %48 = vector.load %arg4[%c6, %c0_25, %c0_26] : memref<27x8x4xf32, #tpu.memory_space<vmem>>, vector<1x8x4xf32>
      %49 = vector.shape_cast %48 : vector<1x8x4xf32> to vector<8x4xf32>
      %cst_27 = arith.constant dense<0.000000e+00> : vector<8x1024xf32>
      %50 = tpu.matmul %49, %47, %cst_27 {dimension_numbers = #tpu.dot_dimension_numbers<[1], [0], [0], [1], [0, 0, 1, 1], [], []>} : vector<8x4xf32>, vector<4x1024xf32>, vector<8x1024xf32> -> vector<8x1024xf32>
      %51 = arith.addf %46, %50 : vector<8x1024xf32>
      %52 = vector.extract_strided_slice %15 {offsets = [0, 38], sizes = [4, 1024], strides = [1, 1]} : vector<4x1280xf32> to vector<4x1024xf32>
      %c7 = arith.constant 7 : index
      %c0_28 = arith.constant 0 : index
      %c0_29 = arith.constant 0 : index
      %53 = vector.load %arg4[%c7, %c0_28, %c0_29] : memref<27x8x4xf32, #tpu.memory_space<vmem>>, vector<1x8x4xf32>
      %54 = vector.shape_cast %53 : vector<1x8x4xf32> to vector<8x4xf32>
      %cst_30 = arith.constant dense<0.000000e+00> : vector<8x1024xf32>
      %55 = tpu.matmul %54, %52, %cst_30 {dimension_numbers = #tpu.dot_dimension_numbers<[1], [0], [0], [1], [0, 0, 1, 1], [], []>} : vector<8x4xf32>, vector<4x1024xf32>, vector<8x1024xf32> -> vector<8x1024xf32>
      %56 = arith.addf %51, %55 : vector<8x1024xf32>
      %57 = vector.extract_strided_slice %15 {offsets = [0, 39], sizes = [4, 1024], strides = [1, 1]} : vector<4x1280xf32> to vector<4x1024xf32>
      %c8 = arith.constant 8 : index
      %c0_31 = arith.constant 0 : index
      %c0_32 = arith.constant 0 : index
      %58 = vector.load %arg4[%c8, %c0_31, %c0_32] : memref<27x8x4xf32, #tpu.memory_space<vmem>>, vector<1x8x4xf32>
      %59 = vector.shape_cast %58 : vector<1x8x4xf32> to vector<8x4xf32>
      %cst_33 = arith.constant dense<0.000000e+00> : vector<8x1024xf32>
      %60 = tpu.matmul %59, %57, %cst_33 {dimension_numbers = #tpu.dot_dimension_numbers<[1], [0], [0], [1], [0, 0, 1, 1], [], []>} : vector<8x4xf32>, vector<4x1024xf32>, vector<8x1024xf32> -> vector<8x1024xf32>
      %61 = arith.addf %56, %60 : vector<8x1024xf32>
      %cst_34 = arith.constant 0.000000e+00 : f32
      %62 = vector.broadcast %cst_34 : f32 to vector<8x1024xf32>
      %63 = vector.extract_strided_slice %15 {offsets = [0, 117], sizes = [4, 1024], strides = [1, 1]} : vector<4x1280xf32> to vector<4x1024xf32>
      %c9 = arith.constant 9 : index
      %c0_35 = arith.constant 0 : index
      %c0_36 = arith.constant 0 : index
      %64 = vector.load %arg4[%c9, %c0_35, %c0_36] : memref<27x8x4xf32, #tpu.memory_space<vmem>>, vector<1x8x4xf32>
      %65 = vector.shape_cast %64 : vector<1x8x4xf32> to vector<8x4xf32>
      %cst_37 = arith.constant dense<0.000000e+00> : vector<8x1024xf32>
      %66 = tpu.matmul %65, %63, %cst_37 {dimension_numbers = #tpu.dot_dimension_numbers<[1], [0], [0], [1], [0, 0, 1, 1], [], []>} : vector<8x4xf32>, vector<4x1024xf32>, vector<8x1024xf32> -> vector<8x1024xf32>
      %67 = arith.addf %62, %66 : vector<8x1024xf32>
      %68 = vector.extract_strided_slice %15 {offsets = [0, 118], sizes = [4, 1024], strides = [1, 1]} : vector<4x1280xf32> to vector<4x1024xf32>
      %c10 = arith.constant 10 : index
      %c0_38 = arith.constant 0 : index
      %c0_39 = arith.constant 0 : index
      %69 = vector.load %arg4[%c10, %c0_38, %c0_39] : memref<27x8x4xf32, #tpu.memory_space<vmem>>, vector<1x8x4xf32>
      %70 = vector.shape_cast %69 : vector<1x8x4xf32> to vector<8x4xf32>
      %cst_40 = arith.constant dense<0.000000e+00> : vector<8x1024xf32>
      %71 = tpu.matmul %70, %68, %cst_40 {dimension_numbers = #tpu.dot_dimension_numbers<[1], [0], [0], [1], [0, 0, 1, 1], [], []>} : vector<8x4xf32>, vector<4x1024xf32>, vector<8x1024xf32> -> vector<8x1024xf32>
      %72 = arith.addf %67, %71 : vector<8x1024xf32>
      %73 = vector.extract_strided_slice %15 {offsets = [0, 119], sizes = [4, 1024], strides = [1, 1]} : vector<4x1280xf32> to vector<4x1024xf32>
      %c11 = arith.constant 11 : index
      %c0_41 = arith.constant 0 : index
      %c0_42 = arith.constant 0 : index
      %74 = vector.load %arg4[%c11, %c0_41, %c0_42] : memref<27x8x4xf32, #tpu.memory_space<vmem>>, vector<1x8x4xf32>
      %75 = vector.shape_cast %74 : vector<1x8x4xf32> to vector<8x4xf32>
      %cst_43 = arith.constant dense<0.000000e+00> : vector<8x1024xf32>
      %76 = tpu.matmul %75, %73, %cst_43 {dimension_numbers = #tpu.dot_dimension_numbers<[1], [0], [0], [1], [0, 0, 1, 1], [], []>} : vector<8x4xf32>, vector<4x1024xf32>, vector<8x1024xf32> -> vector<8x1024xf32>
      %77 = arith.addf %72, %76 : vector<8x1024xf32>
      %78 = vector.extract_strided_slice %15 {offsets = [0, 127], sizes = [4, 1024], strides = [1, 1]} : vector<4x1280xf32> to vector<4x1024xf32>
      %c12 = arith.constant 12 : index
      %c0_44 = arith.constant 0 : index
      %c0_45 = arith.constant 0 : index
      %79 = vector.load %arg4[%c12, %c0_44, %c0_45] : memref<27x8x4xf32, #tpu.memory_space<vmem>>, vector<1x8x4xf32>
      %80 = vector.shape_cast %79 : vector<1x8x4xf32> to vector<8x4xf32>
      %cst_46 = arith.constant dense<0.000000e+00> : vector<8x1024xf32>
      %81 = tpu.matmul %80, %78, %cst_46 {dimension_numbers = #tpu.dot_dimension_numbers<[1], [0], [0], [1], [0, 0, 1, 1], [], []>} : vector<8x4xf32>, vector<4x1024xf32>, vector<8x1024xf32> -> vector<8x1024xf32>
      %82 = arith.addf %77, %81 : vector<8x1024xf32>
      %83 = vector.extract_strided_slice %15 {offsets = [0, 128], sizes = [4, 1024], strides = [1, 1]} : vector<4x1280xf32> to vector<4x1024xf32>
      %c13 = arith.constant 13 : index
      %c0_47 = arith.constant 0 : index
      %c0_48 = arith.constant 0 : index
      %84 = vector.load %arg4[%c13, %c0_47, %c0_48] : memref<27x8x4xf32, #tpu.memory_space<vmem>>, vector<1x8x4xf32>
      %85 = vector.shape_cast %84 : vector<1x8x4xf32> to vector<8x4xf32>
      %cst_49 = arith.constant dense<0.000000e+00> : vector<8x1024xf32>
      %86 = tpu.matmul %85, %83, %cst_49 {dimension_numbers = #tpu.dot_dimension_numbers<[1], [0], [0], [1], [0, 0, 1, 1], [], []>} : vector<8x4xf32>, vector<4x1024xf32>, vector<8x1024xf32> -> vector<8x1024xf32>
      %87 = arith.addf %82, %86 : vector<8x1024xf32>
      %88 = vector.extract_strided_slice %15 {offsets = [0, 129], sizes = [4, 1024], strides = [1, 1]} : vector<4x1280xf32> to vector<4x1024xf32>
      %c14 = arith.constant 14 : index
      %c0_50 = arith.constant 0 : index
      %c0_51 = arith.constant 0 : index
      %89 = vector.load %arg4[%c14, %c0_50, %c0_51] : memref<27x8x4xf32, #tpu.memory_space<vmem>>, vector<1x8x4xf32>
      %90 = vector.shape_cast %89 : vector<1x8x4xf32> to vector<8x4xf32>
      %cst_52 = arith.constant dense<0.000000e+00> : vector<8x1024xf32>
      %91 = tpu.matmul %90, %88, %cst_52 {dimension_numbers = #tpu.dot_dimension_numbers<[1], [0], [0], [1], [0, 0, 1, 1], [], []>} : vector<8x4xf32>, vector<4x1024xf32>, vector<8x1024xf32> -> vector<8x1024xf32>
      %92 = arith.addf %87, %91 : vector<8x1024xf32>
      %93 = vector.extract_strided_slice %15 {offsets = [0, 137], sizes = [4, 1024], strides = [1, 1]} : vector<4x1280xf32> to vector<4x1024xf32>
      %c15 = arith.constant 15 : index
      %c0_53 = arith.constant 0 : index
      %c0_54 = arith.constant 0 : index
      %94 = vector.load %arg4[%c15, %c0_53, %c0_54] : memref<27x8x4xf32, #tpu.memory_space<vmem>>, vector<1x8x4xf32>
      %95 = vector.shape_cast %94 : vector<1x8x4xf32> to vector<8x4xf32>
      %cst_55 = arith.constant dense<0.000000e+00> : vector<8x1024xf32>
      %96 = tpu.matmul %95, %93, %cst_55 {dimension_numbers = #tpu.dot_dimension_numbers<[1], [0], [0], [1], [0, 0, 1, 1], [], []>} : vector<8x4xf32>, vector<4x1024xf32>, vector<8x1024xf32> -> vector<8x1024xf32>
      %97 = arith.addf %92, %96 : vector<8x1024xf32>
      %98 = vector.extract_strided_slice %15 {offsets = [0, 138], sizes = [4, 1024], strides = [1, 1]} : vector<4x1280xf32> to vector<4x1024xf32>
      %c16 = arith.constant 16 : index
      %c0_56 = arith.constant 0 : index
      %c0_57 = arith.constant 0 : index
      %99 = vector.load %arg4[%c16, %c0_56, %c0_57] : memref<27x8x4xf32, #tpu.memory_space<vmem>>, vector<1x8x4xf32>
      %100 = vector.shape_cast %99 : vector<1x8x4xf32> to vector<8x4xf32>
      %cst_58 = arith.constant dense<0.000000e+00> : vector<8x1024xf32>
      %101 = tpu.matmul %100, %98, %cst_58 {dimension_numbers = #tpu.dot_dimension_numbers<[1], [0], [0], [1], [0, 0, 1, 1], [], []>} : vector<8x4xf32>, vector<4x1024xf32>, vector<8x1024xf32> -> vector<8x1024xf32>
      %102 = arith.addf %97, %101 : vector<8x1024xf32>
      %103 = vector.extract_strided_slice %15 {offsets = [0, 139], sizes = [4, 1024], strides = [1, 1]} : vector<4x1280xf32> to vector<4x1024xf32>
      %c17 = arith.constant 17 : index
      %c0_59 = arith.constant 0 : index
      %c0_60 = arith.constant 0 : index
      %104 = vector.load %arg4[%c17, %c0_59, %c0_60] : memref<27x8x4xf32, #tpu.memory_space<vmem>>, vector<1x8x4xf32>
      %105 = vector.shape_cast %104 : vector<1x8x4xf32> to vector<8x4xf32>
      %cst_61 = arith.constant dense<0.000000e+00> : vector<8x1024xf32>
      %106 = tpu.matmul %105, %103, %cst_61 {dimension_numbers = #tpu.dot_dimension_numbers<[1], [0], [0], [1], [0, 0, 1, 1], [], []>} : vector<8x4xf32>, vector<4x1024xf32>, vector<8x1024xf32> -> vector<8x1024xf32>
      %107 = arith.addf %102, %106 : vector<8x1024xf32>
      %cst_62 = arith.constant 0.000000e+00 : f32
      %108 = vector.broadcast %cst_62 : f32 to vector<8x1024xf32>
      %109 = vector.extract_strided_slice %15 {offsets = [0, 217], sizes = [4, 1024], strides = [1, 1]} : vector<4x1280xf32> to vector<4x1024xf32>
      %c18 = arith.constant 18 : index
      %c0_63 = arith.constant 0 : index
      %c0_64 = arith.constant 0 : index
      %110 = vector.load %arg4[%c18, %c0_63, %c0_64] : memref<27x8x4xf32, #tpu.memory_space<vmem>>, vector<1x8x4xf32>
      %111 = vector.shape_cast %110 : vector<1x8x4xf32> to vector<8x4xf32>
      %cst_65 = arith.constant dense<0.000000e+00> : vector<8x1024xf32>
      %112 = tpu.matmul %111, %109, %cst_65 {dimension_numbers = #tpu.dot_dimension_numbers<[1], [0], [0], [1], [0, 0, 1, 1], [], []>} : vector<8x4xf32>, vector<4x1024xf32>, vector<8x1024xf32> -> vector<8x1024xf32>
      %113 = arith.addf %108, %112 : vector<8x1024xf32>
      %114 = vector.extract_strided_slice %15 {offsets = [0, 218], sizes = [4, 1024], strides = [1, 1]} : vector<4x1280xf32> to vector<4x1024xf32>
      %c19 = arith.constant 19 : index
      %c0_66 = arith.constant 0 : index
      %c0_67 = arith.constant 0 : index
      %115 = vector.load %arg4[%c19, %c0_66, %c0_67] : memref<27x8x4xf32, #tpu.memory_space<vmem>>, vector<1x8x4xf32>
      %116 = vector.shape_cast %115 : vector<1x8x4xf32> to vector<8x4xf32>
      %cst_68 = arith.constant dense<0.000000e+00> : vector<8x1024xf32>
      %117 = tpu.matmul %116, %114, %cst_68 {dimension_numbers = #tpu.dot_dimension_numbers<[1], [0], [0], [1], [0, 0, 1, 1], [], []>} : vector<8x4xf32>, vector<4x1024xf32>, vector<8x1024xf32> -> vector<8x1024xf32>
      %118 = arith.addf %113, %117 : vector<8x1024xf32>
      %119 = vector.extract_strided_slice %15 {offsets = [0, 219], sizes = [4, 1024], strides = [1, 1]} : vector<4x1280xf32> to vector<4x1024xf32>
      %c20 = arith.constant 20 : index
      %c0_69 = arith.constant 0 : index
      %c0_70 = arith.constant 0 : index
      %120 = vector.load %arg4[%c20, %c0_69, %c0_70] : memref<27x8x4xf32, #tpu.memory_space<vmem>>, vector<1x8x4xf32>
      %121 = vector.shape_cast %120 : vector<1x8x4xf32> to vector<8x4xf32>
      %cst_71 = arith.constant dense<0.000000e+00> : vector<8x1024xf32>
      %122 = tpu.matmul %121, %119, %cst_71 {dimension_numbers = #tpu.dot_dimension_numbers<[1], [0], [0], [1], [0, 0, 1, 1], [], []>} : vector<8x4xf32>, vector<4x1024xf32>, vector<8x1024xf32> -> vector<8x1024xf32>
      %123 = arith.addf %118, %122 : vector<8x1024xf32>
      %124 = vector.extract_strided_slice %15 {offsets = [0, 227], sizes = [4, 1024], strides = [1, 1]} : vector<4x1280xf32> to vector<4x1024xf32>
      %c21 = arith.constant 21 : index
      %c0_72 = arith.constant 0 : index
      %c0_73 = arith.constant 0 : index
      %125 = vector.load %arg4[%c21, %c0_72, %c0_73] : memref<27x8x4xf32, #tpu.memory_space<vmem>>, vector<1x8x4xf32>
      %126 = vector.shape_cast %125 : vector<1x8x4xf32> to vector<8x4xf32>
      %cst_74 = arith.constant dense<0.000000e+00> : vector<8x1024xf32>
      %127 = tpu.matmul %126, %124, %cst_74 {dimension_numbers = #tpu.dot_dimension_numbers<[1], [0], [0], [1], [0, 0, 1, 1], [], []>} : vector<8x4xf32>, vector<4x1024xf32>, vector<8x1024xf32> -> vector<8x1024xf32>
      %128 = arith.addf %123, %127 : vector<8x1024xf32>
      %129 = vector.extract_strided_slice %15 {offsets = [0, 228], sizes = [4, 1024], strides = [1, 1]} : vector<4x1280xf32> to vector<4x1024xf32>
      %c22 = arith.constant 22 : index
      %c0_75 = arith.constant 0 : index
      %c0_76 = arith.constant 0 : index
      %130 = vector.load %arg4[%c22, %c0_75, %c0_76] : memref<27x8x4xf32, #tpu.memory_space<vmem>>, vector<1x8x4xf32>
      %131 = vector.shape_cast %130 : vector<1x8x4xf32> to vector<8x4xf32>
      %cst_77 = arith.constant dense<0.000000e+00> : vector<8x1024xf32>
      %132 = tpu.matmul %131, %129, %cst_77 {dimension_numbers = #tpu.dot_dimension_numbers<[1], [0], [0], [1], [0, 0, 1, 1], [], []>} : vector<8x4xf32>, vector<4x1024xf32>, vector<8x1024xf32> -> vector<8x1024xf32>
      %133 = arith.addf %128, %132 : vector<8x1024xf32>
      %134 = vector.extract_strided_slice %15 {offsets = [0, 229], sizes = [4, 1024], strides = [1, 1]} : vector<4x1280xf32> to vector<4x1024xf32>
      %c23 = arith.constant 23 : index
      %c0_78 = arith.constant 0 : index
      %c0_79 = arith.constant 0 : index
      %135 = vector.load %arg4[%c23, %c0_78, %c0_79] : memref<27x8x4xf32, #tpu.memory_space<vmem>>, vector<1x8x4xf32>
      %136 = vector.shape_cast %135 : vector<1x8x4xf32> to vector<8x4xf32>
      %cst_80 = arith.constant dense<0.000000e+00> : vector<8x1024xf32>
      %137 = tpu.matmul %136, %134, %cst_80 {dimension_numbers = #tpu.dot_dimension_numbers<[1], [0], [0], [1], [0, 0, 1, 1], [], []>} : vector<8x4xf32>, vector<4x1024xf32>, vector<8x1024xf32> -> vector<8x1024xf32>
      %138 = arith.addf %133, %137 : vector<8x1024xf32>
      %139 = vector.extract_strided_slice %15 {offsets = [0, 237], sizes = [4, 1024], strides = [1, 1]} : vector<4x1280xf32> to vector<4x1024xf32>
      %c24 = arith.constant 24 : index
      %c0_81 = arith.constant 0 : index
      %c0_82 = arith.constant 0 : index
      %140 = vector.load %arg4[%c24, %c0_81, %c0_82] : memref<27x8x4xf32, #tpu.memory_space<vmem>>, vector<1x8x4xf32>
      %141 = vector.shape_cast %140 : vector<1x8x4xf32> to vector<8x4xf32>
      %cst_83 = arith.constant dense<0.000000e+00> : vector<8x1024xf32>
      %142 = tpu.matmul %141, %139, %cst_83 {dimension_numbers = #tpu.dot_dimension_numbers<[1], [0], [0], [1], [0, 0, 1, 1], [], []>} : vector<8x4xf32>, vector<4x1024xf32>, vector<8x1024xf32> -> vector<8x1024xf32>
      %143 = arith.addf %138, %142 : vector<8x1024xf32>
      %144 = vector.extract_strided_slice %15 {offsets = [0, 238], sizes = [4, 1024], strides = [1, 1]} : vector<4x1280xf32> to vector<4x1024xf32>
      %c25 = arith.constant 25 : index
      %c0_84 = arith.constant 0 : index
      %c0_85 = arith.constant 0 : index
      %145 = vector.load %arg4[%c25, %c0_84, %c0_85] : memref<27x8x4xf32, #tpu.memory_space<vmem>>, vector<1x8x4xf32>
      %146 = vector.shape_cast %145 : vector<1x8x4xf32> to vector<8x4xf32>
      %cst_86 = arith.constant dense<0.000000e+00> : vector<8x1024xf32>
      %147 = tpu.matmul %146, %144, %cst_86 {dimension_numbers = #tpu.dot_dimension_numbers<[1], [0], [0], [1], [0, 0, 1, 1], [], []>} : vector<8x4xf32>, vector<4x1024xf32>, vector<8x1024xf32> -> vector<8x1024xf32>
      %148 = arith.addf %143, %147 : vector<8x1024xf32>
      %149 = vector.extract_strided_slice %15 {offsets = [0, 239], sizes = [4, 1024], strides = [1, 1]} : vector<4x1280xf32> to vector<4x1024xf32>
      %c26 = arith.constant 26 : index
      %c0_87 = arith.constant 0 : index
      %c0_88 = arith.constant 0 : index
      %150 = vector.load %arg4[%c26, %c0_87, %c0_88] : memref<27x8x4xf32, #tpu.memory_space<vmem>>, vector<1x8x4xf32>
      %151 = vector.shape_cast %150 : vector<1x8x4xf32> to vector<8x4xf32>
      %cst_89 = arith.constant dense<0.000000e+00> : vector<8x1024xf32>
      %152 = tpu.matmul %151, %149, %cst_89 {dimension_numbers = #tpu.dot_dimension_numbers<[1], [0], [0], [1], [0, 0, 1, 1], [], []>} : vector<8x4xf32>, vector<4x1024xf32>, vector<8x1024xf32> -> vector<8x1024xf32>
      %153 = arith.addf %148, %152 : vector<8x1024xf32>
      %154 = arith.addf %61, %107 : vector<8x1024xf32>
      %155 = arith.addf %154, %153 : vector<8x1024xf32>
      %c0_90 = arith.constant 0 : index
      %c0_91 = arith.constant 0 : index
      %156 = vector.load %arg5[%c0_90, %c0_91] : memref<1x1024xf32, #tpu.memory_space<vmem>>, vector<1x1024xf32>
      %157 = vector.broadcast %156 : vector<1x1024xf32> to vector<8x1024xf32>
      %158 = arith.mulf %155, %157 : vector<8x1024xf32>
      %c0_92 = arith.constant 0 : index
      %c0_93 = arith.constant 0 : index
      %159 = vector.load %arg8[%c0_92, %c0_93] : memref<8x1xf32, #tpu.memory_space<vmem>>, vector<8x1xf32>
      %cst_94 = arith.constant dense<0.000000e+00> : vector<8xf32>
      %160 = vector.multi_reduction <add>, %158, %cst_94 [1] : vector<8x1024xf32> to vector<8xf32>
      %161 = vector.shape_cast %160 : vector<8xf32> to vector<8x1xf32>
      %162 = arith.addf %159, %161 : vector<8x1xf32>
      %c0_95 = arith.constant 0 : index
      %c0_96 = arith.constant 0 : index
      %163 = vector.load %arg8[%c0_95, %c0_96] : memref<8x1xf32, #tpu.memory_space<vmem>>, vector<8x1xf32>
      tpu.vector_store %arg8[%c0_95, %c0_96], %162 {strides = array<i32>} : memref<8x1xf32, #tpu.memory_space<vmem>>, vector<8x1xf32>,
      %c0_97 = arith.constant 0 : index
      %c0_98 = arith.constant 0 : index
      %164 = vector.load %arg9[%c0_97, %c0_98] : memref<8x1xf32, #tpu.memory_space<vmem>>, vector<8x1xf32>
      %165 = arith.mulf %158, %155 : vector<8x1024xf32>
      %cst_99 = arith.constant dense<0.000000e+00> : vector<8xf32>
      %166 = vector.multi_reduction <add>, %165, %cst_99 [1] : vector<8x1024xf32> to vector<8xf32>
      %167 = vector.shape_cast %166 : vector<8xf32> to vector<8x1xf32>
      %168 = arith.addf %164, %167 : vector<8x1xf32>
      %c0_100 = arith.constant 0 : index
      %c0_101 = arith.constant 0 : index
      %169 = vector.load %arg9[%c0_100, %c0_101] : memref<8x1xf32, #tpu.memory_space<vmem>>, vector<8x1xf32>
      tpu.vector_store %arg9[%c0_100, %c0_101], %168 {strides = array<i32>} : memref<8x1xf32, #tpu.memory_space<vmem>>, vector<8x1xf32>,
      %c0_102 = arith.constant 0 : index
      %170 = arith.index_cast %1 : i32 to index
      %171 = vector.load %arg7[%c0_102, %170] : memref<8x1024xf32, #tpu.memory_space<vmem>>, vector<8x1024xf32>
      tpu.vector_store %arg7[%c0_102, %170], %155 {strides = array<i32>} : memref<8x1024xf32, #tpu.memory_space<vmem>>, vector<8x1024xf32>,
    } else {
    }
    %c1_i32 = arith.constant 1 : i32
    %10 = arith.cmpi eq, %arg1, %c1_i32 : i32
    %11 = arith.extui %10 : i1 to i32
    %c0_i32_4 = arith.constant 0 : i32
    %12 = arith.cmpi ne, %11, %c0_i32_4 : i32
    scf.if %12 {
      %c0 = arith.constant 0 : index
      %13 = arith.index_cast %1 : i32 to index
      %14 = vector.load %arg7[%c0, %13] : memref<8x1024xf32, #tpu.memory_space<vmem>>, vector<8x1024xf32>
      %c0_5 = arith.constant 0 : index
      %c0_6 = arith.constant 0 : index
      %15 = vector.load %arg8[%c0_5, %c0_6] : memref<8x1xf32, #tpu.memory_space<vmem>>, vector<8x1xf32>
      %cst = arith.constant 0.001953125 : f32
      %16 = vector.broadcast %cst : f32 to vector<8x1xf32>
      %17 = arith.mulf %15, %16 : vector<8x1xf32>
      %c0_7 = arith.constant 0 : index
      %c0_8 = arith.constant 0 : index
      %18 = vector.load %arg9[%c0_7, %c0_8] : memref<8x1xf32, #tpu.memory_space<vmem>>, vector<8x1xf32>
      %cst_9 = arith.constant 0.001953125 : f32
      %19 = vector.broadcast %cst_9 : f32 to vector<8x1xf32>
      %20 = arith.mulf %18, %19 : vector<8x1xf32>
      %21 = arith.mulf %17, %17 : vector<8x1xf32>
      %22 = arith.subf %20, %21 : vector<8x1xf32>
      %cst_10 = arith.constant 9.99999974E-6 : f32
      %23 = vector.broadcast %cst_10 : f32 to vector<8x1xf32>
      %24 = arith.addf %22, %23 : vector<8x1xf32>
      %25 = math.rsqrt %24 : vector<8x1xf32>
      %26 = vector.broadcast %17 : vector<8x1xf32> to vector<8x1024xf32>
      %27 = arith.subf %14, %26 : vector<8x1024xf32>
      %28 = vector.broadcast %25 : vector<8x1xf32> to vector<8x1024xf32>
      %29 = arith.mulf %27, %28 : vector<8x1024xf32>
      %cst_11 = arith.constant 0.000000e+00 : f32
      %30 = vector.broadcast %cst_11 : f32 to vector<8x1024xf32>
      %31 = arith.maximumf %29, %30 : vector<8x1024xf32>
      %c0_12 = arith.constant 0 : index
      %c0_13 = arith.constant 0 : index
      %c0_14 = arith.constant 0 : index
      %32 = vector.load %arg6[%c0_12, %c0_13, %c0_14] : memref<1x8x1024xf32, #tpu.memory_space<vmem>>, vector<1x8x1024xf32>
      %33 = vector.shape_cast %32 : vector<1x8x1024xf32> to vector<8x1024xf32>
      %34 = vector.shape_cast %31 : vector<8x1024xf32> to vector<1x8x1024xf32>
      tpu.vector_store %arg6[%c0_12, %c0_13, %c0_14], %34 {strides = array<i32>} : memref<1x8x1024xf32, #tpu.memory_space<vmem>>, vector<1x8x1024xf32>,
    } else {
    }
    return
  }
  func.func @transform_0(%arg0: i32, %arg1: i32, %arg2: i32) -> (i32, i32, i32) {
    %c0_i32 = arith.constant 0 : i32
    %c0_i32_0 = arith.constant 0 : i32
    %c0_i32_1 = arith.constant 0 : i32
    return %arg0, %c0_i32, %c0_i32_0 : i32, i32, i32
  }
  func.func @transform_1(%arg0: i32, %arg1: i32, %arg2: i32) -> (i32, i32, i32) {
    %c0_i32 = arith.constant 0 : i32
    %c0_i32_0 = arith.constant 0 : i32
    %c0_i32_1 = arith.constant 0 : i32
    %c0_i32_2 = arith.constant 0 : i32
    return %c0_i32, %c0_i32_0, %c0_i32_1 : i32, i32, i32
  }
  func.func @transform_2(%arg0: i32, %arg1: i32, %arg2: i32) -> (i32, i32) {
    %c0_i32 = arith.constant 0 : i32
    %c0_i32_0 = arith.constant 0 : i32
    return %c0_i32, %arg2 : i32, i32
  }
  func.func @transform_3(%arg0: i32, %arg1: i32, %arg2: i32) -> (i32, i32, i32) {
    %0 = arith.muli %arg2, %arg1 : i32
    %c0_i32 = arith.constant 0 : i32
    %c0_i32_0 = arith.constant 0 : i32
    return %arg0, %c0_i32, %0 : i32, i32, i32
  }
}

</mosaic_0001>

<llo_original>
// kernel: same_conv_forward.1
$region0: #{same_conv_forward.1}
  #allocation0 [shape = 'u32[]', space=smem, size = 0x4, offset = 0x4, fixed_abs, tag = 'smem constant byte address 0x4 - core index']
  #allocation1 [shape = 'u32[72,128]{1,0:T(1,128)}', space=vmem, size = 0x9000, scoped, tag = 'internal scratch']
  #allocation2 [shape = 'f32[8,1024]{1,0:T(8,128)}', space=vmem, size = 0x8000, scoped, tag = 'scratch operand']
  #allocation3 [shape = 'f32[8,1]{1,0:T(8,128)}', space=vmem, size = 0x1000, scoped, tag = 'scratch operand']
  #allocation4 [shape = 'f32[8,1]{1,0:T(8,128)}', space=vmem, size = 0x1000, scoped, tag = 'scratch operand']
  %s0 = inlined_call_operand.vmem [shape: f32[2,4,1280], index: 0, kind: input, shape index: {}]
  %s1 = inlined_call_operand.vmem [shape: f32[27,8,4], index: 1, kind: input, shape index: {}]
  %s2 = inlined_call_operand.vmem [shape: f32[1,1024], index: 2, kind: input, shape index: {}]
  %s3 = inlined_call_operand.vmem [shape: f32[2,8,1024], index: 3, kind: output, shape index: {}]
  %s4 = sld [smem:[#allocation0]]
  $region57: #{same_conv_forward.1} parent=0
    _
  %s6 = ssub.s32 1, %s4
  %s7 = scalar_select 0, %s6, %s4
  loop: start=0, step=1, limit=6
  $region2: #{same_conv_forward.1} parent=0 // loop_pre_header
    _
  $region3: #{same_conv_forward.1} parent=0 // loop_header
    %s9 = sphi 0, %s13
    %p10 = scmp.ge.s32.totalorder %s9, 6
    %s16 = sphi 0, %s35
    %s17 = sphi 0, %s31
    %s18 = sphi 0, %s27
    %s19 = sphi 0, %s16
    %s20 = sphi 0, %s17
    %s21 = sphi 0, %s18
    %s22 = sphi 0, %s19
    %s23 = sphi 0, %s20
    %s24 = sphi 0, %s21
    %s38 = sphi 0, %s40
    %s41 = sphi 0, %s38
    %s42 = sphi 0, %s41
    %s58 = sphi 0, %s42
    %s62 = sphi 0, %s62
    %s64 = sphi 0, %s62
    %s65 = sphi 0, %s64
    %s79 = sphi 0, %s65
    %s85 = sphi 0, %s87
    %s88 = sphi 0, %s85
    %s89 = sphi 0, %s88
    %s105 = sphi 0, %s89
    %s115 = sphi 0, %s117
    %s118 = sphi 0, %s115
    %s119 = sphi 0, %s118
    %s135 = sphi 0, %s119
  $region4: #{same_conv_forward.1} parent=0 // loop_header_branch
    %12 = sbr.rel (%p10) target = $region8
  $region5: #{same_conv_forward.1} parent=0 // loop_body
    %s14 = ssub.s32 %s9, 1
    %s15 = ssub.s32 %s9, 2
    %s25 = sadd.s32 1, %s18
    %p26 = scmp.ge.s32.totalorder %s25, 1
    %s27 = scalar_select %p26, 0, %s25
    %s28 = sadd.s32 1, %s17
    %s29 = scalar_select %p26, %s28, %s17
    %p30 = scmp.ge.s32.totalorder %s29, 2
    %s31 = scalar_select %p30, 0, %s29
    %s32 = sadd.s32 1, %s16
    %s33 = scalar_select %p30, %s32, %s16
    %p34 = scmp.ge.s32.totalorder %s33, 2
    %s35 = scalar_select %p34, 0, %s33
    %s36 = ssub.s32 %s16, %s35
    %p37 = scmp.eq.s32.totalorder %s36, 0
    %s39 = sadd.s32 %s38, 1
    %s40 = scalar_select %p37, %s38, %s39
    %p43 = pneg %p37
    %p44 = scmp.eq.s32.totalorder %s9, 3
    %p45 = por %p43, %p44
    %p46 = scmp.ne.s32.totalorder %s38, %s41
    %p47 = scmp.eq.s32.totalorder %s9, 0
    %p48 = por %p46, %p47
    %p49 = scmp.ne.s32.totalorder %s38, %s41
    %p50 = scmp.eq.s32.totalorder %s14, 3
    %p51 = por %p49, %p50
    %p52 = scmp.ne.s32.totalorder %s41, %s42
    %p53 = scmp.eq.s32.totalorder %s14, 0
    %p54 = por %p52, %p53
    %p55 = scmp.ne.s32.totalorder %s41, %s42
    %p56 = scmp.eq.s32.totalorder %s15, 3
    %p57 = por %p55, %p56
    %p59 = scmp.ne.s32.totalorder %s42, %s58
    %p60 = scmp.eq.s32.totalorder %s15, 0
    %p61 = por %p59, %p60
    %s63 = sadd.s32 %s62, 1
    %p66 = scmp.eq.s32.totalorder %s9, 3
    %p67 = scmp.ne.s32.totalorder %s62, %s64
    %p68 = scmp.eq.s32.totalorder %s9, 0
    %p69 = por %p67, %p68
    %p70 = scmp.ne.s32.totalorder %s62, %s64
    %p71 = scmp.eq.s32.totalorder %s14, 3
    %p72 = por %p70, %p71
    %p73 = scmp.ne.s32.totalorder %s64, %s65
    %p74 = scmp.eq.s32.totalorder %s14, 0
    %p75 = por %p73, %p74
    %p76 = scmp.ne.s32.totalorder %s64, %s65
    %p77 = scmp.eq.s32.totalorder %s15, 3
    %p78 = por %p76, %p77
    %p80 = scmp.ne.s32.totalorder %s65, %s79
    %p81 = scmp.eq.s32.totalorder %s15, 0
    %p82 = por %p80, %p81
    %s83 = ssub.s32 %s18, %s27
    %p84 = scmp.eq.s32.totalorder %s83, 0
    %s86 = sadd.s32 %s85, 1
    %s87 = scalar_select %p84, %s85, %s86
    %p90 = pneg %p84
    %p91 = scmp.eq.s32.totalorder %s9, 3
    %p92 = por %p90, %p91
    %p93 = scmp.ne.s32.totalorder %s85, %s88
    %p94 = scmp.eq.s32.totalorder %s9, 0
    %p95 = por %p93, %p94
    %p96 = scmp.ne.s32.totalorder %s85, %s88
    %p97 = scmp.eq.s32.totalorder %s14, 3
    %p98 = por %p96, %p97
    %p99 = scmp.ne.s32.totalorder %s88, %s89
    %p100 = scmp.eq.s32.totalorder %s14, 0
    %p101 = por %p99, %p100
    %p102 = scmp.ne.s32.totalorder %s88, %s89
    %p103 = scmp.eq.s32.totalorder %s15, 3
    %p104 = por %p102, %p103
    %p106 = scmp.ne.s32.totalorder %s89, %s105
    %p107 = scmp.eq.s32.totalorder %s15, 0
    %p108 = por %p106, %p107
    %s109 = smul.u32 %s18, %s17
    %s110 = smul.u32 %s27, %s31
    %s111 = ssub.s32 %s16, %s35
    %s112 = ssub.s32 %s109, %s110
    %s113 = sor.u32 %s111, %s112
    %p114 = scmp.eq.s32.totalorder %s113, 0
    %s116 = sadd.s32 %s115, 1
    %s117 = scalar_select %p114, %s115, %s116
    %p120 = pneg %p114
    %p121 = scmp.eq.s32.totalorder %s9, 3
    %p122 = por %p120, %p121
    %p123 = scmp.ne.s32.totalorder %s115, %s118
    %p124 = scmp.eq.s32.totalorder %s9, 0
    %p125 = por %p123, %p124
    %p126 = scmp.ne.s32.totalorder %s115, %s118
    %p127 = scmp.eq.s32.totalorder %s14, 3
    %p128 = por %p126, %p127
    %p129 = scmp.ne.s32.totalorder %s118, %s119
    %p130 = scmp.eq.s32.totalorder %s14, 0
    %p131 = por %p129, %p130
    %p132 = scmp.ne.s32.totalorder %s118, %s119
    %p133 = scmp.eq.s32.totalorder %s15, 3
    %p134 = por %p132, %p133
    %p136 = scmp.ne.s32.totalorder %s119, %s135
    %p137 = scmp.eq.s32.totalorder %s15, 0
    %p138 = por %p136, %p137
    %p139 = scmp.le.s32.totalorder 1, %s9
    %p140 = scmp.lt.s32.totalorder %s9, 5
    %p141 = pnand %p139, %p140
    %p142 = pneg %p141
    // Predicated region
    $region9: #{same_conv_forward.1} parent=5 // pred_check
      _
    $region10: #{same_conv_forward.1} parent=5 // pred_check_branch
      %144 = sbr.rel (%p141) target = $region12
    $region11: #{same_conv_forward.1} parent=5 // pred_region
      %s145 = ssub.s32 %s9, 1
      // Predicated region
      $region13: #{same_conv_forward.1} parent=11 // pred_check
        %p146 = pneg %p75
      $region14: #{same_conv_forward.1} parent=11 // pred_check_branch
        %148 = sbr.rel (%p146) target = $region16
      $region15: #{same_conv_forward.1} parent=11 // pred_region
        _
      $region16: #{same_conv_forward.1} parent=11 // pred_fallthru
        _
      // Predicated region
      $region17: #{same_conv_forward.1} parent=11 // pred_check
        %p149 = pneg %p101
      $region18: #{same_conv_forward.1} parent=11 // pred_check_branch
        %151 = sbr.rel (%p149) target = $region20
      $region19: #{same_conv_forward.1} parent=11 // pred_region
        %s152 = smul.u32 8, %s21
        %p153 = scmp.lt.s32.totalorder %s152, 7
        %s154 = scalar_select %p153, %s152, 7
        %s155 = scalar_lea.vmem %s2, %s154
        %s156 = smul.u32 8, %s21
      $region20: #{same_conv_forward.1} parent=11 // pred_fallthru
        _
    $region12: #{same_conv_forward.1} parent=5 // pred_fallthru
      _
    %p157 = scmp.lt.s32.totalorder %s9, 4
    // Predicated region
    $region21: #{same_conv_forward.1} parent=5 // pred_check
      %p158 = pneg %p157
    $region22: #{same_conv_forward.1} parent=5 // pred_check_branch
      %160 = sbr.rel (%p158) target = $region24
    $region23: #{same_conv_forward.1} parent=5 // pred_region
      // Predicated region
      $region25: #{same_conv_forward.1} parent=23 // pred_check
        %p161 = pneg %p48
      $region26: #{same_conv_forward.1} parent=23 // pred_check_branch
        %163 = sbr.rel (%p161) target = $region28
      $region27: #{same_conv_forward.1} parent=23 // pred_region
        %p164 = scmp.lt.s32.totalorder %s16, 1
        %s165 = scalar_select %p164, %s16, 1
        %s166 = smul.addr %s165, 10
        %s167 = smul.addr %s166, 4
        %s168 = scalar_lea.vmem %s0, %s167
      $region28: #{same_conv_forward.1} parent=23 // pred_fallthru
        _
    $region24: #{same_conv_forward.1} parent=5 // pred_fallthru
      _
    %p169 = scmp.le.s32.totalorder 1, %s9
    %p170 = scmp.lt.s32.totalorder %s9, 5
    %p171 = pnand %p169, %p170
    %p172 = pneg %p171
    // Predicated region
    $region29: #{same_conv_forward.1} parent=5 // pred_check
      _
    $region30: #{same_conv_forward.1} parent=5 // pred_check_branch
      %174 = sbr.rel (%p171) target = $region32
    $region31: #{same_conv_forward.1} parent=5 // pred_region
      %s175 = ssub.s32 %s9, 1
      %p176 = scmp.lt.s32.totalorder %s19, 1
      %s177 = scalar_select %p176, %s19, 1
      %s178 = smul.addr %s177, 10
      %s179 = smul.addr %s178, 4
      %s180 = scalar_lea.vmem %s0, %s179
      %p181 = pneg %p54
      %p182 = pneg %p51
      %p183 = pneg %p75
      %p184 = pneg %p72
      %s185 = smul.u32 8, %s21
      %p186 = scmp.lt.s32.totalorder %s185, 7
      %s187 = scalar_select %p186, %s185, 7
      %s188 = scalar_lea.vmem %s2, %s187
      %p189 = pneg %p101
      %p190 = pneg %p98
      %p191 = pneg %p131
      %p192 = pneg %p128
      %s193 = smul.u32 %s21, %s20
      %s194 = smul.u32 8, %s193
      %p195 = scmp.lt.s32.totalorder %s19, 1
      %s196 = scalar_select %p195, %s19, 1
      %p197 = scmp.lt.s32.totalorder %s194, 7
      %s198 = scalar_select %p197, %s194, 7
      %s199 = smul.addr %s196, 8
      %s200 = sadd.s32 %s198, %s199
      %s201 = smul.addr %s200, 8
      %s202 = scalar_lea.vmem %s3, %s201
      %p203 = scmp.lt.s32.totalorder %s19, 1
      %s204 = scalar_select %p203, %s19, 1
      %s205 = smul.addr %s204, 10
      %s206 = smul.addr %s205, 4
      %s207 = scalar_lea.vmem %s0, %s206
      %s208 = smul.u32 8, %s21
      %p209 = scmp.lt.s32.totalorder %s208, 7
      %s210 = scalar_select %p209, %s208, 7
      %s211 = scalar_lea.vmem %s2, %s210
      %s212 = smul.u32 8, %s21
      %s213 = smul.u32 %s21, %s20
      %s214 = smul.u32 8, %s213
      %p215 = scmp.lt.s32.totalorder %s19, 1
      %s216 = scalar_select %p215, %s19, 1
      %p217 = scmp.lt.s32.totalorder %s214, 7
      %s218 = scalar_select %p217, %s214, 7
      %s219 = smul.addr %s216, 8
      %s220 = sadd.s32 %s218, %s219
      %s221 = smul.addr %s220, 8
      %s222 = scalar_lea.vmem %s3, %s221
      %s223 = smul.u32 %s21, %s20
      %s224 = smul.u32 8, %s223
      %s225 = smul.u32 %s21, 1024
      %p226 = scmp.eq.s32.totalorder %s20, 0
      %p227 = scmp.eq.s32.totalorder %s21, 0
      %p228 = pnand %p226, %p227
      %p229 = pneg %p228
      // Predicated region
      $region33: #{same_conv_forward.1} parent=31 // pred_check
        _
      $region34: #{same_conv_forward.1} parent=31 // pred_check_branch
        %231 = sbr.rel (%p228) target = $region36
      $region35: #{same_conv_forward.1} parent=31 // pred_region
        %vm232 = vcmask 7168
        %233 = vst.msk [vmem:[#allocation3] sm:$0xff] %vm232, 0.0
        %234 = vst.msk [vmem:[#allocation4] sm:$0xff] %vm232, 0.0
      $region36: #{same_conv_forward.1} parent=31 // pred_fallthru
        _
      // Predicated region
      $region37: #{same_conv_forward.1} parent=31 // pred_check
        %p235 = pneg %p226
      $region38: #{same_conv_forward.1} parent=31 // pred_check_branch
        %237 = sbr.rel (%p235) target = $region40
      $region39: #{same_conv_forward.1} parent=31 // pred_region
        %s238 = sshra.s32 %s225, 7
        %s239 = sand.u32 %s225, 127
        %s240 = smul.addr %s238, 4
        %s241 = scalar_lea.vmem %s207, %s240
        %v242 = vld [vmem:[%s241] sm:$0xff]
        %v243 = vld [vmem:[%s241 + $0x8] sm:$0xff]
        %v244 = vld [vmem:[%s241 + $0x10] sm:$0xff]
        %v245 = vld [vmem:[%s241 + $0x18] sm:$0xff]
        %v246 = vld [vmem:[%s241 + $0x20] sm:$0xff]
        %v247 = vld [vmem:[%s1] sm:$0xff]
        %s248 = scalar_lea.vmem %s1, 8
        %v249 = vld [vmem:[%s248] sm:$0xff]
        %255 = vst [vmem:[#allocation1] ss:$2 sm:$0xff] %v242
        %s256 = scalar_lea.vmem [#allocation1], 16
        %257 = vst [vmem:[%s256] ss:$2 sm:$0xff] %v243
        %s258 = scalar_lea.vmem [#allocation1], 32
        %259 = vst [vmem:[%s258] ss:$2 sm:$0xff] %v244
        %s260 = scalar_lea.vmem [#allocation1], 48
        %261 = vst [vmem:[%s260] ss:$2 sm:$0xff] %v245
        %v262 = vld.sshfl [vmem:[#allocation1] sm:$0xff pattern:$0x75316420]
        %v263 = vld.sshfl [vmem:[#allocation1 + $0x8] sm:$0xff pattern:$0x75316420]
        %v264 = vld.sshfl [vmem:[#allocation1 + $0x10] sm:$0xff pattern:$0x75316420]
        %v265 = vld.sshfl [vmem:[#allocation1 + $0x18] sm:$0xff pattern:$0x75316420]
        %v266 = vld.sshfl [vmem:[#allocation1 + $0x20] sm:$0xff pattern:$0x75316420]
        %v267 = vld.sshfl [vmem:[#allocation1 + $0x28] sm:$0xff pattern:$0x75316420]
        %v268 = vld.sshfl [vmem:[#allocation1 + $0x30] sm:$0xff pattern:$0x75316420]
        %v269 = vld.sshfl [vmem:[#allocation1 + $0x38] sm:$0xff pattern:$0x75316420]
        %270 = vst [vmem:[#allocation1] ss:$2 sm:$0xff] %v246
        %v271 = vld.sshfl [vmem:[#allocation1] sm:$0xff pattern:$0x75316420]
        %272 = vrot.lane.b32.xlu0 %v262, 110
        %v273 = vpop.permute.xlu0 %272
        %274 = vrot.lane.b32.xlu0 %v263, 110
        %v275 = vpop.permute.xlu0 %274
        %276 = vrot.lane.b32.xlu0 %v264, 110
        %v277 = vpop.permute.xlu0 %276
        %278 = vrot.lane.b32.xlu0 %v265, 110
        %v279 = vpop.permute.xlu0 %278
        %280 = vrot.lane.b32.xlu0 %v266, 110
        %v281 = vpop.permute.xlu0 %280
        %282 = vrot.lane.b32.xlu0 %v267, 110
        %v283 = vpop.permute.xlu0 %282
        %284 = vrot.lane.b32.xlu0 %v268, 110
        %v285 = vpop.permute.xlu0 %284
        %286 = vrot.lane.b32.xlu0 %v269, 110
        %v287 = vpop.permute.xlu0 %286
        %288 = vrot.lane.b32.xlu0 %v271, 110
        %v289 = vpop.permute.xlu0 %288
        %vm290 = vcmask 900096
        %v291 = vsel %vm290, %v273, %v275
        %v292 = vsel %vm290, %v275, %v277
        %v293 = vsel %vm290, %v277, %v279
        %v294 = vsel %vm290, %v279, %v281
        %v295 = vsel %vm290, %v281, %v283
        %v296 = vsel %vm290, %v283, %v285
        %v297 = vsel %vm290, %v285, %v287
        %v298 = vsel %vm290, %v287, %v289
        %vm299 = vcmask 31744
        %v301 = vsel %vm299, %v249, 0
        %vm303 = vcmask 1043456
        %v304 = vsel %vm303, %v291, 0
        %v306 = vsel %vm303, %v292, 0
        %v308 = vsel %vm303, %v293, 0
        %v310 = vsel %vm303, %v294, 0
        %v312 = vsel %vm303, %v295, 0
        %v314 = vsel %vm303, %v296, 0
        %v316 = vsel %vm303, %v297, 0
        %v318 = vsel %vm303, %v298, 0
        %320 = vmatpush.msra.mxu0 0.0
        %321 = vmatpush.msra.mxu0 0.0
        %322 = vmatpush.msra.mxu0 0.0
        %323 = vmatpush.msra.mxu0 0.0
        %324 = vmatpush.msra.mxu0 0.0
        %325 = vmatpush.msra.mxu0 0.0
        %326 = vmatpush.msra.mxu0 0.0
        %327 = vmatpush.msra.mxu0 0.0
        %328 = vmatpush.msra.mxu0 0.0
        %329 = vmatpush.msra.mxu0 0.0
        %330 = vmatpush.msra.mxu0 0.0
        %331 = vmatpush.msra.mxu0 0.0
        %332 = vmatpush.msra.mxu0 0.0
        %333 = vmatpush.msra.mxu0 0.0
        %334 = vmatpush.msra.mxu0 0.0
        %335 = vmatpush.msra.mxu0 %v304
        %336 = vmatmul.f32.gmra.mxu0 %v301
        %v337 = vpop.f32.mrf.mxu0
        %v338 = vadd.f32 0.0, %v337
        %339 = vdwg.mxu0
        %340 = vmatpush.msra.mxu0 0.0
        %341 = vmatpush.msra.mxu0 0.0
        %342 = vmatpush.msra.mxu0 0.0
        %343 = vmatpush.msra.mxu0 0.0
        %344 = vmatpush.msra.mxu0 0.0
        %345 = vmatpush.msra.mxu0 0.0
        %346 = vmatpush.msra.mxu0 0.0
        %347 = vmatpush.msra.mxu0 0.0
        %348 = vmatpush.msra.mxu0 0.0
        %349 = vmatpush.msra.mxu0 0.0
        %350 = vmatpush.msra.mxu0 0.0
        %351 = vmatpush.msra.mxu0 0.0
        %352 = vmatpush.msra.mxu0 0.0
        %353 = vmatpush.msra.mxu0 0.0
        %354 = vmatpush.msra.mxu0 0.0
        %355 = vmatpush.msra.mxu0 %v306
        %356 = vmatmul.f32.gmra.mxu0 %v301
        %v357 = vpop.f32.mrf.mxu0
        %v358 = vadd.f32 0.0, %v357
        %359 = vdwg.mxu0
        %360 = vmatpush.msra.mxu0 0.0
        %361 = vmatpush.msra.mxu0 0.0
        %362 = vmatpush.msra.mxu0 0.0
        %363 = vmatpush.msra.mxu0 0.0
        %364 = vmatpush.msra.mxu0 0.0
        %365 = vmatpush.msra.mxu0 0.0
        %366 = vmatpush.msra.mxu0 0.0
        %367 = vmatpush.msra.mxu0 0.0
        %368 = vmatpush.msra.mxu0 0.0
        %369 = vmatpush.msra.mxu0 0.0
        %370 = vmatpush.msra.mxu0 0.0
        %371 = vmatpush.msra.mxu0 0.0
        %372 = vmatpush.msra.mxu0 0.0
        %373 = vmatpush.msra.mxu0 0.0
        %374 = vmatpush.msra.mxu0 0.0
        %375 = vmatpush.msra.mxu0 %v308
        %376 = vmatmul.f32.gmra.mxu0 %v301
        %v377 = vpop.f32.mrf.mxu0
        %v378 = vadd.f32 0.0, %v377
        %379 = vdwg.mxu0
        %380 = vmatpush.msra.mxu0 0.0
        %381 = vmatpush.msra.mxu0 0.0
        %382 = vmatpush.msra.mxu0 0.0
        %383 = vmatpush.msra.mxu0 0.0
        %384 = vmatpush.msra.mxu0 0.0
        %385 = vmatpush.msra.mxu0 0.0
        %386 = vmatpush.msra.mxu0 0.0
        %387 = vmatpush.msra.mxu0 0.0
        %388 = vmatpush.msra.mxu0 0.0
        %389 = vmatpush.msra.mxu0 0.0
        %390 = vmatpush.msra.mxu0 0.0
        %391 = vmatpush.msra.mxu0 0.0
        %392 = vmatpush.msra.mxu0 0.0
        %393 = vmatpush.msra.mxu0 0.0
        %394 = vmatpush.msra.mxu0 0.0
        %395 = vmatpush.msra.mxu0 %v310
        %396 = vmatmul.f32.gmra.mxu0 %v301
        %v397 = vpop.f32.mrf.mxu0
        %v398 = vadd.f32 0.0, %v397
        %399 = vdwg.mxu0
        %400 = vmatpush.msra.mxu0 0.0
        %401 = vmatpush.msra.mxu0 0.0
        %402 = vmatpush.msra.mxu0 0.0
        %403 = vmatpush.msra.mxu0 0.0
        %404 = vmatpush.msra.mxu0 0.0
        %405 = vmatpush.msra.mxu0 0.0
        %406 = vmatpush.msra.mxu0 0.0
        %407 = vmatpush.msra.mxu0 0.0
        %408 = vmatpush.msra.mxu0 0.0
        %409 = vmatpush.msra.mxu0 0.0
        %410 = vmatpush.msra.mxu0 0.0
        %411 = vmatpush.msra.mxu0 0.0
        %412 = vmatpush.msra.mxu0 0.0
        %413 = vmatpush.msra.mxu0 0.0
        %414 = vmatpush.msra.mxu0 0.0
        %415 = vmatpush.msra.mxu0 %v312
        %416 = vmatmul.f32.gmra.mxu0 %v301
        %v417 = vpop.f32.mrf.mxu0
        %v418 = vadd.f32 0.0, %v417
        %419 = vdwg.mxu0
        %420 = vmatpush.msra.mxu0 0.0
        %421 = vmatpush.msra.mxu0 0.0
        %422 = vmatpush.msra.mxu0 0.0
        %423 = vmatpush.msra.mxu0 0.0
        %424 = vmatpush.msra.mxu0 0.0
        %425 = vmatpush.msra.mxu0 0.0
        %426 = vmatpush.msra.mxu0 0.0
        %427 = vmatpush.msra.mxu0 0.0
        %428 = vmatpush.msra.mxu0 0.0
        %429 = vmatpush.msra.mxu0 0.0
        %430 = vmatpush.msra.mxu0 0.0
        %431 = vmatpush.msra.mxu0 0.0
        %432 = vmatpush.msra.mxu0 0.0
        %433 = vmatpush.msra.mxu0 0.0
        %434 = vmatpush.msra.mxu0 0.0
        %435 = vmatpush.msra.mxu0 %v314
        %436 = vmatmul.f32.gmra.mxu0 %v301
        %v437 = vpop.f32.mrf.mxu0
        %v438 = vadd.f32 0.0, %v437
        %439 = vdwg.mxu0
        %440 = vmatpush.msra.mxu0 0.0
        %441 = vmatpush.msra.mxu0 0.0
        %442 = vmatpush.msra.mxu0 0.0
        %443 = vmatpush.msra.mxu0 0.0
        %444 = vmatpush.msra.mxu0 0.0
        %445 = vmatpush.msra.mxu0 0.0
        %446 = vmatpush.msra.mxu0 0.0
        %447 = vmatpush.msra.mxu0 0.0
        %448 = vmatpush.msra.mxu0 0.0
        %449 = vmatpush.msra.mxu0 0.0
        %450 = vmatpush.msra.mxu0 0.0
        %451 = vmatpush.msra.mxu0 0.0
        %452 = vmatpush.msra.mxu0 0.0
        %453 = vmatpush.msra.mxu0 0.0
        %454 = vmatpush.msra.mxu0 0.0
        %455 = vmatpush.msra.mxu0 %v316
        %456 = vmatmul.f32.gmra.mxu0 %v301
        %v457 = vpop.f32.mrf.mxu0
        %v458 = vadd.f32 0.0, %v457
        %459 = vdwg.mxu0
        %460 = vmatpush.msra.mxu0 0.0
        %461 = vmatpush.msra.mxu0 0.0
        %462 = vmatpush.msra.mxu0 0.0
        %463 = vmatpush.msra.mxu0 0.0
        %464 = vmatpush.msra.mxu0 0.0
        %465 = vmatpush.msra.mxu0 0.0
        %466 = vmatpush.msra.mxu0 0.0
        %467 = vmatpush.msra.mxu0 0.0
        %468 = vmatpush.msra.mxu0 0.0
        %469 = vmatpush.msra.mxu0 0.0
        %470 = vmatpush.msra.mxu0 0.0
        %471 = vmatpush.msra.mxu0 0.0
        %472 = vmatpush.msra.mxu0 0.0
        %473 = vmatpush.msra.mxu0 0.0
        %474 = vmatpush.msra.mxu0 0.0
        %475 = vmatpush.msra.mxu0 %v318
        %476 = vmatmul.f32.gmra.mxu0 %v301
        %v477 = vpop.f32.mrf.mxu0
        %v478 = vadd.f32 0.0, %v477
        %479 = vdwg.mxu0
        %480 = vst [vmem:[#allocation1] ss:$2 sm:$0xff] %v242
        %s481 = scalar_lea.vmem [#allocation1], 16
        %482 = vst [vmem:[%s481] ss:$2 sm:$0xff] %v243
        %s483 = scalar_lea.vmem [#allocation1], 32
        %484 = vst [vmem:[%s483] ss:$2 sm:$0xff] %v244
        %s485 = scalar_lea.vmem [#allocation1], 48
        %486 = vst [vmem:[%s485] ss:$2 sm:$0xff] %v245
        %v487 = vld.sshfl [vmem:[#allocation1] sm:$0xff pattern:$0x75316420]
        %v488 = vld.sshfl [vmem:[#allocation1 + $0x8] sm:$0xff pattern:$0x75316420]
        %v489 = vld.sshfl [vmem:[#allocation1 + $0x10] sm:$0xff pattern:$0x75316420]
        %v490 = vld.sshfl [vmem:[#allocation1 + $0x18] sm:$0xff pattern:$0x75316420]
        %v491 = vld.sshfl [vmem:[#allocation1 + $0x20] sm:$0xff pattern:$0x75316420]
        %v492 = vld.sshfl [vmem:[#allocation1 + $0x28] sm:$0xff pattern:$0x75316420]
        %v493 = vld.sshfl [vmem:[#allocation1 + $0x30] sm:$0xff pattern:$0x75316420]
        %v494 = vld.sshfl [vmem:[#allocation1 + $0x38] sm:$0xff pattern:$0x75316420]
        %495 = vst [vmem:[#allocation1] ss:$2 sm:$0xff] %v246
        %v496 = vld.sshfl [vmem:[#allocation1] sm:$0xff pattern:$0x75316420]
        %497 = vrot.lane.b32.xlu0 %v487, 111
        %v498 = vpop.permute.xlu0 %497
        %499 = vrot.lane.b32.xlu0 %v488, 111
        %v500 = vpop.permute.xlu0 %499
        %501 = vrot.lane.b32.xlu0 %v489, 111
        %v502 = vpop.permute.xlu0 %501
        %503 = vrot.lane.b32.xlu0 %v490, 111
        %v504 = vpop.permute.xlu0 %503
        %505 = vrot.lane.b32.xlu0 %v491, 111
        %v506 = vpop.permute.xlu0 %505
        %507 = vrot.lane.b32.xlu0 %v492, 111
        %v508 = vpop.permute.xlu0 %507
        %509 = vrot.lane.b32.xlu0 %v493, 111
        %v510 = vpop.permute.xlu0 %509
        %511 = vrot.lane.b32.xlu0 %v494, 111
        %v512 = vpop.permute.xlu0 %511
        %513 = vrot.lane.b32.xlu0 %v496, 111
        %v514 = vpop.permute.xlu0 %513
        %vm515 = vcmask 908288
        %v516 = vsel %vm515, %v498, %v500
        %v517 = vsel %vm515, %v500, %v502
        %v518 = vsel %vm515, %v502, %v504
        %v519 = vsel %vm515, %v504, %v506
        %v520 = vsel %vm515, %v506, %v508
        %v521 = vsel %vm515, %v508, %v510
        %v522 = vsel %vm515, %v510, %v512
        %v523 = vsel %vm515, %v512, %v514
        %v525 = vsel %vm299, %v247, 0
        %v527 = vsel %vm303, %v516, 0
        %v529 = vsel %vm303, %v517, 0
        %v531 = vsel %vm303, %v518, 0
        %v533 = vsel %vm303, %v519, 0
        %v535 = vsel %vm303, %v520, 0
        %v537 = vsel %vm303, %v521, 0
        %v539 = vsel %vm303, %v522, 0
        %v541 = vsel %vm303, %v523, 0
        %543 = vmatpush.msra.mxu0 0.0
        %544 = vmatpush.msra.mxu0 0.0
        %545 = vmatpush.msra.mxu0 0.0
        %546 = vmatpush.msra.mxu0 0.0
        %547 = vmatpush.msra.mxu0 0.0
        %548 = vmatpush.msra.mxu0 0.0
        %549 = vmatpush.msra.mxu0 0.0
        %550 = vmatpush.msra.mxu0 0.0
        %551 = vmatpush.msra.mxu0 0.0
        %552 = vmatpush.msra.mxu0 0.0
        %553 = vmatpush.msra.mxu0 0.0
        %554 = vmatpush.msra.mxu0 0.0
        %555 = vmatpush.msra.mxu0 0.0
        %556 = vmatpush.msra.mxu0 0.0
        %557 = vmatpush.msra.mxu0 0.0
        %558 = vmatpush.msra.mxu0 %v527
        %559 = vmatmul.f32.gmra.mxu0 %v525
        %v560 = vpop.f32.mrf.mxu0
        %v561 = vadd.f32 %v338, %v560
        %562 = vdwg.mxu0
        %563 = vmatpush.msra.mxu0 0.0
        %564 = vmatpush.msra.mxu0 0.0
        %565 = vmatpush.msra.mxu0 0.0
        %566 = vmatpush.msra.mxu0 0.0
        %567 = vmatpush.msra.mxu0 0.0
        %568 = vmatpush.msra.mxu0 0.0
        %569 = vmatpush.msra.mxu0 0.0
        %570 = vmatpush.msra.mxu0 0.0
        %571 = vmatpush.msra.mxu0 0.0
        %572 = vmatpush.msra.mxu0 0.0
        %573 = vmatpush.msra.mxu0 0.0
        %574 = vmatpush.msra.mxu0 0.0
        %575 = vmatpush.msra.mxu0 0.0
        %576 = vmatpush.msra.mxu0 0.0
        %577 = vmatpush.msra.mxu0 0.0
        %578 = vmatpush.msra.mxu0 %v529
        %579 = vmatmul.f32.gmra.mxu0 %v525
        %v580 = vpop.f32.mrf.mxu0
        %v581 = vadd.f32 %v358, %v580
        %582 = vdwg.mxu0
        %583 = vmatpush.msra.mxu0 0.0
        %584 = vmatpush.msra.mxu0 0.0
        %585 = vmatpush.msra.mxu0 0.0
        %586 = vmatpush.msra.mxu0 0.0
        %587 = vmatpush.msra.mxu0 0.0
        %588 = vmatpush.msra.mxu0 0.0
        %589 = vmatpush.msra.mxu0 0.0
        %590 = vmatpush.msra.mxu0 0.0
        %591 = vmatpush.msra.mxu0 0.0
        %592 = vmatpush.msra.mxu0 0.0
        %593 = vmatpush.msra.mxu0 0.0
        %594 = vmatpush.msra.mxu0 0.0
        %595 = vmatpush.msra.mxu0 0.0
        %596 = vmatpush.msra.mxu0 0.0
        %597 = vmatpush.msra.mxu0 0.0
        %598 = vmatpush.msra.mxu0 %v531
        %599 = vmatmul.f32.gmra.mxu0 %v525
        %v600 = vpop.f32.mrf.mxu0
        %v601 = vadd.f32 %v378, %v600
        %602 = vdwg.mxu0
        %603 = vmatpush.msra.mxu0 0.0
        %604 = vmatpush.msra.mxu0 0.0
        %605 = vmatpush.msra.mxu0 0.0
        %606 = vmatpush.msra.mxu0 0.0
        %607 = vmatpush.msra.mxu0 0.0
        %608 = vmatpush.msra.mxu0 0.0
        %609 = vmatpush.msra.mxu0 0.0
        %610 = vmatpush.msra.mxu0 0.0
        %611 = vmatpush.msra.mxu0 0.0
        %612 = vmatpush.msra.mxu0 0.0
        %613 = vmatpush.msra.mxu0 0.0
        %614 = vmatpush.msra.mxu0 0.0
        %615 = vmatpush.msra.mxu0 0.0
        %616 = vmatpush.msra.mxu0 0.0
        %617 = vmatpush.msra.mxu0 0.0
        %618 = vmatpush.msra.mxu0 %v533
        %619 = vmatmul.f32.gmra.mxu0 %v525
        %v620 = vpop.f32.mrf.mxu0
        %v621 = vadd.f32 %v398, %v620
        %622 = vdwg.mxu0
        %623 = vmatpush.msra.mxu0 0.0
        %624 = vmatpush.msra.mxu0 0.0
        %625 = vmatpush.msra.mxu0 0.0
        %626 = vmatpush.msra.mxu0 0.0
        %627 = vmatpush.msra.mxu0 0.0
        %628 = vmatpush.msra.mxu0 0.0
        %629 = vmatpush.msra.mxu0 0.0
        %630 = vmatpush.msra.mxu0 0.0
        %631 = vmatpush.msra.mxu0 0.0
        %632 = vmatpush.msra.mxu0 0.0
        %633 = vmatpush.msra.mxu0 0.0
        %634 = vmatpush.msra.mxu0 0.0
        %635 = vmatpush.msra.mxu0 0.0
        %636 = vmatpush.msra.mxu0 0.0
        %637 = vmatpush.msra.mxu0 0.0
        %638 = vmatpush.msra.mxu0 %v535
        %639 = vmatmul.f32.gmra.mxu0 %v525
        %v640 = vpop.f32.mrf.mxu0
        %v641 = vadd.f32 %v418, %v640
        %642 = vdwg.mxu0
        %643 = vmatpush.msra.mxu0 0.0
        %644 = vmatpush.msra.mxu0 0.0
        %645 = vmatpush.msra.mxu0 0.0
        %646 = vmatpush.msra.mxu0 0.0
        %647 = vmatpush.msra.mxu0 0.0
        %648 = vmatpush.msra.mxu0 0.0
        %649 = vmatpush.msra.mxu0 0.0
        %650 = vmatpush.msra.mxu0 0.0
        %651 = vmatpush.msra.mxu0 0.0
        %652 = vmatpush.msra.mxu0 0.0
        %653 = vmatpush.msra.mxu0 0.0
        %654 = vmatpush.msra.mxu0 0.0
        %655 = vmatpush.msra.mxu0 0.0
        %656 = vmatpush.msra.mxu0 0.0
        %657 = vmatpush.msra.mxu0 0.0
        %658 = vmatpush.msra.mxu0 %v537
        %659 = vmatmul.f32.gmra.mxu0 %v525
        %v660 = vpop.f32.mrf.mxu0
        %v661 = vadd.f32 %v438, %v660
        %662 = vdwg.mxu0
        %663 = vmatpush.msra.mxu0 0.0
        %664 = vmatpush.msra.mxu0 0.0
        %665 = vmatpush.msra.mxu0 0.0
        %666 = vmatpush.msra.mxu0 0.0
        %667 = vmatpush.msra.mxu0 0.0
        %668 = vmatpush.msra.mxu0 0.0
        %669 = vmatpush.msra.mxu0 0.0
        %670 = vmatpush.msra.mxu0 0.0
        %671 = vmatpush.msra.mxu0 0.0
        %672 = vmatpush.msra.mxu0 0.0
        %673 = vmatpush.msra.mxu0 0.0
        %674 = vmatpush.msra.mxu0 0.0
        %675 = vmatpush.msra.mxu0 0.0
        %676 = vmatpush.msra.mxu0 0.0
        %677 = vmatpush.msra.mxu0 0.0
        %678 = vmatpush.msra.mxu0 %v539
        %679 = vmatmul.f32.gmra.mxu0 %v525
        %v680 = vpop.f32.mrf.mxu0
        %v681 = vadd.f32 %v458, %v680
        %682 = vdwg.mxu0
        %683 = vmatpush.msra.mxu0 0.0
        %684 = vmatpush.msra.mxu0 0.0
        %685 = vmatpush.msra.mxu0 0.0
        %686 = vmatpush.msra.mxu0 0.0
        %687 = vmatpush.msra.mxu0 0.0
        %688 = vmatpush.msra.mxu0 0.0
        %689 = vmatpush.msra.mxu0 0.0
        %690 = vmatpush.msra.mxu0 0.0
        %691 = vmatpush.msra.mxu0 0.0
        %692 = vmatpush.msra.mxu0 0.0
        %693 = vmatpush.msra.mxu0 0.0
        %694 = vmatpush.msra.mxu0 0.0
        %695 = vmatpush.msra.mxu0 0.0
        %696 = vmatpush.msra.mxu0 0.0
        %697 = vmatpush.msra.mxu0 0.0
        %698 = vmatpush.msra.mxu0 %v541
        %699 = vmatmul.f32.gmra.mxu0 %v525
        %v700 = vpop.f32.mrf.mxu0
        %v701 = vadd.f32 %v478, %v700
        %702 = vdwg.mxu0
        %s703 = scalar_lea.vmem %s1, 16
        %v704 = vld [vmem:[%s703] sm:$0xff]
        %705 = vst [vmem:[#allocation1] ss:$2 sm:$0xff] %v242
        %s706 = scalar_lea.vmem [#allocation1], 16
        %707 = vst [vmem:[%s706] ss:$2 sm:$0xff] %v243
        %s708 = scalar_lea.vmem [#allocation1], 32
        %709 = vst [vmem:[%s708] ss:$2 sm:$0xff] %v244
        %s710 = scalar_lea.vmem [#allocation1], 48
        %711 = vst [vmem:[%s710] ss:$2 sm:$0xff] %v245
        %v712 = vld.sshfl [vmem:[#allocation1] sm:$0xff pattern:$0x75316420]
        %v713 = vld.sshfl [vmem:[#allocation1 + $0x8] sm:$0xff pattern:$0x75316420]
        %v714 = vld.sshfl [vmem:[#allocation1 + $0x10] sm:$0xff pattern:$0x75316420]
        %v715 = vld.sshfl [vmem:[#allocation1 + $0x18] sm:$0xff pattern:$0x75316420]
        %v716 = vld.sshfl [vmem:[#allocation1 + $0x20] sm:$0xff pattern:$0x75316420]
        %v717 = vld.sshfl [vmem:[#allocation1 + $0x28] sm:$0xff pattern:$0x75316420]
        %v718 = vld.sshfl [vmem:[#allocation1 + $0x30] sm:$0xff pattern:$0x75316420]
        %v719 = vld.sshfl [vmem:[#allocation1 + $0x38] sm:$0xff pattern:$0x75316420]
        %720 = vst [vmem:[#allocation1] ss:$2 sm:$0xff] %v246
        %v721 = vld.sshfl [vmem:[#allocation1] sm:$0xff pattern:$0x75316420]
        %722 = vrot.lane.b32.xlu0 %v712, 109
        %v723 = vpop.permute.xlu0 %722
        %724 = vrot.lane.b32.xlu0 %v713, 109
        %v725 = vpop.permute.xlu0 %724
        %726 = vrot.lane.b32.xlu0 %v714, 109
        %v727 = vpop.permute.xlu0 %726
        %728 = vrot.lane.b32.xlu0 %v715, 109
        %v729 = vpop.permute.xlu0 %728
        %730 = vrot.lane.b32.xlu0 %v716, 109
        %v731 = vpop.permute.xlu0 %730
        %732 = vrot.lane.b32.xlu0 %v717, 109
        %v733 = vpop.permute.xlu0 %732
        %734 = vrot.lane.b32.xlu0 %v718, 109
        %v735 = vpop.permute.xlu0 %734
        %736 = vrot.lane.b32.xlu0 %v719, 109
        %v737 = vpop.permute.xlu0 %736
        %738 = vrot.lane.b32.xlu0 %v721, 109
        %v739 = vpop.permute.xlu0 %738
        %vm740 = vcmask 891904
        %v741 = vsel %vm740, %v723, %v725
        %v742 = vsel %vm740, %v725, %v727
        %v743 = vsel %vm740, %v727, %v729
        %v744 = vsel %vm740, %v729, %v731
        %v745 = vsel %vm740, %v731, %v733
        %v746 = vsel %vm740, %v733, %v735
        %v747 = vsel %vm740, %v735, %v737
        %v748 = vsel %vm740, %v737, %v739
        %v750 = vsel %vm299, %v704, 0
        %v752 = vsel %vm303, %v741, 0
        %v754 = vsel %vm303, %v742, 0
        %v756 = vsel %vm303, %v743, 0
        %v758 = vsel %vm303, %v744, 0
        %v760 = vsel %vm303, %v745, 0
        %v762 = vsel %vm303, %v746, 0
        %v764 = vsel %vm303, %v747, 0
        %v766 = vsel %vm303, %v748, 0
        %768 = vmatpush.msra.mxu0 0.0
        %769 = vmatpush.msra.mxu0 0.0
        %770 = vmatpush.msra.mxu0 0.0
        %771 = vmatpush.msra.mxu0 0.0
        %772 = vmatpush.msra.mxu0 0.0
        %773 = vmatpush.msra.mxu0 0.0
        %774 = vmatpush.msra.mxu0 0.0
        %775 = vmatpush.msra.mxu0 0.0
        %776 = vmatpush.msra.mxu0 0.0
        %777 = vmatpush.msra.mxu0 0.0
        %778 = vmatpush.msra.mxu0 0.0
        %779 = vmatpush.msra.mxu0 0.0
        %780 = vmatpush.msra.mxu0 0.0
        %781 = vmatpush.msra.mxu0 0.0
        %782 = vmatpush.msra.mxu0 0.0
        %783 = vmatpush.msra.mxu0 %v752
        %784 = vmatmul.f32.gmra.mxu0 %v750
        %v785 = vpop.f32.mrf.mxu0
        %v786 = vadd.f32 0.0, %v785
        %787 = vdwg.mxu0
        %788 = vmatpush.msra.mxu0 0.0
        %789 = vmatpush.msra.mxu0 0.0
        %790 = vmatpush.msra.mxu0 0.0
        %791 = vmatpush.msra.mxu0 0.0
        %792 = vmatpush.msra.mxu0 0.0
        %793 = vmatpush.msra.mxu0 0.0
        %794 = vmatpush.msra.mxu0 0.0
        %795 = vmatpush.msra.mxu0 0.0
        %796 = vmatpush.msra.mxu0 0.0
        %797 = vmatpush.msra.mxu0 0.0
        %798 = vmatpush.msra.mxu0 0.0
        %799 = vmatpush.msra.mxu0 0.0
        %800 = vmatpush.msra.mxu0 0.0
        %801 = vmatpush.msra.mxu0 0.0
        %802 = vmatpush.msra.mxu0 0.0
        %803 = vmatpush.msra.mxu0 %v754
        %804 = vmatmul.f32.gmra.mxu0 %v750
        %v805 = vpop.f32.mrf.mxu0
        %v806 = vadd.f32 0.0, %v805
        %807 = vdwg.mxu0
        %808 = vmatpush.msra.mxu0 0.0
        %809 = vmatpush.msra.mxu0 0.0
        %810 = vmatpush.msra.mxu0 0.0
        %811 = vmatpush.msra.mxu0 0.0
        %812 = vmatpush.msra.mxu0 0.0
        %813 = vmatpush.msra.mxu0 0.0
        %814 = vmatpush.msra.mxu0 0.0
        %815 = vmatpush.msra.mxu0 0.0
        %816 = vmatpush.msra.mxu0 0.0
        %817 = vmatpush.msra.mxu0 0.0
        %818 = vmatpush.msra.mxu0 0.0
        %819 = vmatpush.msra.mxu0 0.0
        %820 = vmatpush.msra.mxu0 0.0
        %821 = vmatpush.msra.mxu0 0.0
        %822 = vmatpush.msra.mxu0 0.0
        %823 = vmatpush.msra.mxu0 %v756
        %824 = vmatmul.f32.gmra.mxu0 %v750
        %v825 = vpop.f32.mrf.mxu0
        %v826 = vadd.f32 0.0, %v825
        %827 = vdwg.mxu0
        %828 = vmatpush.msra.mxu0 0.0
        %829 = vmatpush.msra.mxu0 0.0
        %830 = vmatpush.msra.mxu0 0.0
        %831 = vmatpush.msra.mxu0 0.0
        %832 = vmatpush.msra.mxu0 0.0
        %833 = vmatpush.msra.mxu0 0.0
        %834 = vmatpush.msra.mxu0 0.0
        %835 = vmatpush.msra.mxu0 0.0
        %836 = vmatpush.msra.mxu0 0.0
        %837 = vmatpush.msra.mxu0 0.0
        %838 = vmatpush.msra.mxu0 0.0
        %839 = vmatpush.msra.mxu0 0.0
        %840 = vmatpush.msra.mxu0 0.0
        %841 = vmatpush.msra.mxu0 0.0
        %842 = vmatpush.msra.mxu0 0.0
        %843 = vmatpush.msra.mxu0 %v758
        %844 = vmatmul.f32.gmra.mxu0 %v750
        %v845 = vpop.f32.mrf.mxu0
        %v846 = vadd.f32 0.0, %v845
        %847 = vdwg.mxu0
        %848 = vmatpush.msra.mxu0 0.0
        %849 = vmatpush.msra.mxu0 0.0
        %850 = vmatpush.msra.mxu0 0.0
        %851 = vmatpush.msra.mxu0 0.0
        %852 = vmatpush.msra.mxu0 0.0
        %853 = vmatpush.msra.mxu0 0.0
        %854 = vmatpush.msra.mxu0 0.0
        %855 = vmatpush.msra.mxu0 0.0
        %856 = vmatpush.msra.mxu0 0.0
        %857 = vmatpush.msra.mxu0 0.0
        %858 = vmatpush.msra.mxu0 0.0
        %859 = vmatpush.msra.mxu0 0.0
        %860 = vmatpush.msra.mxu0 0.0
        %861 = vmatpush.msra.mxu0 0.0
        %862 = vmatpush.msra.mxu0 0.0
        %863 = vmatpush.msra.mxu0 %v760
        %864 = vmatmul.f32.gmra.mxu0 %v750
        %v865 = vpop.f32.mrf.mxu0
        %v866 = vadd.f32 0.0, %v865
        %867 = vdwg.mxu0
        %868 = vmatpush.msra.mxu0 0.0
        %869 = vmatpush.msra.mxu0 0.0
        %870 = vmatpush.msra.mxu0 0.0
        %871 = vmatpush.msra.mxu0 0.0
        %872 = vmatpush.msra.mxu0 0.0
        %873 = vmatpush.msra.mxu0 0.0
        %874 = vmatpush.msra.mxu0 0.0
        %875 = vmatpush.msra.mxu0 0.0
        %876 = vmatpush.msra.mxu0 0.0
        %877 = vmatpush.msra.mxu0 0.0
        %878 = vmatpush.msra.mxu0 0.0
        %879 = vmatpush.msra.mxu0 0.0
        %880 = vmatpush.msra.mxu0 0.0
        %881 = vmatpush.msra.mxu0 0.0
        %882 = vmatpush.msra.mxu0 0.0
        %883 = vmatpush.msra.mxu0 %v762
        %884 = vmatmul.f32.gmra.mxu0 %v750
        %v885 = vpop.f32.mrf.mxu0
        %v886 = vadd.f32 0.0, %v885
        %887 = vdwg.mxu0
        %888 = vmatpush.msra.mxu0 0.0
        %889 = vmatpush.msra.mxu0 0.0
        %890 = vmatpush.msra.mxu0 0.0
        %891 = vmatpush.msra.mxu0 0.0
        %892 = vmatpush.msra.mxu0 0.0
        %893 = vmatpush.msra.mxu0 0.0
        %894 = vmatpush.msra.mxu0 0.0
        %895 = vmatpush.msra.mxu0 0.0
        %896 = vmatpush.msra.mxu0 0.0
        %897 = vmatpush.msra.mxu0 0.0
        %898 = vmatpush.msra.mxu0 0.0
        %899 = vmatpush.msra.mxu0 0.0
        %900 = vmatpush.msra.mxu0 0.0
        %901 = vmatpush.msra.mxu0 0.0
        %902 = vmatpush.msra.mxu0 0.0
        %903 = vmatpush.msra.mxu0 %v764
        %904 = vmatmul.f32.gmra.mxu0 %v750
        %v905 = vpop.f32.mrf.mxu0
        %v906 = vadd.f32 0.0, %v905
        %907 = vdwg.mxu0
        %908 = vmatpush.msra.mxu0 0.0
        %909 = vmatpush.msra.mxu0 0.0
        %910 = vmatpush.msra.mxu0 0.0
        %911 = vmatpush.msra.mxu0 0.0
        %912 = vmatpush.msra.mxu0 0.0
        %913 = vmatpush.msra.mxu0 0.0
        %914 = vmatpush.msra.mxu0 0.0
        %915 = vmatpush.msra.mxu0 0.0
        %916 = vmatpush.msra.mxu0 0.0
        %917 = vmatpush.msra.mxu0 0.0
        %918 = vmatpush.msra.mxu0 0.0
        %919 = vmatpush.msra.mxu0 0.0
        %920 = vmatpush.msra.mxu0 0.0
        %921 = vmatpush.msra.mxu0 0.0
        %922 = vmatpush.msra.mxu0 0.0
        %923 = vmatpush.msra.mxu0 %v766
        %924 = vmatmul.f32.gmra.mxu0 %v750
        %v925 = vpop.f32.mrf.mxu0
        %v926 = vadd.f32 0.0, %v925
        %927 = vdwg.mxu0
        %v928 = vadd.f32 %v561, %v786
        %v929 = vadd.f32 %v581, %v806
        %v930 = vadd.f32 %v601, %v826
        %v931 = vadd.f32 %v621, %v846
        %v932 = vadd.f32 %v641, %v866
        %v933 = vadd.f32 %v661, %v886
        %v934 = vadd.f32 %v681, %v906
        %v935 = vadd.f32 %v701, %v926
        %s936 = scalar_lea.vmem %s1, 24
        %v937 = vld [vmem:[%s936] sm:$0xff]
        %938 = vst [vmem:[#allocation1] ss:$2 sm:$0xff] %v242
        %s939 = scalar_lea.vmem [#allocation1], 16
        %940 = vst [vmem:[%s939] ss:$2 sm:$0xff] %v243
        %s941 = scalar_lea.vmem [#allocation1], 32
        %942 = vst [vmem:[%s941] ss:$2 sm:$0xff] %v244
        %s943 = scalar_lea.vmem [#allocation1], 48
        %944 = vst [vmem:[%s943] ss:$2 sm:$0xff] %v245
        %v945 = vld.sshfl [vmem:[#allocation1] sm:$0xff pattern:$0x75316420]
        %v946 = vld.sshfl [vmem:[#allocation1 + $0x8] sm:$0xff pattern:$0x75316420]
        %v947 = vld.sshfl [vmem:[#allocation1 + $0x10] sm:$0xff pattern:$0x75316420]
        %v948 = vld.sshfl [vmem:[#allocation1 + $0x18] sm:$0xff pattern:$0x75316420]
        %v949 = vld.sshfl [vmem:[#allocation1 + $0x20] sm:$0xff pattern:$0x75316420]
        %v950 = vld.sshfl [vmem:[#allocation1 + $0x28] sm:$0xff pattern:$0x75316420]
        %v951 = vld.sshfl [vmem:[#allocation1 + $0x30] sm:$0xff pattern:$0x75316420]
        %v952 = vld.sshfl [vmem:[#allocation1 + $0x38] sm:$0xff pattern:$0x75316420]
        %953 = vst [vmem:[#allocation1] ss:$2 sm:$0xff] %v246
        %v954 = vld.sshfl [vmem:[#allocation1] sm:$0xff pattern:$0x75316420]
        %955 = vrot.lane.b32.xlu0 %v945, 101
        %v956 = vpop.permute.xlu0 %955
        %957 = vrot.lane.b32.xlu0 %v946, 101
        %v958 = vpop.permute.xlu0 %957
        %959 = vrot.lane.b32.xlu0 %v947, 101
        %v960 = vpop.permute.xlu0 %959
        %961 = vrot.lane.b32.xlu0 %v948, 101
        %v962 = vpop.permute.xlu0 %961
        %963 = vrot.lane.b32.xlu0 %v949, 101
        %v964 = vpop.permute.xlu0 %963
        %965 = vrot.lane.b32.xlu0 %v950, 101
        %v966 = vpop.permute.xlu0 %965
        %967 = vrot.lane.b32.xlu0 %v951, 101
        %v968 = vpop.permute.xlu0 %967
        %969 = vrot.lane.b32.xlu0 %v952, 101
        %v970 = vpop.permute.xlu0 %969
        %971 = vrot.lane.b32.xlu0 %v954, 101
        %v972 = vpop.permute.xlu0 %971
        %vm973 = vcmask 826368
        %v974 = vsel %vm973, %v956, %v958
        %v975 = vsel %vm973, %v958, %v960
        %v976 = vsel %vm973, %v960, %v962
        %v977 = vsel %vm973, %v962, %v964
        %v978 = vsel %vm973, %v964, %v966
        %v979 = vsel %vm973, %v966, %v968
        %v980 = vsel %vm973, %v968, %v970
        %v981 = vsel %vm973, %v970, %v972
        %v983 = vsel %vm299, %v937, 0
        %v985 = vsel %vm303, %v974, 0
        %v987 = vsel %vm303, %v975, 0
        %v989 = vsel %vm303, %v976, 0
        %v991 = vsel %vm303, %v977, 0
        %v993 = vsel %vm303, %v978, 0
        %v995 = vsel %vm303, %v979, 0
        %v997 = vsel %vm303, %v980, 0
        %v999 = vsel %vm303, %v981, 0
        %1001 = vmatpush.msra.mxu0 0.0
        %1002 = vmatpush.msra.mxu0 0.0
        %1003 = vmatpush.msra.mxu0 0.0
        %1004 = vmatpush.msra.mxu0 0.0
        %1005 = vmatpush.msra.mxu0 0.0
        %1006 = vmatpush.msra.mxu0 0.0
        %1007 = vmatpush.msra.mxu0 0.0
        %1008 = vmatpush.msra.mxu0 0.0
        %1009 = vmatpush.msra.mxu0 0.0
        %1010 = vmatpush.msra.mxu0 0.0
        %1011 = vmatpush.msra.mxu0 0.0
        %1012 = vmatpush.msra.mxu0 0.0
        %1013 = vmatpush.msra.mxu0 0.0
        %1014 = vmatpush.msra.mxu0 0.0
        %1015 = vmatpush.msra.mxu0 0.0
        %1016 = vmatpush.msra.mxu0 %v985
        %1017 = vmatmul.f32.gmra.mxu0 %v983
        %v1018 = vpop.f32.mrf.mxu0
        %v1019 = vadd.f32 0.0, %v1018
        %1020 = vdwg.mxu0
        %1021 = vmatpush.msra.mxu0 0.0
        %1022 = vmatpush.msra.mxu0 0.0
        %1023 = vmatpush.msra.mxu0 0.0
        %1024 = vmatpush.msra.mxu0 0.0
        %1025 = vmatpush.msra.mxu0 0.0
        %1026 = vmatpush.msra.mxu0 0.0
        %1027 = vmatpush.msra.mxu0 0.0
        %1028 = vmatpush.msra.mxu0 0.0
        %1029 = vmatpush.msra.mxu0 0.0
        %1030 = vmatpush.msra.mxu0 0.0
        %1031 = vmatpush.msra.mxu0 0.0
        %1032 = vmatpush.msra.mxu0 0.0
        %1033 = vmatpush.msra.mxu0 0.0
        %1034 = vmatpush.msra.mxu0 0.0
        %1035 = vmatpush.msra.mxu0 0.0
        %1036 = vmatpush.msra.mxu0 %v987
        %1037 = vmatmul.f32.gmra.mxu0 %v983
        %v1038 = vpop.f32.mrf.mxu0
        %v1039 = vadd.f32 0.0, %v1038
        %1040 = vdwg.mxu0
        %1041 = vmatpush.msra.mxu0 0.0
        %1042 = vmatpush.msra.mxu0 0.0
        %1043 = vmatpush.msra.mxu0 0.0
        %1044 = vmatpush.msra.mxu0 0.0
        %1045 = vmatpush.msra.mxu0 0.0
        %1046 = vmatpush.msra.mxu0 0.0
        %1047 = vmatpush.msra.mxu0 0.0
        %1048 = vmatpush.msra.mxu0 0.0
        %1049 = vmatpush.msra.mxu0 0.0
        %1050 = vmatpush.msra.mxu0 0.0
        %1051 = vmatpush.msra.mxu0 0.0
        %1052 = vmatpush.msra.mxu0 0.0
        %1053 = vmatpush.msra.mxu0 0.0
        %1054 = vmatpush.msra.mxu0 0.0
        %1055 = vmatpush.msra.mxu0 0.0
        %1056 = vmatpush.msra.mxu0 %v989
        %1057 = vmatmul.f32.gmra.mxu0 %v983
        %v1058 = vpop.f32.mrf.mxu0
        %v1059 = vadd.f32 0.0, %v1058
        %1060 = vdwg.mxu0
        %1061 = vmatpush.msra.mxu0 0.0
        %1062 = vmatpush.msra.mxu0 0.0
        %1063 = vmatpush.msra.mxu0 0.0
        %1064 = vmatpush.msra.mxu0 0.0
        %1065 = vmatpush.msra.mxu0 0.0
        %1066 = vmatpush.msra.mxu0 0.0
        %1067 = vmatpush.msra.mxu0 0.0
        %1068 = vmatpush.msra.mxu0 0.0
        %1069 = vmatpush.msra.mxu0 0.0
        %1070 = vmatpush.msra.mxu0 0.0
        %1071 = vmatpush.msra.mxu0 0.0
        %1072 = vmatpush.msra.mxu0 0.0
        %1073 = vmatpush.msra.mxu0 0.0
        %1074 = vmatpush.msra.mxu0 0.0
        %1075 = vmatpush.msra.mxu0 0.0
        %1076 = vmatpush.msra.mxu0 %v991
        %1077 = vmatmul.f32.gmra.mxu0 %v983
        %v1078 = vpop.f32.mrf.mxu0
        %v1079 = vadd.f32 0.0, %v1078
        %1080 = vdwg.mxu0
        %1081 = vmatpush.msra.mxu0 0.0
        %1082 = vmatpush.msra.mxu0 0.0
        %1083 = vmatpush.msra.mxu0 0.0
        %1084 = vmatpush.msra.mxu0 0.0
        %1085 = vmatpush.msra.mxu0 0.0
        %1086 = vmatpush.msra.mxu0 0.0
        %1087 = vmatpush.msra.mxu0 0.0
        %1088 = vmatpush.msra.mxu0 0.0
        %1089 = vmatpush.msra.mxu0 0.0
        %1090 = vmatpush.msra.mxu0 0.0
        %1091 = vmatpush.msra.mxu0 0.0
        %1092 = vmatpush.msra.mxu0 0.0
        %1093 = vmatpush.msra.mxu0 0.0
        %1094 = vmatpush.msra.mxu0 0.0
        %1095 = vmatpush.msra.mxu0 0.0
        %1096 = vmatpush.msra.mxu0 %v993
        %1097 = vmatmul.f32.gmra.mxu0 %v983
        %v1098 = vpop.f32.mrf.mxu0
        %v1099 = vadd.f32 0.0, %v1098
        %1100 = vdwg.mxu0
        %1101 = vmatpush.msra.mxu0 0.0
        %1102 = vmatpush.msra.mxu0 0.0
        %1103 = vmatpush.msra.mxu0 0.0
        %1104 = vmatpush.msra.mxu0 0.0
        %1105 = vmatpush.msra.mxu0 0.0
        %1106 = vmatpush.msra.mxu0 0.0
        %1107 = vmatpush.msra.mxu0 0.0
        %1108 = vmatpush.msra.mxu0 0.0
        %1109 = vmatpush.msra.mxu0 0.0
        %1110 = vmatpush.msra.mxu0 0.0
        %1111 = vmatpush.msra.mxu0 0.0
        %1112 = vmatpush.msra.mxu0 0.0
        %1113 = vmatpush.msra.mxu0 0.0
        %1114 = vmatpush.msra.mxu0 0.0
        %1115 = vmatpush.msra.mxu0 0.0
        %1116 = vmatpush.msra.mxu0 %v995
        %1117 = vmatmul.f32.gmra.mxu0 %v983
        %v1118 = vpop.f32.mrf.mxu0
        %v1119 = vadd.f32 0.0, %v1118
        %1120 = vdwg.mxu0
        %1121 = vmatpush.msra.mxu0 0.0
        %1122 = vmatpush.msra.mxu0 0.0
        %1123 = vmatpush.msra.mxu0 0.0
        %1124 = vmatpush.msra.mxu0 0.0
        %1125 = vmatpush.msra.mxu0 0.0
        %1126 = vmatpush.msra.mxu0 0.0
        %1127 = vmatpush.msra.mxu0 0.0
        %1128 = vmatpush.msra.mxu0 0.0
        %1129 = vmatpush.msra.mxu0 0.0
        %1130 = vmatpush.msra.mxu0 0.0
        %1131 = vmatpush.msra.mxu0 0.0
        %1132 = vmatpush.msra.mxu0 0.0
        %1133 = vmatpush.msra.mxu0 0.0
        %1134 = vmatpush.msra.mxu0 0.0
        %1135 = vmatpush.msra.mxu0 0.0
        %1136 = vmatpush.msra.mxu0 %v997
        %1137 = vmatmul.f32.gmra.mxu0 %v983
        %v1138 = vpop.f32.mrf.mxu0
        %v1139 = vadd.f32 0.0, %v1138
        %1140 = vdwg.mxu0
        %1141 = vmatpush.msra.mxu0 0.0
        %1142 = vmatpush.msra.mxu0 0.0
        %1143 = vmatpush.msra.mxu0 0.0
        %1144 = vmatpush.msra.mxu0 0.0
        %1145 = vmatpush.msra.mxu0 0.0
        %1146 = vmatpush.msra.mxu0 0.0
        %1147 = vmatpush.msra.mxu0 0.0
        %1148 = vmatpush.msra.mxu0 0.0
        %1149 = vmatpush.msra.mxu0 0.0
        %1150 = vmatpush.msra.mxu0 0.0
        %1151 = vmatpush.msra.mxu0 0.0
        %1152 = vmatpush.msra.mxu0 0.0
        %1153 = vmatpush.msra.mxu0 0.0
        %1154 = vmatpush.msra.mxu0 0.0
        %1155 = vmatpush.msra.mxu0 0.0
        %1156 = vmatpush.msra.mxu0 %v999
        %1157 = vmatmul.f32.gmra.mxu0 %v983
        %v1158 = vpop.f32.mrf.mxu0
        %v1159 = vadd.f32 0.0, %v1158
        %1160 = vdwg.mxu0
        %v1161 = vadd.f32 %v928, %v1019
        %v1162 = vadd.f32 %v929, %v1039
        %v1163 = vadd.f32 %v930, %v1059
        %v1164 = vadd.f32 %v931, %v1079
        %v1165 = vadd.f32 %v932, %v1099
        %v1166 = vadd.f32 %v933, %v1119
        %v1167 = vadd.f32 %v934, %v1139
        %v1168 = vadd.f32 %v935, %v1159
        %s1169 = scalar_lea.vmem %s1, 32
        %v1170 = vld [vmem:[%s1169] sm:$0xff]
        %1171 = vst [vmem:[#allocation1] ss:$2 sm:$0xff] %v242
        %s1172 = scalar_lea.vmem [#allocation1], 16
        %1173 = vst [vmem:[%s1172] ss:$2 sm:$0xff] %v243
        %s1174 = scalar_lea.vmem [#allocation1], 32
        %1175 = vst [vmem:[%s1174] ss:$2 sm:$0xff] %v244
        %s1176 = scalar_lea.vmem [#allocation1], 48
        %1177 = vst [vmem:[%s1176] ss:$2 sm:$0xff] %v245
        %v1178 = vld.sshfl [vmem:[#allocation1] sm:$0xff pattern:$0x75316420]
        %v1179 = vld.sshfl [vmem:[#allocation1 + $0x8] sm:$0xff pattern:$0x75316420]
        %v1180 = vld.sshfl [vmem:[#allocation1 + $0x10] sm:$0xff pattern:$0x75316420]
        %v1181 = vld.sshfl [vmem:[#allocation1 + $0x18] sm:$0xff pattern:$0x75316420]
        %v1182 = vld.sshfl [vmem:[#allocation1 + $0x20] sm:$0xff pattern:$0x75316420]
        %v1183 = vld.sshfl [vmem:[#allocation1 + $0x28] sm:$0xff pattern:$0x75316420]
        %v1184 = vld.sshfl [vmem:[#allocation1 + $0x30] sm:$0xff pattern:$0x75316420]
        %v1185 = vld.sshfl [vmem:[#allocation1 + $0x38] sm:$0xff pattern:$0x75316420]
        %1186 = vst [vmem:[#allocation1] ss:$2 sm:$0xff] %v246
        %v1187 = vld.sshfl [vmem:[#allocation1] sm:$0xff pattern:$0x75316420]
        %1188 = vrot.lane.b32.xlu0 %v1178, 100
        %v1189 = vpop.permute.xlu0 %1188
        %1190 = vrot.lane.b32.xlu0 %v1179, 100
        %v1191 = vpop.permute.xlu0 %1190
        %1192 = vrot.lane.b32.xlu0 %v1180, 100
        %v1193 = vpop.permute.xlu0 %1192
        %1194 = vrot.lane.b32.xlu0 %v1181, 100
        %v1195 = vpop.permute.xlu0 %1194
        %1196 = vrot.lane.b32.xlu0 %v1182, 100
        %v1197 = vpop.permute.xlu0 %1196
        %1198 = vrot.lane.b32.xlu0 %v1183, 100
        %v1199 = vpop.permute.xlu0 %1198
        %1200 = vrot.lane.b32.xlu0 %v1184, 100
        %v1201 = vpop.permute.xlu0 %1200
        %1202 = vrot.lane.b32.xlu0 %v1185, 100
        %v1203 = vpop.permute.xlu0 %1202
        %1204 = vrot.lane.b32.xlu0 %v1187, 100
        %v1205 = vpop.permute.xlu0 %1204
        %vm1206 = vcmask 818176
        %v1207 = vsel %vm1206, %v1189, %v1191
        %v1208 = vsel %vm1206, %v1191, %v1193
        %v1209 = vsel %vm1206, %v1193, %v1195
        %v1210 = vsel %vm1206, %v1195, %v1197
        %v1211 = vsel %vm1206, %v1197, %v1199
        %v1212 = vsel %vm1206, %v1199, %v1201
        %v1213 = vsel %vm1206, %v1201, %v1203
        %v1214 = vsel %vm1206, %v1203, %v1205
        %v1216 = vsel %vm299, %v1170, 0
        %v1218 = vsel %vm303, %v1207, 0
        %v1220 = vsel %vm303, %v1208, 0
        %v1222 = vsel %vm303, %v1209, 0
        %v1224 = vsel %vm303, %v1210, 0
        %v1226 = vsel %vm303, %v1211, 0
        %v1228 = vsel %vm303, %v1212, 0
        %v1230 = vsel %vm303, %v1213, 0
        %v1232 = vsel %vm303, %v1214, 0
        %1234 = vmatpush.msra.mxu0 0.0
        %1235 = vmatpush.msra.mxu0 0.0
        %1236 = vmatpush.msra.mxu0 0.0
        %1237 = vmatpush.msra.mxu0 0.0
        %1238 = vmatpush.msra.mxu0 0.0
        %1239 = vmatpush.msra.mxu0 0.0
        %1240 = vmatpush.msra.mxu0 0.0
        %1241 = vmatpush.msra.mxu0 0.0
        %1242 = vmatpush.msra.mxu0 0.0
        %1243 = vmatpush.msra.mxu0 0.0
        %1244 = vmatpush.msra.mxu0 0.0
        %1245 = vmatpush.msra.mxu0 0.0
        %1246 = vmatpush.msra.mxu0 0.0
        %1247 = vmatpush.msra.mxu0 0.0
        %1248 = vmatpush.msra.mxu0 0.0
        %1249 = vmatpush.msra.mxu0 %v1218
        %1250 = vmatmul.f32.gmra.mxu0 %v1216
        %v1251 = vpop.f32.mrf.mxu0
        %v1252 = vadd.f32 0.0, %v1251
        %1253 = vdwg.mxu0
        %1254 = vmatpush.msra.mxu0 0.0
        %1255 = vmatpush.msra.mxu0 0.0
        %1256 = vmatpush.msra.mxu0 0.0
        %1257 = vmatpush.msra.mxu0 0.0
        %1258 = vmatpush.msra.mxu0 0.0
        %1259 = vmatpush.msra.mxu0 0.0
        %1260 = vmatpush.msra.mxu0 0.0
        %1261 = vmatpush.msra.mxu0 0.0
        %1262 = vmatpush.msra.mxu0 0.0
        %1263 = vmatpush.msra.mxu0 0.0
        %1264 = vmatpush.msra.mxu0 0.0
        %1265 = vmatpush.msra.mxu0 0.0
        %1266 = vmatpush.msra.mxu0 0.0
        %1267 = vmatpush.msra.mxu0 0.0
        %1268 = vmatpush.msra.mxu0 0.0
        %1269 = vmatpush.msra.mxu0 %v1220
        %1270 = vmatmul.f32.gmra.mxu0 %v1216
        %v1271 = vpop.f32.mrf.mxu0
        %v1272 = vadd.f32 0.0, %v1271
        %1273 = vdwg.mxu0
        %1274 = vmatpush.msra.mxu0 0.0
        %1275 = vmatpush.msra.mxu0 0.0
        %1276 = vmatpush.msra.mxu0 0.0
        %1277 = vmatpush.msra.mxu0 0.0
        %1278 = vmatpush.msra.mxu0 0.0
        %1279 = vmatpush.msra.mxu0 0.0
        %1280 = vmatpush.msra.mxu0 0.0
        %1281 = vmatpush.msra.mxu0 0.0
        %1282 = vmatpush.msra.mxu0 0.0
        %1283 = vmatpush.msra.mxu0 0.0
        %1284 = vmatpush.msra.mxu0 0.0
        %1285 = vmatpush.msra.mxu0 0.0
        %1286 = vmatpush.msra.mxu0 0.0
        %1287 = vmatpush.msra.mxu0 0.0
        %1288 = vmatpush.msra.mxu0 0.0
        %1289 = vmatpush.msra.mxu0 %v1222
        %1290 = vmatmul.f32.gmra.mxu0 %v1216
        %v1291 = vpop.f32.mrf.mxu0
        %v1292 = vadd.f32 0.0, %v1291
        %1293 = vdwg.mxu0
        %1294 = vmatpush.msra.mxu0 0.0
        %1295 = vmatpush.msra.mxu0 0.0
        %1296 = vmatpush.msra.mxu0 0.0
        %1297 = vmatpush.msra.mxu0 0.0
        %1298 = vmatpush.msra.mxu0 0.0
        %1299 = vmatpush.msra.mxu0 0.0
        %1300 = vmatpush.msra.mxu0 0.0
        %1301 = vmatpush.msra.mxu0 0.0
        %1302 = vmatpush.msra.mxu0 0.0
        %1303 = vmatpush.msra.mxu0 0.0
        %1304 = vmatpush.msra.mxu0 0.0
        %1305 = vmatpush.msra.mxu0 0.0
        %1306 = vmatpush.msra.mxu0 0.0
        %1307 = vmatpush.msra.mxu0 0.0
        %1308 = vmatpush.msra.mxu0 0.0
        %1309 = vmatpush.msra.mxu0 %v1224
        %1310 = vmatmul.f32.gmra.mxu0 %v1216
        %v1311 = vpop.f32.mrf.mxu0
        %v1312 = vadd.f32 0.0, %v1311
        %1313 = vdwg.mxu0
        %1314 = vmatpush.msra.mxu0 0.0
        %1315 = vmatpush.msra.mxu0 0.0
        %1316 = vmatpush.msra.mxu0 0.0
        %1317 = vmatpush.msra.mxu0 0.0
        %1318 = vmatpush.msra.mxu0 0.0
        %1319 = vmatpush.msra.mxu0 0.0
        %1320 = vmatpush.msra.mxu0 0.0
        %1321 = vmatpush.msra.mxu0 0.0
        %1322 = vmatpush.msra.mxu0 0.0
        %1323 = vmatpush.msra.mxu0 0.0
        %1324 = vmatpush.msra.mxu0 0.0
        %1325 = vmatpush.msra.mxu0 0.0
        %1326 = vmatpush.msra.mxu0 0.0
        %1327 = vmatpush.msra.mxu0 0.0
        %1328 = vmatpush.msra.mxu0 0.0
        %1329 = vmatpush.msra.mxu0 %v1226
        %1330 = vmatmul.f32.gmra.mxu0 %v1216
        %v1331 = vpop.f32.mrf.mxu0
        %v1332 = vadd.f32 0.0, %v1331
        %1333 = vdwg.mxu0
        %1334 = vmatpush.msra.mxu0 0.0
        %1335 = vmatpush.msra.mxu0 0.0
        %1336 = vmatpush.msra.mxu0 0.0
        %1337 = vmatpush.msra.mxu0 0.0
        %1338 = vmatpush.msra.mxu0 0.0
        %1339 = vmatpush.msra.mxu0 0.0
        %1340 = vmatpush.msra.mxu0 0.0
        %1341 = vmatpush.msra.mxu0 0.0
        %1342 = vmatpush.msra.mxu0 0.0
        %1343 = vmatpush.msra.mxu0 0.0
        %1344 = vmatpush.msra.mxu0 0.0
        %1345 = vmatpush.msra.mxu0 0.0
        %1346 = vmatpush.msra.mxu0 0.0
        %1347 = vmatpush.msra.mxu0 0.0
        %1348 = vmatpush.msra.mxu0 0.0
        %1349 = vmatpush.msra.mxu0 %v1228
        %1350 = vmatmul.f32.gmra.mxu0 %v1216
        %v1351 = vpop.f32.mrf.mxu0
        %v1352 = vadd.f32 0.0, %v1351
        %1353 = vdwg.mxu0
        %1354 = vmatpush.msra.mxu0 0.0
        %1355 = vmatpush.msra.mxu0 0.0
        %1356 = vmatpush.msra.mxu0 0.0
        %1357 = vmatpush.msra.mxu0 0.0
        %1358 = vmatpush.msra.mxu0 0.0
        %1359 = vmatpush.msra.mxu0 0.0
        %1360 = vmatpush.msra.mxu0 0.0
        %1361 = vmatpush.msra.mxu0 0.0
        %1362 = vmatpush.msra.mxu0 0.0
        %1363 = vmatpush.msra.mxu0 0.0
        %1364 = vmatpush.msra.mxu0 0.0
        %1365 = vmatpush.msra.mxu0 0.0
        %1366 = vmatpush.msra.mxu0 0.0
        %1367 = vmatpush.msra.mxu0 0.0
        %1368 = vmatpush.msra.mxu0 0.0
        %1369 = vmatpush.msra.mxu0 %v1230
        %1370 = vmatmul.f32.gmra.mxu0 %v1216
        %v1371 = vpop.f32.mrf.mxu0
        %v1372 = vadd.f32 0.0, %v1371
        %1373 = vdwg.mxu0
        %1374 = vmatpush.msra.mxu0 0.0
        %1375 = vmatpush.msra.mxu0 0.0
        %1376 = vmatpush.msra.mxu0 0.0
        %1377 = vmatpush.msra.mxu0 0.0
        %1378 = vmatpush.msra.mxu0 0.0
        %1379 = vmatpush.msra.mxu0 0.0
        %1380 = vmatpush.msra.mxu0 0.0
        %1381 = vmatpush.msra.mxu0 0.0
        %1382 = vmatpush.msra.mxu0 0.0
        %1383 = vmatpush.msra.mxu0 0.0
        %1384 = vmatpush.msra.mxu0 0.0
        %1385 = vmatpush.msra.mxu0 0.0
        %1386 = vmatpush.msra.mxu0 0.0
        %1387 = vmatpush.msra.mxu0 0.0
        %1388 = vmatpush.msra.mxu0 0.0
        %1389 = vmatpush.msra.mxu0 %v1232
        %1390 = vmatmul.f32.gmra.mxu0 %v1216
        %v1391 = vpop.f32.mrf.mxu0
        %v1392 = vadd.f32 0.0, %v1391
        %1393 = vdwg.mxu0
        %v1394 = vadd.f32 %v1161, %v1252
        %v1395 = vadd.f32 %v1162, %v1272
        %v1396 = vadd.f32 %v1163, %v1292
        %v1397 = vadd.f32 %v1164, %v1312
        %v1398 = vadd.f32 %v1165, %v1332
        %v1399 = vadd.f32 %v1166, %v1352
        %v1400 = vadd.f32 %v1167, %v1372
        %v1401 = vadd.f32 %v1168, %v1392
        %s1402 = scalar_lea.vmem %s1, 40
        %v1403 = vld [vmem:[%s1402] sm:$0xff]
        %1404 = vst [vmem:[#allocation1] ss:$2 sm:$0xff] %v242
        %s1405 = scalar_lea.vmem [#allocation1], 16
        %1406 = vst [vmem:[%s1405] ss:$2 sm:$0xff] %v243
        %s1407 = scalar_lea.vmem [#allocation1], 32
        %1408 = vst [vmem:[%s1407] ss:$2 sm:$0xff] %v244
        %s1409 = scalar_lea.vmem [#allocation1], 48
        %1410 = vst [vmem:[%s1409] ss:$2 sm:$0xff] %v245
        %v1411 = vld.sshfl [vmem:[#allocation1] sm:$0xff pattern:$0x75316420]
        %v1412 = vld.sshfl [vmem:[#allocation1 + $0x8] sm:$0xff pattern:$0x75316420]
        %v1413 = vld.sshfl [vmem:[#allocation1 + $0x10] sm:$0xff pattern:$0x75316420]
        %v1414 = vld.sshfl [vmem:[#allocation1 + $0x18] sm:$0xff pattern:$0x75316420]
        %v1415 = vld.sshfl [vmem:[#allocation1 + $0x20] sm:$0xff pattern:$0x75316420]
        %v1416 = vld.sshfl [vmem:[#allocation1 + $0x28] sm:$0xff pattern:$0x75316420]
        %v1417 = vld.sshfl [vmem:[#allocation1 + $0x30] sm:$0xff pattern:$0x75316420]
        %v1418 = vld.sshfl [vmem:[#allocation1 + $0x38] sm:$0xff pattern:$0x75316420]
        %1419 = vst [vmem:[#allocation1] ss:$2 sm:$0xff] %v246
        %v1420 = vld.sshfl [vmem:[#allocation1] sm:$0xff pattern:$0x75316420]
        %1421 = vrot.lane.b32.xlu0 %v1411, 99
        %v1422 = vpop.permute.xlu0 %1421
        %1423 = vrot.lane.b32.xlu0 %v1412, 99
        %v1424 = vpop.permute.xlu0 %1423
        %1425 = vrot.lane.b32.xlu0 %v1413, 99
        %v1426 = vpop.permute.xlu0 %1425
        %1427 = vrot.lane.b32.xlu0 %v1414, 99
        %v1428 = vpop.permute.xlu0 %1427
        %1429 = vrot.lane.b32.xlu0 %v1415, 99
        %v1430 = vpop.permute.xlu0 %1429
        %1431 = vrot.lane.b32.xlu0 %v1416, 99
        %v1432 = vpop.permute.xlu0 %1431
        %1433 = vrot.lane.b32.xlu0 %v1417, 99
        %v1434 = vpop.permute.xlu0 %1433
        %1435 = vrot.lane.b32.xlu0 %v1418, 99
        %v1436 = vpop.permute.xlu0 %1435
        %1437 = vrot.lane.b32.xlu0 %v1420, 99
        %v1438 = vpop.permute.xlu0 %1437
        %vm1439 = vcmask 809984
        %v1440 = vsel %vm1439, %v1422, %v1424
        %v1441 = vsel %vm1439, %v1424, %v1426
        %v1442 = vsel %vm1439, %v1426, %v1428
        %v1443 = vsel %vm1439, %v1428, %v1430
        %v1444 = vsel %vm1439, %v1430, %v1432
        %v1445 = vsel %vm1439, %v1432, %v1434
        %v1446 = vsel %vm1439, %v1434, %v1436
        %v1447 = vsel %vm1439, %v1436, %v1438
        %v1449 = vsel %vm299, %v1403, 0
        %v1451 = vsel %vm303, %v1440, 0
        %v1453 = vsel %vm303, %v1441, 0
        %v1455 = vsel %vm303, %v1442, 0
        %v1457 = vsel %vm303, %v1443, 0
        %v1459 = vsel %vm303, %v1444, 0
        %v1461 = vsel %vm303, %v1445, 0
        %v1463 = vsel %vm303, %v1446, 0
        %v1465 = vsel %vm303, %v1447, 0
        %1467 = vmatpush.msra.mxu0 0.0
        %1468 = vmatpush.msra.mxu0 0.0
        %1469 = vmatpush.msra.mxu0 0.0
        %1470 = vmatpush.msra.mxu0 0.0
        %1471 = vmatpush.msra.mxu0 0.0
        %1472 = vmatpush.msra.mxu0 0.0
        %1473 = vmatpush.msra.mxu0 0.0
        %1474 = vmatpush.msra.mxu0 0.0
        %1475 = vmatpush.msra.mxu0 0.0
        %1476 = vmatpush.msra.mxu0 0.0
        %1477 = vmatpush.msra.mxu0 0.0
        %1478 = vmatpush.msra.mxu0 0.0
        %1479 = vmatpush.msra.mxu0 0.0
        %1480 = vmatpush.msra.mxu0 0.0
        %1481 = vmatpush.msra.mxu0 0.0
        %1482 = vmatpush.msra.mxu0 %v1451
        %1483 = vmatmul.f32.gmra.mxu0 %v1449
        %v1484 = vpop.f32.mrf.mxu0
        %v1485 = vadd.f32 0.0, %v1484
        %1486 = vdwg.mxu0
        %1487 = vmatpush.msra.mxu0 0.0
        %1488 = vmatpush.msra.mxu0 0.0
        %1489 = vmatpush.msra.mxu0 0.0
        %1490 = vmatpush.msra.mxu0 0.0
        %1491 = vmatpush.msra.mxu0 0.0
        %1492 = vmatpush.msra.mxu0 0.0
        %1493 = vmatpush.msra.mxu0 0.0
        %1494 = vmatpush.msra.mxu0 0.0
        %1495 = vmatpush.msra.mxu0 0.0
        %1496 = vmatpush.msra.mxu0 0.0
        %1497 = vmatpush.msra.mxu0 0.0
        %1498 = vmatpush.msra.mxu0 0.0
        %1499 = vmatpush.msra.mxu0 0.0
        %1500 = vmatpush.msra.mxu0 0.0
        %1501 = vmatpush.msra.mxu0 0.0
        %1502 = vmatpush.msra.mxu0 %v1453
        %1503 = vmatmul.f32.gmra.mxu0 %v1449
        %v1504 = vpop.f32.mrf.mxu0
        %v1505 = vadd.f32 0.0, %v1504
        %1506 = vdwg.mxu0
        %1507 = vmatpush.msra.mxu0 0.0
        %1508 = vmatpush.msra.mxu0 0.0
        %1509 = vmatpush.msra.mxu0 0.0
        %1510 = vmatpush.msra.mxu0 0.0
        %1511 = vmatpush.msra.mxu0 0.0
        %1512 = vmatpush.msra.mxu0 0.0
        %1513 = vmatpush.msra.mxu0 0.0
        %1514 = vmatpush.msra.mxu0 0.0
        %1515 = vmatpush.msra.mxu0 0.0
        %1516 = vmatpush.msra.mxu0 0.0
        %1517 = vmatpush.msra.mxu0 0.0
        %1518 = vmatpush.msra.mxu0 0.0
        %1519 = vmatpush.msra.mxu0 0.0
        %1520 = vmatpush.msra.mxu0 0.0
        %1521 = vmatpush.msra.mxu0 0.0
        %1522 = vmatpush.msra.mxu0 %v1455
        %1523 = vmatmul.f32.gmra.mxu0 %v1449
        %v1524 = vpop.f32.mrf.mxu0
        %v1525 = vadd.f32 0.0, %v1524
        %1526 = vdwg.mxu0
        %1527 = vmatpush.msra.mxu0 0.0
        %1528 = vmatpush.msra.mxu0 0.0
        %1529 = vmatpush.msra.mxu0 0.0
        %1530 = vmatpush.msra.mxu0 0.0
        %1531 = vmatpush.msra.mxu0 0.0
        %1532 = vmatpush.msra.mxu0 0.0
        %1533 = vmatpush.msra.mxu0 0.0
        %1534 = vmatpush.msra.mxu0 0.0
        %1535 = vmatpush.msra.mxu0 0.0
        %1536 = vmatpush.msra.mxu0 0.0
        %1537 = vmatpush.msra.mxu0 0.0
        %1538 = vmatpush.msra.mxu0 0.0
        %1539 = vmatpush.msra.mxu0 0.0
        %1540 = vmatpush.msra.mxu0 0.0
        %1541 = vmatpush.msra.mxu0 0.0
        %1542 = vmatpush.msra.mxu0 %v1457
        %1543 = vmatmul.f32.gmra.mxu0 %v1449
        %v1544 = vpop.f32.mrf.mxu0
        %v1545 = vadd.f32 0.0, %v1544
        %1546 = vdwg.mxu0
        %1547 = vmatpush.msra.mxu0 0.0
        %1548 = vmatpush.msra.mxu0 0.0
        %1549 = vmatpush.msra.mxu0 0.0
        %1550 = vmatpush.msra.mxu0 0.0
        %1551 = vmatpush.msra.mxu0 0.0
        %1552 = vmatpush.msra.mxu0 0.0
        %1553 = vmatpush.msra.mxu0 0.0
        %1554 = vmatpush.msra.mxu0 0.0
        %1555 = vmatpush.msra.mxu0 0.0
        %1556 = vmatpush.msra.mxu0 0.0
        %1557 = vmatpush.msra.mxu0 0.0
        %1558 = vmatpush.msra.mxu0 0.0
        %1559 = vmatpush.msra.mxu0 0.0
        %1560 = vmatpush.msra.mxu0 0.0
        %1561 = vmatpush.msra.mxu0 0.0
        %1562 = vmatpush.msra.mxu0 %v1459
        %1563 = vmatmul.f32.gmra.mxu0 %v1449
        %v1564 = vpop.f32.mrf.mxu0
        %v1565 = vadd.f32 0.0, %v1564
        %1566 = vdwg.mxu0
        %1567 = vmatpush.msra.mxu0 0.0
        %1568 = vmatpush.msra.mxu0 0.0
        %1569 = vmatpush.msra.mxu0 0.0
        %1570 = vmatpush.msra.mxu0 0.0
        %1571 = vmatpush.msra.mxu0 0.0
        %1572 = vmatpush.msra.mxu0 0.0
        %1573 = vmatpush.msra.mxu0 0.0
        %1574 = vmatpush.msra.mxu0 0.0
        %1575 = vmatpush.msra.mxu0 0.0
        %1576 = vmatpush.msra.mxu0 0.0
        %1577 = vmatpush.msra.mxu0 0.0
        %1578 = vmatpush.msra.mxu0 0.0
        %1579 = vmatpush.msra.mxu0 0.0
        %1580 = vmatpush.msra.mxu0 0.0
        %1581 = vmatpush.msra.mxu0 0.0
        %1582 = vmatpush.msra.mxu0 %v1461
        %1583 = vmatmul.f32.gmra.mxu0 %v1449
        %v1584 = vpop.f32.mrf.mxu0
        %v1585 = vadd.f32 0.0, %v1584
        %1586 = vdwg.mxu0
        %1587 = vmatpush.msra.mxu0 0.0
        %1588 = vmatpush.msra.mxu0 0.0
        %1589 = vmatpush.msra.mxu0 0.0
        %1590 = vmatpush.msra.mxu0 0.0
        %1591 = vmatpush.msra.mxu0 0.0
        %1592 = vmatpush.msra.mxu0 0.0
        %1593 = vmatpush.msra.mxu0 0.0
        %1594 = vmatpush.msra.mxu0 0.0
        %1595 = vmatpush.msra.mxu0 0.0
        %1596 = vmatpush.msra.mxu0 0.0
        %1597 = vmatpush.msra.mxu0 0.0
        %1598 = vmatpush.msra.mxu0 0.0
        %1599 = vmatpush.msra.mxu0 0.0
        %1600 = vmatpush.msra.mxu0 0.0
        %1601 = vmatpush.msra.mxu0 0.0
        %1602 = vmatpush.msra.mxu0 %v1463
        %1603 = vmatmul.f32.gmra.mxu0 %v1449
        %v1604 = vpop.f32.mrf.mxu0
        %v1605 = vadd.f32 0.0, %v1604
        %1606 = vdwg.mxu0
        %1607 = vmatpush.msra.mxu0 0.0
        %1608 = vmatpush.msra.mxu0 0.0
        %1609 = vmatpush.msra.mxu0 0.0
        %1610 = vmatpush.msra.mxu0 0.0
        %1611 = vmatpush.msra.mxu0 0.0
        %1612 = vmatpush.msra.mxu0 0.0
        %1613 = vmatpush.msra.mxu0 0.0
        %1614 = vmatpush.msra.mxu0 0.0
        %1615 = vmatpush.msra.mxu0 0.0
        %1616 = vmatpush.msra.mxu0 0.0
        %1617 = vmatpush.msra.mxu0 0.0
        %1618 = vmatpush.msra.mxu0 0.0
        %1619 = vmatpush.msra.mxu0 0.0
        %1620 = vmatpush.msra.mxu0 0.0
        %1621 = vmatpush.msra.mxu0 0.0
        %1622 = vmatpush.msra.mxu0 %v1465
        %1623 = vmatmul.f32.gmra.mxu0 %v1449
        %v1624 = vpop.f32.mrf.mxu0
        %v1625 = vadd.f32 0.0, %v1624
        %1626 = vdwg.mxu0
        %v1627 = vadd.f32 %v1394, %v1485
        %v1628 = vadd.f32 %v1395, %v1505
        %v1629 = vadd.f32 %v1396, %v1525
        %v1630 = vadd.f32 %v1397, %v1545
        %v1631 = vadd.f32 %v1398, %v1565
        %v1632 = vadd.f32 %v1399, %v1585
        %v1633 = vadd.f32 %v1400, %v1605
        %v1634 = vadd.f32 %v1401, %v1625
        %s1635 = scalar_lea.vmem %s1, 48
        %v1636 = vld [vmem:[%s1635] sm:$0xff]
        %1637 = vst [vmem:[#allocation1] ss:$2 sm:$0xff] %v242
        %s1638 = scalar_lea.vmem [#allocation1], 16
        %1639 = vst [vmem:[%s1638] ss:$2 sm:$0xff] %v243
        %s1640 = scalar_lea.vmem [#allocation1], 32
        %1641 = vst [vmem:[%s1640] ss:$2 sm:$0xff] %v244
        %s1642 = scalar_lea.vmem [#allocation1], 48
        %1643 = vst [vmem:[%s1642] ss:$2 sm:$0xff] %v245
        %v1644 = vld.sshfl [vmem:[#allocation1] sm:$0xff pattern:$0x75316420]
        %v1645 = vld.sshfl [vmem:[#allocation1 + $0x8] sm:$0xff pattern:$0x75316420]
        %v1646 = vld.sshfl [vmem:[#allocation1 + $0x10] sm:$0xff pattern:$0x75316420]
        %v1647 = vld.sshfl [vmem:[#allocation1 + $0x18] sm:$0xff pattern:$0x75316420]
        %v1648 = vld.sshfl [vmem:[#allocation1 + $0x20] sm:$0xff pattern:$0x75316420]
        %v1649 = vld.sshfl [vmem:[#allocation1 + $0x28] sm:$0xff pattern:$0x75316420]
        %v1650 = vld.sshfl [vmem:[#allocation1 + $0x30] sm:$0xff pattern:$0x75316420]
        %v1651 = vld.sshfl [vmem:[#allocation1 + $0x38] sm:$0xff pattern:$0x75316420]
        %1652 = vst [vmem:[#allocation1] ss:$2 sm:$0xff] %v246
        %v1653 = vld.sshfl [vmem:[#allocation1] sm:$0xff pattern:$0x75316420]
        %1654 = vrot.lane.b32.xlu0 %v1644, 91
        %v1655 = vpop.permute.xlu0 %1654
        %1656 = vrot.lane.b32.xlu0 %v1645, 91
        %v1657 = vpop.permute.xlu0 %1656
        %1658 = vrot.lane.b32.xlu0 %v1646, 91
        %v1659 = vpop.permute.xlu0 %1658
        %1660 = vrot.lane.b32.xlu0 %v1647, 91
        %v1661 = vpop.permute.xlu0 %1660
        %1662 = vrot.lane.b32.xlu0 %v1648, 91
        %v1663 = vpop.permute.xlu0 %1662
        %1664 = vrot.lane.b32.xlu0 %v1649, 91
        %v1665 = vpop.permute.xlu0 %1664
        %1666 = vrot.lane.b32.xlu0 %v1650, 91
        %v1667 = vpop.permute.xlu0 %1666
        %1668 = vrot.lane.b32.xlu0 %v1651, 91
        %v1669 = vpop.permute.xlu0 %1668
        %1670 = vrot.lane.b32.xlu0 %v1653, 91
        %v1671 = vpop.permute.xlu0 %1670
        %vm1672 = vcmask 744448
        %v1673 = vsel %vm1672, %v1655, %v1657
        %v1674 = vsel %vm1672, %v1657, %v1659
        %v1675 = vsel %vm1672, %v1659, %v1661
        %v1676 = vsel %vm1672, %v1661, %v1663
        %v1677 = vsel %vm1672, %v1663, %v1665
        %v1678 = vsel %vm1672, %v1665, %v1667
        %v1679 = vsel %vm1672, %v1667, %v1669
        %v1680 = vsel %vm1672, %v1669, %v1671
        %v1682 = vsel %vm299, %v1636, 0
        %v1684 = vsel %vm303, %v1673, 0
        %v1686 = vsel %vm303, %v1674, 0
        %v1688 = vsel %vm303, %v1675, 0
        %v1690 = vsel %vm303, %v1676, 0
        %v1692 = vsel %vm303, %v1677, 0
        %v1694 = vsel %vm303, %v1678, 0
        %v1696 = vsel %vm303, %v1679, 0
        %v1698 = vsel %vm303, %v1680, 0
        %1700 = vmatpush.msra.mxu0 0.0
        %1701 = vmatpush.msra.mxu0 0.0
        %1702 = vmatpush.msra.mxu0 0.0
        %1703 = vmatpush.msra.mxu0 0.0
        %1704 = vmatpush.msra.mxu0 0.0
        %1705 = vmatpush.msra.mxu0 0.0
        %1706 = vmatpush.msra.mxu0 0.0
        %1707 = vmatpush.msra.mxu0 0.0
        %1708 = vmatpush.msra.mxu0 0.0
        %1709 = vmatpush.msra.mxu0 0.0
        %1710 = vmatpush.msra.mxu0 0.0
        %1711 = vmatpush.msra.mxu0 0.0
        %1712 = vmatpush.msra.mxu0 0.0
        %1713 = vmatpush.msra.mxu0 0.0
        %1714 = vmatpush.msra.mxu0 0.0
        %1715 = vmatpush.msra.mxu0 %v1684
        %1716 = vmatmul.f32.gmra.mxu0 %v1682
        %v1717 = vpop.f32.mrf.mxu0
        %v1718 = vadd.f32 0.0, %v1717
        %1719 = vdwg.mxu0
        %1720 = vmatpush.msra.mxu0 0.0
        %1721 = vmatpush.msra.mxu0 0.0
        %1722 = vmatpush.msra.mxu0 0.0
        %1723 = vmatpush.msra.mxu0 0.0
        %1724 = vmatpush.msra.mxu0 0.0
        %1725 = vmatpush.msra.mxu0 0.0
        %1726 = vmatpush.msra.mxu0 0.0
        %1727 = vmatpush.msra.mxu0 0.0
        %1728 = vmatpush.msra.mxu0 0.0
        %1729 = vmatpush.msra.mxu0 0.0
        %1730 = vmatpush.msra.mxu0 0.0
        %1731 = vmatpush.msra.mxu0 0.0
        %1732 = vmatpush.msra.mxu0 0.0
        %1733 = vmatpush.msra.mxu0 0.0
        %1734 = vmatpush.msra.mxu0 0.0
        %1735 = vmatpush.msra.mxu0 %v1686
        %1736 = vmatmul.f32.gmra.mxu0 %v1682
        %v1737 = vpop.f32.mrf.mxu0
        %v1738 = vadd.f32 0.0, %v1737
        %1739 = vdwg.mxu0
        %1740 = vmatpush.msra.mxu0 0.0
        %1741 = vmatpush.msra.mxu0 0.0
        %1742 = vmatpush.msra.mxu0 0.0
        %1743 = vmatpush.msra.mxu0 0.0
        %1744 = vmatpush.msra.mxu0 0.0
        %1745 = vmatpush.msra.mxu0 0.0
        %1746 = vmatpush.msra.mxu0 0.0
        %1747 = vmatpush.msra.mxu0 0.0
        %1748 = vmatpush.msra.mxu0 0.0
        %1749 = vmatpush.msra.mxu0 0.0
        %1750 = vmatpush.msra.mxu0 0.0
        %1751 = vmatpush.msra.mxu0 0.0
        %1752 = vmatpush.msra.mxu0 0.0
        %1753 = vmatpush.msra.mxu0 0.0
        %1754 = vmatpush.msra.mxu0 0.0
        %1755 = vmatpush.msra.mxu0 %v1688
        %1756 = vmatmul.f32.gmra.mxu0 %v1682
        %v1757 = vpop.f32.mrf.mxu0
        %v1758 = vadd.f32 0.0, %v1757
        %1759 = vdwg.mxu0
        %1760 = vmatpush.msra.mxu0 0.0
        %1761 = vmatpush.msra.mxu0 0.0
        %1762 = vmatpush.msra.mxu0 0.0
        %1763 = vmatpush.msra.mxu0 0.0
        %1764 = vmatpush.msra.mxu0 0.0
        %1765 = vmatpush.msra.mxu0 0.0
        %1766 = vmatpush.msra.mxu0 0.0
        %1767 = vmatpush.msra.mxu0 0.0
        %1768 = vmatpush.msra.mxu0 0.0
        %1769 = vmatpush.msra.mxu0 0.0
        %1770 = vmatpush.msra.mxu0 0.0
        %1771 = vmatpush.msra.mxu0 0.0
        %1772 = vmatpush.msra.mxu0 0.0
        %1773 = vmatpush.msra.mxu0 0.0
        %1774 = vmatpush.msra.mxu0 0.0
        %1775 = vmatpush.msra.mxu0 %v1690
        %1776 = vmatmul.f32.gmra.mxu0 %v1682
        %v1777 = vpop.f32.mrf.mxu0
        %v1778 = vadd.f32 0.0, %v1777
        %1779 = vdwg.mxu0
        %1780 = vmatpush.msra.mxu0 0.0
        %1781 = vmatpush.msra.mxu0 0.0
        %1782 = vmatpush.msra.mxu0 0.0
        %1783 = vmatpush.msra.mxu0 0.0
        %1784 = vmatpush.msra.mxu0 0.0
        %1785 = vmatpush.msra.mxu0 0.0
        %1786 = vmatpush.msra.mxu0 0.0
        %1787 = vmatpush.msra.mxu0 0.0
        %1788 = vmatpush.msra.mxu0 0.0
        %1789 = vmatpush.msra.mxu0 0.0
        %1790 = vmatpush.msra.mxu0 0.0
        %1791 = vmatpush.msra.mxu0 0.0
        %1792 = vmatpush.msra.mxu0 0.0
        %1793 = vmatpush.msra.mxu0 0.0
        %1794 = vmatpush.msra.mxu0 0.0
        %1795 = vmatpush.msra.mxu0 %v1692
        %1796 = vmatmul.f32.gmra.mxu0 %v1682
        %v1797 = vpop.f32.mrf.mxu0
        %v1798 = vadd.f32 0.0, %v1797
        %1799 = vdwg.mxu0
        %1800 = vmatpush.msra.mxu0 0.0
        %1801 = vmatpush.msra.mxu0 0.0
        %1802 = vmatpush.msra.mxu0 0.0
        %1803 = vmatpush.msra.mxu0 0.0
        %1804 = vmatpush.msra.mxu0 0.0
        %1805 = vmatpush.msra.mxu0 0.0
        %1806 = vmatpush.msra.mxu0 0.0
        %1807 = vmatpush.msra.mxu0 0.0
        %1808 = vmatpush.msra.mxu0 0.0
        %1809 = vmatpush.msra.mxu0 0.0
        %1810 = vmatpush.msra.mxu0 0.0
        %1811 = vmatpush.msra.mxu0 0.0
        %1812 = vmatpush.msra.mxu0 0.0
        %1813 = vmatpush.msra.mxu0 0.0
        %1814 = vmatpush.msra.mxu0 0.0
        %1815 = vmatpush.msra.mxu0 %v1694
        %1816 = vmatmul.f32.gmra.mxu0 %v1682
        %v1817 = vpop.f32.mrf.mxu0
        %v1818 = vadd.f32 0.0, %v1817
        %1819 = vdwg.mxu0
        %1820 = vmatpush.msra.mxu0 0.0
        %1821 = vmatpush.msra.mxu0 0.0
        %1822 = vmatpush.msra.mxu0 0.0
        %1823 = vmatpush.msra.mxu0 0.0
        %1824 = vmatpush.msra.mxu0 0.0
        %1825 = vmatpush.msra.mxu0 0.0
        %1826 = vmatpush.msra.mxu0 0.0
        %1827 = vmatpush.msra.mxu0 0.0
        %1828 = vmatpush.msra.mxu0 0.0
        %1829 = vmatpush.msra.mxu0 0.0
        %1830 = vmatpush.msra.mxu0 0.0
        %1831 = vmatpush.msra.mxu0 0.0
        %1832 = vmatpush.msra.mxu0 0.0
        %1833 = vmatpush.msra.mxu0 0.0
        %1834 = vmatpush.msra.mxu0 0.0
        %1835 = vmatpush.msra.mxu0 %v1696
        %1836 = vmatmul.f32.gmra.mxu0 %v1682
        %v1837 = vpop.f32.mrf.mxu0
        %v1838 = vadd.f32 0.0, %v1837
        %1839 = vdwg.mxu0
        %1840 = vmatpush.msra.mxu0 0.0
        %1841 = vmatpush.msra.mxu0 0.0
        %1842 = vmatpush.msra.mxu0 0.0
        %1843 = vmatpush.msra.mxu0 0.0
        %1844 = vmatpush.msra.mxu0 0.0
        %1845 = vmatpush.msra.mxu0 0.0
        %1846 = vmatpush.msra.mxu0 0.0
        %1847 = vmatpush.msra.mxu0 0.0
        %1848 = vmatpush.msra.mxu0 0.0
        %1849 = vmatpush.msra.mxu0 0.0
        %1850 = vmatpush.msra.mxu0 0.0
        %1851 = vmatpush.msra.mxu0 0.0
        %1852 = vmatpush.msra.mxu0 0.0
        %1853 = vmatpush.msra.mxu0 0.0
        %1854 = vmatpush.msra.mxu0 0.0
        %1855 = vmatpush.msra.mxu0 %v1698
        %1856 = vmatmul.f32.gmra.mxu0 %v1682
        %v1857 = vpop.f32.mrf.mxu0
        %v1858 = vadd.f32 0.0, %v1857
        %1859 = vdwg.mxu0
        %v1860 = vadd.f32 %v1627, %v1718
        %v1861 = vadd.f32 %v1628, %v1738
        %v1862 = vadd.f32 %v1629, %v1758
        %v1863 = vadd.f32 %v1630, %v1778
        %v1864 = vadd.f32 %v1631, %v1798
        %v1865 = vadd.f32 %v1632, %v1818
        %v1866 = vadd.f32 %v1633, %v1838
        %v1867 = vadd.f32 %v1634, %v1858
        %s1868 = scalar_lea.vmem %s1, 56
        %v1869 = vld [vmem:[%s1868] sm:$0xff]
        %1870 = vst [vmem:[#allocation1] ss:$2 sm:$0xff] %v242
        %s1871 = scalar_lea.vmem [#allocation1], 16
        %1872 = vst [vmem:[%s1871] ss:$2 sm:$0xff] %v243
        %s1873 = scalar_lea.vmem [#allocation1], 32
        %1874 = vst [vmem:[%s1873] ss:$2 sm:$0xff] %v244
        %s1875 = scalar_lea.vmem [#allocation1], 48
        %1876 = vst [vmem:[%s1875] ss:$2 sm:$0xff] %v245
        %v1877 = vld.sshfl [vmem:[#allocation1] sm:$0xff pattern:$0x75316420]
        %v1878 = vld.sshfl [vmem:[#allocation1 + $0x8] sm:$0xff pattern:$0x75316420]
        %v1879 = vld.sshfl [vmem:[#allocation1 + $0x10] sm:$0xff pattern:$0x75316420]
        %v1880 = vld.sshfl [vmem:[#allocation1 + $0x18] sm:$0xff pattern:$0x75316420]
        %v1881 = vld.sshfl [vmem:[#allocation1 + $0x20] sm:$0xff pattern:$0x75316420]
        %v1882 = vld.sshfl [vmem:[#allocation1 + $0x28] sm:$0xff pattern:$0x75316420]
        %v1883 = vld.sshfl [vmem:[#allocation1 + $0x30] sm:$0xff pattern:$0x75316420]
        %v1884 = vld.sshfl [vmem:[#allocation1 + $0x38] sm:$0xff pattern:$0x75316420]
        %1885 = vst [vmem:[#allocation1] ss:$2 sm:$0xff] %v246
        %v1886 = vld.sshfl [vmem:[#allocation1] sm:$0xff pattern:$0x75316420]
        %1887 = vrot.lane.b32.xlu0 %v1877, 90
        %v1888 = vpop.permute.xlu0 %1887
        %1889 = vrot.lane.b32.xlu0 %v1878, 90
        %v1890 = vpop.permute.xlu0 %1889
        %1891 = vrot.lane.b32.xlu0 %v1879, 90
        %v1892 = vpop.permute.xlu0 %1891
        %1893 = vrot.lane.b32.xlu0 %v1880, 90
        %v1894 = vpop.permute.xlu0 %1893
        %1895 = vrot.lane.b32.xlu0 %v1881, 90
        %v1896 = vpop.permute.xlu0 %1895
        %1897 = vrot.lane.b32.xlu0 %v1882, 90
        %v1898 = vpop.permute.xlu0 %1897
        %1899 = vrot.lane.b32.xlu0 %v1883, 90
        %v1900 = vpop.permute.xlu0 %1899
        %1901 = vrot.lane.b32.xlu0 %v1884, 90
        %v1902 = vpop.permute.xlu0 %1901
        %1903 = vrot.lane.b32.xlu0 %v1886, 90
        %v1904 = vpop.permute.xlu0 %1903
        %vm1905 = vcmask 736256
        %v1906 = vsel %vm1905, %v1888, %v1890
        %v1907 = vsel %vm1905, %v1890, %v1892
        %v1908 = vsel %vm1905, %v1892, %v1894
        %v1909 = vsel %vm1905, %v1894, %v1896
        %v1910 = vsel %vm1905, %v1896, %v1898
        %v1911 = vsel %vm1905, %v1898, %v1900
        %v1912 = vsel %vm1905, %v1900, %v1902
        %v1913 = vsel %vm1905, %v1902, %v1904
        %v1915 = vsel %vm299, %v1869, 0
        %v1917 = vsel %vm303, %v1906, 0
        %v1919 = vsel %vm303, %v1907, 0
        %v1921 = vsel %vm303, %v1908, 0
        %v1923 = vsel %vm303, %v1909, 0
        %v1925 = vsel %vm303, %v1910, 0
        %v1927 = vsel %vm303, %v1911, 0
        %v1929 = vsel %vm303, %v1912, 0
        %v1931 = vsel %vm303, %v1913, 0
        %1933 = vmatpush.msra.mxu0 0.0
        %1934 = vmatpush.msra.mxu0 0.0
        %1935 = vmatpush.msra.mxu0 0.0
        %1936 = vmatpush.msra.mxu0 0.0
        %1937 = vmatpush.msra.mxu0 0.0
        %1938 = vmatpush.msra.mxu0 0.0
        %1939 = vmatpush.msra.mxu0 0.0
        %1940 = vmatpush.msra.mxu0 0.0
        %1941 = vmatpush.msra.mxu0 0.0
        %1942 = vmatpush.msra.mxu0 0.0
        %1943 = vmatpush.msra.mxu0 0.0
        %1944 = vmatpush.msra.mxu0 0.0
        %1945 = vmatpush.msra.mxu0 0.0
        %1946 = vmatpush.msra.mxu0 0.0
        %1947 = vmatpush.msra.mxu0 0.0
        %1948 = vmatpush.msra.mxu0 %v1917
        %1949 = vmatmul.f32.gmra.mxu0 %v1915
        %v1950 = vpop.f32.mrf.mxu0
        %v1951 = vadd.f32 0.0, %v1950
        %1952 = vdwg.mxu0
        %1953 = vmatpush.msra.mxu0 0.0
        %1954 = vmatpush.msra.mxu0 0.0
        %1955 = vmatpush.msra.mxu0 0.0
        %1956 = vmatpush.msra.mxu0 0.0
        %1957 = vmatpush.msra.mxu0 0.0
        %1958 = vmatpush.msra.mxu0 0.0
        %1959 = vmatpush.msra.mxu0 0.0
        %1960 = vmatpush.msra.mxu0 0.0
        %1961 = vmatpush.msra.mxu0 0.0
        %1962 = vmatpush.msra.mxu0 0.0
        %1963 = vmatpush.msra.mxu0 0.0
        %1964 = vmatpush.msra.mxu0 0.0
        %1965 = vmatpush.msra.mxu0 0.0
        %1966 = vmatpush.msra.mxu0 0.0
        %1967 = vmatpush.msra.mxu0 0.0
        %1968 = vmatpush.msra.mxu0 %v1919
        %1969 = vmatmul.f32.gmra.mxu0 %v1915
        %v1970 = vpop.f32.mrf.mxu0
        %v1971 = vadd.f32 0.0, %v1970
        %1972 = vdwg.mxu0
        %1973 = vmatpush.msra.mxu0 0.0
        %1974 = vmatpush.msra.mxu0 0.0
        %1975 = vmatpush.msra.mxu0 0.0
        %1976 = vmatpush.msra.mxu0 0.0
        %1977 = vmatpush.msra.mxu0 0.0
        %1978 = vmatpush.msra.mxu0 0.0
        %1979 = vmatpush.msra.mxu0 0.0
        %1980 = vmatpush.msra.mxu0 0.0
        %1981 = vmatpush.msra.mxu0 0.0
        %1982 = vmatpush.msra.mxu0 0.0
        %1983 = vmatpush.msra.mxu0 0.0
        %1984 = vmatpush.msra.mxu0 0.0
        %1985 = vmatpush.msra.mxu0 0.0
        %1986 = vmatpush.msra.mxu0 0.0
        %1987 = vmatpush.msra.mxu0 0.0
        %1988 = vmatpush.msra.mxu0 %v1921
        %1989 = vmatmul.f32.gmra.mxu0 %v1915
        %v1990 = vpop.f32.mrf.mxu0
        %v1991 = vadd.f32 0.0, %v1990
        %1992 = vdwg.mxu0
        %1993 = vmatpush.msra.mxu0 0.0
        %1994 = vmatpush.msra.mxu0 0.0
        %1995 = vmatpush.msra.mxu0 0.0
        %1996 = vmatpush.msra.mxu0 0.0
        %1997 = vmatpush.msra.mxu0 0.0
        %1998 = vmatpush.msra.mxu0 0.0
        %1999 = vmatpush.msra.mxu0 0.0
        %2000 = vmatpush.msra.mxu0 0.0
        %2001 = vmatpush.msra.mxu0 0.0
        %2002 = vmatpush.msra.mxu0 0.0
        %2003 = vmatpush.msra.mxu0 0.0
        %2004 = vmatpush.msra.mxu0 0.0
        %2005 = vmatpush.msra.mxu0 0.0
        %2006 = vmatpush.msra.mxu0 0.0
        %2007 = vmatpush.msra.mxu0 0.0
        %2008 = vmatpush.msra.mxu0 %v1923
        %2009 = vmatmul.f32.gmra.mxu0 %v1915
        %v2010 = vpop.f32.mrf.mxu0
        %v2011 = vadd.f32 0.0, %v2010
        %2012 = vdwg.mxu0
        %2013 = vmatpush.msra.mxu0 0.0
        %2014 = vmatpush.msra.mxu0 0.0
        %2015 = vmatpush.msra.mxu0 0.0
        %2016 = vmatpush.msra.mxu0 0.0
        %2017 = vmatpush.msra.mxu0 0.0
        %2018 = vmatpush.msra.mxu0 0.0
        %2019 = vmatpush.msra.mxu0 0.0
        %2020 = vmatpush.msra.mxu0 0.0
        %2021 = vmatpush.msra.mxu0 0.0
        %2022 = vmatpush.msra.mxu0 0.0
        %2023 = vmatpush.msra.mxu0 0.0
        %2024 = vmatpush.msra.mxu0 0.0
        %2025 = vmatpush.msra.mxu0 0.0
        %2026 = vmatpush.msra.mxu0 0.0
        %2027 = vmatpush.msra.mxu0 0.0
        %2028 = vmatpush.msra.mxu0 %v1925
        %2029 = vmatmul.f32.gmra.mxu0 %v1915
        %v2030 = vpop.f32.mrf.mxu0
        %v2031 = vadd.f32 0.0, %v2030
        %2032 = vdwg.mxu0
        %2033 = vmatpush.msra.mxu0 0.0
        %2034 = vmatpush.msra.mxu0 0.0
        %2035 = vmatpush.msra.mxu0 0.0
        %2036 = vmatpush.msra.mxu0 0.0
        %2037 = vmatpush.msra.mxu0 0.0
        %2038 = vmatpush.msra.mxu0 0.0
        %2039 = vmatpush.msra.mxu0 0.0
        %2040 = vmatpush.msra.mxu0 0.0
        %2041 = vmatpush.msra.mxu0 0.0
        %2042 = vmatpush.msra.mxu0 0.0
        %2043 = vmatpush.msra.mxu0 0.0
        %2044 = vmatpush.msra.mxu0 0.0
        %2045 = vmatpush.msra.mxu0 0.0
        %2046 = vmatpush.msra.mxu0 0.0
        %2047 = vmatpush.msra.mxu0 0.0
        %2048 = vmatpush.msra.mxu0 %v1927
        %2049 = vmatmul.f32.gmra.mxu0 %v1915
        %v2050 = vpop.f32.mrf.mxu0
        %v2051 = vadd.f32 0.0, %v2050
        %2052 = vdwg.mxu0
        %2053 = vmatpush.msra.mxu0 0.0
        %2054 = vmatpush.msra.mxu0 0.0
        %2055 = vmatpush.msra.mxu0 0.0
        %2056 = vmatpush.msra.mxu0 0.0
        %2057 = vmatpush.msra.mxu0 0.0
        %2058 = vmatpush.msra.mxu0 0.0
        %2059 = vmatpush.msra.mxu0 0.0
        %2060 = vmatpush.msra.mxu0 0.0
        %2061 = vmatpush.msra.mxu0 0.0
        %2062 = vmatpush.msra.mxu0 0.0
        %2063 = vmatpush.msra.mxu0 0.0
        %2064 = vmatpush.msra.mxu0 0.0
        %2065 = vmatpush.msra.mxu0 0.0
        %2066 = vmatpush.msra.mxu0 0.0
        %2067 = vmatpush.msra.mxu0 0.0
        %2068 = vmatpush.msra.mxu0 %v1929
        %2069 = vmatmul.f32.gmra.mxu0 %v1915
        %v2070 = vpop.f32.mrf.mxu0
        %v2071 = vadd.f32 0.0, %v2070
        %2072 = vdwg.mxu0
        %2073 = vmatpush.msra.mxu0 0.0
        %2074 = vmatpush.msra.mxu0 0.0
        %2075 = vmatpush.msra.mxu0 0.0
        %2076 = vmatpush.msra.mxu0 0.0
        %2077 = vmatpush.msra.mxu0 0.0
        %2078 = vmatpush.msra.mxu0 0.0
        %2079 = vmatpush.msra.mxu0 0.0
        %2080 = vmatpush.msra.mxu0 0.0
        %2081 = vmatpush.msra.mxu0 0.0
        %2082 = vmatpush.msra.mxu0 0.0
        %2083 = vmatpush.msra.mxu0 0.0
        %2084 = vmatpush.msra.mxu0 0.0
        %2085 = vmatpush.msra.mxu0 0.0
        %2086 = vmatpush.msra.mxu0 0.0
        %2087 = vmatpush.msra.mxu0 0.0
        %2088 = vmatpush.msra.mxu0 %v1931
        %2089 = vmatmul.f32.gmra.mxu0 %v1915
        %v2090 = vpop.f32.mrf.mxu0
        %v2091 = vadd.f32 0.0, %v2090
        %2092 = vdwg.mxu0
        %v2093 = vadd.f32 %v1860, %v1951
        %v2094 = vadd.f32 %v1861, %v1971
        %v2095 = vadd.f32 %v1862, %v1991
        %v2096 = vadd.f32 %v1863, %v2011
        %v2097 = vadd.f32 %v1864, %v2031
        %v2098 = vadd.f32 %v1865, %v2051
        %v2099 = vadd.f32 %v1866, %v2071
        %v2100 = vadd.f32 %v1867, %v2091
        %s2101 = scalar_lea.vmem %s1, 64
        %v2102 = vld [vmem:[%s2101] sm:$0xff]
        %2103 = vst [vmem:[#allocation1] ss:$2 sm:$0xff] %v242
        %s2104 = scalar_lea.vmem [#allocation1], 16
        %2105 = vst [vmem:[%s2104] ss:$2 sm:$0xff] %v243
        %s2106 = scalar_lea.vmem [#allocation1], 32
        %2107 = vst [vmem:[%s2106] ss:$2 sm:$0xff] %v244
        %s2108 = scalar_lea.vmem [#allocation1], 48
        %2109 = vst [vmem:[%s2108] ss:$2 sm:$0xff] %v245
        %v2110 = vld.sshfl [vmem:[#allocation1] sm:$0xff pattern:$0x75316420]
        %v2111 = vld.sshfl [vmem:[#allocation1 + $0x8] sm:$0xff pattern:$0x75316420]
        %v2112 = vld.sshfl [vmem:[#allocation1 + $0x10] sm:$0xff pattern:$0x75316420]
        %v2113 = vld.sshfl [vmem:[#allocation1 + $0x18] sm:$0xff pattern:$0x75316420]
        %v2114 = vld.sshfl [vmem:[#allocation1 + $0x20] sm:$0xff pattern:$0x75316420]
        %v2115 = vld.sshfl [vmem:[#allocation1 + $0x28] sm:$0xff pattern:$0x75316420]
        %v2116 = vld.sshfl [vmem:[#allocation1 + $0x30] sm:$0xff pattern:$0x75316420]
        %v2117 = vld.sshfl [vmem:[#allocation1 + $0x38] sm:$0xff pattern:$0x75316420]
        %2118 = vst [vmem:[#allocation1] ss:$2 sm:$0xff] %v246
        %v2119 = vld.sshfl [vmem:[#allocation1] sm:$0xff pattern:$0x75316420]
        %2120 = vrot.lane.b32.xlu0 %v2110, 89
        %v2121 = vpop.permute.xlu0 %2120
        %2122 = vrot.lane.b32.xlu0 %v2111, 89
        %v2123 = vpop.permute.xlu0 %2122
        %2124 = vrot.lane.b32.xlu0 %v2112, 89
        %v2125 = vpop.permute.xlu0 %2124
        %2126 = vrot.lane.b32.xlu0 %v2113, 89
        %v2127 = vpop.permute.xlu0 %2126
        %2128 = vrot.lane.b32.xlu0 %v2114, 89
        %v2129 = vpop.permute.xlu0 %2128
        %2130 = vrot.lane.b32.xlu0 %v2115, 89
        %v2131 = vpop.permute.xlu0 %2130
        %2132 = vrot.lane.b32.xlu0 %v2116, 89
        %v2133 = vpop.permute.xlu0 %2132
        %2134 = vrot.lane.b32.xlu0 %v2117, 89
        %v2135 = vpop.permute.xlu0 %2134
        %2136 = vrot.lane.b32.xlu0 %v2119, 89
        %v2137 = vpop.permute.xlu0 %2136
        %vm2138 = vcmask 728064
        %v2139 = vsel %vm2138, %v2121, %v2123
        %v2140 = vsel %vm2138, %v2123, %v2125
        %v2141 = vsel %vm2138, %v2125, %v2127
        %v2142 = vsel %vm2138, %v2127, %v2129
        %v2143 = vsel %vm2138, %v2129, %v2131
        %v2144 = vsel %vm2138, %v2131, %v2133
        %v2145 = vsel %vm2138, %v2133, %v2135
        %v2146 = vsel %vm2138, %v2135, %v2137
        %v2148 = vsel %vm299, %v2102, 0
        %v2150 = vsel %vm303, %v2139, 0
        %v2152 = vsel %vm303, %v2140, 0
        %v2154 = vsel %vm303, %v2141, 0
        %v2156 = vsel %vm303, %v2142, 0
        %v2158 = vsel %vm303, %v2143, 0
        %v2160 = vsel %vm303, %v2144, 0
        %v2162 = vsel %vm303, %v2145, 0
        %v2164 = vsel %vm303, %v2146, 0
        %2166 = vmatpush.msra.mxu0 0.0
        %2167 = vmatpush.msra.mxu0 0.0
        %2168 = vmatpush.msra.mxu0 0.0
        %2169 = vmatpush.msra.mxu0 0.0
        %2170 = vmatpush.msra.mxu0 0.0
        %2171 = vmatpush.msra.mxu0 0.0
        %2172 = vmatpush.msra.mxu0 0.0
        %2173 = vmatpush.msra.mxu0 0.0
        %2174 = vmatpush.msra.mxu0 0.0
        %2175 = vmatpush.msra.mxu0 0.0
        %2176 = vmatpush.msra.mxu0 0.0
        %2177 = vmatpush.msra.mxu0 0.0
        %2178 = vmatpush.msra.mxu0 0.0
        %2179 = vmatpush.msra.mxu0 0.0
        %2180 = vmatpush.msra.mxu0 0.0
        %2181 = vmatpush.msra.mxu0 %v2150
        %2182 = vmatmul.f32.gmra.mxu0 %v2148
        %v2183 = vpop.f32.mrf.mxu0
        %v2184 = vadd.f32 0.0, %v2183
        %2185 = vdwg.mxu0
        %2186 = vmatpush.msra.mxu0 0.0
        %2187 = vmatpush.msra.mxu0 0.0
        %2188 = vmatpush.msra.mxu0 0.0
        %2189 = vmatpush.msra.mxu0 0.0
        %2190 = vmatpush.msra.mxu0 0.0
        %2191 = vmatpush.msra.mxu0 0.0
        %2192 = vmatpush.msra.mxu0 0.0
        %2193 = vmatpush.msra.mxu0 0.0
        %2194 = vmatpush.msra.mxu0 0.0
        %2195 = vmatpush.msra.mxu0 0.0
        %2196 = vmatpush.msra.mxu0 0.0
        %2197 = vmatpush.msra.mxu0 0.0
        %2198 = vmatpush.msra.mxu0 0.0
        %2199 = vmatpush.msra.mxu0 0.0
        %2200 = vmatpush.msra.mxu0 0.0
        %2201 = vmatpush.msra.mxu0 %v2152
        %2202 = vmatmul.f32.gmra.mxu0 %v2148
        %v2203 = vpop.f32.mrf.mxu0
        %v2204 = vadd.f32 0.0, %v2203
        %2205 = vdwg.mxu0
        %2206 = vmatpush.msra.mxu0 0.0
        %2207 = vmatpush.msra.mxu0 0.0
        %2208 = vmatpush.msra.mxu0 0.0
        %2209 = vmatpush.msra.mxu0 0.0
        %2210 = vmatpush.msra.mxu0 0.0
        %2211 = vmatpush.msra.mxu0 0.0
        %2212 = vmatpush.msra.mxu0 0.0
        %2213 = vmatpush.msra.mxu0 0.0
        %2214 = vmatpush.msra.mxu0 0.0
        %2215 = vmatpush.msra.mxu0 0.0
        %2216 = vmatpush.msra.mxu0 0.0
        %2217 = vmatpush.msra.mxu0 0.0
        %2218 = vmatpush.msra.mxu0 0.0
        %2219 = vmatpush.msra.mxu0 0.0
        %2220 = vmatpush.msra.mxu0 0.0
        %2221 = vmatpush.msra.mxu0 %v2154
        %2222 = vmatmul.f32.gmra.mxu0 %v2148
        %v2223 = vpop.f32.mrf.mxu0
        %v2224 = vadd.f32 0.0, %v2223
        %2225 = vdwg.mxu0
        %2226 = vmatpush.msra.mxu0 0.0
        %2227 = vmatpush.msra.mxu0 0.0
        %2228 = vmatpush.msra.mxu0 0.0
        %2229 = vmatpush.msra.mxu0 0.0
        %2230 = vmatpush.msra.mxu0 0.0
        %2231 = vmatpush.msra.mxu0 0.0
        %2232 = vmatpush.msra.mxu0 0.0
        %2233 = vmatpush.msra.mxu0 0.0
        %2234 = vmatpush.msra.mxu0 0.0
        %2235 = vmatpush.msra.mxu0 0.0
        %2236 = vmatpush.msra.mxu0 0.0
        %2237 = vmatpush.msra.mxu0 0.0
        %2238 = vmatpush.msra.mxu0 0.0
        %2239 = vmatpush.msra.mxu0 0.0
        %2240 = vmatpush.msra.mxu0 0.0
        %2241 = vmatpush.msra.mxu0 %v2156
        %2242 = vmatmul.f32.gmra.mxu0 %v2148
        %v2243 = vpop.f32.mrf.mxu0
        %v2244 = vadd.f32 0.0, %v2243
        %2245 = vdwg.mxu0
        %2246 = vmatpush.msra.mxu0 0.0
        %2247 = vmatpush.msra.mxu0 0.0
        %2248 = vmatpush.msra.mxu0 0.0
        %2249 = vmatpush.msra.mxu0 0.0
        %2250 = vmatpush.msra.mxu0 0.0
        %2251 = vmatpush.msra.mxu0 0.0
        %2252 = vmatpush.msra.mxu0 0.0
        %2253 = vmatpush.msra.mxu0 0.0
        %2254 = vmatpush.msra.mxu0 0.0
        %2255 = vmatpush.msra.mxu0 0.0
        %2256 = vmatpush.msra.mxu0 0.0
        %2257 = vmatpush.msra.mxu0 0.0
        %2258 = vmatpush.msra.mxu0 0.0
        %2259 = vmatpush.msra.mxu0 0.0
        %2260 = vmatpush.msra.mxu0 0.0
        %2261 = vmatpush.msra.mxu0 %v2158
        %2262 = vmatmul.f32.gmra.mxu0 %v2148
        %v2263 = vpop.f32.mrf.mxu0
        %v2264 = vadd.f32 0.0, %v2263
        %2265 = vdwg.mxu0
        %2266 = vmatpush.msra.mxu0 0.0
        %2267 = vmatpush.msra.mxu0 0.0
        %2268 = vmatpush.msra.mxu0 0.0
        %2269 = vmatpush.msra.mxu0 0.0
        %2270 = vmatpush.msra.mxu0 0.0
        %2271 = vmatpush.msra.mxu0 0.0
        %2272 = vmatpush.msra.mxu0 0.0
        %2273 = vmatpush.msra.mxu0 0.0
        %2274 = vmatpush.msra.mxu0 0.0
        %2275 = vmatpush.msra.mxu0 0.0
        %2276 = vmatpush.msra.mxu0 0.0
        %2277 = vmatpush.msra.mxu0 0.0
        %2278 = vmatpush.msra.mxu0 0.0
        %2279 = vmatpush.msra.mxu0 0.0
        %2280 = vmatpush.msra.mxu0 0.0
        %2281 = vmatpush.msra.mxu0 %v2160
        %2282 = vmatmul.f32.gmra.mxu0 %v2148
        %v2283 = vpop.f32.mrf.mxu0
        %v2284 = vadd.f32 0.0, %v2283
        %2285 = vdwg.mxu0
        %2286 = vmatpush.msra.mxu0 0.0
        %2287 = vmatpush.msra.mxu0 0.0
        %2288 = vmatpush.msra.mxu0 0.0
        %2289 = vmatpush.msra.mxu0 0.0
        %2290 = vmatpush.msra.mxu0 0.0
        %2291 = vmatpush.msra.mxu0 0.0
        %2292 = vmatpush.msra.mxu0 0.0
        %2293 = vmatpush.msra.mxu0 0.0
        %2294 = vmatpush.msra.mxu0 0.0
        %2295 = vmatpush.msra.mxu0 0.0
        %2296 = vmatpush.msra.mxu0 0.0
        %2297 = vmatpush.msra.mxu0 0.0
        %2298 = vmatpush.msra.mxu0 0.0
        %2299 = vmatpush.msra.mxu0 0.0
        %2300 = vmatpush.msra.mxu0 0.0
        %2301 = vmatpush.msra.mxu0 %v2162
        %2302 = vmatmul.f32.gmra.mxu0 %v2148
        %v2303 = vpop.f32.mrf.mxu0
        %v2304 = vadd.f32 0.0, %v2303
        %2305 = vdwg.mxu0
        %2306 = vmatpush.msra.mxu0 0.0
        %2307 = vmatpush.msra.mxu0 0.0
        %2308 = vmatpush.msra.mxu0 0.0
        %2309 = vmatpush.msra.mxu0 0.0
        %2310 = vmatpush.msra.mxu0 0.0
        %2311 = vmatpush.msra.mxu0 0.0
        %2312 = vmatpush.msra.mxu0 0.0
        %2313 = vmatpush.msra.mxu0 0.0
        %2314 = vmatpush.msra.mxu0 0.0
        %2315 = vmatpush.msra.mxu0 0.0
        %2316 = vmatpush.msra.mxu0 0.0
        %2317 = vmatpush.msra.mxu0 0.0
        %2318 = vmatpush.msra.mxu0 0.0
        %2319 = vmatpush.msra.mxu0 0.0
        %2320 = vmatpush.msra.mxu0 0.0
        %2321 = vmatpush.msra.mxu0 %v2164
        %2322 = vmatmul.f32.gmra.mxu0 %v2148
        %v2323 = vpop.f32.mrf.mxu0
        %v2324 = vadd.f32 0.0, %v2323
        %2325 = vdwg.mxu0
        %v2326 = vadd.f32 %v2093, %v2184
        %v2327 = vadd.f32 %v2094, %v2204
        %v2328 = vadd.f32 %v2095, %v2224
        %v2329 = vadd.f32 %v2096, %v2244
        %v2330 = vadd.f32 %v2097, %v2264
        %v2331 = vadd.f32 %v2098, %v2284
        %v2332 = vadd.f32 %v2099, %v2304
        %v2333 = vadd.f32 %v2100, %v2324
        %s2334 = scalar_lea.vmem %s1, 72
        %v2335 = vld [vmem:[%s2334] sm:$0xff]
        %s2336 = scalar_lea.vmem %s1, 80
        %v2337 = vld [vmem:[%s2336] sm:$0xff]
        %2338 = vst [vmem:[#allocation1] ss:$2 sm:$0xff] %v242
        %s2339 = scalar_lea.vmem [#allocation1], 16
        %2340 = vst [vmem:[%s2339] ss:$2 sm:$0xff] %v243
        %s2341 = scalar_lea.vmem [#allocation1], 32
        %2342 = vst [vmem:[%s2341] ss:$2 sm:$0xff] %v244
        %s2343 = scalar_lea.vmem [#allocation1], 48
        %2344 = vst [vmem:[%s2343] ss:$2 sm:$0xff] %v245
        %v2345 = vld.sshfl [vmem:[#allocation1] sm:$0xff pattern:$0x75316420]
        %v2346 = vld.sshfl [vmem:[#allocation1 + $0x8] sm:$0xff pattern:$0x75316420]
        %v2347 = vld.sshfl [vmem:[#allocation1 + $0x10] sm:$0xff pattern:$0x75316420]
        %v2348 = vld.sshfl [vmem:[#allocation1 + $0x18] sm:$0xff pattern:$0x75316420]
        %v2349 = vld.sshfl [vmem:[#allocation1 + $0x20] sm:$0xff pattern:$0x75316420]
        %v2350 = vld.sshfl [vmem:[#allocation1 + $0x28] sm:$0xff pattern:$0x75316420]
        %v2351 = vld.sshfl [vmem:[#allocation1 + $0x30] sm:$0xff pattern:$0x75316420]
        %v2352 = vld.sshfl [vmem:[#allocation1 + $0x38] sm:$0xff pattern:$0x75316420]
        %2353 = vst [vmem:[#allocation1] ss:$2 sm:$0xff] %v246
        %v2354 = vld.sshfl [vmem:[#allocation1] sm:$0xff pattern:$0x75316420]
        %2355 = vrot.lane.b32.xlu0 %v2345, 10
        %v2356 = vpop.permute.xlu0 %2355
        %2357 = vrot.lane.b32.xlu0 %v2346, 10
        %v2358 = vpop.permute.xlu0 %2357
        %2359 = vrot.lane.b32.xlu0 %v2347, 10
        %v2360 = vpop.permute.xlu0 %2359
        %2361 = vrot.lane.b32.xlu0 %v2348, 10
        %v2362 = vpop.permute.xlu0 %2361
        %2363 = vrot.lane.b32.xlu0 %v2349, 10
        %v2364 = vpop.permute.xlu0 %2363
        %2365 = vrot.lane.b32.xlu0 %v2350, 10
        %v2366 = vpop.permute.xlu0 %2365
        %2367 = vrot.lane.b32.xlu0 %v2351, 10
        %v2368 = vpop.permute.xlu0 %2367
        %2369 = vrot.lane.b32.xlu0 %v2352, 10
        %v2370 = vpop.permute.xlu0 %2369
        %2371 = vrot.lane.b32.xlu0 %v2354, 10
        %v2372 = vpop.permute.xlu0 %2371
        %vm2373 = vcmask 80896
        %v2374 = vsel %vm2373, %v2356, %v2358
        %v2375 = vsel %vm2373, %v2358, %v2360
        %v2376 = vsel %vm2373, %v2360, %v2362
        %v2377 = vsel %vm2373, %v2362, %v2364
        %v2378 = vsel %vm2373, %v2364, %v2366
        %v2379 = vsel %vm2373, %v2366, %v2368
        %v2380 = vsel %vm2373, %v2368, %v2370
        %v2381 = vsel %vm2373, %v2370, %v2372
        %v2383 = vsel %vm299, %v2337, 0
        %v2385 = vsel %vm303, %v2374, 0
        %v2387 = vsel %vm303, %v2375, 0
        %v2389 = vsel %vm303, %v2376, 0
        %v2391 = vsel %vm303, %v2377, 0
        %v2393 = vsel %vm303, %v2378, 0
        %v2395 = vsel %vm303, %v2379, 0
        %v2397 = vsel %vm303, %v2380, 0
        %v2399 = vsel %vm303, %v2381, 0
        %2401 = vmatpush.msra.mxu0 0.0
        %2402 = vmatpush.msra.mxu0 0.0
        %2403 = vmatpush.msra.mxu0 0.0
        %2404 = vmatpush.msra.mxu0 0.0
        %2405 = vmatpush.msra.mxu0 0.0
        %2406 = vmatpush.msra.mxu0 0.0
        %2407 = vmatpush.msra.mxu0 0.0
        %2408 = vmatpush.msra.mxu0 0.0
        %2409 = vmatpush.msra.mxu0 0.0
        %2410 = vmatpush.msra.mxu0 0.0
        %2411 = vmatpush.msra.mxu0 0.0
        %2412 = vmatpush.msra.mxu0 0.0
        %2413 = vmatpush.msra.mxu0 0.0
        %2414 = vmatpush.msra.mxu0 0.0
        %2415 = vmatpush.msra.mxu0 0.0
        %2416 = vmatpush.msra.mxu0 %v2385
        %2417 = vmatmul.f32.gmra.mxu0 %v2383
        %v2418 = vpop.f32.mrf.mxu0
        %v2419 = vadd.f32 0.0, %v2418
        %2420 = vdwg.mxu0
        %2421 = vmatpush.msra.mxu0 0.0
        %2422 = vmatpush.msra.mxu0 0.0
        %2423 = vmatpush.msra.mxu0 0.0
        %2424 = vmatpush.msra.mxu0 0.0
        %2425 = vmatpush.msra.mxu0 0.0
        %2426 = vmatpush.msra.mxu0 0.0
        %2427 = vmatpush.msra.mxu0 0.0
        %2428 = vmatpush.msra.mxu0 0.0
        %2429 = vmatpush.msra.mxu0 0.0
        %2430 = vmatpush.msra.mxu0 0.0
        %2431 = vmatpush.msra.mxu0 0.0
        %2432 = vmatpush.msra.mxu0 0.0
        %2433 = vmatpush.msra.mxu0 0.0
        %2434 = vmatpush.msra.mxu0 0.0
        %2435 = vmatpush.msra.mxu0 0.0
        %2436 = vmatpush.msra.mxu0 %v2387
        %2437 = vmatmul.f32.gmra.mxu0 %v2383
        %v2438 = vpop.f32.mrf.mxu0
        %v2439 = vadd.f32 0.0, %v2438
        %2440 = vdwg.mxu0
        %2441 = vmatpush.msra.mxu0 0.0
        %2442 = vmatpush.msra.mxu0 0.0
        %2443 = vmatpush.msra.mxu0 0.0
        %2444 = vmatpush.msra.mxu0 0.0
        %2445 = vmatpush.msra.mxu0 0.0
        %2446 = vmatpush.msra.mxu0 0.0
        %2447 = vmatpush.msra.mxu0 0.0
        %2448 = vmatpush.msra.mxu0 0.0
        %2449 = vmatpush.msra.mxu0 0.0
        %2450 = vmatpush.msra.mxu0 0.0
        %2451 = vmatpush.msra.mxu0 0.0
        %2452 = vmatpush.msra.mxu0 0.0
        %2453 = vmatpush.msra.mxu0 0.0
        %2454 = vmatpush.msra.mxu0 0.0
        %2455 = vmatpush.msra.mxu0 0.0
        %2456 = vmatpush.msra.mxu0 %v2389
        %2457 = vmatmul.f32.gmra.mxu0 %v2383
        %v2458 = vpop.f32.mrf.mxu0
        %v2459 = vadd.f32 0.0, %v2458
        %2460 = vdwg.mxu0
        %2461 = vmatpush.msra.mxu0 0.0
        %2462 = vmatpush.msra.mxu0 0.0
        %2463 = vmatpush.msra.mxu0 0.0
        %2464 = vmatpush.msra.mxu0 0.0
        %2465 = vmatpush.msra.mxu0 0.0
        %2466 = vmatpush.msra.mxu0 0.0
        %2467 = vmatpush.msra.mxu0 0.0
        %2468 = vmatpush.msra.mxu0 0.0
        %2469 = vmatpush.msra.mxu0 0.0
        %2470 = vmatpush.msra.mxu0 0.0
        %2471 = vmatpush.msra.mxu0 0.0
        %2472 = vmatpush.msra.mxu0 0.0
        %2473 = vmatpush.msra.mxu0 0.0
        %2474 = vmatpush.msra.mxu0 0.0
        %2475 = vmatpush.msra.mxu0 0.0
        %2476 = vmatpush.msra.mxu0 %v2391
        %2477 = vmatmul.f32.gmra.mxu0 %v2383
        %v2478 = vpop.f32.mrf.mxu0
        %v2479 = vadd.f32 0.0, %v2478
        %2480 = vdwg.mxu0
        %2481 = vmatpush.msra.mxu0 0.0
        %2482 = vmatpush.msra.mxu0 0.0
        %2483 = vmatpush.msra.mxu0 0.0
        %2484 = vmatpush.msra.mxu0 0.0
        %2485 = vmatpush.msra.mxu0 0.0
        %2486 = vmatpush.msra.mxu0 0.0
        %2487 = vmatpush.msra.mxu0 0.0
        %2488 = vmatpush.msra.mxu0 0.0
        %2489 = vmatpush.msra.mxu0 0.0
        %2490 = vmatpush.msra.mxu0 0.0
        %2491 = vmatpush.msra.mxu0 0.0
        %2492 = vmatpush.msra.mxu0 0.0
        %2493 = vmatpush.msra.mxu0 0.0
        %2494 = vmatpush.msra.mxu0 0.0
        %2495 = vmatpush.msra.mxu0 0.0
        %2496 = vmatpush.msra.mxu0 %v2393
        %2497 = vmatmul.f32.gmra.mxu0 %v2383
        %v2498 = vpop.f32.mrf.mxu0
        %v2499 = vadd.f32 0.0, %v2498
        %2500 = vdwg.mxu0
        %2501 = vmatpush.msra.mxu0 0.0
        %2502 = vmatpush.msra.mxu0 0.0
        %2503 = vmatpush.msra.mxu0 0.0
        %2504 = vmatpush.msra.mxu0 0.0
        %2505 = vmatpush.msra.mxu0 0.0
        %2506 = vmatpush.msra.mxu0 0.0
        %2507 = vmatpush.msra.mxu0 0.0
        %2508 = vmatpush.msra.mxu0 0.0
        %2509 = vmatpush.msra.mxu0 0.0
        %2510 = vmatpush.msra.mxu0 0.0
        %2511 = vmatpush.msra.mxu0 0.0
        %2512 = vmatpush.msra.mxu0 0.0
        %2513 = vmatpush.msra.mxu0 0.0
        %2514 = vmatpush.msra.mxu0 0.0
        %2515 = vmatpush.msra.mxu0 0.0
        %2516 = vmatpush.msra.mxu0 %v2395
        %2517 = vmatmul.f32.gmra.mxu0 %v2383
        %v2518 = vpop.f32.mrf.mxu0
        %v2519 = vadd.f32 0.0, %v2518
        %2520 = vdwg.mxu0
        %2521 = vmatpush.msra.mxu0 0.0
        %2522 = vmatpush.msra.mxu0 0.0
        %2523 = vmatpush.msra.mxu0 0.0
        %2524 = vmatpush.msra.mxu0 0.0
        %2525 = vmatpush.msra.mxu0 0.0
        %2526 = vmatpush.msra.mxu0 0.0
        %2527 = vmatpush.msra.mxu0 0.0
        %2528 = vmatpush.msra.mxu0 0.0
        %2529 = vmatpush.msra.mxu0 0.0
        %2530 = vmatpush.msra.mxu0 0.0
        %2531 = vmatpush.msra.mxu0 0.0
        %2532 = vmatpush.msra.mxu0 0.0
        %2533 = vmatpush.msra.mxu0 0.0
        %2534 = vmatpush.msra.mxu0 0.0
        %2535 = vmatpush.msra.mxu0 0.0
        %2536 = vmatpush.msra.mxu0 %v2397
        %2537 = vmatmul.f32.gmra.mxu0 %v2383
        %v2538 = vpop.f32.mrf.mxu0
        %v2539 = vadd.f32 0.0, %v2538
        %2540 = vdwg.mxu0
        %2541 = vmatpush.msra.mxu0 0.0
        %2542 = vmatpush.msra.mxu0 0.0
        %2543 = vmatpush.msra.mxu0 0.0
        %2544 = vmatpush.msra.mxu0 0.0
        %2545 = vmatpush.msra.mxu0 0.0
        %2546 = vmatpush.msra.mxu0 0.0
        %2547 = vmatpush.msra.mxu0 0.0
        %2548 = vmatpush.msra.mxu0 0.0
        %2549 = vmatpush.msra.mxu0 0.0
        %2550 = vmatpush.msra.mxu0 0.0
        %2551 = vmatpush.msra.mxu0 0.0
        %2552 = vmatpush.msra.mxu0 0.0
        %2553 = vmatpush.msra.mxu0 0.0
        %2554 = vmatpush.msra.mxu0 0.0
        %2555 = vmatpush.msra.mxu0 0.0
        %2556 = vmatpush.msra.mxu0 %v2399
        %2557 = vmatmul.f32.gmra.mxu0 %v2383
        %v2558 = vpop.f32.mrf.mxu0
        %v2559 = vadd.f32 0.0, %v2558
        %2560 = vdwg.mxu0
        %2561 = vst [vmem:[#allocation1] ss:$2 sm:$0xff] %v242
        %s2562 = scalar_lea.vmem [#allocation1], 16
        %2563 = vst [vmem:[%s2562] ss:$2 sm:$0xff] %v243
        %s2564 = scalar_lea.vmem [#allocation1], 32
        %2565 = vst [vmem:[%s2564] ss:$2 sm:$0xff] %v244
        %s2566 = scalar_lea.vmem [#allocation1], 48
        %2567 = vst [vmem:[%s2566] ss:$2 sm:$0xff] %v245
        %v2568 = vld.sshfl [vmem:[#allocation1] sm:$0xff pattern:$0x75316420]
        %v2569 = vld.sshfl [vmem:[#allocation1 + $0x8] sm:$0xff pattern:$0x75316420]
        %v2570 = vld.sshfl [vmem:[#allocation1 + $0x10] sm:$0xff pattern:$0x75316420]
        %v2571 = vld.sshfl [vmem:[#allocation1 + $0x18] sm:$0xff pattern:$0x75316420]
        %v2572 = vld.sshfl [vmem:[#allocation1 + $0x20] sm:$0xff pattern:$0x75316420]
        %v2573 = vld.sshfl [vmem:[#allocation1 + $0x28] sm:$0xff pattern:$0x75316420]
        %v2574 = vld.sshfl [vmem:[#allocation1 + $0x30] sm:$0xff pattern:$0x75316420]
        %v2575 = vld.sshfl [vmem:[#allocation1 + $0x38] sm:$0xff pattern:$0x75316420]
        %2576 = vst [vmem:[#allocation1] ss:$2 sm:$0xff] %v246
        %v2577 = vld.sshfl [vmem:[#allocation1] sm:$0xff pattern:$0x75316420]
        %2578 = vrot.lane.b32.xlu0 %v2568, 11
        %v2579 = vpop.permute.xlu0 %2578
        %2580 = vrot.lane.b32.xlu0 %v2569, 11
        %v2581 = vpop.permute.xlu0 %2580
        %2582 = vrot.lane.b32.xlu0 %v2570, 11
        %v2583 = vpop.permute.xlu0 %2582
        %2584 = vrot.lane.b32.xlu0 %v2571, 11
        %v2585 = vpop.permute.xlu0 %2584
        %2586 = vrot.lane.b32.xlu0 %v2572, 11
        %v2587 = vpop.permute.xlu0 %2586
        %2588 = vrot.lane.b32.xlu0 %v2573, 11
        %v2589 = vpop.permute.xlu0 %2588
        %2590 = vrot.lane.b32.xlu0 %v2574, 11
        %v2591 = vpop.permute.xlu0 %2590
        %2592 = vrot.lane.b32.xlu0 %v2575, 11
        %v2593 = vpop.permute.xlu0 %2592
        %2594 = vrot.lane.b32.xlu0 %v2577, 11
        %v2595 = vpop.permute.xlu0 %2594
        %vm2596 = vcmask 89088
        %v2597 = vsel %vm2596, %v2579, %v2581
        %v2598 = vsel %vm2596, %v2581, %v2583
        %v2599 = vsel %vm2596, %v2583, %v2585
        %v2600 = vsel %vm2596, %v2585, %v2587
        %v2601 = vsel %vm2596, %v2587, %v2589
        %v2602 = vsel %vm2596, %v2589, %v2591
        %v2603 = vsel %vm2596, %v2591, %v2593
        %v2604 = vsel %vm2596, %v2593, %v2595
        %v2606 = vsel %vm299, %v2335, 0
        %v2608 = vsel %vm303, %v2597, 0
        %v2610 = vsel %vm303, %v2598, 0
        %v2612 = vsel %vm303, %v2599, 0
        %v2614 = vsel %vm303, %v2600, 0
        %v2616 = vsel %vm303, %v2601, 0
        %v2618 = vsel %vm303, %v2602, 0
        %v2620 = vsel %vm303, %v2603, 0
        %v2622 = vsel %vm303, %v2604, 0
        %2624 = vmatpush.msra.mxu0 0.0
        %2625 = vmatpush.msra.mxu0 0.0
        %2626 = vmatpush.msra.mxu0 0.0
        %2627 = vmatpush.msra.mxu0 0.0
        %2628 = vmatpush.msra.mxu0 0.0
        %2629 = vmatpush.msra.mxu0 0.0
        %2630 = vmatpush.msra.mxu0 0.0
        %2631 = vmatpush.msra.mxu0 0.0
        %2632 = vmatpush.msra.mxu0 0.0
        %2633 = vmatpush.msra.mxu0 0.0
        %2634 = vmatpush.msra.mxu0 0.0
        %2635 = vmatpush.msra.mxu0 0.0
        %2636 = vmatpush.msra.mxu0 0.0
        %2637 = vmatpush.msra.mxu0 0.0
        %2638 = vmatpush.msra.mxu0 0.0
        %2639 = vmatpush.msra.mxu0 %v2608
        %2640 = vmatmul.f32.gmra.mxu0 %v2606
        %v2641 = vpop.f32.mrf.mxu0
        %v2642 = vadd.f32 %v2419, %v2641
        %2643 = vdwg.mxu0
        %2644 = vmatpush.msra.mxu0 0.0
        %2645 = vmatpush.msra.mxu0 0.0
        %2646 = vmatpush.msra.mxu0 0.0
        %2647 = vmatpush.msra.mxu0 0.0
        %2648 = vmatpush.msra.mxu0 0.0
        %2649 = vmatpush.msra.mxu0 0.0
        %2650 = vmatpush.msra.mxu0 0.0
        %2651 = vmatpush.msra.mxu0 0.0
        %2652 = vmatpush.msra.mxu0 0.0
        %2653 = vmatpush.msra.mxu0 0.0
        %2654 = vmatpush.msra.mxu0 0.0
        %2655 = vmatpush.msra.mxu0 0.0
        %2656 = vmatpush.msra.mxu0 0.0
        %2657 = vmatpush.msra.mxu0 0.0
        %2658 = vmatpush.msra.mxu0 0.0
        %2659 = vmatpush.msra.mxu0 %v2610
        %2660 = vmatmul.f32.gmra.mxu0 %v2606
        %v2661 = vpop.f32.mrf.mxu0
        %v2662 = vadd.f32 %v2439, %v2661
        %2663 = vdwg.mxu0
        %2664 = vmatpush.msra.mxu0 0.0
        %2665 = vmatpush.msra.mxu0 0.0
        %2666 = vmatpush.msra.mxu0 0.0
        %2667 = vmatpush.msra.mxu0 0.0
        %2668 = vmatpush.msra.mxu0 0.0
        %2669 = vmatpush.msra.mxu0 0.0
        %2670 = vmatpush.msra.mxu0 0.0
        %2671 = vmatpush.msra.mxu0 0.0
        %2672 = vmatpush.msra.mxu0 0.0
        %2673 = vmatpush.msra.mxu0 0.0
        %2674 = vmatpush.msra.mxu0 0.0
        %2675 = vmatpush.msra.mxu0 0.0
        %2676 = vmatpush.msra.mxu0 0.0
        %2677 = vmatpush.msra.mxu0 0.0
        %2678 = vmatpush.msra.mxu0 0.0
        %2679 = vmatpush.msra.mxu0 %v2612
        %2680 = vmatmul.f32.gmra.mxu0 %v2606
        %v2681 = vpop.f32.mrf.mxu0
        %v2682 = vadd.f32 %v2459, %v2681
        %2683 = vdwg.mxu0
        %2684 = vmatpush.msra.mxu0 0.0
        %2685 = vmatpush.msra.mxu0 0.0
        %2686 = vmatpush.msra.mxu0 0.0
        %2687 = vmatpush.msra.mxu0 0.0
        %2688 = vmatpush.msra.mxu0 0.0
        %2689 = vmatpush.msra.mxu0 0.0
        %2690 = vmatpush.msra.mxu0 0.0
        %2691 = vmatpush.msra.mxu0 0.0
        %2692 = vmatpush.msra.mxu0 0.0
        %2693 = vmatpush.msra.mxu0 0.0
        %2694 = vmatpush.msra.mxu0 0.0
        %2695 = vmatpush.msra.mxu0 0.0
        %2696 = vmatpush.msra.mxu0 0.0
        %2697 = vmatpush.msra.mxu0 0.0
        %2698 = vmatpush.msra.mxu0 0.0
        %2699 = vmatpush.msra.mxu0 %v2614
        %2700 = vmatmul.f32.gmra.mxu0 %v2606
        %v2701 = vpop.f32.mrf.mxu0
        %v2702 = vadd.f32 %v2479, %v2701
        %2703 = vdwg.mxu0
        %2704 = vmatpush.msra.mxu0 0.0
        %2705 = vmatpush.msra.mxu0 0.0
        %2706 = vmatpush.msra.mxu0 0.0
        %2707 = vmatpush.msra.mxu0 0.0
        %2708 = vmatpush.msra.mxu0 0.0
        %2709 = vmatpush.msra.mxu0 0.0
        %2710 = vmatpush.msra.mxu0 0.0
        %2711 = vmatpush.msra.mxu0 0.0
        %2712 = vmatpush.msra.mxu0 0.0
        %2713 = vmatpush.msra.mxu0 0.0
        %2714 = vmatpush.msra.mxu0 0.0
        %2715 = vmatpush.msra.mxu0 0.0
        %2716 = vmatpush.msra.mxu0 0.0
        %2717 = vmatpush.msra.mxu0 0.0
        %2718 = vmatpush.msra.mxu0 0.0
        %2719 = vmatpush.msra.mxu0 %v2616
        %2720 = vmatmul.f32.gmra.mxu0 %v2606
        %v2721 = vpop.f32.mrf.mxu0
        %v2722 = vadd.f32 %v2499, %v2721
        %2723 = vdwg.mxu0
        %2724 = vmatpush.msra.mxu0 0.0
        %2725 = vmatpush.msra.mxu0 0.0
        %2726 = vmatpush.msra.mxu0 0.0
        %2727 = vmatpush.msra.mxu0 0.0
        %2728 = vmatpush.msra.mxu0 0.0
        %2729 = vmatpush.msra.mxu0 0.0
        %2730 = vmatpush.msra.mxu0 0.0
        %2731 = vmatpush.msra.mxu0 0.0
        %2732 = vmatpush.msra.mxu0 0.0
        %2733 = vmatpush.msra.mxu0 0.0
        %2734 = vmatpush.msra.mxu0 0.0
        %2735 = vmatpush.msra.mxu0 0.0
        %2736 = vmatpush.msra.mxu0 0.0
        %2737 = vmatpush.msra.mxu0 0.0
        %2738 = vmatpush.msra.mxu0 0.0
        %2739 = vmatpush.msra.mxu0 %v2618
        %2740 = vmatmul.f32.gmra.mxu0 %v2606
        %v2741 = vpop.f32.mrf.mxu0
        %v2742 = vadd.f32 %v2519, %v2741
        %2743 = vdwg.mxu0
        %2744 = vmatpush.msra.mxu0 0.0
        %2745 = vmatpush.msra.mxu0 0.0
        %2746 = vmatpush.msra.mxu0 0.0
        %2747 = vmatpush.msra.mxu0 0.0
        %2748 = vmatpush.msra.mxu0 0.0
        %2749 = vmatpush.msra.mxu0 0.0
        %2750 = vmatpush.msra.mxu0 0.0
        %2751 = vmatpush.msra.mxu0 0.0
        %2752 = vmatpush.msra.mxu0 0.0
        %2753 = vmatpush.msra.mxu0 0.0
        %2754 = vmatpush.msra.mxu0 0.0
        %2755 = vmatpush.msra.mxu0 0.0
        %2756 = vmatpush.msra.mxu0 0.0
        %2757 = vmatpush.msra.mxu0 0.0
        %2758 = vmatpush.msra.mxu0 0.0
        %2759 = vmatpush.msra.mxu0 %v2620
        %2760 = vmatmul.f32.gmra.mxu0 %v2606
        %v2761 = vpop.f32.mrf.mxu0
        %v2762 = vadd.f32 %v2539, %v2761
        %2763 = vdwg.mxu0
        %2764 = vmatpush.msra.mxu0 0.0
        %2765 = vmatpush.msra.mxu0 0.0
        %2766 = vmatpush.msra.mxu0 0.0
        %2767 = vmatpush.msra.mxu0 0.0
        %2768 = vmatpush.msra.mxu0 0.0
        %2769 = vmatpush.msra.mxu0 0.0
        %2770 = vmatpush.msra.mxu0 0.0
        %2771 = vmatpush.msra.mxu0 0.0
        %2772 = vmatpush.msra.mxu0 0.0
        %2773 = vmatpush.msra.mxu0 0.0
        %2774 = vmatpush.msra.mxu0 0.0
        %2775 = vmatpush.msra.mxu0 0.0
        %2776 = vmatpush.msra.mxu0 0.0
        %2777 = vmatpush.msra.mxu0 0.0
        %2778 = vmatpush.msra.mxu0 0.0
        %2779 = vmatpush.msra.mxu0 %v2622
        %2780 = vmatmul.f32.gmra.mxu0 %v2606
        %v2781 = vpop.f32.mrf.mxu0
        %v2782 = vadd.f32 %v2559, %v2781
        %2783 = vdwg.mxu0
        %s2784 = scalar_lea.vmem %s1, 88
        %v2785 = vld [vmem:[%s2784] sm:$0xff]
        %2786 = vst [vmem:[#allocation1] ss:$2 sm:$0xff] %v242
        %s2787 = scalar_lea.vmem [#allocation1], 16
        %2788 = vst [vmem:[%s2787] ss:$2 sm:$0xff] %v243
        %s2789 = scalar_lea.vmem [#allocation1], 32
        %2790 = vst [vmem:[%s2789] ss:$2 sm:$0xff] %v244
        %s2791 = scalar_lea.vmem [#allocation1], 48
        %2792 = vst [vmem:[%s2791] ss:$2 sm:$0xff] %v245
        %v2793 = vld.sshfl [vmem:[#allocation1] sm:$0xff pattern:$0x75316420]
        %v2794 = vld.sshfl [vmem:[#allocation1 + $0x8] sm:$0xff pattern:$0x75316420]
        %v2795 = vld.sshfl [vmem:[#allocation1 + $0x10] sm:$0xff pattern:$0x75316420]
        %v2796 = vld.sshfl [vmem:[#allocation1 + $0x18] sm:$0xff pattern:$0x75316420]
        %v2797 = vld.sshfl [vmem:[#allocation1 + $0x20] sm:$0xff pattern:$0x75316420]
        %v2798 = vld.sshfl [vmem:[#allocation1 + $0x28] sm:$0xff pattern:$0x75316420]
        %v2799 = vld.sshfl [vmem:[#allocation1 + $0x30] sm:$0xff pattern:$0x75316420]
        %v2800 = vld.sshfl [vmem:[#allocation1 + $0x38] sm:$0xff pattern:$0x75316420]
        %2801 = vst [vmem:[#allocation1] ss:$2 sm:$0xff] %v246
        %v2802 = vld.sshfl [vmem:[#allocation1] sm:$0xff pattern:$0x75316420]
        %2803 = vrot.lane.b32.xlu0 %v2793, 9
        %v2804 = vpop.permute.xlu0 %2803
        %2805 = vrot.lane.b32.xlu0 %v2794, 9
        %v2806 = vpop.permute.xlu0 %2805
        %2807 = vrot.lane.b32.xlu0 %v2795, 9
        %v2808 = vpop.permute.xlu0 %2807
        %2809 = vrot.lane.b32.xlu0 %v2796, 9
        %v2810 = vpop.permute.xlu0 %2809
        %2811 = vrot.lane.b32.xlu0 %v2797, 9
        %v2812 = vpop.permute.xlu0 %2811
        %2813 = vrot.lane.b32.xlu0 %v2798, 9
        %v2814 = vpop.permute.xlu0 %2813
        %2815 = vrot.lane.b32.xlu0 %v2799, 9
        %v2816 = vpop.permute.xlu0 %2815
        %2817 = vrot.lane.b32.xlu0 %v2800, 9
        %v2818 = vpop.permute.xlu0 %2817
        %2819 = vrot.lane.b32.xlu0 %v2802, 9
        %v2820 = vpop.permute.xlu0 %2819
        %vm2821 = vcmask 72704
        %v2822 = vsel %vm2821, %v2804, %v2806
        %v2823 = vsel %vm2821, %v2806, %v2808
        %v2824 = vsel %vm2821, %v2808, %v2810
        %v2825 = vsel %vm2821, %v2810, %v2812
        %v2826 = vsel %vm2821, %v2812, %v2814
        %v2827 = vsel %vm2821, %v2814, %v2816
        %v2828 = vsel %vm2821, %v2816, %v2818
        %v2829 = vsel %vm2821, %v2818, %v2820
        %v2831 = vsel %vm299, %v2785, 0
        %v2833 = vsel %vm303, %v2822, 0
        %v2835 = vsel %vm303, %v2823, 0
        %v2837 = vsel %vm303, %v2824, 0
        %v2839 = vsel %vm303, %v2825, 0
        %v2841 = vsel %vm303, %v2826, 0
        %v2843 = vsel %vm303, %v2827, 0
        %v2845 = vsel %vm303, %v2828, 0
        %v2847 = vsel %vm303, %v2829, 0
        %2849 = vmatpush.msra.mxu0 0.0
        %2850 = vmatpush.msra.mxu0 0.0
        %2851 = vmatpush.msra.mxu0 0.0
        %2852 = vmatpush.msra.mxu0 0.0
        %2853 = vmatpush.msra.mxu0 0.0
        %2854 = vmatpush.msra.mxu0 0.0
        %2855 = vmatpush.msra.mxu0 0.0
        %2856 = vmatpush.msra.mxu0 0.0
        %2857 = vmatpush.msra.mxu0 0.0
        %2858 = vmatpush.msra.mxu0 0.0
        %2859 = vmatpush.msra.mxu0 0.0
        %2860 = vmatpush.msra.mxu0 0.0
        %2861 = vmatpush.msra.mxu0 0.0
        %2862 = vmatpush.msra.mxu0 0.0
        %2863 = vmatpush.msra.mxu0 0.0
        %2864 = vmatpush.msra.mxu0 %v2833
        %2865 = vmatmul.f32.gmra.mxu0 %v2831
        %v2866 = vpop.f32.mrf.mxu0
        %v2867 = vadd.f32 0.0, %v2866
        %2868 = vdwg.mxu0
        %2869 = vmatpush.msra.mxu0 0.0
        %2870 = vmatpush.msra.mxu0 0.0
        %2871 = vmatpush.msra.mxu0 0.0
        %2872 = vmatpush.msra.mxu0 0.0
        %2873 = vmatpush.msra.mxu0 0.0
        %2874 = vmatpush.msra.mxu0 0.0
        %2875 = vmatpush.msra.mxu0 0.0
        %2876 = vmatpush.msra.mxu0 0.0
        %2877 = vmatpush.msra.mxu0 0.0
        %2878 = vmatpush.msra.mxu0 0.0
        %2879 = vmatpush.msra.mxu0 0.0
        %2880 = vmatpush.msra.mxu0 0.0
        %2881 = vmatpush.msra.mxu0 0.0
        %2882 = vmatpush.msra.mxu0 0.0
        %2883 = vmatpush.msra.mxu0 0.0
        %2884 = vmatpush.msra.mxu0 %v2835
        %2885 = vmatmul.f32.gmra.mxu0 %v2831
        %v2886 = vpop.f32.mrf.mxu0
        %v2887 = vadd.f32 0.0, %v2886
        %2888 = vdwg.mxu0
        %2889 = vmatpush.msra.mxu0 0.0
        %2890 = vmatpush.msra.mxu0 0.0
        %2891 = vmatpush.msra.mxu0 0.0
        %2892 = vmatpush.msra.mxu0 0.0
        %2893 = vmatpush.msra.mxu0 0.0
        %2894 = vmatpush.msra.mxu0 0.0
        %2895 = vmatpush.msra.mxu0 0.0
        %2896 = vmatpush.msra.mxu0 0.0
        %2897 = vmatpush.msra.mxu0 0.0
        %2898 = vmatpush.msra.mxu0 0.0
        %2899 = vmatpush.msra.mxu0 0.0
        %2900 = vmatpush.msra.mxu0 0.0
        %2901 = vmatpush.msra.mxu0 0.0
        %2902 = vmatpush.msra.mxu0 0.0
        %2903 = vmatpush.msra.mxu0 0.0
        %2904 = vmatpush.msra.mxu0 %v2837
        %2905 = vmatmul.f32.gmra.mxu0 %v2831
        %v2906 = vpop.f32.mrf.mxu0
        %v2907 = vadd.f32 0.0, %v2906
        %2908 = vdwg.mxu0
        %2909 = vmatpush.msra.mxu0 0.0
        %2910 = vmatpush.msra.mxu0 0.0
        %2911 = vmatpush.msra.mxu0 0.0
        %2912 = vmatpush.msra.mxu0 0.0
        %2913 = vmatpush.msra.mxu0 0.0
        %2914 = vmatpush.msra.mxu0 0.0
        %2915 = vmatpush.msra.mxu0 0.0
        %2916 = vmatpush.msra.mxu0 0.0
        %2917 = vmatpush.msra.mxu0 0.0
        %2918 = vmatpush.msra.mxu0 0.0
        %2919 = vmatpush.msra.mxu0 0.0
        %2920 = vmatpush.msra.mxu0 0.0
        %2921 = vmatpush.msra.mxu0 0.0
        %2922 = vmatpush.msra.mxu0 0.0
        %2923 = vmatpush.msra.mxu0 0.0
        %2924 = vmatpush.msra.mxu0 %v2839
        %2925 = vmatmul.f32.gmra.mxu0 %v2831
        %v2926 = vpop.f32.mrf.mxu0
        %v2927 = vadd.f32 0.0, %v2926
        %2928 = vdwg.mxu0
        %2929 = vmatpush.msra.mxu0 0.0
        %2930 = vmatpush.msra.mxu0 0.0
        %2931 = vmatpush.msra.mxu0 0.0
        %2932 = vmatpush.msra.mxu0 0.0
        %2933 = vmatpush.msra.mxu0 0.0
        %2934 = vmatpush.msra.mxu0 0.0
        %2935 = vmatpush.msra.mxu0 0.0
        %2936 = vmatpush.msra.mxu0 0.0
        %2937 = vmatpush.msra.mxu0 0.0
        %2938 = vmatpush.msra.mxu0 0.0
        %2939 = vmatpush.msra.mxu0 0.0
        %2940 = vmatpush.msra.mxu0 0.0
        %2941 = vmatpush.msra.mxu0 0.0
        %2942 = vmatpush.msra.mxu0 0.0
        %2943 = vmatpush.msra.mxu0 0.0
        %2944 = vmatpush.msra.mxu0 %v2841
        %2945 = vmatmul.f32.gmra.mxu0 %v2831
        %v2946 = vpop.f32.mrf.mxu0
        %v2947 = vadd.f32 0.0, %v2946
        %2948 = vdwg.mxu0
        %2949 = vmatpush.msra.mxu0 0.0
        %2950 = vmatpush.msra.mxu0 0.0
        %2951 = vmatpush.msra.mxu0 0.0
        %2952 = vmatpush.msra.mxu0 0.0
        %2953 = vmatpush.msra.mxu0 0.0
        %2954 = vmatpush.msra.mxu0 0.0
        %2955 = vmatpush.msra.mxu0 0.0
        %2956 = vmatpush.msra.mxu0 0.0
        %2957 = vmatpush.msra.mxu0 0.0
        %2958 = vmatpush.msra.mxu0 0.0
        %2959 = vmatpush.msra.mxu0 0.0
        %2960 = vmatpush.msra.mxu0 0.0
        %2961 = vmatpush.msra.mxu0 0.0
        %2962 = vmatpush.msra.mxu0 0.0
        %2963 = vmatpush.msra.mxu0 0.0
        %2964 = vmatpush.msra.mxu0 %v2843
        %2965 = vmatmul.f32.gmra.mxu0 %v2831
        %v2966 = vpop.f32.mrf.mxu0
        %v2967 = vadd.f32 0.0, %v2966
        %2968 = vdwg.mxu0
        %2969 = vmatpush.msra.mxu0 0.0
        %2970 = vmatpush.msra.mxu0 0.0
        %2971 = vmatpush.msra.mxu0 0.0
        %2972 = vmatpush.msra.mxu0 0.0
        %2973 = vmatpush.msra.mxu0 0.0
        %2974 = vmatpush.msra.mxu0 0.0
        %2975 = vmatpush.msra.mxu0 0.0
        %2976 = vmatpush.msra.mxu0 0.0
        %2977 = vmatpush.msra.mxu0 0.0
        %2978 = vmatpush.msra.mxu0 0.0
        %2979 = vmatpush.msra.mxu0 0.0
        %2980 = vmatpush.msra.mxu0 0.0
        %2981 = vmatpush.msra.mxu0 0.0
        %2982 = vmatpush.msra.mxu0 0.0
        %2983 = vmatpush.msra.mxu0 0.0
        %2984 = vmatpush.msra.mxu0 %v2845
        %2985 = vmatmul.f32.gmra.mxu0 %v2831
        %v2986 = vpop.f32.mrf.mxu0
        %v2987 = vadd.f32 0.0, %v2986
        %2988 = vdwg.mxu0
        %2989 = vmatpush.msra.mxu0 0.0
        %2990 = vmatpush.msra.mxu0 0.0
        %2991 = vmatpush.msra.mxu0 0.0
        %2992 = vmatpush.msra.mxu0 0.0
        %2993 = vmatpush.msra.mxu0 0.0
        %2994 = vmatpush.msra.mxu0 0.0
        %2995 = vmatpush.msra.mxu0 0.0
        %2996 = vmatpush.msra.mxu0 0.0
        %2997 = vmatpush.msra.mxu0 0.0
        %2998 = vmatpush.msra.mxu0 0.0
        %2999 = vmatpush.msra.mxu0 0.0
        %3000 = vmatpush.msra.mxu0 0.0
        %3001 = vmatpush.msra.mxu0 0.0
        %3002 = vmatpush.msra.mxu0 0.0
        %3003 = vmatpush.msra.mxu0 0.0
        %3004 = vmatpush.msra.mxu0 %v2847
        %3005 = vmatmul.f32.gmra.mxu0 %v2831
        %v3006 = vpop.f32.mrf.mxu0
        %v3007 = vadd.f32 0.0, %v3006
        %3008 = vdwg.mxu0
        %v3009 = vadd.f32 %v2642, %v2867
        %v3010 = vadd.f32 %v2662, %v2887
        %v3011 = vadd.f32 %v2682, %v2907
        %v3012 = vadd.f32 %v2702, %v2927
        %v3013 = vadd.f32 %v2722, %v2947
        %v3014 = vadd.f32 %v2742, %v2967
        %v3015 = vadd.f32 %v2762, %v2987
        %v3016 = vadd.f32 %v2782, %v3007
        %s3017 = scalar_lea.vmem %s1, 96
        %v3018 = vld [vmem:[%s3017] sm:$0xff]
        %3019 = vst [vmem:[#allocation1] ss:$2 sm:$0xff] %v242
        %s3020 = scalar_lea.vmem [#allocation1], 16
        %3021 = vst [vmem:[%s3020] ss:$2 sm:$0xff] %v243
        %s3022 = scalar_lea.vmem [#allocation1], 32
        %3023 = vst [vmem:[%s3022] ss:$2 sm:$0xff] %v244
        %s3024 = scalar_lea.vmem [#allocation1], 48
        %3025 = vst [vmem:[%s3024] ss:$2 sm:$0xff] %v245
        %v3026 = vld.sshfl [vmem:[#allocation1] sm:$0xff pattern:$0x75316420]
        %v3027 = vld.sshfl [vmem:[#allocation1 + $0x8] sm:$0xff pattern:$0x75316420]
        %v3028 = vld.sshfl [vmem:[#allocation1 + $0x10] sm:$0xff pattern:$0x75316420]
        %v3029 = vld.sshfl [vmem:[#allocation1 + $0x18] sm:$0xff pattern:$0x75316420]
        %v3030 = vld.sshfl [vmem:[#allocation1 + $0x20] sm:$0xff pattern:$0x75316420]
        %v3031 = vld.sshfl [vmem:[#allocation1 + $0x28] sm:$0xff pattern:$0x75316420]
        %v3032 = vld.sshfl [vmem:[#allocation1 + $0x30] sm:$0xff pattern:$0x75316420]
        %v3033 = vld.sshfl [vmem:[#allocation1 + $0x38] sm:$0xff pattern:$0x75316420]
        %3034 = vst [vmem:[#allocation1] ss:$2 sm:$0xff] %v246
        %v3035 = vld.sshfl [vmem:[#allocation1] sm:$0xff pattern:$0x75316420]
        %3036 = vrot.lane.b32.xlu0 %v3026, 1
        %v3037 = vpop.permute.xlu0 %3036
        %3038 = vrot.lane.b32.xlu0 %v3027, 1
        %v3039 = vpop.permute.xlu0 %3038
        %3040 = vrot.lane.b32.xlu0 %v3028, 1
        %v3041 = vpop.permute.xlu0 %3040
        %3042 = vrot.lane.b32.xlu0 %v3029, 1
        %v3043 = vpop.permute.xlu0 %3042
        %3044 = vrot.lane.b32.xlu0 %v3030, 1
        %v3045 = vpop.permute.xlu0 %3044
        %3046 = vrot.lane.b32.xlu0 %v3031, 1
        %v3047 = vpop.permute.xlu0 %3046
        %3048 = vrot.lane.b32.xlu0 %v3032, 1
        %v3049 = vpop.permute.xlu0 %3048
        %3050 = vrot.lane.b32.xlu0 %v3033, 1
        %v3051 = vpop.permute.xlu0 %3050
        %3052 = vrot.lane.b32.xlu0 %v3035, 1
        %v3053 = vpop.permute.xlu0 %3052
        %vm3054 = vcmask 7168
        %v3055 = vsel %vm3054, %v3037, %v3039
        %v3056 = vsel %vm3054, %v3039, %v3041
        %v3057 = vsel %vm3054, %v3041, %v3043
        %v3058 = vsel %vm3054, %v3043, %v3045
        %v3059 = vsel %vm3054, %v3045, %v3047
        %v3060 = vsel %vm3054, %v3047, %v3049
        %v3061 = vsel %vm3054, %v3049, %v3051
        %v3062 = vsel %vm3054, %v3051, %v3053
        %v3064 = vsel %vm299, %v3018, 0
        %v3066 = vsel %vm303, %v3055, 0
        %v3068 = vsel %vm303, %v3056, 0
        %v3070 = vsel %vm303, %v3057, 0
        %v3072 = vsel %vm303, %v3058, 0
        %v3074 = vsel %vm303, %v3059, 0
        %v3076 = vsel %vm303, %v3060, 0
        %v3078 = vsel %vm303, %v3061, 0
        %v3080 = vsel %vm303, %v3062, 0
        %3082 = vmatpush.msra.mxu0 0.0
        %3083 = vmatpush.msra.mxu0 0.0
        %3084 = vmatpush.msra.mxu0 0.0
        %3085 = vmatpush.msra.mxu0 0.0
        %3086 = vmatpush.msra.mxu0 0.0
        %3087 = vmatpush.msra.mxu0 0.0
        %3088 = vmatpush.msra.mxu0 0.0
        %3089 = vmatpush.msra.mxu0 0.0
        %3090 = vmatpush.msra.mxu0 0.0
        %3091 = vmatpush.msra.mxu0 0.0
        %3092 = vmatpush.msra.mxu0 0.0
        %3093 = vmatpush.msra.mxu0 0.0
        %3094 = vmatpush.msra.mxu0 0.0
        %3095 = vmatpush.msra.mxu0 0.0
        %3096 = vmatpush.msra.mxu0 0.0
        %3097 = vmatpush.msra.mxu0 %v3066
        %3098 = vmatmul.f32.gmra.mxu0 %v3064
        %v3099 = vpop.f32.mrf.mxu0
        %v3100 = vadd.f32 0.0, %v3099
        %3101 = vdwg.mxu0
        %3102 = vmatpush.msra.mxu0 0.0
        %3103 = vmatpush.msra.mxu0 0.0
        %3104 = vmatpush.msra.mxu0 0.0
        %3105 = vmatpush.msra.mxu0 0.0
        %3106 = vmatpush.msra.mxu0 0.0
        %3107 = vmatpush.msra.mxu0 0.0
        %3108 = vmatpush.msra.mxu0 0.0
        %3109 = vmatpush.msra.mxu0 0.0
        %3110 = vmatpush.msra.mxu0 0.0
        %3111 = vmatpush.msra.mxu0 0.0
        %3112 = vmatpush.msra.mxu0 0.0
        %3113 = vmatpush.msra.mxu0 0.0
        %3114 = vmatpush.msra.mxu0 0.0
        %3115 = vmatpush.msra.mxu0 0.0
        %3116 = vmatpush.msra.mxu0 0.0
        %3117 = vmatpush.msra.mxu0 %v3068
        %3118 = vmatmul.f32.gmra.mxu0 %v3064
        %v3119 = vpop.f32.mrf.mxu0
        %v3120 = vadd.f32 0.0, %v3119
        %3121 = vdwg.mxu0
        %3122 = vmatpush.msra.mxu0 0.0
        %3123 = vmatpush.msra.mxu0 0.0
        %3124 = vmatpush.msra.mxu0 0.0
        %3125 = vmatpush.msra.mxu0 0.0
        %3126 = vmatpush.msra.mxu0 0.0
        %3127 = vmatpush.msra.mxu0 0.0
        %3128 = vmatpush.msra.mxu0 0.0
        %3129 = vmatpush.msra.mxu0 0.0
        %3130 = vmatpush.msra.mxu0 0.0
        %3131 = vmatpush.msra.mxu0 0.0
        %3132 = vmatpush.msra.mxu0 0.0
        %3133 = vmatpush.msra.mxu0 0.0
        %3134 = vmatpush.msra.mxu0 0.0
        %3135 = vmatpush.msra.mxu0 0.0
        %3136 = vmatpush.msra.mxu0 0.0
        %3137 = vmatpush.msra.mxu0 %v3070
        %3138 = vmatmul.f32.gmra.mxu0 %v3064
        %v3139 = vpop.f32.mrf.mxu0
        %v3140 = vadd.f32 0.0, %v3139
        %3141 = vdwg.mxu0
        %3142 = vmatpush.msra.mxu0 0.0
        %3143 = vmatpush.msra.mxu0 0.0
        %3144 = vmatpush.msra.mxu0 0.0
        %3145 = vmatpush.msra.mxu0 0.0
        %3146 = vmatpush.msra.mxu0 0.0
        %3147 = vmatpush.msra.mxu0 0.0
        %3148 = vmatpush.msra.mxu0 0.0
        %3149 = vmatpush.msra.mxu0 0.0
        %3150 = vmatpush.msra.mxu0 0.0
        %3151 = vmatpush.msra.mxu0 0.0
        %3152 = vmatpush.msra.mxu0 0.0
        %3153 = vmatpush.msra.mxu0 0.0
        %3154 = vmatpush.msra.mxu0 0.0
        %3155 = vmatpush.msra.mxu0 0.0
        %3156 = vmatpush.msra.mxu0 0.0
        %3157 = vmatpush.msra.mxu0 %v3072
        %3158 = vmatmul.f32.gmra.mxu0 %v3064
        %v3159 = vpop.f32.mrf.mxu0
        %v3160 = vadd.f32 0.0, %v3159
        %3161 = vdwg.mxu0
        %3162 = vmatpush.msra.mxu0 0.0
        %3163 = vmatpush.msra.mxu0 0.0
        %3164 = vmatpush.msra.mxu0 0.0
        %3165 = vmatpush.msra.mxu0 0.0
        %3166 = vmatpush.msra.mxu0 0.0
        %3167 = vmatpush.msra.mxu0 0.0
        %3168 = vmatpush.msra.mxu0 0.0
        %3169 = vmatpush.msra.mxu0 0.0
        %3170 = vmatpush.msra.mxu0 0.0
        %3171 = vmatpush.msra.mxu0 0.0
        %3172 = vmatpush.msra.mxu0 0.0
        %3173 = vmatpush.msra.mxu0 0.0
        %3174 = vmatpush.msra.mxu0 0.0
        %3175 = vmatpush.msra.mxu0 0.0
        %3176 = vmatpush.msra.mxu0 0.0
        %3177 = vmatpush.msra.mxu0 %v3074
        %3178 = vmatmul.f32.gmra.mxu0 %v3064
        %v3179 = vpop.f32.mrf.mxu0
        %v3180 = vadd.f32 0.0, %v3179
        %3181 = vdwg.mxu0
        %3182 = vmatpush.msra.mxu0 0.0
        %3183 = vmatpush.msra.mxu0 0.0
        %3184 = vmatpush.msra.mxu0 0.0
        %3185 = vmatpush.msra.mxu0 0.0
        %3186 = vmatpush.msra.mxu0 0.0
        %3187 = vmatpush.msra.mxu0 0.0
        %3188 = vmatpush.msra.mxu0 0.0
        %3189 = vmatpush.msra.mxu0 0.0
        %3190 = vmatpush.msra.mxu0 0.0
        %3191 = vmatpush.msra.mxu0 0.0
        %3192 = vmatpush.msra.mxu0 0.0
        %3193 = vmatpush.msra.mxu0 0.0
        %3194 = vmatpush.msra.mxu0 0.0
        %3195 = vmatpush.msra.mxu0 0.0
        %3196 = vmatpush.msra.mxu0 0.0
        %3197 = vmatpush.msra.mxu0 %v3076
        %3198 = vmatmul.f32.gmra.mxu0 %v3064
        %v3199 = vpop.f32.mrf.mxu0
        %v3200 = vadd.f32 0.0, %v3199
        %3201 = vdwg.mxu0
        %3202 = vmatpush.msra.mxu0 0.0
        %3203 = vmatpush.msra.mxu0 0.0
        %3204 = vmatpush.msra.mxu0 0.0
        %3205 = vmatpush.msra.mxu0 0.0
        %3206 = vmatpush.msra.mxu0 0.0
        %3207 = vmatpush.msra.mxu0 0.0
        %3208 = vmatpush.msra.mxu0 0.0
        %3209 = vmatpush.msra.mxu0 0.0
        %3210 = vmatpush.msra.mxu0 0.0
        %3211 = vmatpush.msra.mxu0 0.0
        %3212 = vmatpush.msra.mxu0 0.0
        %3213 = vmatpush.msra.mxu0 0.0
        %3214 = vmatpush.msra.mxu0 0.0
        %3215 = vmatpush.msra.mxu0 0.0
        %3216 = vmatpush.msra.mxu0 0.0
        %3217 = vmatpush.msra.mxu0 %v3078
        %3218 = vmatmul.f32.gmra.mxu0 %v3064
        %v3219 = vpop.f32.mrf.mxu0
        %v3220 = vadd.f32 0.0, %v3219
        %3221 = vdwg.mxu0
        %3222 = vmatpush.msra.mxu0 0.0
        %3223 = vmatpush.msra.mxu0 0.0
        %3224 = vmatpush.msra.mxu0 0.0
        %3225 = vmatpush.msra.mxu0 0.0
        %3226 = vmatpush.msra.mxu0 0.0
        %3227 = vmatpush.msra.mxu0 0.0
        %3228 = vmatpush.msra.mxu0 0.0
        %3229 = vmatpush.msra.mxu0 0.0
        %3230 = vmatpush.msra.mxu0 0.0
        %3231 = vmatpush.msra.mxu0 0.0
        %3232 = vmatpush.msra.mxu0 0.0
        %3233 = vmatpush.msra.mxu0 0.0
        %3234 = vmatpush.msra.mxu0 0.0
        %3235 = vmatpush.msra.mxu0 0.0
        %3236 = vmatpush.msra.mxu0 0.0
        %3237 = vmatpush.msra.mxu0 %v3080
        %3238 = vmatmul.f32.gmra.mxu0 %v3064
        %v3239 = vpop.f32.mrf.mxu0
        %v3240 = vadd.f32 0.0, %v3239
        %3241 = vdwg.mxu0
        %v3242 = vadd.f32 %v3009, %v3100
        %v3243 = vadd.f32 %v3010, %v3120
        %v3244 = vadd.f32 %v3011, %v3140
        %v3245 = vadd.f32 %v3012, %v3160
        %v3246 = vadd.f32 %v3013, %v3180
        %v3247 = vadd.f32 %v3014, %v3200
        %v3248 = vadd.f32 %v3015, %v3220
        %v3249 = vadd.f32 %v3016, %v3240
        %s3250 = scalar_lea.vmem %s1, 104
        %v3251 = vld [vmem:[%s3250] sm:$0xff]
        %3252 = vst [vmem:[#allocation1] ss:$2 sm:$0xff] %v242
        %s3253 = scalar_lea.vmem [#allocation1], 16
        %3254 = vst [vmem:[%s3253] ss:$2 sm:$0xff] %v243
        %s3255 = scalar_lea.vmem [#allocation1], 32
        %3256 = vst [vmem:[%s3255] ss:$2 sm:$0xff] %v244
        %s3257 = scalar_lea.vmem [#allocation1], 48
        %3258 = vst [vmem:[%s3257] ss:$2 sm:$0xff] %v245
        %v3259 = vld.sshfl [vmem:[#allocation1 + $0x8] sm:$0xff pattern:$0x75316420]
        %v3260 = vld.sshfl [vmem:[#allocation1 + $0x10] sm:$0xff pattern:$0x75316420]
        %v3261 = vld.sshfl [vmem:[#allocation1 + $0x18] sm:$0xff pattern:$0x75316420]
        %v3262 = vld.sshfl [vmem:[#allocation1 + $0x20] sm:$0xff pattern:$0x75316420]
        %v3263 = vld.sshfl [vmem:[#allocation1 + $0x28] sm:$0xff pattern:$0x75316420]
        %v3264 = vld.sshfl [vmem:[#allocation1 + $0x30] sm:$0xff pattern:$0x75316420]
        %v3265 = vld.sshfl [vmem:[#allocation1 + $0x38] sm:$0xff pattern:$0x75316420]
        %3266 = vst [vmem:[#allocation1] ss:$2 sm:$0xff] %v246
        %v3267 = vld.sshfl [vmem:[#allocation1] sm:$0xff pattern:$0x75316420]
        %v3269 = vsel %vm299, %v3251, 0
        %v3271 = vsel %vm303, %v3259, 0
        %v3273 = vsel %vm303, %v3260, 0
        %v3275 = vsel %vm303, %v3261, 0
        %v3277 = vsel %vm303, %v3262, 0
        %v3279 = vsel %vm303, %v3263, 0
        %v3281 = vsel %vm303, %v3264, 0
        %v3283 = vsel %vm303, %v3265, 0
        %v3285 = vsel %vm303, %v3267, 0
        %3287 = vmatpush.msra.mxu0 0.0
        %3288 = vmatpush.msra.mxu0 0.0
        %3289 = vmatpush.msra.mxu0 0.0
        %3290 = vmatpush.msra.mxu0 0.0
        %3291 = vmatpush.msra.mxu0 0.0
        %3292 = vmatpush.msra.mxu0 0.0
        %3293 = vmatpush.msra.mxu0 0.0
        %3294 = vmatpush.msra.mxu0 0.0
        %3295 = vmatpush.msra.mxu0 0.0
        %3296 = vmatpush.msra.mxu0 0.0
        %3297 = vmatpush.msra.mxu0 0.0
        %3298 = vmatpush.msra.mxu0 0.0
        %3299 = vmatpush.msra.mxu0 0.0
        %3300 = vmatpush.msra.mxu0 0.0
        %3301 = vmatpush.msra.mxu0 0.0
        %3302 = vmatpush.msra.mxu0 %v3271
        %3303 = vmatmul.f32.gmra.mxu0 %v3269
        %v3304 = vpop.f32.mrf.mxu0
        %v3305 = vadd.f32 0.0, %v3304
        %3306 = vdwg.mxu0
        %3307 = vmatpush.msra.mxu0 0.0
        %3308 = vmatpush.msra.mxu0 0.0
        %3309 = vmatpush.msra.mxu0 0.0
        %3310 = vmatpush.msra.mxu0 0.0
        %3311 = vmatpush.msra.mxu0 0.0
        %3312 = vmatpush.msra.mxu0 0.0
        %3313 = vmatpush.msra.mxu0 0.0
        %3314 = vmatpush.msra.mxu0 0.0
        %3315 = vmatpush.msra.mxu0 0.0
        %3316 = vmatpush.msra.mxu0 0.0
        %3317 = vmatpush.msra.mxu0 0.0
        %3318 = vmatpush.msra.mxu0 0.0
        %3319 = vmatpush.msra.mxu0 0.0
        %3320 = vmatpush.msra.mxu0 0.0
        %3321 = vmatpush.msra.mxu0 0.0
        %3322 = vmatpush.msra.mxu0 %v3273
        %3323 = vmatmul.f32.gmra.mxu0 %v3269
        %v3324 = vpop.f32.mrf.mxu0
        %v3325 = vadd.f32 0.0, %v3324
        %3326 = vdwg.mxu0
        %3327 = vmatpush.msra.mxu0 0.0
        %3328 = vmatpush.msra.mxu0 0.0
        %3329 = vmatpush.msra.mxu0 0.0
        %3330 = vmatpush.msra.mxu0 0.0
        %3331 = vmatpush.msra.mxu0 0.0
        %3332 = vmatpush.msra.mxu0 0.0
        %3333 = vmatpush.msra.mxu0 0.0
        %3334 = vmatpush.msra.mxu0 0.0
        %3335 = vmatpush.msra.mxu0 0.0
        %3336 = vmatpush.msra.mxu0 0.0
        %3337 = vmatpush.msra.mxu0 0.0
        %3338 = vmatpush.msra.mxu0 0.0
        %3339 = vmatpush.msra.mxu0 0.0
        %3340 = vmatpush.msra.mxu0 0.0
        %3341 = vmatpush.msra.mxu0 0.0
        %3342 = vmatpush.msra.mxu0 %v3275
        %3343 = vmatmul.f32.gmra.mxu0 %v3269
        %v3344 = vpop.f32.mrf.mxu0
        %v3345 = vadd.f32 0.0, %v3344
        %3346 = vdwg.mxu0
        %3347 = vmatpush.msra.mxu0 0.0
        %3348 = vmatpush.msra.mxu0 0.0
        %3349 = vmatpush.msra.mxu0 0.0
        %3350 = vmatpush.msra.mxu0 0.0
        %3351 = vmatpush.msra.mxu0 0.0
        %3352 = vmatpush.msra.mxu0 0.0
        %3353 = vmatpush.msra.mxu0 0.0
        %3354 = vmatpush.msra.mxu0 0.0
        %3355 = vmatpush.msra.mxu0 0.0
        %3356 = vmatpush.msra.mxu0 0.0
        %3357 = vmatpush.msra.mxu0 0.0
        %3358 = vmatpush.msra.mxu0 0.0
        %3359 = vmatpush.msra.mxu0 0.0
        %3360 = vmatpush.msra.mxu0 0.0
        %3361 = vmatpush.msra.mxu0 0.0
        %3362 = vmatpush.msra.mxu0 %v3277
        %3363 = vmatmul.f32.gmra.mxu0 %v3269
        %v3364 = vpop.f32.mrf.mxu0
        %v3365 = vadd.f32 0.0, %v3364
        %3366 = vdwg.mxu0
        %3367 = vmatpush.msra.mxu0 0.0
        %3368 = vmatpush.msra.mxu0 0.0
        %3369 = vmatpush.msra.mxu0 0.0
        %3370 = vmatpush.msra.mxu0 0.0
        %3371 = vmatpush.msra.mxu0 0.0
        %3372 = vmatpush.msra.mxu0 0.0
        %3373 = vmatpush.msra.mxu0 0.0
        %3374 = vmatpush.msra.mxu0 0.0
        %3375 = vmatpush.msra.mxu0 0.0
        %3376 = vmatpush.msra.mxu0 0.0
        %3377 = vmatpush.msra.mxu0 0.0
        %3378 = vmatpush.msra.mxu0 0.0
        %3379 = vmatpush.msra.mxu0 0.0
        %3380 = vmatpush.msra.mxu0 0.0
        %3381 = vmatpush.msra.mxu0 0.0
        %3382 = vmatpush.msra.mxu0 %v3279
        %3383 = vmatmul.f32.gmra.mxu0 %v3269
        %v3384 = vpop.f32.mrf.mxu0
        %v3385 = vadd.f32 0.0, %v3384
        %3386 = vdwg.mxu0
        %3387 = vmatpush.msra.mxu0 0.0
        %3388 = vmatpush.msra.mxu0 0.0
        %3389 = vmatpush.msra.mxu0 0.0
        %3390 = vmatpush.msra.mxu0 0.0
        %3391 = vmatpush.msra.mxu0 0.0
        %3392 = vmatpush.msra.mxu0 0.0
        %3393 = vmatpush.msra.mxu0 0.0
        %3394 = vmatpush.msra.mxu0 0.0
        %3395 = vmatpush.msra.mxu0 0.0
        %3396 = vmatpush.msra.mxu0 0.0
        %3397 = vmatpush.msra.mxu0 0.0
        %3398 = vmatpush.msra.mxu0 0.0
        %3399 = vmatpush.msra.mxu0 0.0
        %3400 = vmatpush.msra.mxu0 0.0
        %3401 = vmatpush.msra.mxu0 0.0
        %3402 = vmatpush.msra.mxu0 %v3281
        %3403 = vmatmul.f32.gmra.mxu0 %v3269
        %v3404 = vpop.f32.mrf.mxu0
        %v3405 = vadd.f32 0.0, %v3404
        %3406 = vdwg.mxu0
        %3407 = vmatpush.msra.mxu0 0.0
        %3408 = vmatpush.msra.mxu0 0.0
        %3409 = vmatpush.msra.mxu0 0.0
        %3410 = vmatpush.msra.mxu0 0.0
        %3411 = vmatpush.msra.mxu0 0.0
        %3412 = vmatpush.msra.mxu0 0.0
        %3413 = vmatpush.msra.mxu0 0.0
        %3414 = vmatpush.msra.mxu0 0.0
        %3415 = vmatpush.msra.mxu0 0.0
        %3416 = vmatpush.msra.mxu0 0.0
        %3417 = vmatpush.msra.mxu0 0.0
        %3418 = vmatpush.msra.mxu0 0.0
        %3419 = vmatpush.msra.mxu0 0.0
        %3420 = vmatpush.msra.mxu0 0.0
        %3421 = vmatpush.msra.mxu0 0.0
        %3422 = vmatpush.msra.mxu0 %v3283
        %3423 = vmatmul.f32.gmra.mxu0 %v3269
        %v3424 = vpop.f32.mrf.mxu0
        %v3425 = vadd.f32 0.0, %v3424
        %3426 = vdwg.mxu0
        %3427 = vmatpush.msra.mxu0 0.0
        %3428 = vmatpush.msra.mxu0 0.0
        %3429 = vmatpush.msra.mxu0 0.0
        %3430 = vmatpush.msra.mxu0 0.0
        %3431 = vmatpush.msra.mxu0 0.0
        %3432 = vmatpush.msra.mxu0 0.0
        %3433 = vmatpush.msra.mxu0 0.0
        %3434 = vmatpush.msra.mxu0 0.0
        %3435 = vmatpush.msra.mxu0 0.0
        %3436 = vmatpush.msra.mxu0 0.0
        %3437 = vmatpush.msra.mxu0 0.0
        %3438 = vmatpush.msra.mxu0 0.0
        %3439 = vmatpush.msra.mxu0 0.0
        %3440 = vmatpush.msra.mxu0 0.0
        %3441 = vmatpush.msra.mxu0 0.0
        %3442 = vmatpush.msra.mxu0 %v3285
        %3443 = vmatmul.f32.gmra.mxu0 %v3269
        %v3444 = vpop.f32.mrf.mxu0
        %v3445 = vadd.f32 0.0, %v3444
        %3446 = vdwg.mxu0
        %v3447 = vadd.f32 %v3242, %v3305
        %v3448 = vadd.f32 %v3243, %v3325
        %v3449 = vadd.f32 %v3244, %v3345
        %v3450 = vadd.f32 %v3245, %v3365
        %v3451 = vadd.f32 %v3246, %v3385
        %v3452 = vadd.f32 %v3247, %v3405
        %v3453 = vadd.f32 %v3248, %v3425
        %v3454 = vadd.f32 %v3249, %v3445
        %s3455 = scalar_lea.vmem %s1, 112
        %v3456 = vld [vmem:[%s3455] sm:$0xff]
        %3457 = vst [vmem:[#allocation1] ss:$2 sm:$0xff] %v242
        %s3458 = scalar_lea.vmem [#allocation1], 16
        %3459 = vst [vmem:[%s3458] ss:$2 sm:$0xff] %v243
        %s3460 = scalar_lea.vmem [#allocation1], 32
        %3461 = vst [vmem:[%s3460] ss:$2 sm:$0xff] %v244
        %s3462 = scalar_lea.vmem [#allocation1], 48
        %3463 = vst [vmem:[%s3462] ss:$2 sm:$0xff] %v245
        %v3464 = vld.sshfl [vmem:[#allocation1 + $0x8] sm:$0xff pattern:$0x75316420]
        %v3465 = vld.sshfl [vmem:[#allocation1 + $0x10] sm:$0xff pattern:$0x75316420]
        %v3466 = vld.sshfl [vmem:[#allocation1 + $0x18] sm:$0xff pattern:$0x75316420]
        %v3467 = vld.sshfl [vmem:[#allocation1 + $0x20] sm:$0xff pattern:$0x75316420]
        %v3468 = vld.sshfl [vmem:[#allocation1 + $0x28] sm:$0xff pattern:$0x75316420]
        %v3469 = vld.sshfl [vmem:[#allocation1 + $0x30] sm:$0xff pattern:$0x75316420]
        %v3470 = vld.sshfl [vmem:[#allocation1 + $0x38] sm:$0xff pattern:$0x75316420]
        %3471 = vst [vmem:[#allocation1] ss:$2 sm:$0xff] %v246
        %v3472 = vld.sshfl [vmem:[#allocation1] sm:$0xff pattern:$0x75316420]
        %v3473 = vld.sshfl [vmem:[#allocation1 + $0x8] sm:$0xff pattern:$0x75316420]
        %3474 = vrot.lane.b32.xlu0 %v3464, 127
        %v3475 = vpop.permute.xlu0 %3474
        %3476 = vrot.lane.b32.xlu0 %v3465, 127
        %v3477 = vpop.permute.xlu0 %3476
        %3478 = vrot.lane.b32.xlu0 %v3466, 127
        %v3479 = vpop.permute.xlu0 %3478
        %3480 = vrot.lane.b32.xlu0 %v3467, 127
        %v3481 = vpop.permute.xlu0 %3480
        %3482 = vrot.lane.b32.xlu0 %v3468, 127
        %v3483 = vpop.permute.xlu0 %3482
        %3484 = vrot.lane.b32.xlu0 %v3469, 127
        %v3485 = vpop.permute.xlu0 %3484
        %3486 = vrot.lane.b32.xlu0 %v3470, 127
        %v3487 = vpop.permute.xlu0 %3486
        %3488 = vrot.lane.b32.xlu0 %v3472, 127
        %v3489 = vpop.permute.xlu0 %3488
        %3490 = vrot.lane.b32.xlu0 %v3473, 127
        %v3491 = vpop.permute.xlu0 %3490
        %vm3492 = vcmask 1039360
        %v3493 = vsel %vm3492, %v3475, %v3477
        %v3494 = vsel %vm3492, %v3477, %v3479
        %v3495 = vsel %vm3492, %v3479, %v3481
        %v3496 = vsel %vm3492, %v3481, %v3483
        %v3497 = vsel %vm3492, %v3483, %v3485
        %v3498 = vsel %vm3492, %v3485, %v3487
        %v3499 = vsel %vm3492, %v3487, %v3489
        %v3500 = vsel %vm3492, %v3489, %v3491
        %v3502 = vsel %vm299, %v3456, 0
        %v3504 = vsel %vm303, %v3493, 0
        %v3506 = vsel %vm303, %v3494, 0
        %v3508 = vsel %vm303, %v3495, 0
        %v3510 = vsel %vm303, %v3496, 0
        %v3512 = vsel %vm303, %v3497, 0
        %v3514 = vsel %vm303, %v3498, 0
        %v3516 = vsel %vm303, %v3499, 0
        %v3518 = vsel %vm303, %v3500, 0
        %3520 = vmatpush.msra.mxu0 0.0
        %3521 = vmatpush.msra.mxu0 0.0
        %3522 = vmatpush.msra.mxu0 0.0
        %3523 = vmatpush.msra.mxu0 0.0
        %3524 = vmatpush.msra.mxu0 0.0
        %3525 = vmatpush.msra.mxu0 0.0
        %3526 = vmatpush.msra.mxu0 0.0
        %3527 = vmatpush.msra.mxu0 0.0
        %3528 = vmatpush.msra.mxu0 0.0
        %3529 = vmatpush.msra.mxu0 0.0
        %3530 = vmatpush.msra.mxu0 0.0
        %3531 = vmatpush.msra.mxu0 0.0
        %3532 = vmatpush.msra.mxu0 0.0
        %3533 = vmatpush.msra.mxu0 0.0
        %3534 = vmatpush.msra.mxu0 0.0
        %3535 = vmatpush.msra.mxu0 %v3504
        %3536 = vmatmul.f32.gmra.mxu0 %v3502
        %v3537 = vpop.f32.mrf.mxu0
        %v3538 = vadd.f32 0.0, %v3537
        %3539 = vdwg.mxu0
        %3540 = vmatpush.msra.mxu0 0.0
        %3541 = vmatpush.msra.mxu0 0.0
        %3542 = vmatpush.msra.mxu0 0.0
        %3543 = vmatpush.msra.mxu0 0.0
        %3544 = vmatpush.msra.mxu0 0.0
        %3545 = vmatpush.msra.mxu0 0.0
        %3546 = vmatpush.msra.mxu0 0.0
        %3547 = vmatpush.msra.mxu0 0.0
        %3548 = vmatpush.msra.mxu0 0.0
        %3549 = vmatpush.msra.mxu0 0.0
        %3550 = vmatpush.msra.mxu0 0.0
        %3551 = vmatpush.msra.mxu0 0.0
        %3552 = vmatpush.msra.mxu0 0.0
        %3553 = vmatpush.msra.mxu0 0.0
        %3554 = vmatpush.msra.mxu0 0.0
        %3555 = vmatpush.msra.mxu0 %v3506
        %3556 = vmatmul.f32.gmra.mxu0 %v3502
        %v3557 = vpop.f32.mrf.mxu0
        %v3558 = vadd.f32 0.0, %v3557
        %3559 = vdwg.mxu0
        %3560 = vmatpush.msra.mxu0 0.0
        %3561 = vmatpush.msra.mxu0 0.0
        %3562 = vmatpush.msra.mxu0 0.0
        %3563 = vmatpush.msra.mxu0 0.0
        %3564 = vmatpush.msra.mxu0 0.0
        %3565 = vmatpush.msra.mxu0 0.0
        %3566 = vmatpush.msra.mxu0 0.0
        %3567 = vmatpush.msra.mxu0 0.0
        %3568 = vmatpush.msra.mxu0 0.0
        %3569 = vmatpush.msra.mxu0 0.0
        %3570 = vmatpush.msra.mxu0 0.0
        %3571 = vmatpush.msra.mxu0 0.0
        %3572 = vmatpush.msra.mxu0 0.0
        %3573 = vmatpush.msra.mxu0 0.0
        %3574 = vmatpush.msra.mxu0 0.0
        %3575 = vmatpush.msra.mxu0 %v3508
        %3576 = vmatmul.f32.gmra.mxu0 %v3502
        %v3577 = vpop.f32.mrf.mxu0
        %v3578 = vadd.f32 0.0, %v3577
        %3579 = vdwg.mxu0
        %3580 = vmatpush.msra.mxu0 0.0
        %3581 = vmatpush.msra.mxu0 0.0
        %3582 = vmatpush.msra.mxu0 0.0
        %3583 = vmatpush.msra.mxu0 0.0
        %3584 = vmatpush.msra.mxu0 0.0
        %3585 = vmatpush.msra.mxu0 0.0
        %3586 = vmatpush.msra.mxu0 0.0
        %3587 = vmatpush.msra.mxu0 0.0
        %3588 = vmatpush.msra.mxu0 0.0
        %3589 = vmatpush.msra.mxu0 0.0
        %3590 = vmatpush.msra.mxu0 0.0
        %3591 = vmatpush.msra.mxu0 0.0
        %3592 = vmatpush.msra.mxu0 0.0
        %3593 = vmatpush.msra.mxu0 0.0
        %3594 = vmatpush.msra.mxu0 0.0
        %3595 = vmatpush.msra.mxu0 %v3510
        %3596 = vmatmul.f32.gmra.mxu0 %v3502
        %v3597 = vpop.f32.mrf.mxu0
        %v3598 = vadd.f32 0.0, %v3597
        %3599 = vdwg.mxu0
        %3600 = vmatpush.msra.mxu0 0.0
        %3601 = vmatpush.msra.mxu0 0.0
        %3602 = vmatpush.msra.mxu0 0.0
        %3603 = vmatpush.msra.mxu0 0.0
        %3604 = vmatpush.msra.mxu0 0.0
        %3605 = vmatpush.msra.mxu0 0.0
        %3606 = vmatpush.msra.mxu0 0.0
        %3607 = vmatpush.msra.mxu0 0.0
        %3608 = vmatpush.msra.mxu0 0.0
        %3609 = vmatpush.msra.mxu0 0.0
        %3610 = vmatpush.msra.mxu0 0.0
        %3611 = vmatpush.msra.mxu0 0.0
        %3612 = vmatpush.msra.mxu0 0.0
        %3613 = vmatpush.msra.mxu0 0.0
        %3614 = vmatpush.msra.mxu0 0.0
        %3615 = vmatpush.msra.mxu0 %v3512
        %3616 = vmatmul.f32.gmra.mxu0 %v3502
        %v3617 = vpop.f32.mrf.mxu0
        %v3618 = vadd.f32 0.0, %v3617
        %3619 = vdwg.mxu0
        %3620 = vmatpush.msra.mxu0 0.0
        %3621 = vmatpush.msra.mxu0 0.0
        %3622 = vmatpush.msra.mxu0 0.0
        %3623 = vmatpush.msra.mxu0 0.0
        %3624 = vmatpush.msra.mxu0 0.0
        %3625 = vmatpush.msra.mxu0 0.0
        %3626 = vmatpush.msra.mxu0 0.0
        %3627 = vmatpush.msra.mxu0 0.0
        %3628 = vmatpush.msra.mxu0 0.0
        %3629 = vmatpush.msra.mxu0 0.0
        %3630 = vmatpush.msra.mxu0 0.0
        %3631 = vmatpush.msra.mxu0 0.0
        %3632 = vmatpush.msra.mxu0 0.0
        %3633 = vmatpush.msra.mxu0 0.0
        %3634 = vmatpush.msra.mxu0 0.0
        %3635 = vmatpush.msra.mxu0 %v3514
        %3636 = vmatmul.f32.gmra.mxu0 %v3502
        %v3637 = vpop.f32.mrf.mxu0
        %v3638 = vadd.f32 0.0, %v3637
        %3639 = vdwg.mxu0
        %3640 = vmatpush.msra.mxu0 0.0
        %3641 = vmatpush.msra.mxu0 0.0
        %3642 = vmatpush.msra.mxu0 0.0
        %3643 = vmatpush.msra.mxu0 0.0
        %3644 = vmatpush.msra.mxu0 0.0
        %3645 = vmatpush.msra.mxu0 0.0
        %3646 = vmatpush.msra.mxu0 0.0
        %3647 = vmatpush.msra.mxu0 0.0
        %3648 = vmatpush.msra.mxu0 0.0
        %3649 = vmatpush.msra.mxu0 0.0
        %3650 = vmatpush.msra.mxu0 0.0
        %3651 = vmatpush.msra.mxu0 0.0
        %3652 = vmatpush.msra.mxu0 0.0
        %3653 = vmatpush.msra.mxu0 0.0
        %3654 = vmatpush.msra.mxu0 0.0
        %3655 = vmatpush.msra.mxu0 %v3516
        %3656 = vmatmul.f32.gmra.mxu0 %v3502
        %v3657 = vpop.f32.mrf.mxu0
        %v3658 = vadd.f32 0.0, %v3657
        %3659 = vdwg.mxu0
        %3660 = vmatpush.msra.mxu0 0.0
        %3661 = vmatpush.msra.mxu0 0.0
        %3662 = vmatpush.msra.mxu0 0.0
        %3663 = vmatpush.msra.mxu0 0.0
        %3664 = vmatpush.msra.mxu0 0.0
        %3665 = vmatpush.msra.mxu0 0.0
        %3666 = vmatpush.msra.mxu0 0.0
        %3667 = vmatpush.msra.mxu0 0.0
        %3668 = vmatpush.msra.mxu0 0.0
        %3669 = vmatpush.msra.mxu0 0.0
        %3670 = vmatpush.msra.mxu0 0.0
        %3671 = vmatpush.msra.mxu0 0.0
        %3672 = vmatpush.msra.mxu0 0.0
        %3673 = vmatpush.msra.mxu0 0.0
        %3674 = vmatpush.msra.mxu0 0.0
        %3675 = vmatpush.msra.mxu0 %v3518
        %3676 = vmatmul.f32.gmra.mxu0 %v3502
        %v3677 = vpop.f32.mrf.mxu0
        %v3678 = vadd.f32 0.0, %v3677
        %3679 = vdwg.mxu0
        %v3680 = vadd.f32 %v3447, %v3538
        %v3681 = vadd.f32 %v3448, %v3558
        %v3682 = vadd.f32 %v3449, %v3578
        %v3683 = vadd.f32 %v3450, %v3598
        %v3684 = vadd.f32 %v3451, %v3618
        %v3685 = vadd.f32 %v3452, %v3638
        %v3686 = vadd.f32 %v3453, %v3658
        %v3687 = vadd.f32 %v3454, %v3678
        %s3688 = scalar_lea.vmem %s1, 120
        %v3689 = vld [vmem:[%s3688] sm:$0xff]
        %3690 = vst [vmem:[#allocation1] ss:$2 sm:$0xff] %v242
        %s3691 = scalar_lea.vmem [#allocation1], 16
        %3692 = vst [vmem:[%s3691] ss:$2 sm:$0xff] %v243
        %s3693 = scalar_lea.vmem [#allocation1], 32
        %3694 = vst [vmem:[%s3693] ss:$2 sm:$0xff] %v244
        %s3695 = scalar_lea.vmem [#allocation1], 48
        %3696 = vst [vmem:[%s3695] ss:$2 sm:$0xff] %v245
        %v3697 = vld.sshfl [vmem:[#allocation1 + $0x8] sm:$0xff pattern:$0x75316420]
        %v3698 = vld.sshfl [vmem:[#allocation1 + $0x10] sm:$0xff pattern:$0x75316420]
        %v3699 = vld.sshfl [vmem:[#allocation1 + $0x18] sm:$0xff pattern:$0x75316420]
        %v3700 = vld.sshfl [vmem:[#allocation1 + $0x20] sm:$0xff pattern:$0x75316420]
        %v3701 = vld.sshfl [vmem:[#allocation1 + $0x28] sm:$0xff pattern:$0x75316420]
        %v3702 = vld.sshfl [vmem:[#allocation1 + $0x30] sm:$0xff pattern:$0x75316420]
        %v3703 = vld.sshfl [vmem:[#allocation1 + $0x38] sm:$0xff pattern:$0x75316420]
        %3704 = vst [vmem:[#allocation1] ss:$2 sm:$0xff] %v246
        %v3705 = vld.sshfl [vmem:[#allocation1] sm:$0xff pattern:$0x75316420]
        %v3706 = vld.sshfl [vmem:[#allocation1 + $0x8] sm:$0xff pattern:$0x75316420]
        %3707 = vrot.lane.b32.xlu0 %v3697, 119
        %v3708 = vpop.permute.xlu0 %3707
        %3709 = vrot.lane.b32.xlu0 %v3698, 119
        %v3710 = vpop.permute.xlu0 %3709
        %3711 = vrot.lane.b32.xlu0 %v3699, 119
        %v3712 = vpop.permute.xlu0 %3711
        %3713 = vrot.lane.b32.xlu0 %v3700, 119
        %v3714 = vpop.permute.xlu0 %3713
        %3715 = vrot.lane.b32.xlu0 %v3701, 119
        %v3716 = vpop.permute.xlu0 %3715
        %3717 = vrot.lane.b32.xlu0 %v3702, 119
        %v3718 = vpop.permute.xlu0 %3717
        %3719 = vrot.lane.b32.xlu0 %v3703, 119
        %v3720 = vpop.permute.xlu0 %3719
        %3721 = vrot.lane.b32.xlu0 %v3705, 119
        %v3722 = vpop.permute.xlu0 %3721
        %3723 = vrot.lane.b32.xlu0 %v3706, 119
        %v3724 = vpop.permute.xlu0 %3723
        %vm3725 = vcmask 973824
        %v3726 = vsel %vm3725, %v3708, %v3710
        %v3727 = vsel %vm3725, %v3710, %v3712
        %v3728 = vsel %vm3725, %v3712, %v3714
        %v3729 = vsel %vm3725, %v3714, %v3716
        %v3730 = vsel %vm3725, %v3716, %v3718
        %v3731 = vsel %vm3725, %v3718, %v3720
        %v3732 = vsel %vm3725, %v3720, %v3722
        %v3733 = vsel %vm3725, %v3722, %v3724
        %v3735 = vsel %vm299, %v3689, 0
        %v3737 = vsel %vm303, %v3726, 0
        %v3739 = vsel %vm303, %v3727, 0
        %v3741 = vsel %vm303, %v3728, 0
        %v3743 = vsel %vm303, %v3729, 0
        %v3745 = vsel %vm303, %v3730, 0
        %v3747 = vsel %vm303, %v3731, 0
        %v3749 = vsel %vm303, %v3732, 0
        %v3751 = vsel %vm303, %v3733, 0
        %3753 = vmatpush.msra.mxu0 0.0
        %3754 = vmatpush.msra.mxu0 0.0
        %3755 = vmatpush.msra.mxu0 0.0
        %3756 = vmatpush.msra.mxu0 0.0
        %3757 = vmatpush.msra.mxu0 0.0
        %3758 = vmatpush.msra.mxu0 0.0
        %3759 = vmatpush.msra.mxu0 0.0
        %3760 = vmatpush.msra.mxu0 0.0
        %3761 = vmatpush.msra.mxu0 0.0
        %3762 = vmatpush.msra.mxu0 0.0
        %3763 = vmatpush.msra.mxu0 0.0
        %3764 = vmatpush.msra.mxu0 0.0
        %3765 = vmatpush.msra.mxu0 0.0
        %3766 = vmatpush.msra.mxu0 0.0
        %3767 = vmatpush.msra.mxu0 0.0
        %3768 = vmatpush.msra.mxu0 %v3737
        %3769 = vmatmul.f32.gmra.mxu0 %v3735
        %v3770 = vpop.f32.mrf.mxu0
        %v3771 = vadd.f32 0.0, %v3770
        %3772 = vdwg.mxu0
        %3773 = vmatpush.msra.mxu0 0.0
        %3774 = vmatpush.msra.mxu0 0.0
        %3775 = vmatpush.msra.mxu0 0.0
        %3776 = vmatpush.msra.mxu0 0.0
        %3777 = vmatpush.msra.mxu0 0.0
        %3778 = vmatpush.msra.mxu0 0.0
        %3779 = vmatpush.msra.mxu0 0.0
        %3780 = vmatpush.msra.mxu0 0.0
        %3781 = vmatpush.msra.mxu0 0.0
        %3782 = vmatpush.msra.mxu0 0.0
        %3783 = vmatpush.msra.mxu0 0.0
        %3784 = vmatpush.msra.mxu0 0.0
        %3785 = vmatpush.msra.mxu0 0.0
        %3786 = vmatpush.msra.mxu0 0.0
        %3787 = vmatpush.msra.mxu0 0.0
        %3788 = vmatpush.msra.mxu0 %v3739
        %3789 = vmatmul.f32.gmra.mxu0 %v3735
        %v3790 = vpop.f32.mrf.mxu0
        %v3791 = vadd.f32 0.0, %v3790
        %3792 = vdwg.mxu0
        %3793 = vmatpush.msra.mxu0 0.0
        %3794 = vmatpush.msra.mxu0 0.0
        %3795 = vmatpush.msra.mxu0 0.0
        %3796 = vmatpush.msra.mxu0 0.0
        %3797 = vmatpush.msra.mxu0 0.0
        %3798 = vmatpush.msra.mxu0 0.0
        %3799 = vmatpush.msra.mxu0 0.0
        %3800 = vmatpush.msra.mxu0 0.0
        %3801 = vmatpush.msra.mxu0 0.0
        %3802 = vmatpush.msra.mxu0 0.0
        %3803 = vmatpush.msra.mxu0 0.0
        %3804 = vmatpush.msra.mxu0 0.0
        %3805 = vmatpush.msra.mxu0 0.0
        %3806 = vmatpush.msra.mxu0 0.0
        %3807 = vmatpush.msra.mxu0 0.0
        %3808 = vmatpush.msra.mxu0 %v3741
        %3809 = vmatmul.f32.gmra.mxu0 %v3735
        %v3810 = vpop.f32.mrf.mxu0
        %v3811 = vadd.f32 0.0, %v3810
        %3812 = vdwg.mxu0
        %3813 = vmatpush.msra.mxu0 0.0
        %3814 = vmatpush.msra.mxu0 0.0
        %3815 = vmatpush.msra.mxu0 0.0
        %3816 = vmatpush.msra.mxu0 0.0
        %3817 = vmatpush.msra.mxu0 0.0
        %3818 = vmatpush.msra.mxu0 0.0
        %3819 = vmatpush.msra.mxu0 0.0
        %3820 = vmatpush.msra.mxu0 0.0
        %3821 = vmatpush.msra.mxu0 0.0
        %3822 = vmatpush.msra.mxu0 0.0
        %3823 = vmatpush.msra.mxu0 0.0
        %3824 = vmatpush.msra.mxu0 0.0
        %3825 = vmatpush.msra.mxu0 0.0
        %3826 = vmatpush.msra.mxu0 0.0
        %3827 = vmatpush.msra.mxu0 0.0
        %3828 = vmatpush.msra.mxu0 %v3743
        %3829 = vmatmul.f32.gmra.mxu0 %v3735
        %v3830 = vpop.f32.mrf.mxu0
        %v3831 = vadd.f32 0.0, %v3830
        %3832 = vdwg.mxu0
        %3833 = vmatpush.msra.mxu0 0.0
        %3834 = vmatpush.msra.mxu0 0.0
        %3835 = vmatpush.msra.mxu0 0.0
        %3836 = vmatpush.msra.mxu0 0.0
        %3837 = vmatpush.msra.mxu0 0.0
        %3838 = vmatpush.msra.mxu0 0.0
        %3839 = vmatpush.msra.mxu0 0.0
        %3840 = vmatpush.msra.mxu0 0.0
        %3841 = vmatpush.msra.mxu0 0.0
        %3842 = vmatpush.msra.mxu0 0.0
        %3843 = vmatpush.msra.mxu0 0.0
        %3844 = vmatpush.msra.mxu0 0.0
        %3845 = vmatpush.msra.mxu0 0.0
        %3846 = vmatpush.msra.mxu0 0.0
        %3847 = vmatpush.msra.mxu0 0.0
        %3848 = vmatpush.msra.mxu0 %v3745
        %3849 = vmatmul.f32.gmra.mxu0 %v3735
        %v3850 = vpop.f32.mrf.mxu0
        %v3851 = vadd.f32 0.0, %v3850
        %3852 = vdwg.mxu0
        %3853 = vmatpush.msra.mxu0 0.0
        %3854 = vmatpush.msra.mxu0 0.0
        %3855 = vmatpush.msra.mxu0 0.0
        %3856 = vmatpush.msra.mxu0 0.0
        %3857 = vmatpush.msra.mxu0 0.0
        %3858 = vmatpush.msra.mxu0 0.0
        %3859 = vmatpush.msra.mxu0 0.0
        %3860 = vmatpush.msra.mxu0 0.0
        %3861 = vmatpush.msra.mxu0 0.0
        %3862 = vmatpush.msra.mxu0 0.0
        %3863 = vmatpush.msra.mxu0 0.0
        %3864 = vmatpush.msra.mxu0 0.0
        %3865 = vmatpush.msra.mxu0 0.0
        %3866 = vmatpush.msra.mxu0 0.0
        %3867 = vmatpush.msra.mxu0 0.0
        %3868 = vmatpush.msra.mxu0 %v3747
        %3869 = vmatmul.f32.gmra.mxu0 %v3735
        %v3870 = vpop.f32.mrf.mxu0
        %v3871 = vadd.f32 0.0, %v3870
        %3872 = vdwg.mxu0
        %3873 = vmatpush.msra.mxu0 0.0
        %3874 = vmatpush.msra.mxu0 0.0
        %3875 = vmatpush.msra.mxu0 0.0
        %3876 = vmatpush.msra.mxu0 0.0
        %3877 = vmatpush.msra.mxu0 0.0
        %3878 = vmatpush.msra.mxu0 0.0
        %3879 = vmatpush.msra.mxu0 0.0
        %3880 = vmatpush.msra.mxu0 0.0
        %3881 = vmatpush.msra.mxu0 0.0
        %3882 = vmatpush.msra.mxu0 0.0
        %3883 = vmatpush.msra.mxu0 0.0
        %3884 = vmatpush.msra.mxu0 0.0
        %3885 = vmatpush.msra.mxu0 0.0
        %3886 = vmatpush.msra.mxu0 0.0
        %3887 = vmatpush.msra.mxu0 0.0
        %3888 = vmatpush.msra.mxu0 %v3749
        %3889 = vmatmul.f32.gmra.mxu0 %v3735
        %v3890 = vpop.f32.mrf.mxu0
        %v3891 = vadd.f32 0.0, %v3890
        %3892 = vdwg.mxu0
        %3893 = vmatpush.msra.mxu0 0.0
        %3894 = vmatpush.msra.mxu0 0.0
        %3895 = vmatpush.msra.mxu0 0.0
        %3896 = vmatpush.msra.mxu0 0.0
        %3897 = vmatpush.msra.mxu0 0.0
        %3898 = vmatpush.msra.mxu0 0.0
        %3899 = vmatpush.msra.mxu0 0.0
        %3900 = vmatpush.msra.mxu0 0.0
        %3901 = vmatpush.msra.mxu0 0.0
        %3902 = vmatpush.msra.mxu0 0.0
        %3903 = vmatpush.msra.mxu0 0.0
        %3904 = vmatpush.msra.mxu0 0.0
        %3905 = vmatpush.msra.mxu0 0.0
        %3906 = vmatpush.msra.mxu0 0.0
        %3907 = vmatpush.msra.mxu0 0.0
        %3908 = vmatpush.msra.mxu0 %v3751
        %3909 = vmatmul.f32.gmra.mxu0 %v3735
        %v3910 = vpop.f32.mrf.mxu0
        %v3911 = vadd.f32 0.0, %v3910
        %3912 = vdwg.mxu0
        %v3913 = vadd.f32 %v3680, %v3771
        %v3914 = vadd.f32 %v3681, %v3791
        %v3915 = vadd.f32 %v3682, %v3811
        %v3916 = vadd.f32 %v3683, %v3831
        %v3917 = vadd.f32 %v3684, %v3851
        %v3918 = vadd.f32 %v3685, %v3871
        %v3919 = vadd.f32 %v3686, %v3891
        %v3920 = vadd.f32 %v3687, %v3911
        %s3921 = scalar_lea.vmem %s1, 128
        %v3922 = vld [vmem:[%s3921] sm:$0xff]
        %3923 = vst [vmem:[#allocation1] ss:$2 sm:$0xff] %v242
        %s3924 = scalar_lea.vmem [#allocation1], 16
        %3925 = vst [vmem:[%s3924] ss:$2 sm:$0xff] %v243
        %s3926 = scalar_lea.vmem [#allocation1], 32
        %3927 = vst [vmem:[%s3926] ss:$2 sm:$0xff] %v244
        %s3928 = scalar_lea.vmem [#allocation1], 48
        %3929 = vst [vmem:[%s3928] ss:$2 sm:$0xff] %v245
        %v3930 = vld.sshfl [vmem:[#allocation1 + $0x8] sm:$0xff pattern:$0x75316420]
        %v3931 = vld.sshfl [vmem:[#allocation1 + $0x10] sm:$0xff pattern:$0x75316420]
        %v3932 = vld.sshfl [vmem:[#allocation1 + $0x18] sm:$0xff pattern:$0x75316420]
        %v3933 = vld.sshfl [vmem:[#allocation1 + $0x20] sm:$0xff pattern:$0x75316420]
        %v3934 = vld.sshfl [vmem:[#allocation1 + $0x28] sm:$0xff pattern:$0x75316420]
        %v3935 = vld.sshfl [vmem:[#allocation1 + $0x30] sm:$0xff pattern:$0x75316420]
        %v3936 = vld.sshfl [vmem:[#allocation1 + $0x38] sm:$0xff pattern:$0x75316420]
        %3937 = vst [vmem:[#allocation1] ss:$2 sm:$0xff] %v246
        %v3938 = vld.sshfl [vmem:[#allocation1] sm:$0xff pattern:$0x75316420]
        %v3939 = vld.sshfl [vmem:[#allocation1 + $0x8] sm:$0xff pattern:$0x75316420]
        %3940 = vrot.lane.b32.xlu0 %v3930, 118
        %v3941 = vpop.permute.xlu0 %3940
        %3942 = vrot.lane.b32.xlu0 %v3931, 118
        %v3943 = vpop.permute.xlu0 %3942
        %3944 = vrot.lane.b32.xlu0 %v3932, 118
        %v3945 = vpop.permute.xlu0 %3944
        %3946 = vrot.lane.b32.xlu0 %v3933, 118
        %v3947 = vpop.permute.xlu0 %3946
        %3948 = vrot.lane.b32.xlu0 %v3934, 118
        %v3949 = vpop.permute.xlu0 %3948
        %3950 = vrot.lane.b32.xlu0 %v3935, 118
        %v3951 = vpop.permute.xlu0 %3950
        %3952 = vrot.lane.b32.xlu0 %v3936, 118
        %v3953 = vpop.permute.xlu0 %3952
        %3954 = vrot.lane.b32.xlu0 %v3938, 118
        %v3955 = vpop.permute.xlu0 %3954
        %3956 = vrot.lane.b32.xlu0 %v3939, 118
        %v3957 = vpop.permute.xlu0 %3956
        %vm3958 = vcmask 965632
        %v3959 = vsel %vm3958, %v3941, %v3943
        %v3960 = vsel %vm3958, %v3943, %v3945
        %v3961 = vsel %vm3958, %v3945, %v3947
        %v3962 = vsel %vm3958, %v3947, %v3949
        %v3963 = vsel %vm3958, %v3949, %v3951
        %v3964 = vsel %vm3958, %v3951, %v3953
        %v3965 = vsel %vm3958, %v3953, %v3955
        %v3966 = vsel %vm3958, %v3955, %v3957
        %v3968 = vsel %vm299, %v3922, 0
        %v3970 = vsel %vm303, %v3959, 0
        %v3972 = vsel %vm303, %v3960, 0
        %v3974 = vsel %vm303, %v3961, 0
        %v3976 = vsel %vm303, %v3962, 0
        %v3978 = vsel %vm303, %v3963, 0
        %v3980 = vsel %vm303, %v3964, 0
        %v3982 = vsel %vm303, %v3965, 0
        %v3984 = vsel %vm303, %v3966, 0
        %3986 = vmatpush.msra.mxu0 0.0
        %3987 = vmatpush.msra.mxu0 0.0
        %3988 = vmatpush.msra.mxu0 0.0
        %3989 = vmatpush.msra.mxu0 0.0
        %3990 = vmatpush.msra.mxu0 0.0
        %3991 = vmatpush.msra.mxu0 0.0
        %3992 = vmatpush.msra.mxu0 0.0
        %3993 = vmatpush.msra.mxu0 0.0
        %3994 = vmatpush.msra.mxu0 0.0
        %3995 = vmatpush.msra.mxu0 0.0
        %3996 = vmatpush.msra.mxu0 0.0
        %3997 = vmatpush.msra.mxu0 0.0
        %3998 = vmatpush.msra.mxu0 0.0
        %3999 = vmatpush.msra.mxu0 0.0
        %4000 = vmatpush.msra.mxu0 0.0
        %4001 = vmatpush.msra.mxu0 %v3970
        %4002 = vmatmul.f32.gmra.mxu0 %v3968
        %v4003 = vpop.f32.mrf.mxu0
        %v4004 = vadd.f32 0.0, %v4003
        %4005 = vdwg.mxu0
        %4006 = vmatpush.msra.mxu0 0.0
        %4007 = vmatpush.msra.mxu0 0.0
        %4008 = vmatpush.msra.mxu0 0.0
        %4009 = vmatpush.msra.mxu0 0.0
        %4010 = vmatpush.msra.mxu0 0.0
        %4011 = vmatpush.msra.mxu0 0.0
        %4012 = vmatpush.msra.mxu0 0.0
        %4013 = vmatpush.msra.mxu0 0.0
        %4014 = vmatpush.msra.mxu0 0.0
        %4015 = vmatpush.msra.mxu0 0.0
        %4016 = vmatpush.msra.mxu0 0.0
        %4017 = vmatpush.msra.mxu0 0.0
        %4018 = vmatpush.msra.mxu0 0.0
        %4019 = vmatpush.msra.mxu0 0.0
        %4020 = vmatpush.msra.mxu0 0.0
        %4021 = vmatpush.msra.mxu0 %v3972
        %4022 = vmatmul.f32.gmra.mxu0 %v3968
        %v4023 = vpop.f32.mrf.mxu0
        %v4024 = vadd.f32 0.0, %v4023
        %4025 = vdwg.mxu0
        %4026 = vmatpush.msra.mxu0 0.0
        %4027 = vmatpush.msra.mxu0 0.0
        %4028 = vmatpush.msra.mxu0 0.0
        %4029 = vmatpush.msra.mxu0 0.0
        %4030 = vmatpush.msra.mxu0 0.0
        %4031 = vmatpush.msra.mxu0 0.0
        %4032 = vmatpush.msra.mxu0 0.0
        %4033 = vmatpush.msra.mxu0 0.0
        %4034 = vmatpush.msra.mxu0 0.0
        %4035 = vmatpush.msra.mxu0 0.0
        %4036 = vmatpush.msra.mxu0 0.0
        %4037 = vmatpush.msra.mxu0 0.0
        %4038 = vmatpush.msra.mxu0 0.0
        %4039 = vmatpush.msra.mxu0 0.0
        %4040 = vmatpush.msra.mxu0 0.0
        %4041 = vmatpush.msra.mxu0 %v3974
        %4042 = vmatmul.f32.gmra.mxu0 %v3968
        %v4043 = vpop.f32.mrf.mxu0
        %v4044 = vadd.f32 0.0, %v4043
        %4045 = vdwg.mxu0
        %4046 = vmatpush.msra.mxu0 0.0
        %4047 = vmatpush.msra.mxu0 0.0
        %4048 = vmatpush.msra.mxu0 0.0
        %4049 = vmatpush.msra.mxu0 0.0
        %4050 = vmatpush.msra.mxu0 0.0
        %4051 = vmatpush.msra.mxu0 0.0
        %4052 = vmatpush.msra.mxu0 0.0
        %4053 = vmatpush.msra.mxu0 0.0
        %4054 = vmatpush.msra.mxu0 0.0
        %4055 = vmatpush.msra.mxu0 0.0
        %4056 = vmatpush.msra.mxu0 0.0
        %4057 = vmatpush.msra.mxu0 0.0
        %4058 = vmatpush.msra.mxu0 0.0
        %4059 = vmatpush.msra.mxu0 0.0
        %4060 = vmatpush.msra.mxu0 0.0
        %4061 = vmatpush.msra.mxu0 %v3976
        %4062 = vmatmul.f32.gmra.mxu0 %v3968
        %v4063 = vpop.f32.mrf.mxu0
        %v4064 = vadd.f32 0.0, %v4063
        %4065 = vdwg.mxu0
        %4066 = vmatpush.msra.mxu0 0.0
        %4067 = vmatpush.msra.mxu0 0.0
        %4068 = vmatpush.msra.mxu0 0.0
        %4069 = vmatpush.msra.mxu0 0.0
        %4070 = vmatpush.msra.mxu0 0.0
        %4071 = vmatpush.msra.mxu0 0.0
        %4072 = vmatpush.msra.mxu0 0.0
        %4073 = vmatpush.msra.mxu0 0.0
        %4074 = vmatpush.msra.mxu0 0.0
        %4075 = vmatpush.msra.mxu0 0.0
        %4076 = vmatpush.msra.mxu0 0.0
        %4077 = vmatpush.msra.mxu0 0.0
        %4078 = vmatpush.msra.mxu0 0.0
        %4079 = vmatpush.msra.mxu0 0.0
        %4080 = vmatpush.msra.mxu0 0.0
        %4081 = vmatpush.msra.mxu0 %v3978
        %4082 = vmatmul.f32.gmra.mxu0 %v3968
        %v4083 = vpop.f32.mrf.mxu0
        %v4084 = vadd.f32 0.0, %v4083
        %4085 = vdwg.mxu0
        %4086 = vmatpush.msra.mxu0 0.0
        %4087 = vmatpush.msra.mxu0 0.0
        %4088 = vmatpush.msra.mxu0 0.0
        %4089 = vmatpush.msra.mxu0 0.0
        %4090 = vmatpush.msra.mxu0 0.0
        %4091 = vmatpush.msra.mxu0 0.0
        %4092 = vmatpush.msra.mxu0 0.0
        %4093 = vmatpush.msra.mxu0 0.0
        %4094 = vmatpush.msra.mxu0 0.0
        %4095 = vmatpush.msra.mxu0 0.0
        %4096 = vmatpush.msra.mxu0 0.0
        %4097 = vmatpush.msra.mxu0 0.0
        %4098 = vmatpush.msra.mxu0 0.0
        %4099 = vmatpush.msra.mxu0 0.0
        %4100 = vmatpush.msra.mxu0 0.0
        %4101 = vmatpush.msra.mxu0 %v3980
        %4102 = vmatmul.f32.gmra.mxu0 %v3968
        %v4103 = vpop.f32.mrf.mxu0
        %v4104 = vadd.f32 0.0, %v4103
        %4105 = vdwg.mxu0
        %4106 = vmatpush.msra.mxu0 0.0
        %4107 = vmatpush.msra.mxu0 0.0
        %4108 = vmatpush.msra.mxu0 0.0
        %4109 = vmatpush.msra.mxu0 0.0
        %4110 = vmatpush.msra.mxu0 0.0
        %4111 = vmatpush.msra.mxu0 0.0
        %4112 = vmatpush.msra.mxu0 0.0
        %4113 = vmatpush.msra.mxu0 0.0
        %4114 = vmatpush.msra.mxu0 0.0
        %4115 = vmatpush.msra.mxu0 0.0
        %4116 = vmatpush.msra.mxu0 0.0
        %4117 = vmatpush.msra.mxu0 0.0
        %4118 = vmatpush.msra.mxu0 0.0
        %4119 = vmatpush.msra.mxu0 0.0
        %4120 = vmatpush.msra.mxu0 0.0
        %4121 = vmatpush.msra.mxu0 %v3982
        %4122 = vmatmul.f32.gmra.mxu0 %v3968
        %v4123 = vpop.f32.mrf.mxu0
        %v4124 = vadd.f32 0.0, %v4123
        %4125 = vdwg.mxu0
        %4126 = vmatpush.msra.mxu0 0.0
        %4127 = vmatpush.msra.mxu0 0.0
        %4128 = vmatpush.msra.mxu0 0.0
        %4129 = vmatpush.msra.mxu0 0.0
        %4130 = vmatpush.msra.mxu0 0.0
        %4131 = vmatpush.msra.mxu0 0.0
        %4132 = vmatpush.msra.mxu0 0.0
        %4133 = vmatpush.msra.mxu0 0.0
        %4134 = vmatpush.msra.mxu0 0.0
        %4135 = vmatpush.msra.mxu0 0.0
        %4136 = vmatpush.msra.mxu0 0.0
        %4137 = vmatpush.msra.mxu0 0.0
        %4138 = vmatpush.msra.mxu0 0.0
        %4139 = vmatpush.msra.mxu0 0.0
        %4140 = vmatpush.msra.mxu0 0.0
        %4141 = vmatpush.msra.mxu0 %v3984
        %4142 = vmatmul.f32.gmra.mxu0 %v3968
        %v4143 = vpop.f32.mrf.mxu0
        %v4144 = vadd.f32 0.0, %v4143
        %4145 = vdwg.mxu0
        %v4146 = vadd.f32 %v3913, %v4004
        %v4147 = vadd.f32 %v3914, %v4024
        %v4148 = vadd.f32 %v3915, %v4044
        %v4149 = vadd.f32 %v3916, %v4064
        %v4150 = vadd.f32 %v3917, %v4084
        %v4151 = vadd.f32 %v3918, %v4104
        %v4152 = vadd.f32 %v3919, %v4124
        %v4153 = vadd.f32 %v3920, %v4144
        %s4154 = scalar_lea.vmem %s1, 136
        %v4155 = vld [vmem:[%s4154] sm:$0xff]
        %4156 = vst [vmem:[#allocation1] ss:$2 sm:$0xff] %v242
        %s4157 = scalar_lea.vmem [#allocation1], 16
        %4158 = vst [vmem:[%s4157] ss:$2 sm:$0xff] %v243
        %s4159 = scalar_lea.vmem [#allocation1], 32
        %4160 = vst [vmem:[%s4159] ss:$2 sm:$0xff] %v244
        %s4161 = scalar_lea.vmem [#allocation1], 48
        %4162 = vst [vmem:[%s4161] ss:$2 sm:$0xff] %v245
        %v4163 = vld.sshfl [vmem:[#allocation1 + $0x8] sm:$0xff pattern:$0x75316420]
        %v4164 = vld.sshfl [vmem:[#allocation1 + $0x10] sm:$0xff pattern:$0x75316420]
        %v4165 = vld.sshfl [vmem:[#allocation1 + $0x18] sm:$0xff pattern:$0x75316420]
        %v4166 = vld.sshfl [vmem:[#allocation1 + $0x20] sm:$0xff pattern:$0x75316420]
        %v4167 = vld.sshfl [vmem:[#allocation1 + $0x28] sm:$0xff pattern:$0x75316420]
        %v4168 = vld.sshfl [vmem:[#allocation1 + $0x30] sm:$0xff pattern:$0x75316420]
        %v4169 = vld.sshfl [vmem:[#allocation1 + $0x38] sm:$0xff pattern:$0x75316420]
        %4170 = vst [vmem:[#allocation1] ss:$2 sm:$0xff] %v246
        %v4171 = vld.sshfl [vmem:[#allocation1] sm:$0xff pattern:$0x75316420]
        %v4172 = vld.sshfl [vmem:[#allocation1 + $0x8] sm:$0xff pattern:$0x75316420]
        %4173 = vrot.lane.b32.xlu0 %v4163, 117
        %v4174 = vpop.permute.xlu0 %4173
        %4175 = vrot.lane.b32.xlu0 %v4164, 117
        %v4176 = vpop.permute.xlu0 %4175
        %4177 = vrot.lane.b32.xlu0 %v4165, 117
        %v4178 = vpop.permute.xlu0 %4177
        %4179 = vrot.lane.b32.xlu0 %v4166, 117
        %v4180 = vpop.permute.xlu0 %4179
        %4181 = vrot.lane.b32.xlu0 %v4167, 117
        %v4182 = vpop.permute.xlu0 %4181
        %4183 = vrot.lane.b32.xlu0 %v4168, 117
        %v4184 = vpop.permute.xlu0 %4183
        %4185 = vrot.lane.b32.xlu0 %v4169, 117
        %v4186 = vpop.permute.xlu0 %4185
        %4187 = vrot.lane.b32.xlu0 %v4171, 117
        %v4188 = vpop.permute.xlu0 %4187
        %4189 = vrot.lane.b32.xlu0 %v4172, 117
        %v4190 = vpop.permute.xlu0 %4189
        %vm4191 = vcmask 957440
        %v4192 = vsel %vm4191, %v4174, %v4176
        %v4193 = vsel %vm4191, %v4176, %v4178
        %v4194 = vsel %vm4191, %v4178, %v4180
        %v4195 = vsel %vm4191, %v4180, %v4182
        %v4196 = vsel %vm4191, %v4182, %v4184
        %v4197 = vsel %vm4191, %v4184, %v4186
        %v4198 = vsel %vm4191, %v4186, %v4188
        %v4199 = vsel %vm4191, %v4188, %v4190
        %v4201 = vsel %vm299, %v4155, 0
        %v4203 = vsel %vm303, %v4192, 0
        %v4205 = vsel %vm303, %v4193, 0
        %v4207 = vsel %vm303, %v4194, 0
        %v4209 = vsel %vm303, %v4195, 0
        %v4211 = vsel %vm303, %v4196, 0
        %v4213 = vsel %vm303, %v4197, 0
        %v4215 = vsel %vm303, %v4198, 0
        %v4217 = vsel %vm303, %v4199, 0
        %4219 = vmatpush.msra.mxu0 0.0
        %4220 = vmatpush.msra.mxu0 0.0
        %4221 = vmatpush.msra.mxu0 0.0
        %4222 = vmatpush.msra.mxu0 0.0
        %4223 = vmatpush.msra.mxu0 0.0
        %4224 = vmatpush.msra.mxu0 0.0
        %4225 = vmatpush.msra.mxu0 0.0
        %4226 = vmatpush.msra.mxu0 0.0
        %4227 = vmatpush.msra.mxu0 0.0
        %4228 = vmatpush.msra.mxu0 0.0
        %4229 = vmatpush.msra.mxu0 0.0
        %4230 = vmatpush.msra.mxu0 0.0
        %4231 = vmatpush.msra.mxu0 0.0
        %4232 = vmatpush.msra.mxu0 0.0
        %4233 = vmatpush.msra.mxu0 0.0
        %4234 = vmatpush.msra.mxu0 %v4203
        %4235 = vmatmul.f32.gmra.mxu0 %v4201
        %v4236 = vpop.f32.mrf.mxu0
        %v4237 = vadd.f32 0.0, %v4236
        %4238 = vdwg.mxu0
        %4239 = vmatpush.msra.mxu0 0.0
        %4240 = vmatpush.msra.mxu0 0.0
        %4241 = vmatpush.msra.mxu0 0.0
        %4242 = vmatpush.msra.mxu0 0.0
        %4243 = vmatpush.msra.mxu0 0.0
        %4244 = vmatpush.msra.mxu0 0.0
        %4245 = vmatpush.msra.mxu0 0.0
        %4246 = vmatpush.msra.mxu0 0.0
        %4247 = vmatpush.msra.mxu0 0.0
        %4248 = vmatpush.msra.mxu0 0.0
        %4249 = vmatpush.msra.mxu0 0.0
        %4250 = vmatpush.msra.mxu0 0.0
        %4251 = vmatpush.msra.mxu0 0.0
        %4252 = vmatpush.msra.mxu0 0.0
        %4253 = vmatpush.msra.mxu0 0.0
        %4254 = vmatpush.msra.mxu0 %v4205
        %4255 = vmatmul.f32.gmra.mxu0 %v4201
        %v4256 = vpop.f32.mrf.mxu0
        %v4257 = vadd.f32 0.0, %v4256
        %4258 = vdwg.mxu0
        %4259 = vmatpush.msra.mxu0 0.0
        %4260 = vmatpush.msra.mxu0 0.0
        %4261 = vmatpush.msra.mxu0 0.0
        %4262 = vmatpush.msra.mxu0 0.0
        %4263 = vmatpush.msra.mxu0 0.0
        %4264 = vmatpush.msra.mxu0 0.0
        %4265 = vmatpush.msra.mxu0 0.0
        %4266 = vmatpush.msra.mxu0 0.0
        %4267 = vmatpush.msra.mxu0 0.0
        %4268 = vmatpush.msra.mxu0 0.0
        %4269 = vmatpush.msra.mxu0 0.0
        %4270 = vmatpush.msra.mxu0 0.0
        %4271 = vmatpush.msra.mxu0 0.0
        %4272 = vmatpush.msra.mxu0 0.0
        %4273 = vmatpush.msra.mxu0 0.0
        %4274 = vmatpush.msra.mxu0 %v4207
        %4275 = vmatmul.f32.gmra.mxu0 %v4201
        %v4276 = vpop.f32.mrf.mxu0
        %v4277 = vadd.f32 0.0, %v4276
        %4278 = vdwg.mxu0
        %4279 = vmatpush.msra.mxu0 0.0
        %4280 = vmatpush.msra.mxu0 0.0
        %4281 = vmatpush.msra.mxu0 0.0
        %4282 = vmatpush.msra.mxu0 0.0
        %4283 = vmatpush.msra.mxu0 0.0
        %4284 = vmatpush.msra.mxu0 0.0
        %4285 = vmatpush.msra.mxu0 0.0
        %4286 = vmatpush.msra.mxu0 0.0
        %4287 = vmatpush.msra.mxu0 0.0
        %4288 = vmatpush.msra.mxu0 0.0
        %4289 = vmatpush.msra.mxu0 0.0
        %4290 = vmatpush.msra.mxu0 0.0
        %4291 = vmatpush.msra.mxu0 0.0
        %4292 = vmatpush.msra.mxu0 0.0
        %4293 = vmatpush.msra.mxu0 0.0
        %4294 = vmatpush.msra.mxu0 %v4209
        %4295 = vmatmul.f32.gmra.mxu0 %v4201
        %v4296 = vpop.f32.mrf.mxu0
        %v4297 = vadd.f32 0.0, %v4296
        %4298 = vdwg.mxu0
        %4299 = vmatpush.msra.mxu0 0.0
        %4300 = vmatpush.msra.mxu0 0.0
        %4301 = vmatpush.msra.mxu0 0.0
        %4302 = vmatpush.msra.mxu0 0.0
        %4303 = vmatpush.msra.mxu0 0.0
        %4304 = vmatpush.msra.mxu0 0.0
        %4305 = vmatpush.msra.mxu0 0.0
        %4306 = vmatpush.msra.mxu0 0.0
        %4307 = vmatpush.msra.mxu0 0.0
        %4308 = vmatpush.msra.mxu0 0.0
        %4309 = vmatpush.msra.mxu0 0.0
        %4310 = vmatpush.msra.mxu0 0.0
        %4311 = vmatpush.msra.mxu0 0.0
        %4312 = vmatpush.msra.mxu0 0.0
        %4313 = vmatpush.msra.mxu0 0.0
        %4314 = vmatpush.msra.mxu0 %v4211
        %4315 = vmatmul.f32.gmra.mxu0 %v4201
        %v4316 = vpop.f32.mrf.mxu0
        %v4317 = vadd.f32 0.0, %v4316
        %4318 = vdwg.mxu0
        %4319 = vmatpush.msra.mxu0 0.0
        %4320 = vmatpush.msra.mxu0 0.0
        %4321 = vmatpush.msra.mxu0 0.0
        %4322 = vmatpush.msra.mxu0 0.0
        %4323 = vmatpush.msra.mxu0 0.0
        %4324 = vmatpush.msra.mxu0 0.0
        %4325 = vmatpush.msra.mxu0 0.0
        %4326 = vmatpush.msra.mxu0 0.0
        %4327 = vmatpush.msra.mxu0 0.0
        %4328 = vmatpush.msra.mxu0 0.0
        %4329 = vmatpush.msra.mxu0 0.0
        %4330 = vmatpush.msra.mxu0 0.0
        %4331 = vmatpush.msra.mxu0 0.0
        %4332 = vmatpush.msra.mxu0 0.0
        %4333 = vmatpush.msra.mxu0 0.0
        %4334 = vmatpush.msra.mxu0 %v4213
        %4335 = vmatmul.f32.gmra.mxu0 %v4201
        %v4336 = vpop.f32.mrf.mxu0
        %v4337 = vadd.f32 0.0, %v4336
        %4338 = vdwg.mxu0
        %4339 = vmatpush.msra.mxu0 0.0
        %4340 = vmatpush.msra.mxu0 0.0
        %4341 = vmatpush.msra.mxu0 0.0
        %4342 = vmatpush.msra.mxu0 0.0
        %4343 = vmatpush.msra.mxu0 0.0
        %4344 = vmatpush.msra.mxu0 0.0
        %4345 = vmatpush.msra.mxu0 0.0
        %4346 = vmatpush.msra.mxu0 0.0
        %4347 = vmatpush.msra.mxu0 0.0
        %4348 = vmatpush.msra.mxu0 0.0
        %4349 = vmatpush.msra.mxu0 0.0
        %4350 = vmatpush.msra.mxu0 0.0
        %4351 = vmatpush.msra.mxu0 0.0
        %4352 = vmatpush.msra.mxu0 0.0
        %4353 = vmatpush.msra.mxu0 0.0
        %4354 = vmatpush.msra.mxu0 %v4215
        %4355 = vmatmul.f32.gmra.mxu0 %v4201
        %v4356 = vpop.f32.mrf.mxu0
        %v4357 = vadd.f32 0.0, %v4356
        %4358 = vdwg.mxu0
        %4359 = vmatpush.msra.mxu0 0.0
        %4360 = vmatpush.msra.mxu0 0.0
        %4361 = vmatpush.msra.mxu0 0.0
        %4362 = vmatpush.msra.mxu0 0.0
        %4363 = vmatpush.msra.mxu0 0.0
        %4364 = vmatpush.msra.mxu0 0.0
        %4365 = vmatpush.msra.mxu0 0.0
        %4366 = vmatpush.msra.mxu0 0.0
        %4367 = vmatpush.msra.mxu0 0.0
        %4368 = vmatpush.msra.mxu0 0.0
        %4369 = vmatpush.msra.mxu0 0.0
        %4370 = vmatpush.msra.mxu0 0.0
        %4371 = vmatpush.msra.mxu0 0.0
        %4372 = vmatpush.msra.mxu0 0.0
        %4373 = vmatpush.msra.mxu0 0.0
        %4374 = vmatpush.msra.mxu0 %v4217
        %4375 = vmatmul.f32.gmra.mxu0 %v4201
        %v4376 = vpop.f32.mrf.mxu0
        %v4377 = vadd.f32 0.0, %v4376
        %4378 = vdwg.mxu0
        %v4379 = vadd.f32 %v4146, %v4237
        %v4380 = vadd.f32 %v4147, %v4257
        %v4381 = vadd.f32 %v4148, %v4277
        %v4382 = vadd.f32 %v4149, %v4297
        %v4383 = vadd.f32 %v4150, %v4317
        %v4384 = vadd.f32 %v4151, %v4337
        %v4385 = vadd.f32 %v4152, %v4357
        %v4386 = vadd.f32 %v4153, %v4377
        %s4387 = scalar_lea.vmem %s1, 144
        %v4388 = vld [vmem:[%s4387] sm:$0xff]
        %s4389 = scalar_lea.vmem %s1, 152
        %v4390 = vld [vmem:[%s4389] sm:$0xff]
        %4391 = vst [vmem:[#allocation1] ss:$2 sm:$0xff] %v242
        %s4392 = scalar_lea.vmem [#allocation1], 16
        %4393 = vst [vmem:[%s4392] ss:$2 sm:$0xff] %v243
        %s4394 = scalar_lea.vmem [#allocation1], 32
        %4395 = vst [vmem:[%s4394] ss:$2 sm:$0xff] %v244
        %s4396 = scalar_lea.vmem [#allocation1], 48
        %4397 = vst [vmem:[%s4396] ss:$2 sm:$0xff] %v245
        %v4398 = vld.sshfl [vmem:[#allocation1 + $0x8] sm:$0xff pattern:$0x75316420]
        %v4399 = vld.sshfl [vmem:[#allocation1 + $0x10] sm:$0xff pattern:$0x75316420]
        %v4400 = vld.sshfl [vmem:[#allocation1 + $0x18] sm:$0xff pattern:$0x75316420]
        %v4401 = vld.sshfl [vmem:[#allocation1 + $0x20] sm:$0xff pattern:$0x75316420]
        %v4402 = vld.sshfl [vmem:[#allocation1 + $0x28] sm:$0xff pattern:$0x75316420]
        %v4403 = vld.sshfl [vmem:[#allocation1 + $0x30] sm:$0xff pattern:$0x75316420]
        %v4404 = vld.sshfl [vmem:[#allocation1 + $0x38] sm:$0xff pattern:$0x75316420]
        %4405 = vst [vmem:[#allocation1] ss:$2 sm:$0xff] %v246
        %v4406 = vld.sshfl [vmem:[#allocation1] sm:$0xff pattern:$0x75316420]
        %v4407 = vld.sshfl [vmem:[#allocation1 + $0x8] sm:$0xff pattern:$0x75316420]
        %4408 = vrot.lane.b32.xlu0 %v4398, 38
        %v4409 = vpop.permute.xlu0 %4408
        %4410 = vrot.lane.b32.xlu0 %v4399, 38
        %v4411 = vpop.permute.xlu0 %4410
        %4412 = vrot.lane.b32.xlu0 %v4400, 38
        %v4413 = vpop.permute.xlu0 %4412
        %4414 = vrot.lane.b32.xlu0 %v4401, 38
        %v4415 = vpop.permute.xlu0 %4414
        %4416 = vrot.lane.b32.xlu0 %v4402, 38
        %v4417 = vpop.permute.xlu0 %4416
        %4418 = vrot.lane.b32.xlu0 %v4403, 38
        %v4419 = vpop.permute.xlu0 %4418
        %4420 = vrot.lane.b32.xlu0 %v4404, 38
        %v4421 = vpop.permute.xlu0 %4420
        %4422 = vrot.lane.b32.xlu0 %v4406, 38
        %v4423 = vpop.permute.xlu0 %4422
        %4424 = vrot.lane.b32.xlu0 %v4407, 38
        %v4425 = vpop.permute.xlu0 %4424
        %vm4426 = vcmask 310272
        %v4427 = vsel %vm4426, %v4409, %v4411
        %v4428 = vsel %vm4426, %v4411, %v4413
        %v4429 = vsel %vm4426, %v4413, %v4415
        %v4430 = vsel %vm4426, %v4415, %v4417
        %v4431 = vsel %vm4426, %v4417, %v4419
        %v4432 = vsel %vm4426, %v4419, %v4421
        %v4433 = vsel %vm4426, %v4421, %v4423
        %v4434 = vsel %vm4426, %v4423, %v4425
        %v4436 = vsel %vm299, %v4390, 0
        %v4438 = vsel %vm303, %v4427, 0
        %v4440 = vsel %vm303, %v4428, 0
        %v4442 = vsel %vm303, %v4429, 0
        %v4444 = vsel %vm303, %v4430, 0
        %v4446 = vsel %vm303, %v4431, 0
        %v4448 = vsel %vm303, %v4432, 0
        %v4450 = vsel %vm303, %v4433, 0
        %v4452 = vsel %vm303, %v4434, 0
        %4454 = vmatpush.msra.mxu0 0.0
        %4455 = vmatpush.msra.mxu0 0.0
        %4456 = vmatpush.msra.mxu0 0.0
        %4457 = vmatpush.msra.mxu0 0.0
        %4458 = vmatpush.msra.mxu0 0.0
        %4459 = vmatpush.msra.mxu0 0.0
        %4460 = vmatpush.msra.mxu0 0.0
        %4461 = vmatpush.msra.mxu0 0.0
        %4462 = vmatpush.msra.mxu0 0.0
        %4463 = vmatpush.msra.mxu0 0.0
        %4464 = vmatpush.msra.mxu0 0.0
        %4465 = vmatpush.msra.mxu0 0.0
        %4466 = vmatpush.msra.mxu0 0.0
        %4467 = vmatpush.msra.mxu0 0.0
        %4468 = vmatpush.msra.mxu0 0.0
        %4469 = vmatpush.msra.mxu0 %v4438
        %4470 = vmatmul.f32.gmra.mxu0 %v4436
        %v4471 = vpop.f32.mrf.mxu0
        %v4472 = vadd.f32 0.0, %v4471
        %4473 = vdwg.mxu0
        %4474 = vmatpush.msra.mxu0 0.0
        %4475 = vmatpush.msra.mxu0 0.0
        %4476 = vmatpush.msra.mxu0 0.0
        %4477 = vmatpush.msra.mxu0 0.0
        %4478 = vmatpush.msra.mxu0 0.0
        %4479 = vmatpush.msra.mxu0 0.0
        %4480 = vmatpush.msra.mxu0 0.0
        %4481 = vmatpush.msra.mxu0 0.0
        %4482 = vmatpush.msra.mxu0 0.0
        %4483 = vmatpush.msra.mxu0 0.0
        %4484 = vmatpush.msra.mxu0 0.0
        %4485 = vmatpush.msra.mxu0 0.0
        %4486 = vmatpush.msra.mxu0 0.0
        %4487 = vmatpush.msra.mxu0 0.0
        %4488 = vmatpush.msra.mxu0 0.0
        %4489 = vmatpush.msra.mxu0 %v4440
        %4490 = vmatmul.f32.gmra.mxu0 %v4436
        %v4491 = vpop.f32.mrf.mxu0
        %v4492 = vadd.f32 0.0, %v4491
        %4493 = vdwg.mxu0
        %4494 = vmatpush.msra.mxu0 0.0
        %4495 = vmatpush.msra.mxu0 0.0
        %4496 = vmatpush.msra.mxu0 0.0
        %4497 = vmatpush.msra.mxu0 0.0
        %4498 = vmatpush.msra.mxu0 0.0
        %4499 = vmatpush.msra.mxu0 0.0
        %4500 = vmatpush.msra.mxu0 0.0
        %4501 = vmatpush.msra.mxu0 0.0
        %4502 = vmatpush.msra.mxu0 0.0
        %4503 = vmatpush.msra.mxu0 0.0
        %4504 = vmatpush.msra.mxu0 0.0
        %4505 = vmatpush.msra.mxu0 0.0
        %4506 = vmatpush.msra.mxu0 0.0
        %4507 = vmatpush.msra.mxu0 0.0
        %4508 = vmatpush.msra.mxu0 0.0
        %4509 = vmatpush.msra.mxu0 %v4442
        %4510 = vmatmul.f32.gmra.mxu0 %v4436
        %v4511 = vpop.f32.mrf.mxu0
        %v4512 = vadd.f32 0.0, %v4511
        %4513 = vdwg.mxu0
        %4514 = vmatpush.msra.mxu0 0.0
        %4515 = vmatpush.msra.mxu0 0.0
        %4516 = vmatpush.msra.mxu0 0.0
        %4517 = vmatpush.msra.mxu0 0.0
        %4518 = vmatpush.msra.mxu0 0.0
        %4519 = vmatpush.msra.mxu0 0.0
        %4520 = vmatpush.msra.mxu0 0.0
        %4521 = vmatpush.msra.mxu0 0.0
        %4522 = vmatpush.msra.mxu0 0.0
        %4523 = vmatpush.msra.mxu0 0.0
        %4524 = vmatpush.msra.mxu0 0.0
        %4525 = vmatpush.msra.mxu0 0.0
        %4526 = vmatpush.msra.mxu0 0.0
        %4527 = vmatpush.msra.mxu0 0.0
        %4528 = vmatpush.msra.mxu0 0.0
        %4529 = vmatpush.msra.mxu0 %v4444
        %4530 = vmatmul.f32.gmra.mxu0 %v4436
        %v4531 = vpop.f32.mrf.mxu0
        %v4532 = vadd.f32 0.0, %v4531
        %4533 = vdwg.mxu0
        %4534 = vmatpush.msra.mxu0 0.0
        %4535 = vmatpush.msra.mxu0 0.0
        %4536 = vmatpush.msra.mxu0 0.0
        %4537 = vmatpush.msra.mxu0 0.0
        %4538 = vmatpush.msra.mxu0 0.0
        %4539 = vmatpush.msra.mxu0 0.0
        %4540 = vmatpush.msra.mxu0 0.0
        %4541 = vmatpush.msra.mxu0 0.0
        %4542 = vmatpush.msra.mxu0 0.0
        %4543 = vmatpush.msra.mxu0 0.0
        %4544 = vmatpush.msra.mxu0 0.0
        %4545 = vmatpush.msra.mxu0 0.0
        %4546 = vmatpush.msra.mxu0 0.0
        %4547 = vmatpush.msra.mxu0 0.0
        %4548 = vmatpush.msra.mxu0 0.0
        %4549 = vmatpush.msra.mxu0 %v4446
        %4550 = vmatmul.f32.gmra.mxu0 %v4436
        %v4551 = vpop.f32.mrf.mxu0
        %v4552 = vadd.f32 0.0, %v4551
        %4553 = vdwg.mxu0
        %4554 = vmatpush.msra.mxu0 0.0
        %4555 = vmatpush.msra.mxu0 0.0
        %4556 = vmatpush.msra.mxu0 0.0
        %4557 = vmatpush.msra.mxu0 0.0
        %4558 = vmatpush.msra.mxu0 0.0
        %4559 = vmatpush.msra.mxu0 0.0
        %4560 = vmatpush.msra.mxu0 0.0
        %4561 = vmatpush.msra.mxu0 0.0
        %4562 = vmatpush.msra.mxu0 0.0
        %4563 = vmatpush.msra.mxu0 0.0
        %4564 = vmatpush.msra.mxu0 0.0
        %4565 = vmatpush.msra.mxu0 0.0
        %4566 = vmatpush.msra.mxu0 0.0
        %4567 = vmatpush.msra.mxu0 0.0
        %4568 = vmatpush.msra.mxu0 0.0
        %4569 = vmatpush.msra.mxu0 %v4448
        %4570 = vmatmul.f32.gmra.mxu0 %v4436
        %v4571 = vpop.f32.mrf.mxu0
        %v4572 = vadd.f32 0.0, %v4571
        %4573 = vdwg.mxu0
        %4574 = vmatpush.msra.mxu0 0.0
        %4575 = vmatpush.msra.mxu0 0.0
        %4576 = vmatpush.msra.mxu0 0.0
        %4577 = vmatpush.msra.mxu0 0.0
        %4578 = vmatpush.msra.mxu0 0.0
        %4579 = vmatpush.msra.mxu0 0.0
        %4580 = vmatpush.msra.mxu0 0.0
        %4581 = vmatpush.msra.mxu0 0.0
        %4582 = vmatpush.msra.mxu0 0.0
        %4583 = vmatpush.msra.mxu0 0.0
        %4584 = vmatpush.msra.mxu0 0.0
        %4585 = vmatpush.msra.mxu0 0.0
        %4586 = vmatpush.msra.mxu0 0.0
        %4587 = vmatpush.msra.mxu0 0.0
        %4588 = vmatpush.msra.mxu0 0.0
        %4589 = vmatpush.msra.mxu0 %v4450
        %4590 = vmatmul.f32.gmra.mxu0 %v4436
        %v4591 = vpop.f32.mrf.mxu0
        %v4592 = vadd.f32 0.0, %v4591
        %4593 = vdwg.mxu0
        %4594 = vmatpush.msra.mxu0 0.0
        %4595 = vmatpush.msra.mxu0 0.0
        %4596 = vmatpush.msra.mxu0 0.0
        %4597 = vmatpush.msra.mxu0 0.0
        %4598 = vmatpush.msra.mxu0 0.0
        %4599 = vmatpush.msra.mxu0 0.0
        %4600 = vmatpush.msra.mxu0 0.0
        %4601 = vmatpush.msra.mxu0 0.0
        %4602 = vmatpush.msra.mxu0 0.0
        %4603 = vmatpush.msra.mxu0 0.0
        %4604 = vmatpush.msra.mxu0 0.0
        %4605 = vmatpush.msra.mxu0 0.0
        %4606 = vmatpush.msra.mxu0 0.0
        %4607 = vmatpush.msra.mxu0 0.0
        %4608 = vmatpush.msra.mxu0 0.0
        %4609 = vmatpush.msra.mxu0 %v4452
        %4610 = vmatmul.f32.gmra.mxu0 %v4436
        %v4611 = vpop.f32.mrf.mxu0
        %v4612 = vadd.f32 0.0, %v4611
        %4613 = vdwg.mxu0
        %4614 = vst [vmem:[#allocation1] ss:$2 sm:$0xff] %v242
        %s4615 = scalar_lea.vmem [#allocation1], 16
        %4616 = vst [vmem:[%s4615] ss:$2 sm:$0xff] %v243
        %s4617 = scalar_lea.vmem [#allocation1], 32
        %4618 = vst [vmem:[%s4617] ss:$2 sm:$0xff] %v244
        %s4619 = scalar_lea.vmem [#allocation1], 48
        %4620 = vst [vmem:[%s4619] ss:$2 sm:$0xff] %v245
        %v4621 = vld.sshfl [vmem:[#allocation1 + $0x8] sm:$0xff pattern:$0x75316420]
        %v4622 = vld.sshfl [vmem:[#allocation1 + $0x10] sm:$0xff pattern:$0x75316420]
        %v4623 = vld.sshfl [vmem:[#allocation1 + $0x18] sm:$0xff pattern:$0x75316420]
        %v4624 = vld.sshfl [vmem:[#allocation1 + $0x20] sm:$0xff pattern:$0x75316420]
        %v4625 = vld.sshfl [vmem:[#allocation1 + $0x28] sm:$0xff pattern:$0x75316420]
        %v4626 = vld.sshfl [vmem:[#allocation1 + $0x30] sm:$0xff pattern:$0x75316420]
        %v4627 = vld.sshfl [vmem:[#allocation1 + $0x38] sm:$0xff pattern:$0x75316420]
        %4628 = vst [vmem:[#allocation1] ss:$2 sm:$0xff] %v246
        %v4629 = vld.sshfl [vmem:[#allocation1] sm:$0xff pattern:$0x75316420]
        %v4630 = vld.sshfl [vmem:[#allocation1 + $0x8] sm:$0xff pattern:$0x75316420]
        %4631 = vrot.lane.b32.xlu0 %v4621, 39
        %v4632 = vpop.permute.xlu0 %4631
        %4633 = vrot.lane.b32.xlu0 %v4622, 39
        %v4634 = vpop.permute.xlu0 %4633
        %4635 = vrot.lane.b32.xlu0 %v4623, 39
        %v4636 = vpop.permute.xlu0 %4635
        %4637 = vrot.lane.b32.xlu0 %v4624, 39
        %v4638 = vpop.permute.xlu0 %4637
        %4639 = vrot.lane.b32.xlu0 %v4625, 39
        %v4640 = vpop.permute.xlu0 %4639
        %4641 = vrot.lane.b32.xlu0 %v4626, 39
        %v4642 = vpop.permute.xlu0 %4641
        %4643 = vrot.lane.b32.xlu0 %v4627, 39
        %v4644 = vpop.permute.xlu0 %4643
        %4645 = vrot.lane.b32.xlu0 %v4629, 39
        %v4646 = vpop.permute.xlu0 %4645
        %4647 = vrot.lane.b32.xlu0 %v4630, 39
        %v4648 = vpop.permute.xlu0 %4647
        %vm4649 = vcmask 318464
        %v4650 = vsel %vm4649, %v4632, %v4634
        %v4651 = vsel %vm4649, %v4634, %v4636
        %v4652 = vsel %vm4649, %v4636, %v4638
        %v4653 = vsel %vm4649, %v4638, %v4640
        %v4654 = vsel %vm4649, %v4640, %v4642
        %v4655 = vsel %vm4649, %v4642, %v4644
        %v4656 = vsel %vm4649, %v4644, %v4646
        %v4657 = vsel %vm4649, %v4646, %v4648
        %v4659 = vsel %vm299, %v4388, 0
        %v4661 = vsel %vm303, %v4650, 0
        %v4663 = vsel %vm303, %v4651, 0
        %v4665 = vsel %vm303, %v4652, 0
        %v4667 = vsel %vm303, %v4653, 0
        %v4669 = vsel %vm303, %v4654, 0
        %v4671 = vsel %vm303, %v4655, 0
        %v4673 = vsel %vm303, %v4656, 0
        %v4675 = vsel %vm303, %v4657, 0
        %4677 = vmatpush.msra.mxu0 0.0
        %4678 = vmatpush.msra.mxu0 0.0
        %4679 = vmatpush.msra.mxu0 0.0
        %4680 = vmatpush.msra.mxu0 0.0
        %4681 = vmatpush.msra.mxu0 0.0
        %4682 = vmatpush.msra.mxu0 0.0
        %4683 = vmatpush.msra.mxu0 0.0
        %4684 = vmatpush.msra.mxu0 0.0
        %4685 = vmatpush.msra.mxu0 0.0
        %4686 = vmatpush.msra.mxu0 0.0
        %4687 = vmatpush.msra.mxu0 0.0
        %4688 = vmatpush.msra.mxu0 0.0
        %4689 = vmatpush.msra.mxu0 0.0
        %4690 = vmatpush.msra.mxu0 0.0
        %4691 = vmatpush.msra.mxu0 0.0
        %4692 = vmatpush.msra.mxu0 %v4661
        %4693 = vmatmul.f32.gmra.mxu0 %v4659
        %v4694 = vpop.f32.mrf.mxu0
        %v4695 = vadd.f32 %v4472, %v4694
        %4696 = vdwg.mxu0
        %4697 = vmatpush.msra.mxu0 0.0
        %4698 = vmatpush.msra.mxu0 0.0
        %4699 = vmatpush.msra.mxu0 0.0
        %4700 = vmatpush.msra.mxu0 0.0
        %4701 = vmatpush.msra.mxu0 0.0
        %4702 = vmatpush.msra.mxu0 0.0
        %4703 = vmatpush.msra.mxu0 0.0
        %4704 = vmatpush.msra.mxu0 0.0
        %4705 = vmatpush.msra.mxu0 0.0
        %4706 = vmatpush.msra.mxu0 0.0
        %4707 = vmatpush.msra.mxu0 0.0
        %4708 = vmatpush.msra.mxu0 0.0
        %4709 = vmatpush.msra.mxu0 0.0
        %4710 = vmatpush.msra.mxu0 0.0
        %4711 = vmatpush.msra.mxu0 0.0
        %4712 = vmatpush.msra.mxu0 %v4663
        %4713 = vmatmul.f32.gmra.mxu0 %v4659
        %v4714 = vpop.f32.mrf.mxu0
        %v4715 = vadd.f32 %v4492, %v4714
        %4716 = vdwg.mxu0
        %4717 = vmatpush.msra.mxu0 0.0
        %4718 = vmatpush.msra.mxu0 0.0
        %4719 = vmatpush.msra.mxu0 0.0
        %4720 = vmatpush.msra.mxu0 0.0
        %4721 = vmatpush.msra.mxu0 0.0
        %4722 = vmatpush.msra.mxu0 0.0
        %4723 = vmatpush.msra.mxu0 0.0
        %4724 = vmatpush.msra.mxu0 0.0
        %4725 = vmatpush.msra.mxu0 0.0
        %4726 = vmatpush.msra.mxu0 0.0
        %4727 = vmatpush.msra.mxu0 0.0
        %4728 = vmatpush.msra.mxu0 0.0
        %4729 = vmatpush.msra.mxu0 0.0
        %4730 = vmatpush.msra.mxu0 0.0
        %4731 = vmatpush.msra.mxu0 0.0
        %4732 = vmatpush.msra.mxu0 %v4665
        %4733 = vmatmul.f32.gmra.mxu0 %v4659
        %v4734 = vpop.f32.mrf.mxu0
        %v4735 = vadd.f32 %v4512, %v4734
        %4736 = vdwg.mxu0
        %4737 = vmatpush.msra.mxu0 0.0
        %4738 = vmatpush.msra.mxu0 0.0
        %4739 = vmatpush.msra.mxu0 0.0
        %4740 = vmatpush.msra.mxu0 0.0
        %4741 = vmatpush.msra.mxu0 0.0
        %4742 = vmatpush.msra.mxu0 0.0
        %4743 = vmatpush.msra.mxu0 0.0
        %4744 = vmatpush.msra.mxu0 0.0
        %4745 = vmatpush.msra.mxu0 0.0
        %4746 = vmatpush.msra.mxu0 0.0
        %4747 = vmatpush.msra.mxu0 0.0
        %4748 = vmatpush.msra.mxu0 0.0
        %4749 = vmatpush.msra.mxu0 0.0
        %4750 = vmatpush.msra.mxu0 0.0
        %4751 = vmatpush.msra.mxu0 0.0
        %4752 = vmatpush.msra.mxu0 %v4667
        %4753 = vmatmul.f32.gmra.mxu0 %v4659
        %v4754 = vpop.f32.mrf.mxu0
        %v4755 = vadd.f32 %v4532, %v4754
        %4756 = vdwg.mxu0
        %4757 = vmatpush.msra.mxu0 0.0
        %4758 = vmatpush.msra.mxu0 0.0
        %4759 = vmatpush.msra.mxu0 0.0
        %4760 = vmatpush.msra.mxu0 0.0
        %4761 = vmatpush.msra.mxu0 0.0
        %4762 = vmatpush.msra.mxu0 0.0
        %4763 = vmatpush.msra.mxu0 0.0
        %4764 = vmatpush.msra.mxu0 0.0
        %4765 = vmatpush.msra.mxu0 0.0
        %4766 = vmatpush.msra.mxu0 0.0
        %4767 = vmatpush.msra.mxu0 0.0
        %4768 = vmatpush.msra.mxu0 0.0
        %4769 = vmatpush.msra.mxu0 0.0
        %4770 = vmatpush.msra.mxu0 0.0
        %4771 = vmatpush.msra.mxu0 0.0
        %4772 = vmatpush.msra.mxu0 %v4669
        %4773 = vmatmul.f32.gmra.mxu0 %v4659
        %v4774 = vpop.f32.mrf.mxu0
        %v4775 = vadd.f32 %v4552, %v4774
        %4776 = vdwg.mxu0
        %4777 = vmatpush.msra.mxu0 0.0
        %4778 = vmatpush.msra.mxu0 0.0
        %4779 = vmatpush.msra.mxu0 0.0
        %4780 = vmatpush.msra.mxu0 0.0
        %4781 = vmatpush.msra.mxu0 0.0
        %4782 = vmatpush.msra.mxu0 0.0
        %4783 = vmatpush.msra.mxu0 0.0
        %4784 = vmatpush.msra.mxu0 0.0
        %4785 = vmatpush.msra.mxu0 0.0
        %4786 = vmatpush.msra.mxu0 0.0
        %4787 = vmatpush.msra.mxu0 0.0
        %4788 = vmatpush.msra.mxu0 0.0
        %4789 = vmatpush.msra.mxu0 0.0
        %4790 = vmatpush.msra.mxu0 0.0
        %4791 = vmatpush.msra.mxu0 0.0
        %4792 = vmatpush.msra.mxu0 %v4671
        %4793 = vmatmul.f32.gmra.mxu0 %v4659
        %v4794 = vpop.f32.mrf.mxu0
        %v4795 = vadd.f32 %v4572, %v4794
        %4796 = vdwg.mxu0
        %4797 = vmatpush.msra.mxu0 0.0
        %4798 = vmatpush.msra.mxu0 0.0
        %4799 = vmatpush.msra.mxu0 0.0
        %4800 = vmatpush.msra.mxu0 0.0
        %4801 = vmatpush.msra.mxu0 0.0
        %4802 = vmatpush.msra.mxu0 0.0
        %4803 = vmatpush.msra.mxu0 0.0
        %4804 = vmatpush.msra.mxu0 0.0
        %4805 = vmatpush.msra.mxu0 0.0
        %4806 = vmatpush.msra.mxu0 0.0
        %4807 = vmatpush.msra.mxu0 0.0
        %4808 = vmatpush.msra.mxu0 0.0
        %4809 = vmatpush.msra.mxu0 0.0
        %4810 = vmatpush.msra.mxu0 0.0
        %4811 = vmatpush.msra.mxu0 0.0
        %4812 = vmatpush.msra.mxu0 %v4673
        %4813 = vmatmul.f32.gmra.mxu0 %v4659
        %v4814 = vpop.f32.mrf.mxu0
        %v4815 = vadd.f32 %v4592, %v4814
        %4816 = vdwg.mxu0
        %4817 = vmatpush.msra.mxu0 0.0
        %4818 = vmatpush.msra.mxu0 0.0
        %4819 = vmatpush.msra.mxu0 0.0
        %4820 = vmatpush.msra.mxu0 0.0
        %4821 = vmatpush.msra.mxu0 0.0
        %4822 = vmatpush.msra.mxu0 0.0
        %4823 = vmatpush.msra.mxu0 0.0
        %4824 = vmatpush.msra.mxu0 0.0
        %4825 = vmatpush.msra.mxu0 0.0
        %4826 = vmatpush.msra.mxu0 0.0
        %4827 = vmatpush.msra.mxu0 0.0
        %4828 = vmatpush.msra.mxu0 0.0
        %4829 = vmatpush.msra.mxu0 0.0
        %4830 = vmatpush.msra.mxu0 0.0
        %4831 = vmatpush.msra.mxu0 0.0
        %4832 = vmatpush.msra.mxu0 %v4675
        %4833 = vmatmul.f32.gmra.mxu0 %v4659
        %v4834 = vpop.f32.mrf.mxu0
        %v4835 = vadd.f32 %v4612, %v4834
        %4836 = vdwg.mxu0
        %s4837 = scalar_lea.vmem %s1, 160
        %v4838 = vld [vmem:[%s4837] sm:$0xff]
        %4839 = vst [vmem:[#allocation1] ss:$2 sm:$0xff] %v242
        %s4840 = scalar_lea.vmem [#allocation1], 16
        %4841 = vst [vmem:[%s4840] ss:$2 sm:$0xff] %v243
        %s4842 = scalar_lea.vmem [#allocation1], 32
        %4843 = vst [vmem:[%s4842] ss:$2 sm:$0xff] %v244
        %s4844 = scalar_lea.vmem [#allocation1], 48
        %4845 = vst [vmem:[%s4844] ss:$2 sm:$0xff] %v245
        %v4846 = vld.sshfl [vmem:[#allocation1 + $0x8] sm:$0xff pattern:$0x75316420]
        %v4847 = vld.sshfl [vmem:[#allocation1 + $0x10] sm:$0xff pattern:$0x75316420]
        %v4848 = vld.sshfl [vmem:[#allocation1 + $0x18] sm:$0xff pattern:$0x75316420]
        %v4849 = vld.sshfl [vmem:[#allocation1 + $0x20] sm:$0xff pattern:$0x75316420]
        %v4850 = vld.sshfl [vmem:[#allocation1 + $0x28] sm:$0xff pattern:$0x75316420]
        %v4851 = vld.sshfl [vmem:[#allocation1 + $0x30] sm:$0xff pattern:$0x75316420]
        %v4852 = vld.sshfl [vmem:[#allocation1 + $0x38] sm:$0xff pattern:$0x75316420]
        %4853 = vst [vmem:[#allocation1] ss:$2 sm:$0xff] %v246
        %v4854 = vld.sshfl [vmem:[#allocation1] sm:$0xff pattern:$0x75316420]
        %v4855 = vld.sshfl [vmem:[#allocation1 + $0x8] sm:$0xff pattern:$0x75316420]
        %4856 = vrot.lane.b32.xlu0 %v4846, 37
        %v4857 = vpop.permute.xlu0 %4856
        %4858 = vrot.lane.b32.xlu0 %v4847, 37
        %v4859 = vpop.permute.xlu0 %4858
        %4860 = vrot.lane.b32.xlu0 %v4848, 37
        %v4861 = vpop.permute.xlu0 %4860
        %4862 = vrot.lane.b32.xlu0 %v4849, 37
        %v4863 = vpop.permute.xlu0 %4862
        %4864 = vrot.lane.b32.xlu0 %v4850, 37
        %v4865 = vpop.permute.xlu0 %4864
        %4866 = vrot.lane.b32.xlu0 %v4851, 37
        %v4867 = vpop.permute.xlu0 %4866
        %4868 = vrot.lane.b32.xlu0 %v4852, 37
        %v4869 = vpop.permute.xlu0 %4868
        %4870 = vrot.lane.b32.xlu0 %v4854, 37
        %v4871 = vpop.permute.xlu0 %4870
        %4872 = vrot.lane.b32.xlu0 %v4855, 37
        %v4873 = vpop.permute.xlu0 %4872
        %vm4874 = vcmask 302080
        %v4875 = vsel %vm4874, %v4857, %v4859
        %v4876 = vsel %vm4874, %v4859, %v4861
        %v4877 = vsel %vm4874, %v4861, %v4863
        %v4878 = vsel %vm4874, %v4863, %v4865
        %v4879 = vsel %vm4874, %v4865, %v4867
        %v4880 = vsel %vm4874, %v4867, %v4869
        %v4881 = vsel %vm4874, %v4869, %v4871
        %v4882 = vsel %vm4874, %v4871, %v4873
        %v4884 = vsel %vm299, %v4838, 0
        %v4886 = vsel %vm303, %v4875, 0
        %v4888 = vsel %vm303, %v4876, 0
        %v4890 = vsel %vm303, %v4877, 0
        %v4892 = vsel %vm303, %v4878, 0
        %v4894 = vsel %vm303, %v4879, 0
        %v4896 = vsel %vm303, %v4880, 0
        %v4898 = vsel %vm303, %v4881, 0
        %v4900 = vsel %vm303, %v4882, 0
        %4902 = vmatpush.msra.mxu0 0.0
        %4903 = vmatpush.msra.mxu0 0.0
        %4904 = vmatpush.msra.mxu0 0.0
        %4905 = vmatpush.msra.mxu0 0.0
        %4906 = vmatpush.msra.mxu0 0.0
        %4907 = vmatpush.msra.mxu0 0.0
        %4908 = vmatpush.msra.mxu0 0.0
        %4909 = vmatpush.msra.mxu0 0.0
        %4910 = vmatpush.msra.mxu0 0.0
        %4911 = vmatpush.msra.mxu0 0.0
        %4912 = vmatpush.msra.mxu0 0.0
        %4913 = vmatpush.msra.mxu0 0.0
        %4914 = vmatpush.msra.mxu0 0.0
        %4915 = vmatpush.msra.mxu0 0.0
        %4916 = vmatpush.msra.mxu0 0.0
        %4917 = vmatpush.msra.mxu0 %v4886
        %4918 = vmatmul.f32.gmra.mxu0 %v4884
        %v4919 = vpop.f32.mrf.mxu0
        %v4920 = vadd.f32 0.0, %v4919
        %4921 = vdwg.mxu0
        %4922 = vmatpush.msra.mxu0 0.0
        %4923 = vmatpush.msra.mxu0 0.0
        %4924 = vmatpush.msra.mxu0 0.0
        %4925 = vmatpush.msra.mxu0 0.0
        %4926 = vmatpush.msra.mxu0 0.0
        %4927 = vmatpush.msra.mxu0 0.0
        %4928 = vmatpush.msra.mxu0 0.0
        %4929 = vmatpush.msra.mxu0 0.0
        %4930 = vmatpush.msra.mxu0 0.0
        %4931 = vmatpush.msra.mxu0 0.0
        %4932 = vmatpush.msra.mxu0 0.0
        %4933 = vmatpush.msra.mxu0 0.0
        %4934 = vmatpush.msra.mxu0 0.0
        %4935 = vmatpush.msra.mxu0 0.0
        %4936 = vmatpush.msra.mxu0 0.0
        %4937 = vmatpush.msra.mxu0 %v4888
        %4938 = vmatmul.f32.gmra.mxu0 %v4884
        %v4939 = vpop.f32.mrf.mxu0
        %v4940 = vadd.f32 0.0, %v4939
        %4941 = vdwg.mxu0
        %4942 = vmatpush.msra.mxu0 0.0
        %4943 = vmatpush.msra.mxu0 0.0
        %4944 = vmatpush.msra.mxu0 0.0
        %4945 = vmatpush.msra.mxu0 0.0
        %4946 = vmatpush.msra.mxu0 0.0
        %4947 = vmatpush.msra.mxu0 0.0
        %4948 = vmatpush.msra.mxu0 0.0
        %4949 = vmatpush.msra.mxu0 0.0
        %4950 = vmatpush.msra.mxu0 0.0
        %4951 = vmatpush.msra.mxu0 0.0
        %4952 = vmatpush.msra.mxu0 0.0
        %4953 = vmatpush.msra.mxu0 0.0
        %4954 = vmatpush.msra.mxu0 0.0
        %4955 = vmatpush.msra.mxu0 0.0
        %4956 = vmatpush.msra.mxu0 0.0
        %4957 = vmatpush.msra.mxu0 %v4890
        %4958 = vmatmul.f32.gmra.mxu0 %v4884
        %v4959 = vpop.f32.mrf.mxu0
        %v4960 = vadd.f32 0.0, %v4959
        %4961 = vdwg.mxu0
        %4962 = vmatpush.msra.mxu0 0.0
        %4963 = vmatpush.msra.mxu0 0.0
        %4964 = vmatpush.msra.mxu0 0.0
        %4965 = vmatpush.msra.mxu0 0.0
        %4966 = vmatpush.msra.mxu0 0.0
        %4967 = vmatpush.msra.mxu0 0.0
        %4968 = vmatpush.msra.mxu0 0.0
        %4969 = vmatpush.msra.mxu0 0.0
        %4970 = vmatpush.msra.mxu0 0.0
        %4971 = vmatpush.msra.mxu0 0.0
        %4972 = vmatpush.msra.mxu0 0.0
        %4973 = vmatpush.msra.mxu0 0.0
        %4974 = vmatpush.msra.mxu0 0.0
        %4975 = vmatpush.msra.mxu0 0.0
        %4976 = vmatpush.msra.mxu0 0.0
        %4977 = vmatpush.msra.mxu0 %v4892
        %4978 = vmatmul.f32.gmra.mxu0 %v4884
        %v4979 = vpop.f32.mrf.mxu0
        %v4980 = vadd.f32 0.0, %v4979
        %4981 = vdwg.mxu0
        %4982 = vmatpush.msra.mxu0 0.0
        %4983 = vmatpush.msra.mxu0 0.0
        %4984 = vmatpush.msra.mxu0 0.0
        %4985 = vmatpush.msra.mxu0 0.0
        %4986 = vmatpush.msra.mxu0 0.0
        %4987 = vmatpush.msra.mxu0 0.0
        %4988 = vmatpush.msra.mxu0 0.0
        %4989 = vmatpush.msra.mxu0 0.0
        %4990 = vmatpush.msra.mxu0 0.0
        %4991 = vmatpush.msra.mxu0 0.0
        %4992 = vmatpush.msra.mxu0 0.0
        %4993 = vmatpush.msra.mxu0 0.0
        %4994 = vmatpush.msra.mxu0 0.0
        %4995 = vmatpush.msra.mxu0 0.0
        %4996 = vmatpush.msra.mxu0 0.0
        %4997 = vmatpush.msra.mxu0 %v4894
        %4998 = vmatmul.f32.gmra.mxu0 %v4884
        %v4999 = vpop.f32.mrf.mxu0
        %v5000 = vadd.f32 0.0, %v4999
        %5001 = vdwg.mxu0
        %5002 = vmatpush.msra.mxu0 0.0
        %5003 = vmatpush.msra.mxu0 0.0
        %5004 = vmatpush.msra.mxu0 0.0
        %5005 = vmatpush.msra.mxu0 0.0
        %5006 = vmatpush.msra.mxu0 0.0
        %5007 = vmatpush.msra.mxu0 0.0
        %5008 = vmatpush.msra.mxu0 0.0
        %5009 = vmatpush.msra.mxu0 0.0
        %5010 = vmatpush.msra.mxu0 0.0
        %5011 = vmatpush.msra.mxu0 0.0
        %5012 = vmatpush.msra.mxu0 0.0
        %5013 = vmatpush.msra.mxu0 0.0
        %5014 = vmatpush.msra.mxu0 0.0
        %5015 = vmatpush.msra.mxu0 0.0
        %5016 = vmatpush.msra.mxu0 0.0
        %5017 = vmatpush.msra.mxu0 %v4896
        %5018 = vmatmul.f32.gmra.mxu0 %v4884
        %v5019 = vpop.f32.mrf.mxu0
        %v5020 = vadd.f32 0.0, %v5019
        %5021 = vdwg.mxu0
        %5022 = vmatpush.msra.mxu0 0.0
        %5023 = vmatpush.msra.mxu0 0.0
        %5024 = vmatpush.msra.mxu0 0.0
        %5025 = vmatpush.msra.mxu0 0.0
        %5026 = vmatpush.msra.mxu0 0.0
        %5027 = vmatpush.msra.mxu0 0.0
        %5028 = vmatpush.msra.mxu0 0.0
        %5029 = vmatpush.msra.mxu0 0.0
        %5030 = vmatpush.msra.mxu0 0.0
        %5031 = vmatpush.msra.mxu0 0.0
        %5032 = vmatpush.msra.mxu0 0.0
        %5033 = vmatpush.msra.mxu0 0.0
        %5034 = vmatpush.msra.mxu0 0.0
        %5035 = vmatpush.msra.mxu0 0.0
        %5036 = vmatpush.msra.mxu0 0.0
        %5037 = vmatpush.msra.mxu0 %v4898
        %5038 = vmatmul.f32.gmra.mxu0 %v4884
        %v5039 = vpop.f32.mrf.mxu0
        %v5040 = vadd.f32 0.0, %v5039
        %5041 = vdwg.mxu0
        %5042 = vmatpush.msra.mxu0 0.0
        %5043 = vmatpush.msra.mxu0 0.0
        %5044 = vmatpush.msra.mxu0 0.0
        %5045 = vmatpush.msra.mxu0 0.0
        %5046 = vmatpush.msra.mxu0 0.0
        %5047 = vmatpush.msra.mxu0 0.0
        %5048 = vmatpush.msra.mxu0 0.0
        %5049 = vmatpush.msra.mxu0 0.0
        %5050 = vmatpush.msra.mxu0 0.0
        %5051 = vmatpush.msra.mxu0 0.0
        %5052 = vmatpush.msra.mxu0 0.0
        %5053 = vmatpush.msra.mxu0 0.0
        %5054 = vmatpush.msra.mxu0 0.0
        %5055 = vmatpush.msra.mxu0 0.0
        %5056 = vmatpush.msra.mxu0 0.0
        %5057 = vmatpush.msra.mxu0 %v4900
        %5058 = vmatmul.f32.gmra.mxu0 %v4884
        %v5059 = vpop.f32.mrf.mxu0
        %v5060 = vadd.f32 0.0, %v5059
        %5061 = vdwg.mxu0
        %v5062 = vadd.f32 %v4695, %v4920
        %v5063 = vadd.f32 %v4715, %v4940
        %v5064 = vadd.f32 %v4735, %v4960
        %v5065 = vadd.f32 %v4755, %v4980
        %v5066 = vadd.f32 %v4775, %v5000
        %v5067 = vadd.f32 %v4795, %v5020
        %v5068 = vadd.f32 %v4815, %v5040
        %v5069 = vadd.f32 %v4835, %v5060
        %s5070 = scalar_lea.vmem %s1, 168
        %v5071 = vld [vmem:[%s5070] sm:$0xff]
        %5072 = vst [vmem:[#allocation1] ss:$2 sm:$0xff] %v242
        %s5073 = scalar_lea.vmem [#allocation1], 16
        %5074 = vst [vmem:[%s5073] ss:$2 sm:$0xff] %v243
        %s5075 = scalar_lea.vmem [#allocation1], 32
        %5076 = vst [vmem:[%s5075] ss:$2 sm:$0xff] %v244
        %s5077 = scalar_lea.vmem [#allocation1], 48
        %5078 = vst [vmem:[%s5077] ss:$2 sm:$0xff] %v245
        %v5079 = vld.sshfl [vmem:[#allocation1 + $0x8] sm:$0xff pattern:$0x75316420]
        %v5080 = vld.sshfl [vmem:[#allocation1 + $0x10] sm:$0xff pattern:$0x75316420]
        %v5081 = vld.sshfl [vmem:[#allocation1 + $0x18] sm:$0xff pattern:$0x75316420]
        %v5082 = vld.sshfl [vmem:[#allocation1 + $0x20] sm:$0xff pattern:$0x75316420]
        %v5083 = vld.sshfl [vmem:[#allocation1 + $0x28] sm:$0xff pattern:$0x75316420]
        %v5084 = vld.sshfl [vmem:[#allocation1 + $0x30] sm:$0xff pattern:$0x75316420]
        %v5085 = vld.sshfl [vmem:[#allocation1 + $0x38] sm:$0xff pattern:$0x75316420]
        %5086 = vst [vmem:[#allocation1] ss:$2 sm:$0xff] %v246
        %v5087 = vld.sshfl [vmem:[#allocation1] sm:$0xff pattern:$0x75316420]
        %v5088 = vld.sshfl [vmem:[#allocation1 + $0x8] sm:$0xff pattern:$0x75316420]
        %5089 = vrot.lane.b32.xlu0 %v5079, 29
        %v5090 = vpop.permute.xlu0 %5089
        %5091 = vrot.lane.b32.xlu0 %v5080, 29
        %v5092 = vpop.permute.xlu0 %5091
        %5093 = vrot.lane.b32.xlu0 %v5081, 29
        %v5094 = vpop.permute.xlu0 %5093
        %5095 = vrot.lane.b32.xlu0 %v5082, 29
        %v5096 = vpop.permute.xlu0 %5095
        %5097 = vrot.lane.b32.xlu0 %v5083, 29
        %v5098 = vpop.permute.xlu0 %5097
        %5099 = vrot.lane.b32.xlu0 %v5084, 29
        %v5100 = vpop.permute.xlu0 %5099
        %5101 = vrot.lane.b32.xlu0 %v5085, 29
        %v5102 = vpop.permute.xlu0 %5101
        %5103 = vrot.lane.b32.xlu0 %v5087, 29
        %v5104 = vpop.permute.xlu0 %5103
        %5105 = vrot.lane.b32.xlu0 %v5088, 29
        %v5106 = vpop.permute.xlu0 %5105
        %vm5107 = vcmask 236544
        %v5108 = vsel %vm5107, %v5090, %v5092
        %v5109 = vsel %vm5107, %v5092, %v5094
        %v5110 = vsel %vm5107, %v5094, %v5096
        %v5111 = vsel %vm5107, %v5096, %v5098
        %v5112 = vsel %vm5107, %v5098, %v5100
        %v5113 = vsel %vm5107, %v5100, %v5102
        %v5114 = vsel %vm5107, %v5102, %v5104
        %v5115 = vsel %vm5107, %v5104, %v5106
        %v5117 = vsel %vm299, %v5071, 0
        %v5119 = vsel %vm303, %v5108, 0
        %v5121 = vsel %vm303, %v5109, 0
        %v5123 = vsel %vm303, %v5110, 0
        %v5125 = vsel %vm303, %v5111, 0
        %v5127 = vsel %vm303, %v5112, 0
        %v5129 = vsel %vm303, %v5113, 0
        %v5131 = vsel %vm303, %v5114, 0
        %v5133 = vsel %vm303, %v5115, 0
        %5135 = vmatpush.msra.mxu0 0.0
        %5136 = vmatpush.msra.mxu0 0.0
        %5137 = vmatpush.msra.mxu0 0.0
        %5138 = vmatpush.msra.mxu0 0.0
        %5139 = vmatpush.msra.mxu0 0.0
        %5140 = vmatpush.msra.mxu0 0.0
        %5141 = vmatpush.msra.mxu0 0.0
        %5142 = vmatpush.msra.mxu0 0.0
        %5143 = vmatpush.msra.mxu0 0.0
        %5144 = vmatpush.msra.mxu0 0.0
        %5145 = vmatpush.msra.mxu0 0.0
        %5146 = vmatpush.msra.mxu0 0.0
        %5147 = vmatpush.msra.mxu0 0.0
        %5148 = vmatpush.msra.mxu0 0.0
        %5149 = vmatpush.msra.mxu0 0.0
        %5150 = vmatpush.msra.mxu0 %v5119
        %5151 = vmatmul.f32.gmra.mxu0 %v5117
        %v5152 = vpop.f32.mrf.mxu0
        %v5153 = vadd.f32 0.0, %v5152
        %5154 = vdwg.mxu0
        %5155 = vmatpush.msra.mxu0 0.0
        %5156 = vmatpush.msra.mxu0 0.0
        %5157 = vmatpush.msra.mxu0 0.0
        %5158 = vmatpush.msra.mxu0 0.0
        %5159 = vmatpush.msra.mxu0 0.0
        %5160 = vmatpush.msra.mxu0 0.0
        %5161 = vmatpush.msra.mxu0 0.0
        %5162 = vmatpush.msra.mxu0 0.0
        %5163 = vmatpush.msra.mxu0 0.0
        %5164 = vmatpush.msra.mxu0 0.0
        %5165 = vmatpush.msra.mxu0 0.0
        %5166 = vmatpush.msra.mxu0 0.0
        %5167 = vmatpush.msra.mxu0 0.0
        %5168 = vmatpush.msra.mxu0 0.0
        %5169 = vmatpush.msra.mxu0 0.0
        %5170 = vmatpush.msra.mxu0 %v5121
        %5171 = vmatmul.f32.gmra.mxu0 %v5117
        %v5172 = vpop.f32.mrf.mxu0
        %v5173 = vadd.f32 0.0, %v5172
        %5174 = vdwg.mxu0
        %5175 = vmatpush.msra.mxu0 0.0
        %5176 = vmatpush.msra.mxu0 0.0
        %5177 = vmatpush.msra.mxu0 0.0
        %5178 = vmatpush.msra.mxu0 0.0
        %5179 = vmatpush.msra.mxu0 0.0
        %5180 = vmatpush.msra.mxu0 0.0
        %5181 = vmatpush.msra.mxu0 0.0
        %5182 = vmatpush.msra.mxu0 0.0
        %5183 = vmatpush.msra.mxu0 0.0
        %5184 = vmatpush.msra.mxu0 0.0
        %5185 = vmatpush.msra.mxu0 0.0
        %5186 = vmatpush.msra.mxu0 0.0
        %5187 = vmatpush.msra.mxu0 0.0
        %5188 = vmatpush.msra.mxu0 0.0
        %5189 = vmatpush.msra.mxu0 0.0
        %5190 = vmatpush.msra.mxu0 %v5123
        %5191 = vmatmul.f32.gmra.mxu0 %v5117
        %v5192 = vpop.f32.mrf.mxu0
        %v5193 = vadd.f32 0.0, %v5192
        %5194 = vdwg.mxu0
        %5195 = vmatpush.msra.mxu0 0.0
        %5196 = vmatpush.msra.mxu0 0.0
        %5197 = vmatpush.msra.mxu0 0.0
        %5198 = vmatpush.msra.mxu0 0.0
        %5199 = vmatpush.msra.mxu0 0.0
        %5200 = vmatpush.msra.mxu0 0.0
        %5201 = vmatpush.msra.mxu0 0.0
        %5202 = vmatpush.msra.mxu0 0.0
        %5203 = vmatpush.msra.mxu0 0.0
        %5204 = vmatpush.msra.mxu0 0.0
        %5205 = vmatpush.msra.mxu0 0.0
        %5206 = vmatpush.msra.mxu0 0.0
        %5207 = vmatpush.msra.mxu0 0.0
        %5208 = vmatpush.msra.mxu0 0.0
        %5209 = vmatpush.msra.mxu0 0.0
        %5210 = vmatpush.msra.mxu0 %v5125
        %5211 = vmatmul.f32.gmra.mxu0 %v5117
        %v5212 = vpop.f32.mrf.mxu0
        %v5213 = vadd.f32 0.0, %v5212
        %5214 = vdwg.mxu0
        %5215 = vmatpush.msra.mxu0 0.0
        %5216 = vmatpush.msra.mxu0 0.0
        %5217 = vmatpush.msra.mxu0 0.0
        %5218 = vmatpush.msra.mxu0 0.0
        %5219 = vmatpush.msra.mxu0 0.0
        %5220 = vmatpush.msra.mxu0 0.0
        %5221 = vmatpush.msra.mxu0 0.0
        %5222 = vmatpush.msra.mxu0 0.0
        %5223 = vmatpush.msra.mxu0 0.0
        %5224 = vmatpush.msra.mxu0 0.0
        %5225 = vmatpush.msra.mxu0 0.0
        %5226 = vmatpush.msra.mxu0 0.0
        %5227 = vmatpush.msra.mxu0 0.0
        %5228 = vmatpush.msra.mxu0 0.0
        %5229 = vmatpush.msra.mxu0 0.0
        %5230 = vmatpush.msra.mxu0 %v5127
        %5231 = vmatmul.f32.gmra.mxu0 %v5117
        %v5232 = vpop.f32.mrf.mxu0
        %v5233 = vadd.f32 0.0, %v5232
        %5234 = vdwg.mxu0
        %5235 = vmatpush.msra.mxu0 0.0
        %5236 = vmatpush.msra.mxu0 0.0
        %5237 = vmatpush.msra.mxu0 0.0
        %5238 = vmatpush.msra.mxu0 0.0
        %5239 = vmatpush.msra.mxu0 0.0
        %5240 = vmatpush.msra.mxu0 0.0
        %5241 = vmatpush.msra.mxu0 0.0
        %5242 = vmatpush.msra.mxu0 0.0
        %5243 = vmatpush.msra.mxu0 0.0
        %5244 = vmatpush.msra.mxu0 0.0
        %5245 = vmatpush.msra.mxu0 0.0
        %5246 = vmatpush.msra.mxu0 0.0
        %5247 = vmatpush.msra.mxu0 0.0
        %5248 = vmatpush.msra.mxu0 0.0
        %5249 = vmatpush.msra.mxu0 0.0
        %5250 = vmatpush.msra.mxu0 %v5129
        %5251 = vmatmul.f32.gmra.mxu0 %v5117
        %v5252 = vpop.f32.mrf.mxu0
        %v5253 = vadd.f32 0.0, %v5252
        %5254 = vdwg.mxu0
        %5255 = vmatpush.msra.mxu0 0.0
        %5256 = vmatpush.msra.mxu0 0.0
        %5257 = vmatpush.msra.mxu0 0.0
        %5258 = vmatpush.msra.mxu0 0.0
        %5259 = vmatpush.msra.mxu0 0.0
        %5260 = vmatpush.msra.mxu0 0.0
        %5261 = vmatpush.msra.mxu0 0.0
        %5262 = vmatpush.msra.mxu0 0.0
        %5263 = vmatpush.msra.mxu0 0.0
        %5264 = vmatpush.msra.mxu0 0.0
        %5265 = vmatpush.msra.mxu0 0.0
        %5266 = vmatpush.msra.mxu0 0.0
        %5267 = vmatpush.msra.mxu0 0.0
        %5268 = vmatpush.msra.mxu0 0.0
        %5269 = vmatpush.msra.mxu0 0.0
        %5270 = vmatpush.msra.mxu0 %v5131
        %5271 = vmatmul.f32.gmra.mxu0 %v5117
        %v5272 = vpop.f32.mrf.mxu0
        %v5273 = vadd.f32 0.0, %v5272
        %5274 = vdwg.mxu0
        %5275 = vmatpush.msra.mxu0 0.0
        %5276 = vmatpush.msra.mxu0 0.0
        %5277 = vmatpush.msra.mxu0 0.0
        %5278 = vmatpush.msra.mxu0 0.0
        %5279 = vmatpush.msra.mxu0 0.0
        %5280 = vmatpush.msra.mxu0 0.0
        %5281 = vmatpush.msra.mxu0 0.0
        %5282 = vmatpush.msra.mxu0 0.0
        %5283 = vmatpush.msra.mxu0 0.0
        %5284 = vmatpush.msra.mxu0 0.0
        %5285 = vmatpush.msra.mxu0 0.0
        %5286 = vmatpush.msra.mxu0 0.0
        %5287 = vmatpush.msra.mxu0 0.0
        %5288 = vmatpush.msra.mxu0 0.0
        %5289 = vmatpush.msra.mxu0 0.0
        %5290 = vmatpush.msra.mxu0 %v5133
        %5291 = vmatmul.f32.gmra.mxu0 %v5117
        %v5292 = vpop.f32.mrf.mxu0
        %v5293 = vadd.f32 0.0, %v5292
        %5294 = vdwg.mxu0
        %v5295 = vadd.f32 %v5062, %v5153
        %v5296 = vadd.f32 %v5063, %v5173
        %v5297 = vadd.f32 %v5064, %v5193
        %v5298 = vadd.f32 %v5065, %v5213
        %v5299 = vadd.f32 %v5066, %v5233
        %v5300 = vadd.f32 %v5067, %v5253
        %v5301 = vadd.f32 %v5068, %v5273
        %v5302 = vadd.f32 %v5069, %v5293
        %s5303 = scalar_lea.vmem %s1, 176
        %v5304 = vld [vmem:[%s5303] sm:$0xff]
        %5305 = vst [vmem:[#allocation1] ss:$2 sm:$0xff] %v242
        %s5306 = scalar_lea.vmem [#allocation1], 16
        %5307 = vst [vmem:[%s5306] ss:$2 sm:$0xff] %v243
        %s5308 = scalar_lea.vmem [#allocation1], 32
        %5309 = vst [vmem:[%s5308] ss:$2 sm:$0xff] %v244
        %s5310 = scalar_lea.vmem [#allocation1], 48
        %5311 = vst [vmem:[%s5310] ss:$2 sm:$0xff] %v245
        %v5312 = vld.sshfl [vmem:[#allocation1 + $0x8] sm:$0xff pattern:$0x75316420]
        %v5313 = vld.sshfl [vmem:[#allocation1 + $0x10] sm:$0xff pattern:$0x75316420]
        %v5314 = vld.sshfl [vmem:[#allocation1 + $0x18] sm:$0xff pattern:$0x75316420]
        %v5315 = vld.sshfl [vmem:[#allocation1 + $0x20] sm:$0xff pattern:$0x75316420]
        %v5316 = vld.sshfl [vmem:[#allocation1 + $0x28] sm:$0xff pattern:$0x75316420]
        %v5317 = vld.sshfl [vmem:[#allocation1 + $0x30] sm:$0xff pattern:$0x75316420]
        %v5318 = vld.sshfl [vmem:[#allocation1 + $0x38] sm:$0xff pattern:$0x75316420]
        %5319 = vst [vmem:[#allocation1] ss:$2 sm:$0xff] %v246
        %v5320 = vld.sshfl [vmem:[#allocation1] sm:$0xff pattern:$0x75316420]
        %v5321 = vld.sshfl [vmem:[#allocation1 + $0x8] sm:$0xff pattern:$0x75316420]
        %5322 = vrot.lane.b32.xlu0 %v5312, 28
        %v5323 = vpop.permute.xlu0 %5322
        %5324 = vrot.lane.b32.xlu0 %v5313, 28
        %v5325 = vpop.permute.xlu0 %5324
        %5326 = vrot.lane.b32.xlu0 %v5314, 28
        %v5327 = vpop.permute.xlu0 %5326
        %5328 = vrot.lane.b32.xlu0 %v5315, 28
        %v5329 = vpop.permute.xlu0 %5328
        %5330 = vrot.lane.b32.xlu0 %v5316, 28
        %v5331 = vpop.permute.xlu0 %5330
        %5332 = vrot.lane.b32.xlu0 %v5317, 28
        %v5333 = vpop.permute.xlu0 %5332
        %5334 = vrot.lane.b32.xlu0 %v5318, 28
        %v5335 = vpop.permute.xlu0 %5334
        %5336 = vrot.lane.b32.xlu0 %v5320, 28
        %v5337 = vpop.permute.xlu0 %5336
        %5338 = vrot.lane.b32.xlu0 %v5321, 28
        %v5339 = vpop.permute.xlu0 %5338
        %vm5340 = vcmask 228352
        %v5341 = vsel %vm5340, %v5323, %v5325
        %v5342 = vsel %vm5340, %v5325, %v5327
        %v5343 = vsel %vm5340, %v5327, %v5329
        %v5344 = vsel %vm5340, %v5329, %v5331
        %v5345 = vsel %vm5340, %v5331, %v5333
        %v5346 = vsel %vm5340, %v5333, %v5335
        %v5347 = vsel %vm5340, %v5335, %v5337
        %v5348 = vsel %vm5340, %v5337, %v5339
        %v5350 = vsel %vm299, %v5304, 0
        %v5352 = vsel %vm303, %v5341, 0
        %v5354 = vsel %vm303, %v5342, 0
        %v5356 = vsel %vm303, %v5343, 0
        %v5358 = vsel %vm303, %v5344, 0
        %v5360 = vsel %vm303, %v5345, 0
        %v5362 = vsel %vm303, %v5346, 0
        %v5364 = vsel %vm303, %v5347, 0
        %v5366 = vsel %vm303, %v5348, 0
        %5368 = vmatpush.msra.mxu0 0.0
        %5369 = vmatpush.msra.mxu0 0.0
        %5370 = vmatpush.msra.mxu0 0.0
        %5371 = vmatpush.msra.mxu0 0.0
        %5372 = vmatpush.msra.mxu0 0.0
        %5373 = vmatpush.msra.mxu0 0.0
        %5374 = vmatpush.msra.mxu0 0.0
        %5375 = vmatpush.msra.mxu0 0.0
        %5376 = vmatpush.msra.mxu0 0.0
        %5377 = vmatpush.msra.mxu0 0.0
        %5378 = vmatpush.msra.mxu0 0.0
        %5379 = vmatpush.msra.mxu0 0.0
        %5380 = vmatpush.msra.mxu0 0.0
        %5381 = vmatpush.msra.mxu0 0.0
        %5382 = vmatpush.msra.mxu0 0.0
        %5383 = vmatpush.msra.mxu0 %v5352
        %5384 = vmatmul.f32.gmra.mxu0 %v5350
        %v5385 = vpop.f32.mrf.mxu0
        %v5386 = vadd.f32 0.0, %v5385
        %5387 = vdwg.mxu0
        %5388 = vmatpush.msra.mxu0 0.0
        %5389 = vmatpush.msra.mxu0 0.0
        %5390 = vmatpush.msra.mxu0 0.0
        %5391 = vmatpush.msra.mxu0 0.0
        %5392 = vmatpush.msra.mxu0 0.0
        %5393 = vmatpush.msra.mxu0 0.0
        %5394 = vmatpush.msra.mxu0 0.0
        %5395 = vmatpush.msra.mxu0 0.0
        %5396 = vmatpush.msra.mxu0 0.0
        %5397 = vmatpush.msra.mxu0 0.0
        %5398 = vmatpush.msra.mxu0 0.0
        %5399 = vmatpush.msra.mxu0 0.0
        %5400 = vmatpush.msra.mxu0 0.0
        %5401 = vmatpush.msra.mxu0 0.0
        %5402 = vmatpush.msra.mxu0 0.0
        %5403 = vmatpush.msra.mxu0 %v5354
        %5404 = vmatmul.f32.gmra.mxu0 %v5350
        %v5405 = vpop.f32.mrf.mxu0
        %v5406 = vadd.f32 0.0, %v5405
        %5407 = vdwg.mxu0
        %5408 = vmatpush.msra.mxu0 0.0
        %5409 = vmatpush.msra.mxu0 0.0
        %5410 = vmatpush.msra.mxu0 0.0
        %5411 = vmatpush.msra.mxu0 0.0
        %5412 = vmatpush.msra.mxu0 0.0
        %5413 = vmatpush.msra.mxu0 0.0
        %5414 = vmatpush.msra.mxu0 0.0
        %5415 = vmatpush.msra.mxu0 0.0
        %5416 = vmatpush.msra.mxu0 0.0
        %5417 = vmatpush.msra.mxu0 0.0
        %5418 = vmatpush.msra.mxu0 0.0
        %5419 = vmatpush.msra.mxu0 0.0
        %5420 = vmatpush.msra.mxu0 0.0
        %5421 = vmatpush.msra.mxu0 0.0
        %5422 = vmatpush.msra.mxu0 0.0
        %5423 = vmatpush.msra.mxu0 %v5356
        %5424 = vmatmul.f32.gmra.mxu0 %v5350
        %v5425 = vpop.f32.mrf.mxu0
        %v5426 = vadd.f32 0.0, %v5425
        %5427 = vdwg.mxu0
        %5428 = vmatpush.msra.mxu0 0.0
        %5429 = vmatpush.msra.mxu0 0.0
        %5430 = vmatpush.msra.mxu0 0.0
        %5431 = vmatpush.msra.mxu0 0.0
        %5432 = vmatpush.msra.mxu0 0.0
        %5433 = vmatpush.msra.mxu0 0.0
        %5434 = vmatpush.msra.mxu0 0.0
        %5435 = vmatpush.msra.mxu0 0.0
        %5436 = vmatpush.msra.mxu0 0.0
        %5437 = vmatpush.msra.mxu0 0.0
        %5438 = vmatpush.msra.mxu0 0.0
        %5439 = vmatpush.msra.mxu0 0.0
        %5440 = vmatpush.msra.mxu0 0.0
        %5441 = vmatpush.msra.mxu0 0.0
        %5442 = vmatpush.msra.mxu0 0.0
        %5443 = vmatpush.msra.mxu0 %v5358
        %5444 = vmatmul.f32.gmra.mxu0 %v5350
        %v5445 = vpop.f32.mrf.mxu0
        %v5446 = vadd.f32 0.0, %v5445
        %5447 = vdwg.mxu0
        %5448 = vmatpush.msra.mxu0 0.0
        %5449 = vmatpush.msra.mxu0 0.0
        %5450 = vmatpush.msra.mxu0 0.0
        %5451 = vmatpush.msra.mxu0 0.0
        %5452 = vmatpush.msra.mxu0 0.0
        %5453 = vmatpush.msra.mxu0 0.0
        %5454 = vmatpush.msra.mxu0 0.0
        %5455 = vmatpush.msra.mxu0 0.0
        %5456 = vmatpush.msra.mxu0 0.0
        %5457 = vmatpush.msra.mxu0 0.0
        %5458 = vmatpush.msra.mxu0 0.0
        %5459 = vmatpush.msra.mxu0 0.0
        %5460 = vmatpush.msra.mxu0 0.0
        %5461 = vmatpush.msra.mxu0 0.0
        %5462 = vmatpush.msra.mxu0 0.0
        %5463 = vmatpush.msra.mxu0 %v5360
        %5464 = vmatmul.f32.gmra.mxu0 %v5350
        %v5465 = vpop.f32.mrf.mxu0
        %v5466 = vadd.f32 0.0, %v5465
        %5467 = vdwg.mxu0
        %5468 = vmatpush.msra.mxu0 0.0
        %5469 = vmatpush.msra.mxu0 0.0
        %5470 = vmatpush.msra.mxu0 0.0
        %5471 = vmatpush.msra.mxu0 0.0
        %5472 = vmatpush.msra.mxu0 0.0
        %5473 = vmatpush.msra.mxu0 0.0
        %5474 = vmatpush.msra.mxu0 0.0
        %5475 = vmatpush.msra.mxu0 0.0
        %5476 = vmatpush.msra.mxu0 0.0
        %5477 = vmatpush.msra.mxu0 0.0
        %5478 = vmatpush.msra.mxu0 0.0
        %5479 = vmatpush.msra.mxu0 0.0
        %5480 = vmatpush.msra.mxu0 0.0
        %5481 = vmatpush.msra.mxu0 0.0
        %5482 = vmatpush.msra.mxu0 0.0
        %5483 = vmatpush.msra.mxu0 %v5362
        %5484 = vmatmul.f32.gmra.mxu0 %v5350
        %v5485 = vpop.f32.mrf.mxu0
        %v5486 = vadd.f32 0.0, %v5485
        %5487 = vdwg.mxu0
        %5488 = vmatpush.msra.mxu0 0.0
        %5489 = vmatpush.msra.mxu0 0.0
        %5490 = vmatpush.msra.mxu0 0.0
        %5491 = vmatpush.msra.mxu0 0.0
        %5492 = vmatpush.msra.mxu0 0.0
        %5493 = vmatpush.msra.mxu0 0.0
        %5494 = vmatpush.msra.mxu0 0.0
        %5495 = vmatpush.msra.mxu0 0.0
        %5496 = vmatpush.msra.mxu0 0.0
        %5497 = vmatpush.msra.mxu0 0.0
        %5498 = vmatpush.msra.mxu0 0.0
        %5499 = vmatpush.msra.mxu0 0.0
        %5500 = vmatpush.msra.mxu0 0.0
        %5501 = vmatpush.msra.mxu0 0.0
        %5502 = vmatpush.msra.mxu0 0.0
        %5503 = vmatpush.msra.mxu0 %v5364
        %5504 = vmatmul.f32.gmra.mxu0 %v5350
        %v5505 = vpop.f32.mrf.mxu0
        %v5506 = vadd.f32 0.0, %v5505
        %5507 = vdwg.mxu0
        %5508 = vmatpush.msra.mxu0 0.0
        %5509 = vmatpush.msra.mxu0 0.0
        %5510 = vmatpush.msra.mxu0 0.0
        %5511 = vmatpush.msra.mxu0 0.0
        %5512 = vmatpush.msra.mxu0 0.0
        %5513 = vmatpush.msra.mxu0 0.0
        %5514 = vmatpush.msra.mxu0 0.0
        %5515 = vmatpush.msra.mxu0 0.0
        %5516 = vmatpush.msra.mxu0 0.0
        %5517 = vmatpush.msra.mxu0 0.0
        %5518 = vmatpush.msra.mxu0 0.0
        %5519 = vmatpush.msra.mxu0 0.0
        %5520 = vmatpush.msra.mxu0 0.0
        %5521 = vmatpush.msra.mxu0 0.0
        %5522 = vmatpush.msra.mxu0 0.0
        %5523 = vmatpush.msra.mxu0 %v5366
        %5524 = vmatmul.f32.gmra.mxu0 %v5350
        %v5525 = vpop.f32.mrf.mxu0
        %v5526 = vadd.f32 0.0, %v5525
        %5527 = vdwg.mxu0
        %v5528 = vadd.f32 %v5295, %v5386
        %v5529 = vadd.f32 %v5296, %v5406
        %v5530 = vadd.f32 %v5297, %v5426
        %v5531 = vadd.f32 %v5298, %v5446
        %v5532 = vadd.f32 %v5299, %v5466
        %v5533 = vadd.f32 %v5300, %v5486
        %v5534 = vadd.f32 %v5301, %v5506
        %v5535 = vadd.f32 %v5302, %v5526
        %s5536 = scalar_lea.vmem %s1, 184
        %v5537 = vld [vmem:[%s5536] sm:$0xff]
        %5538 = vst [vmem:[#allocation1] ss:$2 sm:$0xff] %v242
        %s5539 = scalar_lea.vmem [#allocation1], 16
        %5540 = vst [vmem:[%s5539] ss:$2 sm:$0xff] %v243
        %s5541 = scalar_lea.vmem [#allocation1], 32
        %5542 = vst [vmem:[%s5541] ss:$2 sm:$0xff] %v244
        %s5543 = scalar_lea.vmem [#allocation1], 48
        %5544 = vst [vmem:[%s5543] ss:$2 sm:$0xff] %v245
        %v5545 = vld.sshfl [vmem:[#allocation1 + $0x8] sm:$0xff pattern:$0x75316420]
        %v5546 = vld.sshfl [vmem:[#allocation1 + $0x10] sm:$0xff pattern:$0x75316420]
        %v5547 = vld.sshfl [vmem:[#allocation1 + $0x18] sm:$0xff pattern:$0x75316420]
        %v5548 = vld.sshfl [vmem:[#allocation1 + $0x20] sm:$0xff pattern:$0x75316420]
        %v5549 = vld.sshfl [vmem:[#allocation1 + $0x28] sm:$0xff pattern:$0x75316420]
        %v5550 = vld.sshfl [vmem:[#allocation1 + $0x30] sm:$0xff pattern:$0x75316420]
        %v5551 = vld.sshfl [vmem:[#allocation1 + $0x38] sm:$0xff pattern:$0x75316420]
        %5552 = vst [vmem:[#allocation1] ss:$2 sm:$0xff] %v246
        %v5553 = vld.sshfl [vmem:[#allocation1] sm:$0xff pattern:$0x75316420]
        %v5554 = vld.sshfl [vmem:[#allocation1 + $0x8] sm:$0xff pattern:$0x75316420]
        %5555 = vrot.lane.b32.xlu0 %v5545, 27
        %v5556 = vpop.permute.xlu0 %5555
        %5557 = vrot.lane.b32.xlu0 %v5546, 27
        %v5558 = vpop.permute.xlu0 %5557
        %5559 = vrot.lane.b32.xlu0 %v5547, 27
        %v5560 = vpop.permute.xlu0 %5559
        %5561 = vrot.lane.b32.xlu0 %v5548, 27
        %v5562 = vpop.permute.xlu0 %5561
        %5563 = vrot.lane.b32.xlu0 %v5549, 27
        %v5564 = vpop.permute.xlu0 %5563
        %5565 = vrot.lane.b32.xlu0 %v5550, 27
        %v5566 = vpop.permute.xlu0 %5565
        %5567 = vrot.lane.b32.xlu0 %v5551, 27
        %v5568 = vpop.permute.xlu0 %5567
        %5569 = vrot.lane.b32.xlu0 %v5553, 27
        %v5570 = vpop.permute.xlu0 %5569
        %5571 = vrot.lane.b32.xlu0 %v5554, 27
        %v5572 = vpop.permute.xlu0 %5571
        %vm5573 = vcmask 220160
        %v5574 = vsel %vm5573, %v5556, %v5558
        %v5575 = vsel %vm5573, %v5558, %v5560
        %v5576 = vsel %vm5573, %v5560, %v5562
        %v5577 = vsel %vm5573, %v5562, %v5564
        %v5578 = vsel %vm5573, %v5564, %v5566
        %v5579 = vsel %vm5573, %v5566, %v5568
        %v5580 = vsel %vm5573, %v5568, %v5570
        %v5581 = vsel %vm5573, %v5570, %v5572
        %v5583 = vsel %vm299, %v5537, 0
        %v5585 = vsel %vm303, %v5574, 0
        %v5587 = vsel %vm303, %v5575, 0
        %v5589 = vsel %vm303, %v5576, 0
        %v5591 = vsel %vm303, %v5577, 0
        %v5593 = vsel %vm303, %v5578, 0
        %v5595 = vsel %vm303, %v5579, 0
        %v5597 = vsel %vm303, %v5580, 0
        %v5599 = vsel %vm303, %v5581, 0
        %5601 = vmatpush.msra.mxu0 0.0
        %5602 = vmatpush.msra.mxu0 0.0
        %5603 = vmatpush.msra.mxu0 0.0
        %5604 = vmatpush.msra.mxu0 0.0
        %5605 = vmatpush.msra.mxu0 0.0
        %5606 = vmatpush.msra.mxu0 0.0
        %5607 = vmatpush.msra.mxu0 0.0
        %5608 = vmatpush.msra.mxu0 0.0
        %5609 = vmatpush.msra.mxu0 0.0
        %5610 = vmatpush.msra.mxu0 0.0
        %5611 = vmatpush.msra.mxu0 0.0
        %5612 = vmatpush.msra.mxu0 0.0
        %5613 = vmatpush.msra.mxu0 0.0
        %5614 = vmatpush.msra.mxu0 0.0
        %5615 = vmatpush.msra.mxu0 0.0
        %5616 = vmatpush.msra.mxu0 %v5585
        %5617 = vmatmul.f32.gmra.mxu0 %v5583
        %v5618 = vpop.f32.mrf.mxu0
        %v5619 = vadd.f32 0.0, %v5618
        %5620 = vdwg.mxu0
        %5621 = vmatpush.msra.mxu0 0.0
        %5622 = vmatpush.msra.mxu0 0.0
        %5623 = vmatpush.msra.mxu0 0.0
        %5624 = vmatpush.msra.mxu0 0.0
        %5625 = vmatpush.msra.mxu0 0.0
        %5626 = vmatpush.msra.mxu0 0.0
        %5627 = vmatpush.msra.mxu0 0.0
        %5628 = vmatpush.msra.mxu0 0.0
        %5629 = vmatpush.msra.mxu0 0.0
        %5630 = vmatpush.msra.mxu0 0.0
        %5631 = vmatpush.msra.mxu0 0.0
        %5632 = vmatpush.msra.mxu0 0.0
        %5633 = vmatpush.msra.mxu0 0.0
        %5634 = vmatpush.msra.mxu0 0.0
        %5635 = vmatpush.msra.mxu0 0.0
        %5636 = vmatpush.msra.mxu0 %v5587
        %5637 = vmatmul.f32.gmra.mxu0 %v5583
        %v5638 = vpop.f32.mrf.mxu0
        %v5639 = vadd.f32 0.0, %v5638
        %5640 = vdwg.mxu0
        %5641 = vmatpush.msra.mxu0 0.0
        %5642 = vmatpush.msra.mxu0 0.0
        %5643 = vmatpush.msra.mxu0 0.0
        %5644 = vmatpush.msra.mxu0 0.0
        %5645 = vmatpush.msra.mxu0 0.0
        %5646 = vmatpush.msra.mxu0 0.0
        %5647 = vmatpush.msra.mxu0 0.0
        %5648 = vmatpush.msra.mxu0 0.0
        %5649 = vmatpush.msra.mxu0 0.0
        %5650 = vmatpush.msra.mxu0 0.0
        %5651 = vmatpush.msra.mxu0 0.0
        %5652 = vmatpush.msra.mxu0 0.0
        %5653 = vmatpush.msra.mxu0 0.0
        %5654 = vmatpush.msra.mxu0 0.0
        %5655 = vmatpush.msra.mxu0 0.0
        %5656 = vmatpush.msra.mxu0 %v5589
        %5657 = vmatmul.f32.gmra.mxu0 %v5583
        %v5658 = vpop.f32.mrf.mxu0
        %v5659 = vadd.f32 0.0, %v5658
        %5660 = vdwg.mxu0
        %5661 = vmatpush.msra.mxu0 0.0
        %5662 = vmatpush.msra.mxu0 0.0
        %5663 = vmatpush.msra.mxu0 0.0
        %5664 = vmatpush.msra.mxu0 0.0
        %5665 = vmatpush.msra.mxu0 0.0
        %5666 = vmatpush.msra.mxu0 0.0
        %5667 = vmatpush.msra.mxu0 0.0
        %5668 = vmatpush.msra.mxu0 0.0
        %5669 = vmatpush.msra.mxu0 0.0
        %5670 = vmatpush.msra.mxu0 0.0
        %5671 = vmatpush.msra.mxu0 0.0
        %5672 = vmatpush.msra.mxu0 0.0
        %5673 = vmatpush.msra.mxu0 0.0
        %5674 = vmatpush.msra.mxu0 0.0
        %5675 = vmatpush.msra.mxu0 0.0
        %5676 = vmatpush.msra.mxu0 %v5591
        %5677 = vmatmul.f32.gmra.mxu0 %v5583
        %v5678 = vpop.f32.mrf.mxu0
        %v5679 = vadd.f32 0.0, %v5678
        %5680 = vdwg.mxu0
        %5681 = vmatpush.msra.mxu0 0.0
        %5682 = vmatpush.msra.mxu0 0.0
        %5683 = vmatpush.msra.mxu0 0.0
        %5684 = vmatpush.msra.mxu0 0.0
        %5685 = vmatpush.msra.mxu0 0.0
        %5686 = vmatpush.msra.mxu0 0.0
        %5687 = vmatpush.msra.mxu0 0.0
        %5688 = vmatpush.msra.mxu0 0.0
        %5689 = vmatpush.msra.mxu0 0.0
        %5690 = vmatpush.msra.mxu0 0.0
        %5691 = vmatpush.msra.mxu0 0.0
        %5692 = vmatpush.msra.mxu0 0.0
        %5693 = vmatpush.msra.mxu0 0.0
        %5694 = vmatpush.msra.mxu0 0.0
        %5695 = vmatpush.msra.mxu0 0.0
        %5696 = vmatpush.msra.mxu0 %v5593
        %5697 = vmatmul.f32.gmra.mxu0 %v5583
        %v5698 = vpop.f32.mrf.mxu0
        %v5699 = vadd.f32 0.0, %v5698
        %5700 = vdwg.mxu0
        %5701 = vmatpush.msra.mxu0 0.0
        %5702 = vmatpush.msra.mxu0 0.0
        %5703 = vmatpush.msra.mxu0 0.0
        %5704 = vmatpush.msra.mxu0 0.0
        %5705 = vmatpush.msra.mxu0 0.0
        %5706 = vmatpush.msra.mxu0 0.0
        %5707 = vmatpush.msra.mxu0 0.0
        %5708 = vmatpush.msra.mxu0 0.0
        %5709 = vmatpush.msra.mxu0 0.0
        %5710 = vmatpush.msra.mxu0 0.0
        %5711 = vmatpush.msra.mxu0 0.0
        %5712 = vmatpush.msra.mxu0 0.0
        %5713 = vmatpush.msra.mxu0 0.0
        %5714 = vmatpush.msra.mxu0 0.0
        %5715 = vmatpush.msra.mxu0 0.0
        %5716 = vmatpush.msra.mxu0 %v5595
        %5717 = vmatmul.f32.gmra.mxu0 %v5583
        %v5718 = vpop.f32.mrf.mxu0
        %v5719 = vadd.f32 0.0, %v5718
        %5720 = vdwg.mxu0
        %5721 = vmatpush.msra.mxu0 0.0
        %5722 = vmatpush.msra.mxu0 0.0
        %5723 = vmatpush.msra.mxu0 0.0
        %5724 = vmatpush.msra.mxu0 0.0
        %5725 = vmatpush.msra.mxu0 0.0
        %5726 = vmatpush.msra.mxu0 0.0
        %5727 = vmatpush.msra.mxu0 0.0
        %5728 = vmatpush.msra.mxu0 0.0
        %5729 = vmatpush.msra.mxu0 0.0
        %5730 = vmatpush.msra.mxu0 0.0
        %5731 = vmatpush.msra.mxu0 0.0
        %5732 = vmatpush.msra.mxu0 0.0
        %5733 = vmatpush.msra.mxu0 0.0
        %5734 = vmatpush.msra.mxu0 0.0
        %5735 = vmatpush.msra.mxu0 0.0
        %5736 = vmatpush.msra.mxu0 %v5597
        %5737 = vmatmul.f32.gmra.mxu0 %v5583
        %v5738 = vpop.f32.mrf.mxu0
        %v5739 = vadd.f32 0.0, %v5738
        %5740 = vdwg.mxu0
        %5741 = vmatpush.msra.mxu0 0.0
        %5742 = vmatpush.msra.mxu0 0.0
        %5743 = vmatpush.msra.mxu0 0.0
        %5744 = vmatpush.msra.mxu0 0.0
        %5745 = vmatpush.msra.mxu0 0.0
        %5746 = vmatpush.msra.mxu0 0.0
        %5747 = vmatpush.msra.mxu0 0.0
        %5748 = vmatpush.msra.mxu0 0.0
        %5749 = vmatpush.msra.mxu0 0.0
        %5750 = vmatpush.msra.mxu0 0.0
        %5751 = vmatpush.msra.mxu0 0.0
        %5752 = vmatpush.msra.mxu0 0.0
        %5753 = vmatpush.msra.mxu0 0.0
        %5754 = vmatpush.msra.mxu0 0.0
        %5755 = vmatpush.msra.mxu0 0.0
        %5756 = vmatpush.msra.mxu0 %v5599
        %5757 = vmatmul.f32.gmra.mxu0 %v5583
        %v5758 = vpop.f32.mrf.mxu0
        %v5759 = vadd.f32 0.0, %v5758
        %5760 = vdwg.mxu0
        %v5761 = vadd.f32 %v5528, %v5619
        %v5762 = vadd.f32 %v5529, %v5639
        %v5763 = vadd.f32 %v5530, %v5659
        %v5764 = vadd.f32 %v5531, %v5679
        %v5765 = vadd.f32 %v5532, %v5699
        %v5766 = vadd.f32 %v5533, %v5719
        %v5767 = vadd.f32 %v5534, %v5739
        %v5768 = vadd.f32 %v5535, %v5759
        %s5769 = scalar_lea.vmem %s1, 192
        %v5770 = vld [vmem:[%s5769] sm:$0xff]
        %5771 = vst [vmem:[#allocation1] ss:$2 sm:$0xff] %v242
        %s5772 = scalar_lea.vmem [#allocation1], 16
        %5773 = vst [vmem:[%s5772] ss:$2 sm:$0xff] %v243
        %s5774 = scalar_lea.vmem [#allocation1], 32
        %5775 = vst [vmem:[%s5774] ss:$2 sm:$0xff] %v244
        %s5776 = scalar_lea.vmem [#allocation1], 48
        %5777 = vst [vmem:[%s5776] ss:$2 sm:$0xff] %v245
        %v5778 = vld.sshfl [vmem:[#allocation1 + $0x8] sm:$0xff pattern:$0x75316420]
        %v5779 = vld.sshfl [vmem:[#allocation1 + $0x10] sm:$0xff pattern:$0x75316420]
        %v5780 = vld.sshfl [vmem:[#allocation1 + $0x18] sm:$0xff pattern:$0x75316420]
        %v5781 = vld.sshfl [vmem:[#allocation1 + $0x20] sm:$0xff pattern:$0x75316420]
        %v5782 = vld.sshfl [vmem:[#allocation1 + $0x28] sm:$0xff pattern:$0x75316420]
        %v5783 = vld.sshfl [vmem:[#allocation1 + $0x30] sm:$0xff pattern:$0x75316420]
        %v5784 = vld.sshfl [vmem:[#allocation1 + $0x38] sm:$0xff pattern:$0x75316420]
        %5785 = vst [vmem:[#allocation1] ss:$2 sm:$0xff] %v246
        %v5786 = vld.sshfl [vmem:[#allocation1] sm:$0xff pattern:$0x75316420]
        %v5787 = vld.sshfl [vmem:[#allocation1 + $0x8] sm:$0xff pattern:$0x75316420]
        %5788 = vrot.lane.b32.xlu0 %v5778, 19
        %v5789 = vpop.permute.xlu0 %5788
        %5790 = vrot.lane.b32.xlu0 %v5779, 19
        %v5791 = vpop.permute.xlu0 %5790
        %5792 = vrot.lane.b32.xlu0 %v5780, 19
        %v5793 = vpop.permute.xlu0 %5792
        %5794 = vrot.lane.b32.xlu0 %v5781, 19
        %v5795 = vpop.permute.xlu0 %5794
        %5796 = vrot.lane.b32.xlu0 %v5782, 19
        %v5797 = vpop.permute.xlu0 %5796
        %5798 = vrot.lane.b32.xlu0 %v5783, 19
        %v5799 = vpop.permute.xlu0 %5798
        %5800 = vrot.lane.b32.xlu0 %v5784, 19
        %v5801 = vpop.permute.xlu0 %5800
        %5802 = vrot.lane.b32.xlu0 %v5786, 19
        %v5803 = vpop.permute.xlu0 %5802
        %5804 = vrot.lane.b32.xlu0 %v5787, 19
        %v5805 = vpop.permute.xlu0 %5804
        %vm5806 = vcmask 154624
        %v5807 = vsel %vm5806, %v5789, %v5791
        %v5808 = vsel %vm5806, %v5791, %v5793
        %v5809 = vsel %vm5806, %v5793, %v5795
        %v5810 = vsel %vm5806, %v5795, %v5797
        %v5811 = vsel %vm5806, %v5797, %v5799
        %v5812 = vsel %vm5806, %v5799, %v5801
        %v5813 = vsel %vm5806, %v5801, %v5803
        %v5814 = vsel %vm5806, %v5803, %v5805
        %v5816 = vsel %vm299, %v5770, 0
        %v5818 = vsel %vm303, %v5807, 0
        %v5820 = vsel %vm303, %v5808, 0
        %v5822 = vsel %vm303, %v5809, 0
        %v5824 = vsel %vm303, %v5810, 0
        %v5826 = vsel %vm303, %v5811, 0
        %v5828 = vsel %vm303, %v5812, 0
        %v5830 = vsel %vm303, %v5813, 0
        %v5832 = vsel %vm303, %v5814, 0
        %5834 = vmatpush.msra.mxu0 0.0
        %5835 = vmatpush.msra.mxu0 0.0
        %5836 = vmatpush.msra.mxu0 0.0
        %5837 = vmatpush.msra.mxu0 0.0
        %5838 = vmatpush.msra.mxu0 0.0
        %5839 = vmatpush.msra.mxu0 0.0
        %5840 = vmatpush.msra.mxu0 0.0
        %5841 = vmatpush.msra.mxu0 0.0
        %5842 = vmatpush.msra.mxu0 0.0
        %5843 = vmatpush.msra.mxu0 0.0
        %5844 = vmatpush.msra.mxu0 0.0
        %5845 = vmatpush.msra.mxu0 0.0
        %5846 = vmatpush.msra.mxu0 0.0
        %5847 = vmatpush.msra.mxu0 0.0
        %5848 = vmatpush.msra.mxu0 0.0
        %5849 = vmatpush.msra.mxu0 %v5818
        %5850 = vmatmul.f32.gmra.mxu0 %v5816
        %v5851 = vpop.f32.mrf.mxu0
        %v5852 = vadd.f32 0.0, %v5851
        %5853 = vdwg.mxu0
        %5854 = vmatpush.msra.mxu0 0.0
        %5855 = vmatpush.msra.mxu0 0.0
        %5856 = vmatpush.msra.mxu0 0.0
        %5857 = vmatpush.msra.mxu0 0.0
        %5858 = vmatpush.msra.mxu0 0.0
        %5859 = vmatpush.msra.mxu0 0.0
        %5860 = vmatpush.msra.mxu0 0.0
        %5861 = vmatpush.msra.mxu0 0.0
        %5862 = vmatpush.msra.mxu0 0.0
        %5863 = vmatpush.msra.mxu0 0.0
        %5864 = vmatpush.msra.mxu0 0.0
        %5865 = vmatpush.msra.mxu0 0.0
        %5866 = vmatpush.msra.mxu0 0.0
        %5867 = vmatpush.msra.mxu0 0.0
        %5868 = vmatpush.msra.mxu0 0.0
        %5869 = vmatpush.msra.mxu0 %v5820
        %5870 = vmatmul.f32.gmra.mxu0 %v5816
        %v5871 = vpop.f32.mrf.mxu0
        %v5872 = vadd.f32 0.0, %v5871
        %5873 = vdwg.mxu0
        %5874 = vmatpush.msra.mxu0 0.0
        %5875 = vmatpush.msra.mxu0 0.0
        %5876 = vmatpush.msra.mxu0 0.0
        %5877 = vmatpush.msra.mxu0 0.0
        %5878 = vmatpush.msra.mxu0 0.0
        %5879 = vmatpush.msra.mxu0 0.0
        %5880 = vmatpush.msra.mxu0 0.0
        %5881 = vmatpush.msra.mxu0 0.0
        %5882 = vmatpush.msra.mxu0 0.0
        %5883 = vmatpush.msra.mxu0 0.0
        %5884 = vmatpush.msra.mxu0 0.0
        %5885 = vmatpush.msra.mxu0 0.0
        %5886 = vmatpush.msra.mxu0 0.0
        %5887 = vmatpush.msra.mxu0 0.0
        %5888 = vmatpush.msra.mxu0 0.0
        %5889 = vmatpush.msra.mxu0 %v5822
        %5890 = vmatmul.f32.gmra.mxu0 %v5816
        %v5891 = vpop.f32.mrf.mxu0
        %v5892 = vadd.f32 0.0, %v5891
        %5893 = vdwg.mxu0
        %5894 = vmatpush.msra.mxu0 0.0
        %5895 = vmatpush.msra.mxu0 0.0
        %5896 = vmatpush.msra.mxu0 0.0
        %5897 = vmatpush.msra.mxu0 0.0
        %5898 = vmatpush.msra.mxu0 0.0
        %5899 = vmatpush.msra.mxu0 0.0
        %5900 = vmatpush.msra.mxu0 0.0
        %5901 = vmatpush.msra.mxu0 0.0
        %5902 = vmatpush.msra.mxu0 0.0
        %5903 = vmatpush.msra.mxu0 0.0
        %5904 = vmatpush.msra.mxu0 0.0
        %5905 = vmatpush.msra.mxu0 0.0
        %5906 = vmatpush.msra.mxu0 0.0
        %5907 = vmatpush.msra.mxu0 0.0
        %5908 = vmatpush.msra.mxu0 0.0
        %5909 = vmatpush.msra.mxu0 %v5824
        %5910 = vmatmul.f32.gmra.mxu0 %v5816
        %v5911 = vpop.f32.mrf.mxu0
        %v5912 = vadd.f32 0.0, %v5911
        %5913 = vdwg.mxu0
        %5914 = vmatpush.msra.mxu0 0.0
        %5915 = vmatpush.msra.mxu0 0.0
        %5916 = vmatpush.msra.mxu0 0.0
        %5917 = vmatpush.msra.mxu0 0.0
        %5918 = vmatpush.msra.mxu0 0.0
        %5919 = vmatpush.msra.mxu0 0.0
        %5920 = vmatpush.msra.mxu0 0.0
        %5921 = vmatpush.msra.mxu0 0.0
        %5922 = vmatpush.msra.mxu0 0.0
        %5923 = vmatpush.msra.mxu0 0.0
        %5924 = vmatpush.msra.mxu0 0.0
        %5925 = vmatpush.msra.mxu0 0.0
        %5926 = vmatpush.msra.mxu0 0.0
        %5927 = vmatpush.msra.mxu0 0.0
        %5928 = vmatpush.msra.mxu0 0.0
        %5929 = vmatpush.msra.mxu0 %v5826
        %5930 = vmatmul.f32.gmra.mxu0 %v5816
        %v5931 = vpop.f32.mrf.mxu0
        %v5932 = vadd.f32 0.0, %v5931
        %5933 = vdwg.mxu0
        %5934 = vmatpush.msra.mxu0 0.0
        %5935 = vmatpush.msra.mxu0 0.0
        %5936 = vmatpush.msra.mxu0 0.0
        %5937 = vmatpush.msra.mxu0 0.0
        %5938 = vmatpush.msra.mxu0 0.0
        %5939 = vmatpush.msra.mxu0 0.0
        %5940 = vmatpush.msra.mxu0 0.0
        %5941 = vmatpush.msra.mxu0 0.0
        %5942 = vmatpush.msra.mxu0 0.0
        %5943 = vmatpush.msra.mxu0 0.0
        %5944 = vmatpush.msra.mxu0 0.0
        %5945 = vmatpush.msra.mxu0 0.0
        %5946 = vmatpush.msra.mxu0 0.0
        %5947 = vmatpush.msra.mxu0 0.0
        %5948 = vmatpush.msra.mxu0 0.0
        %5949 = vmatpush.msra.mxu0 %v5828
        %5950 = vmatmul.f32.gmra.mxu0 %v5816
        %v5951 = vpop.f32.mrf.mxu0
        %v5952 = vadd.f32 0.0, %v5951
        %5953 = vdwg.mxu0
        %5954 = vmatpush.msra.mxu0 0.0
        %5955 = vmatpush.msra.mxu0 0.0
        %5956 = vmatpush.msra.mxu0 0.0
        %5957 = vmatpush.msra.mxu0 0.0
        %5958 = vmatpush.msra.mxu0 0.0
        %5959 = vmatpush.msra.mxu0 0.0
        %5960 = vmatpush.msra.mxu0 0.0
        %5961 = vmatpush.msra.mxu0 0.0
        %5962 = vmatpush.msra.mxu0 0.0
        %5963 = vmatpush.msra.mxu0 0.0
        %5964 = vmatpush.msra.mxu0 0.0
        %5965 = vmatpush.msra.mxu0 0.0
        %5966 = vmatpush.msra.mxu0 0.0
        %5967 = vmatpush.msra.mxu0 0.0
        %5968 = vmatpush.msra.mxu0 0.0
        %5969 = vmatpush.msra.mxu0 %v5830
        %5970 = vmatmul.f32.gmra.mxu0 %v5816
        %v5971 = vpop.f32.mrf.mxu0
        %v5972 = vadd.f32 0.0, %v5971
        %5973 = vdwg.mxu0
        %5974 = vmatpush.msra.mxu0 0.0
        %5975 = vmatpush.msra.mxu0 0.0
        %5976 = vmatpush.msra.mxu0 0.0
        %5977 = vmatpush.msra.mxu0 0.0
        %5978 = vmatpush.msra.mxu0 0.0
        %5979 = vmatpush.msra.mxu0 0.0
        %5980 = vmatpush.msra.mxu0 0.0
        %5981 = vmatpush.msra.mxu0 0.0
        %5982 = vmatpush.msra.mxu0 0.0
        %5983 = vmatpush.msra.mxu0 0.0
        %5984 = vmatpush.msra.mxu0 0.0
        %5985 = vmatpush.msra.mxu0 0.0
        %5986 = vmatpush.msra.mxu0 0.0
        %5987 = vmatpush.msra.mxu0 0.0
        %5988 = vmatpush.msra.mxu0 0.0
        %5989 = vmatpush.msra.mxu0 %v5832
        %5990 = vmatmul.f32.gmra.mxu0 %v5816
        %v5991 = vpop.f32.mrf.mxu0
        %v5992 = vadd.f32 0.0, %v5991
        %5993 = vdwg.mxu0
        %v5994 = vadd.f32 %v5761, %v5852
        %v5995 = vadd.f32 %v5762, %v5872
        %v5996 = vadd.f32 %v5763, %v5892
        %v5997 = vadd.f32 %v5764, %v5912
        %v5998 = vadd.f32 %v5765, %v5932
        %v5999 = vadd.f32 %v5766, %v5952
        %v6000 = vadd.f32 %v5767, %v5972
        %v6001 = vadd.f32 %v5768, %v5992
        %s6002 = scalar_lea.vmem %s1, 200
        %v6003 = vld [vmem:[%s6002] sm:$0xff]
        %6004 = vst [vmem:[#allocation1] ss:$2 sm:$0xff] %v242
        %s6005 = scalar_lea.vmem [#allocation1], 16
        %6006 = vst [vmem:[%s6005] ss:$2 sm:$0xff] %v243
        %s6007 = scalar_lea.vmem [#allocation1], 32
        %6008 = vst [vmem:[%s6007] ss:$2 sm:$0xff] %v244
        %s6009 = scalar_lea.vmem [#allocation1], 48
        %6010 = vst [vmem:[%s6009] ss:$2 sm:$0xff] %v245
        %v6011 = vld.sshfl [vmem:[#allocation1 + $0x8] sm:$0xff pattern:$0x75316420]
        %v6012 = vld.sshfl [vmem:[#allocation1 + $0x10] sm:$0xff pattern:$0x75316420]
        %v6013 = vld.sshfl [vmem:[#allocation1 + $0x18] sm:$0xff pattern:$0x75316420]
        %v6014 = vld.sshfl [vmem:[#allocation1 + $0x20] sm:$0xff pattern:$0x75316420]
        %v6015 = vld.sshfl [vmem:[#allocation1 + $0x28] sm:$0xff pattern:$0x75316420]
        %v6016 = vld.sshfl [vmem:[#allocation1 + $0x30] sm:$0xff pattern:$0x75316420]
        %v6017 = vld.sshfl [vmem:[#allocation1 + $0x38] sm:$0xff pattern:$0x75316420]
        %6018 = vst [vmem:[#allocation1] ss:$2 sm:$0xff] %v246
        %v6019 = vld.sshfl [vmem:[#allocation1] sm:$0xff pattern:$0x75316420]
        %v6020 = vld.sshfl [vmem:[#allocation1 + $0x8] sm:$0xff pattern:$0x75316420]
        %6021 = vrot.lane.b32.xlu0 %v6011, 18
        %v6022 = vpop.permute.xlu0 %6021
        %6023 = vrot.lane.b32.xlu0 %v6012, 18
        %v6024 = vpop.permute.xlu0 %6023
        %6025 = vrot.lane.b32.xlu0 %v6013, 18
        %v6026 = vpop.permute.xlu0 %6025
        %6027 = vrot.lane.b32.xlu0 %v6014, 18
        %v6028 = vpop.permute.xlu0 %6027
        %6029 = vrot.lane.b32.xlu0 %v6015, 18
        %v6030 = vpop.permute.xlu0 %6029
        %6031 = vrot.lane.b32.xlu0 %v6016, 18
        %v6032 = vpop.permute.xlu0 %6031
        %6033 = vrot.lane.b32.xlu0 %v6017, 18
        %v6034 = vpop.permute.xlu0 %6033
        %6035 = vrot.lane.b32.xlu0 %v6019, 18
        %v6036 = vpop.permute.xlu0 %6035
        %6037 = vrot.lane.b32.xlu0 %v6020, 18
        %v6038 = vpop.permute.xlu0 %6037
        %vm6039 = vcmask 146432
        %v6040 = vsel %vm6039, %v6022, %v6024
        %v6041 = vsel %vm6039, %v6024, %v6026
        %v6042 = vsel %vm6039, %v6026, %v6028
        %v6043 = vsel %vm6039, %v6028, %v6030
        %v6044 = vsel %vm6039, %v6030, %v6032
        %v6045 = vsel %vm6039, %v6032, %v6034
        %v6046 = vsel %vm6039, %v6034, %v6036
        %v6047 = vsel %vm6039, %v6036, %v6038
        %v6049 = vsel %vm299, %v6003, 0
        %v6051 = vsel %vm303, %v6040, 0
        %v6053 = vsel %vm303, %v6041, 0
        %v6055 = vsel %vm303, %v6042, 0
        %v6057 = vsel %vm303, %v6043, 0
        %v6059 = vsel %vm303, %v6044, 0
        %v6061 = vsel %vm303, %v6045, 0
        %v6063 = vsel %vm303, %v6046, 0
        %v6065 = vsel %vm303, %v6047, 0
        %6067 = vmatpush.msra.mxu0 0.0
        %6068 = vmatpush.msra.mxu0 0.0
        %6069 = vmatpush.msra.mxu0 0.0
        %6070 = vmatpush.msra.mxu0 0.0
        %6071 = vmatpush.msra.mxu0 0.0
        %6072 = vmatpush.msra.mxu0 0.0
        %6073 = vmatpush.msra.mxu0 0.0
        %6074 = vmatpush.msra.mxu0 0.0
        %6075 = vmatpush.msra.mxu0 0.0
        %6076 = vmatpush.msra.mxu0 0.0
        %6077 = vmatpush.msra.mxu0 0.0
        %6078 = vmatpush.msra.mxu0 0.0
        %6079 = vmatpush.msra.mxu0 0.0
        %6080 = vmatpush.msra.mxu0 0.0
        %6081 = vmatpush.msra.mxu0 0.0
        %6082 = vmatpush.msra.mxu0 %v6051
        %6083 = vmatmul.f32.gmra.mxu0 %v6049
        %v6084 = vpop.f32.mrf.mxu0
        %v6085 = vadd.f32 0.0, %v6084
        %6086 = vdwg.mxu0
        %6087 = vmatpush.msra.mxu0 0.0
        %6088 = vmatpush.msra.mxu0 0.0
        %6089 = vmatpush.msra.mxu0 0.0
        %6090 = vmatpush.msra.mxu0 0.0
        %6091 = vmatpush.msra.mxu0 0.0
        %6092 = vmatpush.msra.mxu0 0.0
        %6093 = vmatpush.msra.mxu0 0.0
        %6094 = vmatpush.msra.mxu0 0.0
        %6095 = vmatpush.msra.mxu0 0.0
        %6096 = vmatpush.msra.mxu0 0.0
        %6097 = vmatpush.msra.mxu0 0.0
        %6098 = vmatpush.msra.mxu0 0.0
        %6099 = vmatpush.msra.mxu0 0.0
        %6100 = vmatpush.msra.mxu0 0.0
        %6101 = vmatpush.msra.mxu0 0.0
        %6102 = vmatpush.msra.mxu0 %v6053
        %6103 = vmatmul.f32.gmra.mxu0 %v6049
        %v6104 = vpop.f32.mrf.mxu0
        %v6105 = vadd.f32 0.0, %v6104
        %6106 = vdwg.mxu0
        %6107 = vmatpush.msra.mxu0 0.0
        %6108 = vmatpush.msra.mxu0 0.0
        %6109 = vmatpush.msra.mxu0 0.0
        %6110 = vmatpush.msra.mxu0 0.0
        %6111 = vmatpush.msra.mxu0 0.0
        %6112 = vmatpush.msra.mxu0 0.0
        %6113 = vmatpush.msra.mxu0 0.0
        %6114 = vmatpush.msra.mxu0 0.0
        %6115 = vmatpush.msra.mxu0 0.0
        %6116 = vmatpush.msra.mxu0 0.0
        %6117 = vmatpush.msra.mxu0 0.0
        %6118 = vmatpush.msra.mxu0 0.0
        %6119 = vmatpush.msra.mxu0 0.0
        %6120 = vmatpush.msra.mxu0 0.0
        %6121 = vmatpush.msra.mxu0 0.0
        %6122 = vmatpush.msra.mxu0 %v6055
        %6123 = vmatmul.f32.gmra.mxu0 %v6049
        %v6124 = vpop.f32.mrf.mxu0
        %v6125 = vadd.f32 0.0, %v6124
        %6126 = vdwg.mxu0
        %6127 = vmatpush.msra.mxu0 0.0
        %6128 = vmatpush.msra.mxu0 0.0
        %6129 = vmatpush.msra.mxu0 0.0
        %6130 = vmatpush.msra.mxu0 0.0
        %6131 = vmatpush.msra.mxu0 0.0
        %6132 = vmatpush.msra.mxu0 0.0
        %6133 = vmatpush.msra.mxu0 0.0
        %6134 = vmatpush.msra.mxu0 0.0
        %6135 = vmatpush.msra.mxu0 0.0
        %6136 = vmatpush.msra.mxu0 0.0
        %6137 = vmatpush.msra.mxu0 0.0
        %6138 = vmatpush.msra.mxu0 0.0
        %6139 = vmatpush.msra.mxu0 0.0
        %6140 = vmatpush.msra.mxu0 0.0
        %6141 = vmatpush.msra.mxu0 0.0
        %6142 = vmatpush.msra.mxu0 %v6057
        %6143 = vmatmul.f32.gmra.mxu0 %v6049
        %v6144 = vpop.f32.mrf.mxu0
        %v6145 = vadd.f32 0.0, %v6144
        %6146 = vdwg.mxu0
        %6147 = vmatpush.msra.mxu0 0.0
        %6148 = vmatpush.msra.mxu0 0.0
        %6149 = vmatpush.msra.mxu0 0.0
        %6150 = vmatpush.msra.mxu0 0.0
        %6151 = vmatpush.msra.mxu0 0.0
        %6152 = vmatpush.msra.mxu0 0.0
        %6153 = vmatpush.msra.mxu0 0.0
        %6154 = vmatpush.msra.mxu0 0.0
        %6155 = vmatpush.msra.mxu0 0.0
        %6156 = vmatpush.msra.mxu0 0.0
        %6157 = vmatpush.msra.mxu0 0.0
        %6158 = vmatpush.msra.mxu0 0.0
        %6159 = vmatpush.msra.mxu0 0.0
        %6160 = vmatpush.msra.mxu0 0.0
        %6161 = vmatpush.msra.mxu0 0.0
        %6162 = vmatpush.msra.mxu0 %v6059
        %6163 = vmatmul.f32.gmra.mxu0 %v6049
        %v6164 = vpop.f32.mrf.mxu0
        %v6165 = vadd.f32 0.0, %v6164
        %6166 = vdwg.mxu0
        %6167 = vmatpush.msra.mxu0 0.0
        %6168 = vmatpush.msra.mxu0 0.0
        %6169 = vmatpush.msra.mxu0 0.0
        %6170 = vmatpush.msra.mxu0 0.0
        %6171 = vmatpush.msra.mxu0 0.0
        %6172 = vmatpush.msra.mxu0 0.0
        %6173 = vmatpush.msra.mxu0 0.0
        %6174 = vmatpush.msra.mxu0 0.0
        %6175 = vmatpush.msra.mxu0 0.0
        %6176 = vmatpush.msra.mxu0 0.0
        %6177 = vmatpush.msra.mxu0 0.0
        %6178 = vmatpush.msra.mxu0 0.0
        %6179 = vmatpush.msra.mxu0 0.0
        %6180 = vmatpush.msra.mxu0 0.0
        %6181 = vmatpush.msra.mxu0 0.0
        %6182 = vmatpush.msra.mxu0 %v6061
        %6183 = vmatmul.f32.gmra.mxu0 %v6049
        %v6184 = vpop.f32.mrf.mxu0
        %v6185 = vadd.f32 0.0, %v6184
        %6186 = vdwg.mxu0
        %6187 = vmatpush.msra.mxu0 0.0
        %6188 = vmatpush.msra.mxu0 0.0
        %6189 = vmatpush.msra.mxu0 0.0
        %6190 = vmatpush.msra.mxu0 0.0
        %6191 = vmatpush.msra.mxu0 0.0
        %6192 = vmatpush.msra.mxu0 0.0
        %6193 = vmatpush.msra.mxu0 0.0
        %6194 = vmatpush.msra.mxu0 0.0
        %6195 = vmatpush.msra.mxu0 0.0
        %6196 = vmatpush.msra.mxu0 0.0
        %6197 = vmatpush.msra.mxu0 0.0
        %6198 = vmatpush.msra.mxu0 0.0
        %6199 = vmatpush.msra.mxu0 0.0
        %6200 = vmatpush.msra.mxu0 0.0
        %6201 = vmatpush.msra.mxu0 0.0
        %6202 = vmatpush.msra.mxu0 %v6063
        %6203 = vmatmul.f32.gmra.mxu0 %v6049
        %v6204 = vpop.f32.mrf.mxu0
        %v6205 = vadd.f32 0.0, %v6204
        %6206 = vdwg.mxu0
        %6207 = vmatpush.msra.mxu0 0.0
        %6208 = vmatpush.msra.mxu0 0.0
        %6209 = vmatpush.msra.mxu0 0.0
        %6210 = vmatpush.msra.mxu0 0.0
        %6211 = vmatpush.msra.mxu0 0.0
        %6212 = vmatpush.msra.mxu0 0.0
        %6213 = vmatpush.msra.mxu0 0.0
        %6214 = vmatpush.msra.mxu0 0.0
        %6215 = vmatpush.msra.mxu0 0.0
        %6216 = vmatpush.msra.mxu0 0.0
        %6217 = vmatpush.msra.mxu0 0.0
        %6218 = vmatpush.msra.mxu0 0.0
        %6219 = vmatpush.msra.mxu0 0.0
        %6220 = vmatpush.msra.mxu0 0.0
        %6221 = vmatpush.msra.mxu0 0.0
        %6222 = vmatpush.msra.mxu0 %v6065
        %6223 = vmatmul.f32.gmra.mxu0 %v6049
        %v6224 = vpop.f32.mrf.mxu0
        %v6225 = vadd.f32 0.0, %v6224
        %6226 = vdwg.mxu0
        %v6227 = vadd.f32 %v5994, %v6085
        %v6228 = vadd.f32 %v5995, %v6105
        %v6229 = vadd.f32 %v5996, %v6125
        %v6230 = vadd.f32 %v5997, %v6145
        %v6231 = vadd.f32 %v5998, %v6165
        %v6232 = vadd.f32 %v5999, %v6185
        %v6233 = vadd.f32 %v6000, %v6205
        %v6234 = vadd.f32 %v6001, %v6225
        %s6235 = scalar_lea.vmem %s1, 208
        %v6236 = vld [vmem:[%s6235] sm:$0xff]
        %6237 = vst [vmem:[#allocation1] ss:$2 sm:$0xff] %v242
        %s6238 = scalar_lea.vmem [#allocation1], 16
        %6239 = vst [vmem:[%s6238] ss:$2 sm:$0xff] %v243
        %s6240 = scalar_lea.vmem [#allocation1], 32
        %6241 = vst [vmem:[%s6240] ss:$2 sm:$0xff] %v244
        %s6242 = scalar_lea.vmem [#allocation1], 48
        %6243 = vst [vmem:[%s6242] ss:$2 sm:$0xff] %v245
        %v6244 = vld.sshfl [vmem:[#allocation1 + $0x8] sm:$0xff pattern:$0x75316420]
        %v6245 = vld.sshfl [vmem:[#allocation1 + $0x10] sm:$0xff pattern:$0x75316420]
        %v6246 = vld.sshfl [vmem:[#allocation1 + $0x18] sm:$0xff pattern:$0x75316420]
        %v6247 = vld.sshfl [vmem:[#allocation1 + $0x20] sm:$0xff pattern:$0x75316420]
        %v6248 = vld.sshfl [vmem:[#allocation1 + $0x28] sm:$0xff pattern:$0x75316420]
        %v6249 = vld.sshfl [vmem:[#allocation1 + $0x30] sm:$0xff pattern:$0x75316420]
        %v6250 = vld.sshfl [vmem:[#allocation1 + $0x38] sm:$0xff pattern:$0x75316420]
        %6251 = vst [vmem:[#allocation1] ss:$2 sm:$0xff] %v246
        %v6252 = vld.sshfl [vmem:[#allocation1] sm:$0xff pattern:$0x75316420]
        %v6253 = vld.sshfl [vmem:[#allocation1 + $0x8] sm:$0xff pattern:$0x75316420]
        %6254 = vrot.lane.b32.xlu0 %v6244, 17
        %v6255 = vpop.permute.xlu0 %6254
        %6256 = vrot.lane.b32.xlu0 %v6245, 17
        %v6257 = vpop.permute.xlu0 %6256
        %6258 = vrot.lane.b32.xlu0 %v6246, 17
        %v6259 = vpop.permute.xlu0 %6258
        %6260 = vrot.lane.b32.xlu0 %v6247, 17
        %v6261 = vpop.permute.xlu0 %6260
        %6262 = vrot.lane.b32.xlu0 %v6248, 17
        %v6263 = vpop.permute.xlu0 %6262
        %6264 = vrot.lane.b32.xlu0 %v6249, 17
        %v6265 = vpop.permute.xlu0 %6264
        %6266 = vrot.lane.b32.xlu0 %v6250, 17
        %v6267 = vpop.permute.xlu0 %6266
        %6268 = vrot.lane.b32.xlu0 %v6252, 17
        %v6269 = vpop.permute.xlu0 %6268
        %6270 = vrot.lane.b32.xlu0 %v6253, 17
        %v6271 = vpop.permute.xlu0 %6270
        %vm6272 = vcmask 138240
        %v6273 = vsel %vm6272, %v6255, %v6257
        %v6274 = vsel %vm6272, %v6257, %v6259
        %v6275 = vsel %vm6272, %v6259, %v6261
        %v6276 = vsel %vm6272, %v6261, %v6263
        %v6277 = vsel %vm6272, %v6263, %v6265
        %v6278 = vsel %vm6272, %v6265, %v6267
        %v6279 = vsel %vm6272, %v6267, %v6269
        %v6280 = vsel %vm6272, %v6269, %v6271
        %v6282 = vsel %vm299, %v6236, 0
        %v6284 = vsel %vm303, %v6273, 0
        %v6286 = vsel %vm303, %v6274, 0
        %v6288 = vsel %vm303, %v6275, 0
        %v6290 = vsel %vm303, %v6276, 0
        %v6292 = vsel %vm303, %v6277, 0
        %v6294 = vsel %vm303, %v6278, 0
        %v6296 = vsel %vm303, %v6279, 0
        %v6298 = vsel %vm303, %v6280, 0
        %6300 = vmatpush.msra.mxu0 0.0
        %6301 = vmatpush.msra.mxu0 0.0
        %6302 = vmatpush.msra.mxu0 0.0
        %6303 = vmatpush.msra.mxu0 0.0
        %6304 = vmatpush.msra.mxu0 0.0
        %6305 = vmatpush.msra.mxu0 0.0
        %6306 = vmatpush.msra.mxu0 0.0
        %6307 = vmatpush.msra.mxu0 0.0
        %6308 = vmatpush.msra.mxu0 0.0
        %6309 = vmatpush.msra.mxu0 0.0
        %6310 = vmatpush.msra.mxu0 0.0
        %6311 = vmatpush.msra.mxu0 0.0
        %6312 = vmatpush.msra.mxu0 0.0
        %6313 = vmatpush.msra.mxu0 0.0
        %6314 = vmatpush.msra.mxu0 0.0
        %6315 = vmatpush.msra.mxu0 %v6284
        %6316 = vmatmul.f32.gmra.mxu0 %v6282
        %v6317 = vpop.f32.mrf.mxu0
        %v6318 = vadd.f32 0.0, %v6317
        %6319 = vdwg.mxu0
        %6320 = vmatpush.msra.mxu0 0.0
        %6321 = vmatpush.msra.mxu0 0.0
        %6322 = vmatpush.msra.mxu0 0.0
        %6323 = vmatpush.msra.mxu0 0.0
        %6324 = vmatpush.msra.mxu0 0.0
        %6325 = vmatpush.msra.mxu0 0.0
        %6326 = vmatpush.msra.mxu0 0.0
        %6327 = vmatpush.msra.mxu0 0.0
        %6328 = vmatpush.msra.mxu0 0.0
        %6329 = vmatpush.msra.mxu0 0.0
        %6330 = vmatpush.msra.mxu0 0.0
        %6331 = vmatpush.msra.mxu0 0.0
        %6332 = vmatpush.msra.mxu0 0.0
        %6333 = vmatpush.msra.mxu0 0.0
        %6334 = vmatpush.msra.mxu0 0.0
        %6335 = vmatpush.msra.mxu0 %v6286
        %6336 = vmatmul.f32.gmra.mxu0 %v6282
        %v6337 = vpop.f32.mrf.mxu0
        %v6338 = vadd.f32 0.0, %v6337
        %6339 = vdwg.mxu0
        %6340 = vmatpush.msra.mxu0 0.0
        %6341 = vmatpush.msra.mxu0 0.0
        %6342 = vmatpush.msra.mxu0 0.0
        %6343 = vmatpush.msra.mxu0 0.0
        %6344 = vmatpush.msra.mxu0 0.0
        %6345 = vmatpush.msra.mxu0 0.0
        %6346 = vmatpush.msra.mxu0 0.0
        %6347 = vmatpush.msra.mxu0 0.0
        %6348 = vmatpush.msra.mxu0 0.0
        %6349 = vmatpush.msra.mxu0 0.0
        %6350 = vmatpush.msra.mxu0 0.0
        %6351 = vmatpush.msra.mxu0 0.0
        %6352 = vmatpush.msra.mxu0 0.0
        %6353 = vmatpush.msra.mxu0 0.0
        %6354 = vmatpush.msra.mxu0 0.0
        %6355 = vmatpush.msra.mxu0 %v6288
        %6356 = vmatmul.f32.gmra.mxu0 %v6282
        %v6357 = vpop.f32.mrf.mxu0
        %v6358 = vadd.f32 0.0, %v6357
        %6359 = vdwg.mxu0
        %6360 = vmatpush.msra.mxu0 0.0
        %6361 = vmatpush.msra.mxu0 0.0
        %6362 = vmatpush.msra.mxu0 0.0
        %6363 = vmatpush.msra.mxu0 0.0
        %6364 = vmatpush.msra.mxu0 0.0
        %6365 = vmatpush.msra.mxu0 0.0
        %6366 = vmatpush.msra.mxu0 0.0
        %6367 = vmatpush.msra.mxu0 0.0
        %6368 = vmatpush.msra.mxu0 0.0
        %6369 = vmatpush.msra.mxu0 0.0
        %6370 = vmatpush.msra.mxu0 0.0
        %6371 = vmatpush.msra.mxu0 0.0
        %6372 = vmatpush.msra.mxu0 0.0
        %6373 = vmatpush.msra.mxu0 0.0
        %6374 = vmatpush.msra.mxu0 0.0
        %6375 = vmatpush.msra.mxu0 %v6290
        %6376 = vmatmul.f32.gmra.mxu0 %v6282
        %v6377 = vpop.f32.mrf.mxu0
        %v6378 = vadd.f32 0.0, %v6377
        %6379 = vdwg.mxu0
        %6380 = vmatpush.msra.mxu0 0.0
        %6381 = vmatpush.msra.mxu0 0.0
        %6382 = vmatpush.msra.mxu0 0.0
        %6383 = vmatpush.msra.mxu0 0.0
        %6384 = vmatpush.msra.mxu0 0.0
        %6385 = vmatpush.msra.mxu0 0.0
        %6386 = vmatpush.msra.mxu0 0.0
        %6387 = vmatpush.msra.mxu0 0.0
        %6388 = vmatpush.msra.mxu0 0.0
        %6389 = vmatpush.msra.mxu0 0.0
        %6390 = vmatpush.msra.mxu0 0.0
        %6391 = vmatpush.msra.mxu0 0.0
        %6392 = vmatpush.msra.mxu0 0.0
        %6393 = vmatpush.msra.mxu0 0.0
        %6394 = vmatpush.msra.mxu0 0.0
        %6395 = vmatpush.msra.mxu0 %v6292
        %6396 = vmatmul.f32.gmra.mxu0 %v6282
        %v6397 = vpop.f32.mrf.mxu0
        %v6398 = vadd.f32 0.0, %v6397
        %6399 = vdwg.mxu0
        %6400 = vmatpush.msra.mxu0 0.0
        %6401 = vmatpush.msra.mxu0 0.0
        %6402 = vmatpush.msra.mxu0 0.0
        %6403 = vmatpush.msra.mxu0 0.0
        %6404 = vmatpush.msra.mxu0 0.0
        %6405 = vmatpush.msra.mxu0 0.0
        %6406 = vmatpush.msra.mxu0 0.0
        %6407 = vmatpush.msra.mxu0 0.0
        %6408 = vmatpush.msra.mxu0 0.0
        %6409 = vmatpush.msra.mxu0 0.0
        %6410 = vmatpush.msra.mxu0 0.0
        %6411 = vmatpush.msra.mxu0 0.0
        %6412 = vmatpush.msra.mxu0 0.0
        %6413 = vmatpush.msra.mxu0 0.0
        %6414 = vmatpush.msra.mxu0 0.0
        %6415 = vmatpush.msra.mxu0 %v6294
        %6416 = vmatmul.f32.gmra.mxu0 %v6282
        %v6417 = vpop.f32.mrf.mxu0
        %v6418 = vadd.f32 0.0, %v6417
        %6419 = vdwg.mxu0
        %6420 = vmatpush.msra.mxu0 0.0
        %6421 = vmatpush.msra.mxu0 0.0
        %6422 = vmatpush.msra.mxu0 0.0
        %6423 = vmatpush.msra.mxu0 0.0
        %6424 = vmatpush.msra.mxu0 0.0
        %6425 = vmatpush.msra.mxu0 0.0
        %6426 = vmatpush.msra.mxu0 0.0
        %6427 = vmatpush.msra.mxu0 0.0
        %6428 = vmatpush.msra.mxu0 0.0
        %6429 = vmatpush.msra.mxu0 0.0
        %6430 = vmatpush.msra.mxu0 0.0
        %6431 = vmatpush.msra.mxu0 0.0
        %6432 = vmatpush.msra.mxu0 0.0
        %6433 = vmatpush.msra.mxu0 0.0
        %6434 = vmatpush.msra.mxu0 0.0
        %6435 = vmatpush.msra.mxu0 %v6296
        %6436 = vmatmul.f32.gmra.mxu0 %v6282
        %v6437 = vpop.f32.mrf.mxu0
        %v6438 = vadd.f32 0.0, %v6437
        %6439 = vdwg.mxu0
        %6440 = vmatpush.msra.mxu0 0.0
        %6441 = vmatpush.msra.mxu0 0.0
        %6442 = vmatpush.msra.mxu0 0.0
        %6443 = vmatpush.msra.mxu0 0.0
        %6444 = vmatpush.msra.mxu0 0.0
        %6445 = vmatpush.msra.mxu0 0.0
        %6446 = vmatpush.msra.mxu0 0.0
        %6447 = vmatpush.msra.mxu0 0.0
        %6448 = vmatpush.msra.mxu0 0.0
        %6449 = vmatpush.msra.mxu0 0.0
        %6450 = vmatpush.msra.mxu0 0.0
        %6451 = vmatpush.msra.mxu0 0.0
        %6452 = vmatpush.msra.mxu0 0.0
        %6453 = vmatpush.msra.mxu0 0.0
        %6454 = vmatpush.msra.mxu0 0.0
        %6455 = vmatpush.msra.mxu0 %v6298
        %6456 = vmatmul.f32.gmra.mxu0 %v6282
        %v6457 = vpop.f32.mrf.mxu0
        %v6458 = vadd.f32 0.0, %v6457
        %6459 = vdwg.mxu0
        %v6460 = vadd.f32 %v6227, %v6318
        %v6461 = vadd.f32 %v6228, %v6338
        %v6462 = vadd.f32 %v6229, %v6358
        %v6463 = vadd.f32 %v6230, %v6378
        %v6464 = vadd.f32 %v6231, %v6398
        %v6465 = vadd.f32 %v6232, %v6418
        %v6466 = vadd.f32 %v6233, %v6438
        %v6467 = vadd.f32 %v6234, %v6458
        %v6468 = vadd.f32 %v2326, %v4379
        %v6469 = vadd.f32 %v2327, %v4380
        %v6470 = vadd.f32 %v2328, %v4381
        %v6471 = vadd.f32 %v2329, %v4382
        %v6472 = vadd.f32 %v2330, %v4383
        %v6473 = vadd.f32 %v2331, %v4384
        %v6474 = vadd.f32 %v2332, %v4385
        %v6475 = vadd.f32 %v2333, %v4386
        %v6476 = vadd.f32 %v6468, %v6460
        %v6477 = vadd.f32 %v6469, %v6461
        %v6478 = vadd.f32 %v6470, %v6462
        %v6479 = vadd.f32 %v6471, %v6463
        %v6480 = vadd.f32 %v6472, %v6464
        %v6481 = vadd.f32 %v6473, %v6465
        %v6482 = vadd.f32 %v6474, %v6466
        %v6483 = vadd.f32 %v6475, %v6467
        %v6484 = vld [vmem:[%s211] sm:$0xff]
        %v6486 = vperm.slane %v6484, 0
        %v6487 = vperm.slane %v6484, 1
        %v6488 = vperm.slane %v6484, 2
        %v6489 = vperm.slane %v6484, 3
        %v6490 = vperm.slane %v6484, 4
        %v6491 = vperm.slane %v6484, 5
        %v6492 = vperm.slane %v6484, 6
        %v6493 = vperm.slane %v6484, 7
        %v6502 = vmul.f32 %v6476, %v6486
        %v6503 = vmul.f32 %v6477, %v6487
        %v6504 = vmul.f32 %v6478, %v6488
        %v6505 = vmul.f32 %v6479, %v6489
        %v6506 = vmul.f32 %v6480, %v6490
        %v6507 = vmul.f32 %v6481, %v6491
        %v6508 = vmul.f32 %v6482, %v6492
        %v6509 = vmul.f32 %v6483, %v6493
        %v6510 = vld [vmem:[#allocation3] sm:$0xff]
        %v6511 = vadd.f32 %v6502, %v6503
        %v6512 = vadd.f32 %v6511, %v6504
        %v6513 = vadd.f32 %v6512, %v6505
        %v6514 = vadd.f32 %v6513, %v6506
        %v6515 = vadd.f32 %v6514, %v6507
        %v6516 = vadd.f32 %v6515, %v6508
        %v6517 = vadd.f32 %v6516, %v6509
        %6518 = vadd.xlane.f32.xlu0 %v6517
        %v6519 = vpop.xlane.xlu0 %6518
        %v6520 = vadd.f32 %v6510, %v6519
        %6521 = vst.msk [vmem:[#allocation3] sm:$0xff] %vm3054, %v6520
        %v6522 = vld [vmem:[#allocation4] sm:$0xff]
        %v6523 = vmul.f32 %v6502, %v6476
        %v6524 = vmul.f32 %v6503, %v6477
        %v6525 = vmul.f32 %v6504, %v6478
        %v6526 = vmul.f32 %v6505, %v6479
        %v6527 = vmul.f32 %v6506, %v6480
        %v6528 = vmul.f32 %v6507, %v6481
        %v6529 = vmul.f32 %v6508, %v6482
        %v6530 = vmul.f32 %v6509, %v6483
        %v6531 = vadd.f32 %v6523, %v6524
        %v6532 = vadd.f32 %v6531, %v6525
        %v6533 = vadd.f32 %v6532, %v6526
        %v6534 = vadd.f32 %v6533, %v6527
        %v6535 = vadd.f32 %v6534, %v6528
        %v6536 = vadd.f32 %v6535, %v6529
        %v6537 = vadd.f32 %v6536, %v6530
        %6538 = vadd.xlane.f32.xlu0 %v6537
        %v6539 = vpop.xlane.xlu0 %6538
        %v6540 = vadd.f32 %v6522, %v6539
        %6541 = vst.msk [vmem:[#allocation4] sm:$0xff] %vm3054, %v6540
        %s6542 = smul.addr %s238, 8
        %s6543 = scalar_lea.vmem [#allocation2], %s6542
        %6544 = vst [vmem:[%s6543] sm:$0xff] %v6476
        %6545 = vst [vmem:[%s6543 + $0x8] sm:$0xff] %v6477
        %6546 = vst [vmem:[%s6543 + $0x10] sm:$0xff] %v6478
        %6547 = vst [vmem:[%s6543 + $0x18] sm:$0xff] %v6479
        %6548 = vst [vmem:[%s6543 + $0x20] sm:$0xff] %v6480
        %6549 = vst [vmem:[%s6543 + $0x28] sm:$0xff] %v6481
        %6550 = vst [vmem:[%s6543 + $0x30] sm:$0xff] %v6482
        %6551 = vst [vmem:[%s6543 + $0x38] sm:$0xff] %v6483
      $region40: #{same_conv_forward.1} parent=31 // pred_fallthru
        _
      %p6552 = scmp.eq.s32.totalorder %s20, 1
      // Predicated region
      $region41: #{same_conv_forward.1} parent=31 // pred_check
        %p6553 = pneg %p6552
      $region42: #{same_conv_forward.1} parent=31 // pred_check_branch
        %6555 = sbr.rel (%p6553) target = $region44
      $region43: #{same_conv_forward.1} parent=31 // pred_region
        %s6556 = sshra.s32 %s225, 7
        %s6557 = sand.u32 %s225, 127
        %s6558 = smul.addr %s6556, 8
        %s6559 = scalar_lea.vmem [#allocation2], %s6558
        %v6560 = vld [vmem:[%s6559] sm:$0xff]
        %v6561 = vld [vmem:[%s6559 + $0x8] sm:$0xff]
        %v6562 = vld [vmem:[%s6559 + $0x10] sm:$0xff]
        %v6563 = vld [vmem:[%s6559 + $0x18] sm:$0xff]
        %v6564 = vld [vmem:[%s6559 + $0x20] sm:$0xff]
        %v6565 = vld [vmem:[%s6559 + $0x28] sm:$0xff]
        %v6566 = vld [vmem:[%s6559 + $0x30] sm:$0xff]
        %v6567 = vld [vmem:[%s6559 + $0x38] sm:$0xff]
        %v6568 = vld [vmem:[#allocation3] sm:$0xff]
        %v6569 = vmul.f32 %v6568, 0.001953125
        %v6570 = vld [vmem:[#allocation4] sm:$0xff]
        %v6571 = vmul.f32 %v6570, 0.001953125
        %v6572 = vmul.f32 %v6569, %v6569
        %v6573 = vsub.f32 %v6571, %v6572
        %v6574 = vadd.f32 %v6573, 1e-05
        %v6575 = vrsqrt.pop %v6574
        %v6576 = vmul.f32 %v6575, %v6574
        %v6577 = vmul.f32 %v6576, %v6575
        %v6578 = vmul.f32 0.5, %v6577
        %v6579 = vsub.f32 1.5, %v6578
        %v6580 = vmul.f32 %v6575, %v6579
        %vm6581 = vweird.f32 %v6574
        %vm6582 = vweird.f32 %v6575
        %vm6583 = vmor %vm6581, %vm6582
        %v6584 = vsel %vm6583, %v6575, %v6580
        %6586 = vset.pattern.permute.xlu0 0
        %6587 = vperm.xlu0 %6586, %v6569
        %v6588 = vpop.permute.xlu0 %6587
        %v6590 = vsub.f32 %v6560, %v6588
        %v6591 = vsub.f32 %v6561, %v6588
        %v6592 = vsub.f32 %v6562, %v6588
        %v6593 = vsub.f32 %v6563, %v6588
        %v6594 = vsub.f32 %v6564, %v6588
        %v6595 = vsub.f32 %v6565, %v6588
        %v6596 = vsub.f32 %v6566, %v6588
        %v6597 = vsub.f32 %v6567, %v6588
        %6599 = vset.pattern.permute.xlu0 0
        %6600 = vperm.xlu0 %6599, %v6584
        %v6601 = vpop.permute.xlu0 %6600
        %v6603 = vmul.f32 %v6590, %v6601
        %v6604 = vmul.f32 %v6591, %v6601
        %v6605 = vmul.f32 %v6592, %v6601
        %v6606 = vmul.f32 %v6593, %v6601
        %v6607 = vmul.f32 %v6594, %v6601
        %v6608 = vmul.f32 %v6595, %v6601
        %v6609 = vmul.f32 %v6596, %v6601
        %v6610 = vmul.f32 %v6597, %v6601
        %v6611 = vmax.f32 %v6603, 0.0
        %v6612 = vmax.f32 %v6604, 0.0
        %v6613 = vmax.f32 %v6605, 0.0
        %v6614 = vmax.f32 %v6606, 0.0
        %v6615 = vmax.f32 %v6607, 0.0
        %v6616 = vmax.f32 %v6608, 0.0
        %v6617 = vmax.f32 %v6609, 0.0
        %v6618 = vmax.f32 %v6610, 0.0
        %6619 = vst [vmem:[%s222] sm:$0xff] %v6611
        %6620 = vst [vmem:[%s222 + $0x8] sm:$0xff] %v6612
        %6621 = vst [vmem:[%s222 + $0x10] sm:$0xff] %v6613
        %6622 = vst [vmem:[%s222 + $0x18] sm:$0xff] %v6614
        %6623 = vst [vmem:[%s222 + $0x20] sm:$0xff] %v6615
        %6624 = vst [vmem:[%s222 + $0x28] sm:$0xff] %v6616
        %6625 = vst [vmem:[%s222 + $0x30] sm:$0xff] %v6617
        %6626 = vst [vmem:[%s222 + $0x38] sm:$0xff] %v6618
      $region44: #{same_conv_forward.1} parent=31 // pred_fallthru
        _
      %s6627 = smul.u32 %s21, %s20
      %s6628 = smul.u32 8, %s6627
      %p6629 = scmp.lt.s32.totalorder %s19, 1
      %s6630 = scalar_select %p6629, %s19, 1
      %p6631 = scmp.lt.s32.totalorder %s6628, 7
      %s6632 = scalar_select %p6631, %s6628, 7
      %s6633 = smul.addr %s6630, 8
      %s6634 = sadd.s32 %s6632, %s6633
      %s6635 = smul.addr %s6634, 8
      %s6636 = scalar_lea.vmem %s3, %s6635
      // Predicated region
      $region45: #{same_conv_forward.1} parent=31 // pred_check
        %p6637 = pneg %p128
      $region46: #{same_conv_forward.1} parent=31 // pred_check_branch
        %6639 = sbr.rel (%p6637) target = $region48
      $region47: #{same_conv_forward.1} parent=31 // pred_region
        %s6640 = smul.u32 %s21, %s20
        %s6641 = smul.u32 8, %s6640
      $region48: #{same_conv_forward.1} parent=31 // pred_fallthru
        _
    $region32: #{same_conv_forward.1} parent=5 // pred_fallthru
      _
    %p6642 = scmp.le.s32.totalorder 2, %s9
    // Predicated region
    $region49: #{same_conv_forward.1} parent=5 // pred_check
      %p6643 = pneg %p6642
    $region50: #{same_conv_forward.1} parent=5 // pred_check_branch
      %6645 = sbr.rel (%p6643) target = $region52
    $region51: #{same_conv_forward.1} parent=5 // pred_region
      %s6646 = ssub.s32 %s9, 2
      // Predicated region
      $region53: #{same_conv_forward.1} parent=51 // pred_check
        %p6647 = pneg %p134
      $region54: #{same_conv_forward.1} parent=51 // pred_check_branch
        %6649 = sbr.rel (%p6647) target = $region56
      $region55: #{same_conv_forward.1} parent=51 // pred_region
        %s6650 = smul.u32 %s24, %s23
        %s6651 = smul.u32 8, %s6650
        %p6652 = scmp.lt.s32.totalorder %s22, 1
        %s6653 = scalar_select %p6652, %s22, 1
        %p6654 = scmp.lt.s32.totalorder %s6651, 7
        %s6655 = scalar_select %p6654, %s6651, 7
        %s6656 = smul.addr %s6653, 8
        %s6657 = sadd.s32 %s6655, %s6656
        %s6658 = smul.addr %s6657, 8
        %s6659 = scalar_lea.vmem %s3, %s6658
      $region56: #{same_conv_forward.1} parent=51 // pred_fallthru
        _
    $region52: #{same_conv_forward.1} parent=5 // pred_fallthru
      _
  $region6: #{same_conv_forward.1} parent=0 // loop_footer
    %s13 = sadd.s32 1, %s9
  $region7: #{same_conv_forward.1} parent=0 // loop_footer_branch
    %8 = sbr.rel target = $region3
  $region8: #{same_conv_forward.1} parent=0 // loop_exit
    _

</llo_original>
